<compile_context>
chip_gen: v7x
topology: tpu7x:2x2x1
jax: 0.10.0
libtpu: 0.0.40
codegen_flags: <defaults>
</compile_context>

<pallas_src>
import functools
import math

import jax
import jax.numpy as jnp
from jax.experimental import pallas as pl
from jax.experimental.pallas import tpu as pltpu


# Set to jnp.bfloat16 on v6e/v7x to halve matmul DMA bytes (f32 accumulation is
# kept either way).  Default f32 to match the PyTorch reference numerics.
_MXU_DTYPE = jnp.float32

_CP = getattr(pltpu, "CompilerParams", None) or getattr(pltpu, "TPUCompilerParams", None)


def _cparams(n_axes):
    if _CP is None:
        return None
    return _CP(dimension_semantics=("parallel",) * n_axes)


def _wspec(shape):
    zeros = (0,) * len(shape)
    return pl.BlockSpec(shape, lambda *_: zeros)


def _mxdot(a, b):
    return jnp.dot(a.astype(_MXU_DTYPE), b.astype(_MXU_DTYPE),
                   preferred_element_type=jnp.float32)


# ---------------------------------------------------------------------------
# In-kernel helpers (trace-time Python; all ops are plain 2-D VPU/MXU ops)
# ---------------------------------------------------------------------------

def _tree_reduce(vals, op):
    vals = list(vals)
    while len(vals) > 1:
        nxt = [op(vals[i], vals[i + 1]) for i in range(0, len(vals) - 1, 2)]
        if len(vals) % 2:
            nxt.append(vals[-1])
        vals = nxt
    return vals[0]


def _shift_rows(x, off, fill=0.0):
    """result[s] = x[s + off] if 0 <= s + off < S else `fill` (row shift)."""
    S, C = x.shape
    if off == 0:
        return x
    if abs(off) >= S:
        return jnp.full_like(x, fill)
    pad = jnp.full((abs(off), C), fill, x.dtype)
    if off > 0:
        return jnp.concatenate([x[off:], pad], axis=0)
    return jnp.concatenate([pad, x[:off]], axis=0)


def _dw3x3_s1(y, wdw, bdw, H, W):
    """Depthwise 3x3, stride 1, pad 1, on a flattened (S=H*W, C) slab."""
    S = H * W
    w_col = jax.lax.broadcasted_iota(jnp.int32, (S, 1), 0) % W
    taps = []
    for dy in (-1, 0, 1):
        for dx in (-1, 0, 1):
            if dx != 0 and W < 2:
                continue                       # column always out of bounds
            off = dy * W + dx
            if off != 0 and abs(off) >= S:
                continue                       # tap fully shifted out -> zero
            k = (dy + 1) * 3 + (dx + 1)
            t = _shift_rows(y, off) * wdw[k:k + 1, :]
            if dx == -1:
                t = jnp.where(w_col >= 1, t, 0.0)
            elif dx == 1:
                t = jnp.where(w_col <= W - 2, t, 0.0)
            taps.append(t)
    return _tree_reduce(taps, jnp.add) + bdw


def _dw3x3_s2(plane, wdw, bdw, Ho, Wo):
    """Depthwise 3x3, stride 2, pad 1.  `plane(p)` returns the flattened
    (S2, C) parity plane p = 2*py + px of the (even-sized) input."""
    S2 = Ho * Wo
    o_col = jax.lax.broadcasted_iota(jnp.int32, (S2, 1), 0) % Wo
    taps = []
    for ky in range(3):
        py = 0 if ky == 1 else 1
        dy = -1 if ky == 0 else 0
        for kx in range(3):
            px = 0 if kx == 1 else 1
            dx = -1 if kx == 0 else 0
            if dx == -1 and Wo < 2:
                continue
            off = dy * Wo + dx
            if off != 0 and abs(off) >= S2:
                continue
            k = ky * 3 + kx
            t = _shift_rows(plane(2 * py + px), off) * wdw[k:k + 1, :]
            if dx == -1:
                t = jnp.where(o_col >= 1, t, 0.0)
            taps.append(t)
    return _tree_reduce(taps, jnp.add) + bdw


def _maxpool3x3_s2(plane, Ho, Wo):
    """3x3 max-pool, stride 2, pad 1, over the four parity planes."""
    S2 = Ho * Wo
    o_col = jax.lax.broadcasted_iota(jnp.int32, (S2, 1), 0) % Wo
    neg = -1e30
    taps = []
    for ky in range(3):
        py = 0 if ky == 1 else 1
        dy = -1 if ky == 0 else 0
        for kx in range(3):
            px = 0 if kx == 1 else 1
            dx = -1 if kx == 0 else 0
            if dx == -1 and Wo < 2:
                continue
            off = dy * Wo + dx
            if off != 0 and abs(off) >= S2:
                continue
            t = _shift_rows(plane(2 * py + px), off, fill=neg)
            if dx == -1:
                t = jnp.where(o_col >= 1, t, neg)
            taps.append(t)
    return _tree_reduce(taps, jnp.maximum)


# ---------------------------------------------------------------------------
# Pallas kernels
# ---------------------------------------------------------------------------

def _stem_kernel(p_ref, w_ref, b_ref, o_ref):
    # p: (1, ts, 27), w: (27, C0), b: (1, C0) -> o: (1, ts, C0)
    o_ref[0] = jnp.maximum(_mxdot(p_ref[0], w_ref[...]) + b_ref[...], 0.0)


def _maxpool_kernel(xp_ref, o_ref, *, Ho, Wo):
    # xp: (1, 4, S2, C) parity planes -> o: (1, S2, C)
    planes = [xp_ref[0, p] for p in range(4)]
    o_ref[0] = _maxpool3x3_s2(lambda p: planes[p], Ho, Wo)


def _block_s1_kernel(x2_ref, w1_ref, b1_ref, wdw_ref, bdw_ref, w2_ref, b2_ref,
                     ob_ref, *, H, W):
    # Fused branch2 of a stride-1 InvertedResidual: pw1 -> dw3x3 -> pw2.
    x2 = x2_ref[0]                                                   # (S, bf)
    y1 = jnp.maximum(_mxdot(x2, w1_ref[...]) + b1_ref[...], 0.0)     # (S, bf)
    z = _dw3x3_s1(y1, wdw_ref[...], bdw_ref[...], H, W)              # (S, bf)
    ob_ref[0] = jnp.maximum(_mxdot(z, w2_ref[...]) + b2_ref[...], 0.0)


def _block_s2_kernel(xp_ref, wdw1_ref, bdw1_ref, wpw1_ref, bpw1_ref,
                     wpw21_ref, bpw21_ref, wdw2_ref, bdw2_ref,
                     wpw22_ref, bpw22_ref, oa_ref, ob_ref, *, Ho, Wo):
    # Fused stride-2 InvertedResidual (both branches); input as 4 parity planes.
    planes = [xp_ref[0, p] for p in range(4)]

    # branch1: depthwise s2 on raw input, then 1x1 (scale folded) + ReLU
    z1 = _dw3x3_s2(lambda p: planes[p], wdw1_ref[...], bdw1_ref[...], Ho, Wo)
    oa_ref[0] = jnp.maximum(_mxdot(z1, wpw1_ref[...]) + bpw1_ref[...], 0.0)

    # branch2: 1x1 + ReLU (per parity plane), depthwise s2, 1x1 (scale folded) + ReLU
    y1 = [jnp.maximum(_mxdot(pp, wpw21_ref[...]) + bpw21_ref[...], 0.0)
          for pp in planes]
    z2 = _dw3x3_s2(lambda p: y1[p], wdw2_ref[...], bdw2_ref[...], Ho, Wo)
    ob_ref[0] = jnp.maximum(_mxdot(z2, wpw22_ref[...]) + bpw22_ref[...], 0.0)


def _head_kernel(x_ref, w5_ref, b5_ref, wfc_ref, o_ref):
    # conv5 (1x1, scale folded, ReLU) + global mean + fc, fused.
    y = jnp.maximum(_mxdot(x_ref[0], w5_ref[...]) + b5_ref[...], 0.0)  # (S, C5)
    m = jnp.mean(y, axis=0, keepdims=True)                             # (1, C5)
    o_ref[0] = _mxdot(m, wfc_ref[...])                                 # (1, ncls)


# ---------------------------------------------------------------------------
# Kernel wrappers (glue is pure data movement: pad / slice / stack / reshape)
# ---------------------------------------------------------------------------

def _parity_split(x, H, W):
    """(N, H*W, C) -> (N, 4, (H/2)*(W/2), C) parity planes, p = 2*py + px."""
    N, S, C = x.shape
    assert H % 2 == 0 and W % 2 == 0, "stride-2 ops require even spatial dims"
    xi = x.reshape(N, H, W, C)
    planes = [xi[:, py::2, px::2, :].reshape(N, (H // 2) * (W // 2), C)
              for py in (0, 1) for px in (0, 1)]
    return jnp.stack(planes, axis=1)


def stem_conv(x_nchw, q):
    """3x3 conv, stride 2, pad 1 + ReLU via im2col + tiled Pallas matmul."""
    N, Cin, H, W = x_nchw.shape
    Ho = (H + 2 - 3) // 2 + 1
    Wo = (W + 2 - 3) // 2 + 1
    S1 = Ho * Wo
    x = jnp.transpose(x_nchw, (0, 2, 3, 1))                    # NHWC
    xp = jnp.pad(x, ((0, 0), (1, 1), (1, 1), (0, 0)))
    taps = [xp[:, ky: ky + 2 * (Ho - 1) + 1: 2,
               kx: kx + 2 * (Wo - 1) + 1: 2, :]
            for ky in range(3) for kx in range(3)]             # each (N,Ho,Wo,Cin)
    patches = jnp.stack(taps, axis=-1).reshape(N, S1, Cin * 9)  # feature = ci*9+k

    C0 = q["w"].shape[1]
    K = Cin * 9
    ts = S1 if S1 <= 4096 else 512
    grid = (N, pl.cdiv(S1, ts))
    out = pl.pallas_call(
        _stem_kernel,
        out_shape=jax.ShapeDtypeStruct((N, S1, C0), jnp.float32),
        grid=grid,
        in_specs=[pl.BlockSpec((1, ts, K), lambda n, s: (n, s, 0)),
                  _wspec((K, C0)),
                  _wspec((1, C0))],
        out_specs=pl.BlockSpec((1, ts, C0), lambda n, s: (n, s, 0)),
        compiler_params=_cparams(2),
    )(patches, q["w"], q["b"])
    return out, Ho, Wo


def maxpool_s2(x, H, W):
    N, S, C = x.shape
    Ho, Wo = H // 2, W // 2
    S2 = Ho * Wo
    xp = _parity_split(x, H, W)
    out = pl.pallas_call(
        functools.partial(_maxpool_kernel, Ho=Ho, Wo=Wo),
        out_shape=jax.ShapeDtypeStruct((N, S2, C), jnp.float32),
        grid=(N,),
        in_specs=[pl.BlockSpec((1, 4, S2, C), lambda n: (n, 0, 0, 0))],
        out_specs=pl.BlockSpec((1, S2, C), lambda n: (n, 0, 0)),
        compiler_params=_cparams(1),
    )(xp)
    return out, Ho, Wo


def block_s1(x, q, H, W):
    """Stride-1 InvertedResidual (one fused pallas_call + glue interleave)."""
    N, S, C = x.shape
    bf = C // 2
    x2 = x[:, :, bf:]
    ob = pl.pallas_call(
        functools.partial(_block_s1_kernel, H=H, W=W),
        out_shape=jax.ShapeDtypeStruct((N, S, bf), jnp.float32),
        grid=(N,),
        in_specs=[pl.BlockSpec((1, S, bf), lambda n: (n, 0, 0)),
                  _wspec((bf, bf)), _wspec((1, bf)),
                  _wspec((9, bf)), _wspec((1, bf)),
                  _wspec((bf, bf)), _wspec((1, bf))],
        out_specs=pl.BlockSpec((1, S, bf), lambda n: (n, 0, 0)),
        compiler_params=_cparams(1),
    )(x2, q["b2_pw1_w"], q["b2_pw1_b"], q["b2_dw_w"], q["b2_dw_b"],
      q["b2_pw2_w"], q["b2_pw2_b"])
    # concat + channel_shuffle(groups=2)  ==  interleave(x1, branch2(x2))
    return jnp.stack([x[:, :, :bf], ob], axis=-1).reshape(N, S, C)


def block_s2(x, q, H, W):
    """Stride-2 InvertedResidual: both branches fused into one pallas_call."""
    N, S, Cin = x.shape
    Ho, Wo = H // 2, W // 2
    S2 = Ho * Wo
    bf = q["b2_pw1_w"].shape[1]
    xp = _parity_split(x, H, W)
    oa, ob = pl.pallas_call(
        functools.partial(_block_s2_kernel, Ho=Ho, Wo=Wo),
        out_shape=(jax.ShapeDtypeStruct((N, S2, bf), jnp.float32),
                   jax.ShapeDtypeStruct((N, S2, bf), jnp.float32)),
        grid=(N,),
        in_specs=[pl.BlockSpec((1, 4, S2, Cin), lambda n: (n, 0, 0, 0)),
                  _wspec((9, Cin)), _wspec((1, Cin)),
                  _wspec((Cin, bf)), _wspec((1, bf)),
                  _wspec((Cin, bf)), _wspec((1, bf)),
                  _wspec((9, bf)), _wspec((1, bf)),
                  _wspec((bf, bf)), _wspec((1, bf))],
        out_specs=(pl.BlockSpec((1, S2, bf), lambda n: (n, 0, 0)),
                   pl.BlockSpec((1, S2, bf), lambda n: (n, 0, 0))),
        compiler_params=_cparams(1),
    )(xp, q["b1_dw_w"], q["b1_dw_b"], q["b1_pw_w"], q["b1_pw_b"],
      q["b2_pw1_w"], q["b2_pw1_b"], q["b2_dw_w"], q["b2_dw_b"],
      q["b2_pw2_w"], q["b2_pw2_b"])
    out = jnp.stack([oa, ob], axis=-1).reshape(N, S2, 2 * bf)   # shuffle(groups=2)
    return out, Ho, Wo


def head(x, q):
    """conv5 (scale folded) + ReLU + global mean + fc, fused per image."""
    N, S, C4 = x.shape
    C5 = q["w5"].shape[1]
    ncls = q["wfc"].shape[1]
    out = pl.pallas_call(
        _head_kernel,
        out_shape=jax.ShapeDtypeStruct((N, 1, ncls), jnp.float32),
        grid=(N,),
        in_specs=[pl.BlockSpec((1, S, C4), lambda n: (n, 0, 0)),
                  _wspec((C4, C5)), _wspec((1, C5)), _wspec((C5, ncls))],
        out_specs=pl.BlockSpec((1, 1, ncls), lambda n: (n, 0, 0)),
        compiler_params=_cparams(1),
    )(x, q["w5"], q["b5"], q["wfc"])
    return out.reshape(N, ncls)


# ---------------------------------------------------------------------------
# Parameter init (matches the PyTorch module) + kernel-ready preparation
# ---------------------------------------------------------------------------

def init_conv(key, cout, cin, kh, kw, groups=1):
    ss = max(4.0, cin / groups)
    n = kh * kw * ss
    std = math.sqrt(2.0 / n)
    w = std * jax.random.normal(key, (cout, cin // groups, kh, kw), dtype=jnp.float32)
    b = jnp.zeros((cout,), jnp.float32)
    return {"w": w, "b": b}


def init_inverted_residual(key, inp, oup, stride):
    assert 1 <= stride <= 3
    bf = oup // 2
    assert stride != 1 or inp == bf * 2
    keys = jax.random.split(key, 5)
    p = {"stride": stride}
    if stride > 1:
        p["b1_dw"] = init_conv(keys[0], inp, inp, 3, 3, groups=inp)
        p["b1_pw"] = init_conv(keys[1], bf, inp, 1, 1)
        p["b1_scale"] = 1.2
    b2_in = inp if stride > 1 else bf
    p["b2_pw1"] = init_conv(keys[2], bf, b2_in, 1, 1)
    p["b2_dw"] = init_conv(keys[3], bf, bf, 3, 3, groups=bf)
    p["b2_pw2"] = init_conv(keys[4], bf, bf, 1, 1)
    p["b2_scale"] = 1.2 ** 2
    return p


def init_shufflenetv2(key, stages_repeats, stages_out_channels, num_classes):
    assert len(stages_repeats) == 3 and len(stages_out_channels) == 5
    n_blocks = sum(stages_repeats)
    keys = jax.random.split(key, 3 + n_blocks)
    kiter = iter(keys)

    params = {}
    input_channels = 3
    output_channels = stages_out_channels[0]
    params["conv1"] = init_conv(next(kiter), output_channels, input_channels, 3, 3)
    input_channels = output_channels

    stages = []
    for repeats, output_channels in zip(stages_repeats, stages_out_channels[1:4]):
        blocks = [init_inverted_residual(next(kiter), input_channels, output_channels, 2)]
        for _ in range(repeats - 1):
            blocks.append(init_inverted_residual(next(kiter), output_channels, output_channels, 1))
        stages.append(blocks)
        input_channels = output_channels
    params["stages"] = stages

    output_channels = stages_out_channels[-1]
    params["conv5"] = init_conv(next(kiter), output_channels, input_channels, 1, 1)
    params["conv5_scale"] = 1.2
    params["fc_w"] = math.sqrt(2.0 / output_channels) * jax.random.normal(
        next(kiter), (num_classes, output_channels), dtype=jnp.float32)
    # TODO(synk): cbn=True path (affine-free BatchNorm1d on logits) not implemented; default cbn=False.
    return params


def prepare_params(params):
    """One-time transform to kernel-ready layouts with MyScaleLayer folded in."""
    prep = {}

    w, b = params["conv1"]["w"], params["conv1"]["b"]
    C0 = w.shape[0]
    prep["conv1"] = {"w": jnp.transpose(w.reshape(C0, 27)), "b": b.reshape(1, C0)}

    stages = []
    for blocks in params["stages"]:
        pb = []
        for p in blocks:
            q = {"stride": p["stride"]}
            bf = p["b2_pw1"]["w"].shape[0]
            cin2 = p["b2_pw1"]["w"].shape[1]
            if p["stride"] > 1:
                cin = p["b1_dw"]["w"].shape[0]
                s1 = p["b1_scale"]
                q["b1_dw_w"] = jnp.transpose(p["b1_dw"]["w"].reshape(cin, 9))
                q["b1_dw_b"] = p["b1_dw"]["b"].reshape(1, cin)
                q["b1_pw_w"] = jnp.transpose(p["b1_pw"]["w"].reshape(bf, cin)) * s1
                q["b1_pw_b"] = p["b1_pw"]["b"].reshape(1, bf) * s1
            s2 = p["b2_scale"]
            q["b2_pw1_w"] = jnp.transpose(p["b2_pw1"]["w"].reshape(bf, cin2))
            q["b2_pw1_b"] = p["b2_pw1"]["b"].reshape(1, bf)
            q["b2_dw_w"] = jnp.transpose(p["b2_dw"]["w"].reshape(bf, 9))
            q["b2_dw_b"] = p["b2_dw"]["b"].reshape(1, bf)
            q["b2_pw2_w"] = jnp.transpose(p["b2_pw2"]["w"].reshape(bf, bf)) * s2
            q["b2_pw2_b"] = p["b2_pw2"]["b"].reshape(1, bf) * s2
            pb.append(q)
        stages.append(pb)
    prep["stages"] = stages

    w5, b5 = params["conv5"]["w"], params["conv5"]["b"]
    s5 = params["conv5_scale"]
    C5, C4 = w5.shape[0], w5.shape[1]
    prep["head"] = {"w5": jnp.transpose(w5.reshape(C5, C4)) * s5,
                    "b5": b5.reshape(1, C5) * s5,
                    "wfc": jnp.transpose(params["fc_w"])}
    return prep


# ---------------------------------------------------------------------------
# Forward
# ---------------------------------------------------------------------------

def shufflenetv2_forward(prep, x_nchw):
    x_nchw = x_nchw.astype(jnp.float32)
    x, H, W = stem_conv(x_nchw, prep["conv1"])       # conv1 + ReLU
    x, H, W = maxpool_s2(x, H, W)                    # 3x3 maxpool s2
    for blocks in prep["stages"]:
        for q in blocks:
            if q["stride"] == 1:
                x = block_s1(x, q, H, W)
            else:
                x, H, W = block_s2(x, q, H, W)
    return head(x, prep["head"])                     # conv5 + mean + fc


# ---------------------------------------------------------------------------

if __name__ == "__main__":
    key = jax.random.PRNGKey(0)
    pkey, xkey = jax.random.split(key)

    stages_repeats = [2, 2, 2]
    stages_out_channels = [8, 16, 32, 64, 64]
    num_classes = 10

    raw_params = init_shufflenetv2(pkey, stages_repeats, stages_out_channels, num_classes)
    prep = prepare_params(raw_params)

    # PyTorch-convention NCHW input
    x = jax.random.normal(xkey, (2, 3, 32, 32), dtype=jnp.float32)

    fwd = jax.jit(lambda inp: shufflenetv2_forward(prep, inp))
    out = fwd(x)
    jax.block_until_ready(out)

    assert out.shape == (2, num_classes), out.shape
    assert out.dtype == jnp.float32
    print("KERNEL_OK")
</pallas_src>

<mosaic_0001>
module attributes {stable_mosaic.version = 11 : i64} {
  func.func @_stem_kernel(%arg0: i32, %arg1: i32, %arg2: memref<1x256x27xf32, #tpu.memory_space<vmem>>, %arg3: memref<27x8xf32, #tpu.memory_space<vmem>>, %arg4: memref<1x8xf32, #tpu.memory_space<vmem>>, %arg5: memref<1x256x8xf32, #tpu.memory_space<vmem>>) attributes {dimension_semantics = [#tpu.dimension_semantics<parallel>, #tpu.dimension_semantics<parallel>], iteration_bounds = array<i64: 2, 1>, scalar_prefetch = 0 : i64, scratch_operands = 0 : i64, tpu.core_type = #tpu.core_type<tc>, window_params = [{transform_indices = @transform_0, window_bounds = array<i64: 1, 256, 27>}, {pipeline_mode = #tpu.pipeline_mode<synchronous>, transform_indices = @transform_1, window_bounds = array<i64: 27, 8>}, {pipeline_mode = #tpu.pipeline_mode<synchronous>, transform_indices = @transform_2, window_bounds = array<i64: 1, 8>}, {transform_indices = @transform_3, window_bounds = array<i64: 1, 256, 8>}]} {
    %c0 = arith.constant 0 : index
    %c0_0 = arith.constant 0 : index
    %c0_1 = arith.constant 0 : index
    %0 = vector.load %arg2[%c0, %c0_0, %c0_1] : memref<1x256x27xf32, #tpu.memory_space<vmem>>, vector<1x256x27xf32>
    %1 = vector.shape_cast %0 : vector<1x256x27xf32> to vector<256x27xf32>
    %c0_2 = arith.constant 0 : index
    %c0_3 = arith.constant 0 : index
    %2 = vector.load %arg3[%c0_2, %c0_3] : memref<27x8xf32, #tpu.memory_space<vmem>>, vector<27x8xf32>
    %cst = arith.constant dense<0.000000e+00> : vector<256x8xf32>
    %3 = tpu.matmul %1, %2, %cst {dimension_numbers = #tpu.dot_dimension_numbers<[1], [0], [0], [1], [0, 0, 1, 1], [], []>} : vector<256x27xf32>, vector<27x8xf32>, vector<256x8xf32> -> vector<256x8xf32>
    %c0_4 = arith.constant 0 : index
    %c0_5 = arith.constant 0 : index
    %4 = vector.load %arg4[%c0_4, %c0_5] : memref<1x8xf32, #tpu.memory_space<vmem>>, vector<1x8xf32>
    %5 = vector.broadcast %4 : vector<1x8xf32> to vector<256x8xf32>
    %6 = arith.addf %3, %5 : vector<256x8xf32>
    %cst_6 = arith.constant 0.000000e+00 : f32
    %7 = vector.broadcast %cst_6 : f32 to vector<256x8xf32>
    %8 = arith.maximumf %6, %7 : vector<256x8xf32>
    %c0_7 = arith.constant 0 : index
    %c0_8 = arith.constant 0 : index
    %c0_9 = arith.constant 0 : index
    %9 = vector.load %arg5[%c0_7, %c0_8, %c0_9] : memref<1x256x8xf32, #tpu.memory_space<vmem>>, vector<1x256x8xf32>
    %10 = vector.shape_cast %9 : vector<1x256x8xf32> to vector<256x8xf32>
    %11 = vector.shape_cast %8 : vector<256x8xf32> to vector<1x256x8xf32>
    tpu.vector_store %arg5[%c0_7, %c0_8, %c0_9], %11 {strides = array<i32>} : memref<1x256x8xf32, #tpu.memory_space<vmem>>, vector<1x256x8xf32>,
    return
  }
  func.func @transform_0(%arg0: i32, %arg1: i32) -> (i32, i32, i32) {
    %c0_i32 = arith.constant 0 : i32
    %c0_i32_0 = arith.constant 0 : i32
    return %arg0, %arg1, %c0_i32 : i32, i32, i32
  }
  func.func @transform_1(%arg0: i32, %arg1: i32) -> (i32, i32) {
    %c0_i32 = arith.constant 0 : i32
    %c0_i32_0 = arith.constant 0 : i32
    %c0_i32_1 = arith.constant 0 : i32
    return %c0_i32, %c0_i32_0 : i32, i32
  }
  func.func @transform_2(%arg0: i32, %arg1: i32) -> (i32, i32) {
    %c0_i32 = arith.constant 0 : i32
    %c0_i32_0 = arith.constant 0 : i32
    %c0_i32_1 = arith.constant 0 : i32
    return %c0_i32, %c0_i32_0 : i32, i32
  }
  func.func @transform_3(%arg0: i32, %arg1: i32) -> (i32, i32, i32) {
    %c0_i32 = arith.constant 0 : i32
    %c0_i32_0 = arith.constant 0 : i32
    return %arg0, %arg1, %c0_i32 : i32, i32, i32
  }
}

module attributes {stable_mosaic.version = 11 : i64} {
  func.func @_maxpool_kernel(%arg0: i32, %arg1: memref<1x4x64x8xf32, #tpu.memory_space<vmem>>, %arg2: memref<1x64x8xf32, #tpu.memory_space<vmem>>) attributes {dimension_semantics = [#tpu.dimension_semantics<parallel>], iteration_bounds = array<i64: 2>, scalar_prefetch = 0 : i64, scratch_operands = 0 : i64, tpu.core_type = #tpu.core_type<tc>, window_params = [{transform_indices = @transform_0, window_bounds = array<i64: 1, 4, 64, 8>}, {transform_indices = @transform_1, window_bounds = array<i64: 1, 64, 8>}]} {
    %c0 = arith.constant 0 : index
    %c0_0 = arith.constant 0 : index
    %c0_1 = arith.constant 0 : index
    %c0_2 = arith.constant 0 : index
    %0 = vector.load %arg1[%c0, %c0_0, %c0_1, %c0_2] : memref<1x4x64x8xf32, #tpu.memory_space<vmem>>, vector<1x1x64x8xf32>
    %1 = vector.shape_cast %0 : vector<1x1x64x8xf32> to vector<64x8xf32>
    %c0_3 = arith.constant 0 : index
    %c1 = arith.constant 1 : index
    %c0_4 = arith.constant 0 : index
    %c0_5 = arith.constant 0 : index
    %2 = vector.load %arg1[%c0_3, %c1, %c0_4, %c0_5] : memref<1x4x64x8xf32, #tpu.memory_space<vmem>>, vector<1x1x64x8xf32>
    %3 = vector.shape_cast %2 : vector<1x1x64x8xf32> to vector<64x8xf32>
    %c0_6 = arith.constant 0 : index
    %c2 = arith.constant 2 : index
    %c0_7 = arith.constant 0 : index
    %c0_8 = arith.constant 0 : index
    %4 = vector.load %arg1[%c0_6, %c2, %c0_7, %c0_8] : memref<1x4x64x8xf32, #tpu.memory_space<vmem>>, vector<1x1x64x8xf32>
    %5 = vector.shape_cast %4 : vector<1x1x64x8xf32> to vector<64x8xf32>
    %c0_9 = arith.constant 0 : index
    %c3 = arith.constant 3 : index
    %c0_10 = arith.constant 0 : index
    %c0_11 = arith.constant 0 : index
    %6 = vector.load %arg1[%c0_9, %c3, %c0_10, %c0_11] : memref<1x4x64x8xf32, #tpu.memory_space<vmem>>, vector<1x1x64x8xf32>
    %7 = vector.shape_cast %6 : vector<1x1x64x8xf32> to vector<64x8xf32>
    %8 = tpu.iota {dimensions = array<i32: 0>} : vector<64x1xi32>
    %c8_i32 = arith.constant 8 : i32
    %c0_i32 = arith.constant 0 : i32
    %9 = arith.cmpi eq, %c8_i32, %c0_i32 : i32
    %c1_i32 = arith.constant 1 : i32
    %10 = arith.select %9, %c1_i32, %c8_i32 : i32
    %11 = vector.broadcast %10 : i32 to vector<64x1xi32>
    %12 = arith.remsi %8, %11 : vector<64x1xi32>
    %c0_i32_12 = arith.constant 0 : i32
    %13 = vector.broadcast %c0_i32_12 : i32 to vector<64x1xi32>
    %14 = arith.cmpi ne, %12, %13 : vector<64x1xi32>
    %c0_i32_13 = arith.constant 0 : i32
    %15 = vector.broadcast %c0_i32_13 : i32 to vector<64x1xi32>
    %16 = arith.cmpi slt, %12, %15 : vector<64x1xi32>
    %c0_i32_14 = arith.constant 0 : i32
    %17 = arith.cmpi slt, %10, %c0_i32_14 : i32
    %18 = vector.broadcast %17 : i1 to vector<64x1xi1>
    %19 = vector.broadcast %18 : vector<64x1xi1> to vector<64x1xi1>
    %20 = arith.xori %16, %19 : vector<64x1xi1>
    %21 = arith.andi %20, %14 : vector<64x1xi1>
    %22 = vector.broadcast %10 : i32 to vector<64x1xi32>
    %23 = arith.addi %12, %22 : vector<64x1xi32>
    %24 = arith.select %21, %23, %12 : vector<64x1xi1>, vector<64x1xi32>
    %cst = arith.constant -1.000000e+30 : f32
    %25 = vector.broadcast %cst : f32 to vector<9x8xf32>
    %26 = vector.extract_strided_slice %7 {offsets = [0, 0], sizes = [55, 8], strides = [1, 1]} : vector<64x8xf32> to vector<55x8xf32>
    %27 = tpu.concatenate %25, %26 in 0 : vector<9x8xf32>, vector<55x8xf32> -> vector<64x8xf32>
    %c1_i32_15 = arith.constant 1 : i32
    %28 = vector.broadcast %c1_i32_15 : i32 to vector<64x1xi32>
    %29 = arith.cmpi sge, %24, %28 : vector<64x1xi32>
    %cst_16 = arith.constant -1.000000e+30 : f32
    %30 = vector.shape_cast %29 : vector<64x1xi1> to vector<64x1xi1>
    %31 = vector.broadcast %30 : vector<64x1xi1> to vector<64x8xi1>
    %32 = vector.broadcast %cst_16 : f32 to vector<64x8xf32>
    %33 = arith.select %31, %27, %32 : vector<64x8xi1>, vector<64x8xf32>
    %cst_17 = arith.constant -1.000000e+30 : f32
    %34 = vector.broadcast %cst_17 : f32 to vector<8x8xf32>
    %35 = vector.extract_strided_slice %5 {offsets = [0, 0], sizes = [56, 8], strides = [1, 1]} : vector<64x8xf32> to vector<56x8xf32>
    %36 = tpu.concatenate %34, %35 in 0 : vector<8x8xf32>, vector<56x8xf32> -> vector<64x8xf32>
    %cst_18 = arith.constant -1.000000e+30 : f32
    %37 = vector.broadcast %cst_18 : f32 to vector<8x8xf32>
    %38 = vector.extract_strided_slice %7 {offsets = [0, 0], sizes = [56, 8], strides = [1, 1]} : vector<64x8xf32> to vector<56x8xf32>
    %39 = tpu.concatenate %37, %38 in 0 : vector<8x8xf32>, vector<56x8xf32> -> vector<64x8xf32>
    %cst_19 = arith.constant -1.000000e+30 : f32
    %40 = vector.broadcast %cst_19 : f32 to vector<1x8xf32>
    %41 = vector.extract_strided_slice %3 {offsets = [0, 0], sizes = [63, 8], strides = [1, 1]} : vector<64x8xf32> to vector<63x8xf32>
    %42 = tpu.concatenate %40, %41 in 0 : vector<1x8xf32>, vector<63x8xf32> -> vector<64x8xf32>
    %c1_i32_20 = arith.constant 1 : i32
    %43 = vector.broadcast %c1_i32_20 : i32 to vector<64x1xi32>
    %44 = arith.cmpi sge, %24, %43 : vector<64x1xi32>
    %cst_21 = arith.constant -1.000000e+30 : f32
    %45 = vector.shape_cast %44 : vector<64x1xi1> to vector<64x1xi1>
    %46 = vector.broadcast %45 : vector<64x1xi1> to vector<64x8xi1>
    %47 = vector.broadcast %cst_21 : f32 to vector<64x8xf32>
    %48 = arith.select %46, %42, %47 : vector<64x8xi1>, vector<64x8xf32>
    %cst_22 = arith.constant -1.000000e+30 : f32
    %49 = vector.broadcast %cst_22 : f32 to vector<1x8xf32>
    %50 = vector.extract_strided_slice %7 {offsets = [0, 0], sizes = [63, 8], strides = [1, 1]} : vector<64x8xf32> to vector<63x8xf32>
    %51 = tpu.concatenate %49, %50 in 0 : vector<1x8xf32>, vector<63x8xf32> -> vector<64x8xf32>
    %c1_i32_23 = arith.constant 1 : i32
    %52 = vector.broadcast %c1_i32_23 : i32 to vector<64x1xi32>
    %53 = arith.cmpi sge, %24, %52 : vector<64x1xi32>
    %cst_24 = arith.constant -1.000000e+30 : f32
    %54 = vector.shape_cast %53 : vector<64x1xi1> to vector<64x1xi1>
    %55 = vector.broadcast %54 : vector<64x1xi1> to vector<64x8xi1>
    %56 = vector.broadcast %cst_24 : f32 to vector<64x8xf32>
    %57 = arith.select %55, %51, %56 : vector<64x8xi1>, vector<64x8xf32>
    %58 = arith.maximumf %33, %36 : vector<64x8xf32>
    %59 = arith.maximumf %39, %48 : vector<64x8xf32>
    %60 = arith.maximumf %1, %3 : vector<64x8xf32>
    %61 = arith.maximumf %57, %5 : vector<64x8xf32>
    %62 = arith.maximumf %58, %59 : vector<64x8xf32>
    %63 = arith.maximumf %60, %61 : vector<64x8xf32>
    %64 = arith.maximumf %62, %63 : vector<64x8xf32>
    %65 = arith.maximumf %64, %7 : vector<64x8xf32>
    %c0_25 = arith.constant 0 : index
    %c0_26 = arith.constant 0 : index
    %c0_27 = arith.constant 0 : index
    %66 = vector.load %arg2[%c0_25, %c0_26, %c0_27] : memref<1x64x8xf32, #tpu.memory_space<vmem>>, vector<1x64x8xf32>
    %67 = vector.shape_cast %66 : vector<1x64x8xf32> to vector<64x8xf32>
    %68 = vector.shape_cast %65 : vector<64x8xf32> to vector<1x64x8xf32>
    tpu.vector_store %arg2[%c0_25, %c0_26, %c0_27], %68 {strides = array<i32>} : memref<1x64x8xf32, #tpu.memory_space<vmem>>, vector<1x64x8xf32>,
    return
  }
  func.func @transform_0(%arg0: i32) -> (i32, i32, i32, i32) {
    %c0_i32 = arith.constant 0 : i32
    %c0_i32_0 = arith.constant 0 : i32
    %c0_i32_1 = arith.constant 0 : i32
    %c0_i32_2 = arith.constant 0 : i32
    return %arg0, %c0_i32, %c0_i32_0, %c0_i32_1 : i32, i32, i32, i32
  }
  func.func @transform_1(%arg0: i32) -> (i32, i32, i32) {
    %c0_i32 = arith.constant 0 : i32
    %c0_i32_0 = arith.constant 0 : i32
    %c0_i32_1 = arith.constant 0 : i32
    return %arg0, %c0_i32, %c0_i32_0 : i32, i32, i32
  }
}

module attributes {stable_mosaic.version = 11 : i64} {
  func.func @_block_s2_kernel(%arg0: i32, %arg1: memref<1x4x16x8xf32, #tpu.memory_space<vmem>>, %arg2: memref<9x8xf32, #tpu.memory_space<vmem>>, %arg3: memref<1x8xf32, #tpu.memory_space<vmem>>, %arg4: memref<8x8xf32, #tpu.memory_space<vmem>>, %arg5: memref<1x8xf32, #tpu.memory_space<vmem>>, %arg6: memref<8x8xf32, #tpu.memory_space<vmem>>, %arg7: memref<1x8xf32, #tpu.memory_space<vmem>>, %arg8: memref<9x8xf32, #tpu.memory_space<vmem>>, %arg9: memref<1x8xf32, #tpu.memory_space<vmem>>, %arg10: memref<8x8xf32, #tpu.memory_space<vmem>>, %arg11: memref<1x8xf32, #tpu.memory_space<vmem>>, %arg12: memref<1x16x8xf32, #tpu.memory_space<vmem>>, %arg13: memref<1x16x8xf32, #tpu.memory_space<vmem>>) attributes {dimension_semantics = [#tpu.dimension_semantics<parallel>], iteration_bounds = array<i64: 2>, scalar_prefetch = 0 : i64, scratch_operands = 0 : i64, tpu.core_type = #tpu.core_type<tc>, window_params = [{transform_indices = @transform_0, window_bounds = array<i64: 1, 4, 16, 8>}, {pipeline_mode = #tpu.pipeline_mode<synchronous>, transform_indices = @transform_1, window_bounds = array<i64: 9, 8>}, {pipeline_mode = #tpu.pipeline_mode<synchronous>, transform_indices = @transform_2, window_bounds = array<i64: 1, 8>}, {pipeline_mode = #tpu.pipeline_mode<synchronous>, transform_indices = @transform_3, window_bounds = array<i64: 8, 8>}, {pipeline_mode = #tpu.pipeline_mode<synchronous>, transform_indices = @transform_4, window_bounds = array<i64: 1, 8>}, {pipeline_mode = #tpu.pipeline_mode<synchronous>, transform_indices = @transform_5, window_bounds = array<i64: 8, 8>}, {pipeline_mode = #tpu.pipeline_mode<synchronous>, transform_indices = @transform_6, window_bounds = array<i64: 1, 8>}, {pipeline_mode = #tpu.pipeline_mode<synchronous>, transform_indices = @transform_7, window_bounds = array<i64: 9, 8>}, {pipeline_mode = #tpu.pipeline_mode<synchronous>, transform_indices = @transform_8, window_bounds = array<i64: 1, 8>}, {pipeline_mode = #tpu.pipeline_mode<synchronous>, transform_indices = @transform_9, window_bounds = array<i64: 8, 8>}, {pipeline_mode = #tpu.pipeline_mode<synchronous>, transform_indices = @transform_10, window_bounds = array<i64: 1, 8>}, {transform_indices = @transform_11, window_bounds = array<i64: 1, 16, 8>}, {transform_indices = @transform_12, window_bounds = array<i64: 1, 16, 8>}]} {
    %c0 = arith.constant 0 : index
    %c0_0 = arith.constant 0 : index
    %c0_1 = arith.constant 0 : index
    %c0_2 = arith.constant 0 : index
    %0 = vector.load %arg1[%c0, %c0_0, %c0_1, %c0_2] : memref<1x4x16x8xf32, #tpu.memory_space<vmem>>, vector<1x1x16x8xf32>
    %1 = vector.shape_cast %0 : vector<1x1x16x8xf32> to vector<16x8xf32>
    %c0_3 = arith.constant 0 : index
    %c1 = arith.constant 1 : index
    %c0_4 = arith.constant 0 : index
    %c0_5 = arith.constant 0 : index
    %2 = vector.load %arg1[%c0_3, %c1, %c0_4, %c0_5] : memref<1x4x16x8xf32, #tpu.memory_space<vmem>>, vector<1x1x16x8xf32>
    %3 = vector.shape_cast %2 : vector<1x1x16x8xf32> to vector<16x8xf32>
    %c0_6 = arith.constant 0 : index
    %c2 = arith.constant 2 : index
    %c0_7 = arith.constant 0 : index
    %c0_8 = arith.constant 0 : index
    %4 = vector.load %arg1[%c0_6, %c2, %c0_7, %c0_8] : memref<1x4x16x8xf32, #tpu.memory_space<vmem>>, vector<1x1x16x8xf32>
    %5 = vector.shape_cast %4 : vector<1x1x16x8xf32> to vector<16x8xf32>
    %c0_9 = arith.constant 0 : index
    %c3 = arith.constant 3 : index
    %c0_10 = arith.constant 0 : index
    %c0_11 = arith.constant 0 : index
    %6 = vector.load %arg1[%c0_9, %c3, %c0_10, %c0_11] : memref<1x4x16x8xf32, #tpu.memory_space<vmem>>, vector<1x1x16x8xf32>
    %7 = vector.shape_cast %6 : vector<1x1x16x8xf32> to vector<16x8xf32>
    %c0_12 = arith.constant 0 : index
    %c0_13 = arith.constant 0 : index
    %8 = vector.load %arg2[%c0_12, %c0_13] : memref<9x8xf32, #tpu.memory_space<vmem>>, vector<9x8xf32>
    %c0_14 = arith.constant 0 : index
    %c0_15 = arith.constant 0 : index
    %9 = vector.load %arg3[%c0_14, %c0_15] : memref<1x8xf32, #tpu.memory_space<vmem>>, vector<1x8xf32>
    %10 = tpu.iota {dimensions = array<i32: 0>} : vector<16x1xi32>
    %c4_i32 = arith.constant 4 : i32
    %c0_i32 = arith.constant 0 : i32
    %11 = arith.cmpi eq, %c4_i32, %c0_i32 : i32
    %c1_i32 = arith.constant 1 : i32
    %12 = arith.select %11, %c1_i32, %c4_i32 : i32
    %13 = vector.broadcast %12 : i32 to vector<16x1xi32>
    %14 = arith.remsi %10, %13 : vector<16x1xi32>
    %c0_i32_16 = arith.constant 0 : i32
    %15 = vector.broadcast %c0_i32_16 : i32 to vector<16x1xi32>
    %16 = arith.cmpi ne, %14, %15 : vector<16x1xi32>
    %c0_i32_17 = arith.constant 0 : i32
    %17 = vector.broadcast %c0_i32_17 : i32 to vector<16x1xi32>
    %18 = arith.cmpi slt, %14, %17 : vector<16x1xi32>
    %c0_i32_18 = arith.constant 0 : i32
    %19 = arith.cmpi slt, %12, %c0_i32_18 : i32
    %20 = vector.broadcast %19 : i1 to vector<16x1xi1>
    %21 = vector.broadcast %20 : vector<16x1xi1> to vector<16x1xi1>
    %22 = arith.xori %18, %21 : vector<16x1xi1>
    %23 = arith.andi %22, %16 : vector<16x1xi1>
    %24 = vector.broadcast %12 : i32 to vector<16x1xi32>
    %25 = arith.addi %14, %24 : vector<16x1xi32>
    %26 = arith.select %23, %25, %14 : vector<16x1xi1>, vector<16x1xi32>
    %cst = arith.constant 0.000000e+00 : f32
    %27 = vector.broadcast %cst : f32 to vector<5x8xf32>
    %28 = vector.extract_strided_slice %7 {offsets = [0, 0], sizes = [11, 8], strides = [1, 1]} : vector<16x8xf32> to vector<11x8xf32>
    %29 = tpu.concatenate %27, %28 in 0 : vector<5x8xf32>, vector<11x8xf32> -> vector<16x8xf32>
    %30 = vector.extract_strided_slice %8 {offsets = [0, 0], sizes = [1, 8], strides = [1, 1]} : vector<9x8xf32> to vector<1x8xf32>
    %31 = vector.broadcast %30 : vector<1x8xf32> to vector<16x8xf32>
    %32 = arith.mulf %29, %31 : vector<16x8xf32>
    %c1_i32_19 = arith.constant 1 : i32
    %33 = vector.broadcast %c1_i32_19 : i32 to vector<16x1xi32>
    %34 = arith.cmpi sge, %26, %33 : vector<16x1xi32>
    %cst_20 = arith.constant 0.000000e+00 : f32
    %35 = vector.shape_cast %34 : vector<16x1xi1> to vector<16x1xi1>
    %36 = vector.broadcast %35 : vector<16x1xi1> to vector<16x8xi1>
    %37 = vector.broadcast %cst_20 : f32 to vector<16x8xf32>
    %38 = arith.select %36, %32, %37 : vector<16x8xi1>, vector<16x8xf32>
    %cst_21 = arith.constant 0.000000e+00 : f32
    %39 = vector.broadcast %cst_21 : f32 to vector<4x8xf32>
    %40 = vector.extract_strided_slice %5 {offsets = [0, 0], sizes = [12, 8], strides = [1, 1]} : vector<16x8xf32> to vector<12x8xf32>
    %41 = tpu.concatenate %39, %40 in 0 : vector<4x8xf32>, vector<12x8xf32> -> vector<16x8xf32>
    %42 = vector.extract_strided_slice %8 {offsets = [1, 0], sizes = [1, 8], strides = [1, 1]} : vector<9x8xf32> to vector<1x8xf32>
    %43 = vector.broadcast %42 : vector<1x8xf32> to vector<16x8xf32>
    %44 = arith.mulf %41, %43 : vector<16x8xf32>
    %cst_22 = arith.constant 0.000000e+00 : f32
    %45 = vector.broadcast %cst_22 : f32 to vector<4x8xf32>
    %46 = vector.extract_strided_slice %7 {offsets = [0, 0], sizes = [12, 8], strides = [1, 1]} : vector<16x8xf32> to vector<12x8xf32>
    %47 = tpu.concatenate %45, %46 in 0 : vector<4x8xf32>, vector<12x8xf32> -> vector<16x8xf32>
    %48 = vector.extract_strided_slice %8 {offsets = [2, 0], sizes = [1, 8], strides = [1, 1]} : vector<9x8xf32> to vector<1x8xf32>
    %49 = vector.broadcast %48 : vector<1x8xf32> to vector<16x8xf32>
    %50 = arith.mulf %47, %49 : vector<16x8xf32>
    %cst_23 = arith.constant 0.000000e+00 : f32
    %51 = vector.broadcast %cst_23 : f32 to vector<1x8xf32>
    %52 = vector.extract_strided_slice %3 {offsets = [0, 0], sizes = [15, 8], strides = [1, 1]} : vector<16x8xf32> to vector<15x8xf32>
    %53 = tpu.concatenate %51, %52 in 0 : vector<1x8xf32>, vector<15x8xf32> -> vector<16x8xf32>
    %54 = vector.extract_strided_slice %8 {offsets = [3, 0], sizes = [1, 8], strides = [1, 1]} : vector<9x8xf32> to vector<1x8xf32>
    %55 = vector.broadcast %54 : vector<1x8xf32> to vector<16x8xf32>
    %56 = arith.mulf %53, %55 : vector<16x8xf32>
    %c1_i32_24 = arith.constant 1 : i32
    %57 = vector.broadcast %c1_i32_24 : i32 to vector<16x1xi32>
    %58 = arith.cmpi sge, %26, %57 : vector<16x1xi32>
    %cst_25 = arith.constant 0.000000e+00 : f32
    %59 = vector.shape_cast %58 : vector<16x1xi1> to vector<16x1xi1>
    %60 = vector.broadcast %59 : vector<16x1xi1> to vector<16x8xi1>
    %61 = vector.broadcast %cst_25 : f32 to vector<16x8xf32>
    %62 = arith.select %60, %56, %61 : vector<16x8xi1>, vector<16x8xf32>
    %63 = vector.extract_strided_slice %8 {offsets = [4, 0], sizes = [1, 8], strides = [1, 1]} : vector<9x8xf32> to vector<1x8xf32>
    %64 = vector.broadcast %63 : vector<1x8xf32> to vector<16x8xf32>
    %65 = arith.mulf %1, %64 : vector<16x8xf32>
    %66 = vector.extract_strided_slice %8 {offsets = [5, 0], sizes = [1, 8], strides = [1, 1]} : vector<9x8xf32> to vector<1x8xf32>
    %67 = vector.broadcast %66 : vector<1x8xf32> to vector<16x8xf32>
    %68 = arith.mulf %3, %67 : vector<16x8xf32>
    %cst_26 = arith.constant 0.000000e+00 : f32
    %69 = vector.broadcast %cst_26 : f32 to vector<1x8xf32>
    %70 = vector.extract_strided_slice %7 {offsets = [0, 0], sizes = [15, 8], strides = [1, 1]} : vector<16x8xf32> to vector<15x8xf32>
    %71 = tpu.concatenate %69, %70 in 0 : vector<1x8xf32>, vector<15x8xf32> -> vector<16x8xf32>
    %72 = vector.extract_strided_slice %8 {offsets = [6, 0], sizes = [1, 8], strides = [1, 1]} : vector<9x8xf32> to vector<1x8xf32>
    %73 = vector.broadcast %72 : vector<1x8xf32> to vector<16x8xf32>
    %74 = arith.mulf %71, %73 : vector<16x8xf32>
    %c1_i32_27 = arith.constant 1 : i32
    %75 = vector.broadcast %c1_i32_27 : i32 to vector<16x1xi32>
    %76 = arith.cmpi sge, %26, %75 : vector<16x1xi32>
    %cst_28 = arith.constant 0.000000e+00 : f32
    %77 = vector.shape_cast %76 : vector<16x1xi1> to vector<16x1xi1>
    %78 = vector.broadcast %77 : vector<16x1xi1> to vector<16x8xi1>
    %79 = vector.broadcast %cst_28 : f32 to vector<16x8xf32>
    %80 = arith.select %78, %74, %79 : vector<16x8xi1>, vector<16x8xf32>
    %81 = vector.extract_strided_slice %8 {offsets = [7, 0], sizes = [1, 8], strides = [1, 1]} : vector<9x8xf32> to vector<1x8xf32>
    %82 = vector.broadcast %81 : vector<1x8xf32> to vector<16x8xf32>
    %83 = arith.mulf %5, %82 : vector<16x8xf32>
    %84 = vector.extract_strided_slice %8 {offsets = [8, 0], sizes = [1, 8], strides = [1, 1]} : vector<9x8xf32> to vector<1x8xf32>
    %85 = vector.broadcast %84 : vector<1x8xf32> to vector<16x8xf32>
    %86 = arith.mulf %7, %85 : vector<16x8xf32>
    %87 = arith.addf %38, %44 : vector<16x8xf32>
    %88 = arith.addf %50, %62 : vector<16x8xf32>
    %89 = arith.addf %65, %68 : vector<16x8xf32>
    %90 = arith.addf %80, %83 : vector<16x8xf32>
    %91 = arith.addf %87, %88 : vector<16x8xf32>
    %92 = arith.addf %89, %90 : vector<16x8xf32>
    %93 = arith.addf %91, %92 : vector<16x8xf32>
    %94 = arith.addf %93, %86 : vector<16x8xf32>
    %95 = vector.broadcast %9 : vector<1x8xf32> to vector<16x8xf32>
    %96 = arith.addf %94, %95 : vector<16x8xf32>
    %c0_29 = arith.constant 0 : index
    %c0_30 = arith.constant 0 : index
    %97 = vector.load %arg4[%c0_29, %c0_30] : memref<8x8xf32, #tpu.memory_space<vmem>>, vector<8x8xf32>
    %cst_31 = arith.constant dense<0.000000e+00> : vector<16x8xf32>
    %98 = tpu.matmul %96, %97, %cst_31 {dimension_numbers = #tpu.dot_dimension_numbers<[1], [0], [0], [1], [0, 0, 1, 1], [], []>} : vector<16x8xf32>, vector<8x8xf32>, vector<16x8xf32> -> vector<16x8xf32>
    %c0_32 = arith.constant 0 : index
    %c0_33 = arith.constant 0 : index
    %99 = vector.load %arg5[%c0_32, %c0_33] : memref<1x8xf32, #tpu.memory_space<vmem>>, vector<1x8xf32>
    %100 = vector.broadcast %99 : vector<1x8xf32> to vector<16x8xf32>
    %101 = arith.addf %98, %100 : vector<16x8xf32>
    %cst_34 = arith.constant 0.000000e+00 : f32
    %102 = vector.broadcast %cst_34 : f32 to vector<16x8xf32>
    %103 = arith.maximumf %101, %102 : vector<16x8xf32>
    %c0_35 = arith.constant 0 : index
    %c0_36 = arith.constant 0 : index
    %c0_37 = arith.constant 0 : index
    %104 = vector.load %arg12[%c0_35, %c0_36, %c0_37] : memref<1x16x8xf32, #tpu.memory_space<vmem>>, vector<1x16x8xf32>
    %105 = vector.shape_cast %104 : vector<1x16x8xf32> to vector<16x8xf32>
    %106 = vector.shape_cast %103 : vector<16x8xf32> to vector<1x16x8xf32>
    tpu.vector_store %arg12[%c0_35, %c0_36, %c0_37], %106 {strides = array<i32>} : memref<1x16x8xf32, #tpu.memory_space<vmem>>, vector<1x16x8xf32>,
    %c0_38 = arith.constant 0 : index
    %c0_39 = arith.constant 0 : index
    %107 = vector.load %arg6[%c0_38, %c0_39] : memref<8x8xf32, #tpu.memory_space<vmem>>, vector<8x8xf32>
    %cst_40 = arith.constant dense<0.000000e+00> : vector<16x8xf32>
    %108 = tpu.matmul %1, %107, %cst_40 {dimension_numbers = #tpu.dot_dimension_numbers<[1], [0], [0], [1], [0, 0, 1, 1], [], []>} : vector<16x8xf32>, vector<8x8xf32>, vector<16x8xf32> -> vector<16x8xf32>
    %c0_41 = arith.constant 0 : index
    %c0_42 = arith.constant 0 : index
    %109 = vector.load %arg7[%c0_41, %c0_42] : memref<1x8xf32, #tpu.memory_space<vmem>>, vector<1x8xf32>
    %110 = vector.broadcast %109 : vector<1x8xf32> to vector<16x8xf32>
    %111 = arith.addf %108, %110 : vector<16x8xf32>
    %cst_43 = arith.constant 0.000000e+00 : f32
    %112 = vector.broadcast %cst_43 : f32 to vector<16x8xf32>
    %113 = arith.maximumf %111, %112 : vector<16x8xf32>
    %c0_44 = arith.constant 0 : index
    %c0_45 = arith.constant 0 : index
    %114 = vector.load %arg6[%c0_44, %c0_45] : memref<8x8xf32, #tpu.memory_space<vmem>>, vector<8x8xf32>
    %cst_46 = arith.constant dense<0.000000e+00> : vector<16x8xf32>
    %115 = tpu.matmul %3, %114, %cst_46 {dimension_numbers = #tpu.dot_dimension_numbers<[1], [0], [0], [1], [0, 0, 1, 1], [], []>} : vector<16x8xf32>, vector<8x8xf32>, vector<16x8xf32> -> vector<16x8xf32>
    %c0_47 = arith.constant 0 : index
    %c0_48 = arith.constant 0 : index
    %116 = vector.load %arg7[%c0_47, %c0_48] : memref<1x8xf32, #tpu.memory_space<vmem>>, vector<1x8xf32>
    %117 = vector.broadcast %116 : vector<1x8xf32> to vector<16x8xf32>
    %118 = arith.addf %115, %117 : vector<16x8xf32>
    %cst_49 = arith.constant 0.000000e+00 : f32
    %119 = vector.broadcast %cst_49 : f32 to vector<16x8xf32>
    %120 = arith.maximumf %118, %119 : vector<16x8xf32>
    %c0_50 = arith.constant 0 : index
    %c0_51 = arith.constant 0 : index
    %121 = vector.load %arg6[%c0_50, %c0_51] : memref<8x8xf32, #tpu.memory_space<vmem>>, vector<8x8xf32>
    %cst_52 = arith.constant dense<0.000000e+00> : vector<16x8xf32>
    %122 = tpu.matmul %5, %121, %cst_52 {dimension_numbers = #tpu.dot_dimension_numbers<[1], [0], [0], [1], [0, 0, 1, 1], [], []>} : vector<16x8xf32>, vector<8x8xf32>, vector<16x8xf32> -> vector<16x8xf32>
    %c0_53 = arith.constant 0 : index
    %c0_54 = arith.constant 0 : index
    %123 = vector.load %arg7[%c0_53, %c0_54] : memref<1x8xf32, #tpu.memory_space<vmem>>, vector<1x8xf32>
    %124 = vector.broadcast %123 : vector<1x8xf32> to vector<16x8xf32>
    %125 = arith.addf %122, %124 : vector<16x8xf32>
    %cst_55 = arith.constant 0.000000e+00 : f32
    %126 = vector.broadcast %cst_55 : f32 to vector<16x8xf32>
    %127 = arith.maximumf %125, %126 : vector<16x8xf32>
    %c0_56 = arith.constant 0 : index
    %c0_57 = arith.constant 0 : index
    %128 = vector.load %arg6[%c0_56, %c0_57] : memref<8x8xf32, #tpu.memory_space<vmem>>, vector<8x8xf32>
    %cst_58 = arith.constant dense<0.000000e+00> : vector<16x8xf32>
    %129 = tpu.matmul %7, %128, %cst_58 {dimension_numbers = #tpu.dot_dimension_numbers<[1], [0], [0], [1], [0, 0, 1, 1], [], []>} : vector<16x8xf32>, vector<8x8xf32>, vector<16x8xf32> -> vector<16x8xf32>
    %c0_59 = arith.constant 0 : index
    %c0_60 = arith.constant 0 : index
    %130 = vector.load %arg7[%c0_59, %c0_60] : memref<1x8xf32, #tpu.memory_space<vmem>>, vector<1x8xf32>
    %131 = vector.broadcast %130 : vector<1x8xf32> to vector<16x8xf32>
    %132 = arith.addf %129, %131 : vector<16x8xf32>
    %cst_61 = arith.constant 0.000000e+00 : f32
    %133 = vector.broadcast %cst_61 : f32 to vector<16x8xf32>
    %134 = arith.maximumf %132, %133 : vector<16x8xf32>
    %c0_62 = arith.constant 0 : index
    %c0_63 = arith.constant 0 : index
    %135 = vector.load %arg8[%c0_62, %c0_63] : memref<9x8xf32, #tpu.memory_space<vmem>>, vector<9x8xf32>
    %c0_64 = arith.constant 0 : index
    %c0_65 = arith.constant 0 : index
    %136 = vector.load %arg9[%c0_64, %c0_65] : memref<1x8xf32, #tpu.memory_space<vmem>>, vector<1x8xf32>
    %137 = tpu.iota {dimensions = array<i32: 0>} : vector<16x1xi32>
    %c4_i32_66 = arith.constant 4 : i32
    %c0_i32_67 = arith.constant 0 : i32
    %138 = arith.cmpi eq, %c4_i32_66, %c0_i32_67 : i32
    %c1_i32_68 = arith.constant 1 : i32
    %139 = arith.select %138, %c1_i32_68, %c4_i32_66 : i32
    %140 = vector.broadcast %139 : i32 to vector<16x1xi32>
    %141 = arith.remsi %137, %140 : vector<16x1xi32>
    %c0_i32_69 = arith.constant 0 : i32
    %142 = vector.broadcast %c0_i32_69 : i32 to vector<16x1xi32>
    %143 = arith.cmpi ne, %141, %142 : vector<16x1xi32>
    %c0_i32_70 = arith.constant 0 : i32
    %144 = vector.broadcast %c0_i32_70 : i32 to vector<16x1xi32>
    %145 = arith.cmpi slt, %141, %144 : vector<16x1xi32>
    %c0_i32_71 = arith.constant 0 : i32
    %146 = arith.cmpi slt, %139, %c0_i32_71 : i32
    %147 = vector.broadcast %146 : i1 to vector<16x1xi1>
    %148 = vector.broadcast %147 : vector<16x1xi1> to vector<16x1xi1>
    %149 = arith.xori %145, %148 : vector<16x1xi1>
    %150 = arith.andi %149, %143 : vector<16x1xi1>
    %151 = vector.broadcast %139 : i32 to vector<16x1xi32>
    %152 = arith.addi %141, %151 : vector<16x1xi32>
    %153 = arith.select %150, %152, %141 : vector<16x1xi1>, vector<16x1xi32>
    %cst_72 = arith.constant 0.000000e+00 : f32
    %154 = vector.broadcast %cst_72 : f32 to vector<5x8xf32>
    %155 = vector.extract_strided_slice %134 {offsets = [0, 0], sizes = [11, 8], strides = [1, 1]} : vector<16x8xf32> to vector<11x8xf32>
    %156 = tpu.concatenate %154, %155 in 0 : vector<5x8xf32>, vector<11x8xf32> -> vector<16x8xf32>
    %157 = vector.extract_strided_slice %135 {offsets = [0, 0], sizes = [1, 8], strides = [1, 1]} : vector<9x8xf32> to vector<1x8xf32>
    %158 = vector.broadcast %157 : vector<1x8xf32> to vector<16x8xf32>
    %159 = arith.mulf %156, %158 : vector<16x8xf32>
    %c1_i32_73 = arith.constant 1 : i32
    %160 = vector.broadcast %c1_i32_73 : i32 to vector<16x1xi32>
    %161 = arith.cmpi sge, %153, %160 : vector<16x1xi32>
    %cst_74 = arith.constant 0.000000e+00 : f32
    %162 = vector.shape_cast %161 : vector<16x1xi1> to vector<16x1xi1>
    %163 = vector.broadcast %162 : vector<16x1xi1> to vector<16x8xi1>
    %164 = vector.broadcast %cst_74 : f32 to vector<16x8xf32>
    %165 = arith.select %163, %159, %164 : vector<16x8xi1>, vector<16x8xf32>
    %cst_75 = arith.constant 0.000000e+00 : f32
    %166 = vector.broadcast %cst_75 : f32 to vector<4x8xf32>
    %167 = vector.extract_strided_slice %127 {offsets = [0, 0], sizes = [12, 8], strides = [1, 1]} : vector<16x8xf32> to vector<12x8xf32>
    %168 = tpu.concatenate %166, %167 in 0 : vector<4x8xf32>, vector<12x8xf32> -> vector<16x8xf32>
    %169 = vector.extract_strided_slice %135 {offsets = [1, 0], sizes = [1, 8], strides = [1, 1]} : vector<9x8xf32> to vector<1x8xf32>
    %170 = vector.broadcast %169 : vector<1x8xf32> to vector<16x8xf32>
    %171 = arith.mulf %168, %170 : vector<16x8xf32>
    %cst_76 = arith.constant 0.000000e+00 : f32
    %172 = vector.broadcast %cst_76 : f32 to vector<4x8xf32>
    %173 = vector.extract_strided_slice %134 {offsets = [0, 0], sizes = [12, 8], strides = [1, 1]} : vector<16x8xf32> to vector<12x8xf32>
    %174 = tpu.concatenate %172, %173 in 0 : vector<4x8xf32>, vector<12x8xf32> -> vector<16x8xf32>
    %175 = vector.extract_strided_slice %135 {offsets = [2, 0], sizes = [1, 8], strides = [1, 1]} : vector<9x8xf32> to vector<1x8xf32>
    %176 = vector.broadcast %175 : vector<1x8xf32> to vector<16x8xf32>
    %177 = arith.mulf %174, %176 : vector<16x8xf32>
    %cst_77 = arith.constant 0.000000e+00 : f32
    %178 = vector.broadcast %cst_77 : f32 to vector<1x8xf32>
    %179 = vector.extract_strided_slice %120 {offsets = [0, 0], sizes = [15, 8], strides = [1, 1]} : vector<16x8xf32> to vector<15x8xf32>
    %180 = tpu.concatenate %178, %179 in 0 : vector<1x8xf32>, vector<15x8xf32> -> vector<16x8xf32>
    %181 = vector.extract_strided_slice %135 {offsets = [3, 0], sizes = [1, 8], strides = [1, 1]} : vector<9x8xf32> to vector<1x8xf32>
    %182 = vector.broadcast %181 : vector<1x8xf32> to vector<16x8xf32>
    %183 = arith.mulf %180, %182 : vector<16x8xf32>
    %c1_i32_78 = arith.constant 1 : i32
    %184 = vector.broadcast %c1_i32_78 : i32 to vector<16x1xi32>
    %185 = arith.cmpi sge, %153, %184 : vector<16x1xi32>
    %cst_79 = arith.constant 0.000000e+00 : f32
    %186 = vector.shape_cast %185 : vector<16x1xi1> to vector<16x1xi1>
    %187 = vector.broadcast %186 : vector<16x1xi1> to vector<16x8xi1>
    %188 = vector.broadcast %cst_79 : f32 to vector<16x8xf32>
    %189 = arith.select %187, %183, %188 : vector<16x8xi1>, vector<16x8xf32>
    %190 = vector.extract_strided_slice %135 {offsets = [4, 0], sizes = [1, 8], strides = [1, 1]} : vector<9x8xf32> to vector<1x8xf32>
    %191 = vector.broadcast %190 : vector<1x8xf32> to vector<16x8xf32>
    %192 = arith.mulf %113, %191 : vector<16x8xf32>
    %193 = vector.extract_strided_slice %135 {offsets = [5, 0], sizes = [1, 8], strides = [1, 1]} : vector<9x8xf32> to vector<1x8xf32>
    %194 = vector.broadcast %193 : vector<1x8xf32> to vector<16x8xf32>
    %195 = arith.mulf %120, %194 : vector<16x8xf32>
    %cst_80 = arith.constant 0.000000e+00 : f32
    %196 = vector.broadcast %cst_80 : f32 to vector<1x8xf32>
    %197 = vector.extract_strided_slice %134 {offsets = [0, 0], sizes = [15, 8], strides = [1, 1]} : vector<16x8xf32> to vector<15x8xf32>
    %198 = tpu.concatenate %196, %197 in 0 : vector<1x8xf32>, vector<15x8xf32> -> vector<16x8xf32>
    %199 = vector.extract_strided_slice %135 {offsets = [6, 0], sizes = [1, 8], strides = [1, 1]} : vector<9x8xf32> to vector<1x8xf32>
    %200 = vector.broadcast %199 : vector<1x8xf32> to vector<16x8xf32>
    %201 = arith.mulf %198, %200 : vector<16x8xf32>
    %c1_i32_81 = arith.constant 1 : i32
    %202 = vector.broadcast %c1_i32_81 : i32 to vector<16x1xi32>
    %203 = arith.cmpi sge, %153, %202 : vector<16x1xi32>
    %cst_82 = arith.constant 0.000000e+00 : f32
    %204 = vector.shape_cast %203 : vector<16x1xi1> to vector<16x1xi1>
    %205 = vector.broadcast %204 : vector<16x1xi1> to vector<16x8xi1>
    %206 = vector.broadcast %cst_82 : f32 to vector<16x8xf32>
    %207 = arith.select %205, %201, %206 : vector<16x8xi1>, vector<16x8xf32>
    %208 = vector.extract_strided_slice %135 {offsets = [7, 0], sizes = [1, 8], strides = [1, 1]} : vector<9x8xf32> to vector<1x8xf32>
    %209 = vector.broadcast %208 : vector<1x8xf32> to vector<16x8xf32>
    %210 = arith.mulf %127, %209 : vector<16x8xf32>
    %211 = vector.extract_strided_slice %135 {offsets = [8, 0], sizes = [1, 8], strides = [1, 1]} : vector<9x8xf32> to vector<1x8xf32>
    %212 = vector.broadcast %211 : vector<1x8xf32> to vector<16x8xf32>
    %213 = arith.mulf %134, %212 : vector<16x8xf32>
    %214 = arith.addf %165, %171 : vector<16x8xf32>
    %215 = arith.addf %177, %189 : vector<16x8xf32>
    %216 = arith.addf %192, %195 : vector<16x8xf32>
    %217 = arith.addf %207, %210 : vector<16x8xf32>
    %218 = arith.addf %214, %215 : vector<16x8xf32>
    %219 = arith.addf %216, %217 : vector<16x8xf32>
    %220 = arith.addf %218, %219 : vector<16x8xf32>
    %221 = arith.addf %220, %213 : vector<16x8xf32>
    %222 = vector.broadcast %136 : vector<1x8xf32> to vector<16x8xf32>
    %223 = arith.addf %221, %222 : vector<16x8xf32>
    %c0_83 = arith.constant 0 : index
    %c0_84 = arith.constant 0 : index
    %224 = vector.load %arg10[%c0_83, %c0_84] : memref<8x8xf32, #tpu.memory_space<vmem>>, vector<8x8xf32>
    %cst_85 = arith.constant dense<0.000000e+00> : vector<16x8xf32>
    %225 = tpu.matmul %223, %224, %cst_85 {dimension_numbers = #tpu.dot_dimension_numbers<[1], [0], [0], [1], [0, 0, 1, 1], [], []>} : vector<16x8xf32>, vector<8x8xf32>, vector<16x8xf32> -> vector<16x8xf32>
    %c0_86 = arith.constant 0 : index
    %c0_87 = arith.constant 0 : index
    %226 = vector.load %arg11[%c0_86, %c0_87] : memref<1x8xf32, #tpu.memory_space<vmem>>, vector<1x8xf32>
    %227 = vector.broadcast %226 : vector<1x8xf32> to vector<16x8xf32>
    %228 = arith.addf %225, %227 : vector<16x8xf32>
    %cst_88 = arith.constant 0.000000e+00 : f32
    %229 = vector.broadcast %cst_88 : f32 to vector<16x8xf32>
    %230 = arith.maximumf %228, %229 : vector<16x8xf32>
    %c0_89 = arith.constant 0 : index
    %c0_90 = arith.constant 0 : index
    %c0_91 = arith.constant 0 : index
    %231 = vector.load %arg13[%c0_89, %c0_90, %c0_91] : memref<1x16x8xf32, #tpu.memory_space<vmem>>, vector<1x16x8xf32>
    %232 = vector.shape_cast %231 : vector<1x16x8xf32> to vector<16x8xf32>
    %233 = vector.shape_cast %230 : vector<16x8xf32> to vector<1x16x8xf32>
    tpu.vector_store %arg13[%c0_89, %c0_90, %c0_91], %233 {strides = array<i32>} : memref<1x16x8xf32, #tpu.memory_space<vmem>>, vector<1x16x8xf32>,
    return
  }
  func.func @transform_0(%arg0: i32) -> (i32, i32, i32, i32) {
    %c0_i32 = arith.constant 0 : i32
    %c0_i32_0 = arith.constant 0 : i32
    %c0_i32_1 = arith.constant 0 : i32
    %c0_i32_2 = arith.constant 0 : i32
    return %arg0, %c0_i32, %c0_i32_0, %c0_i32_1 : i32, i32, i32, i32
  }
  func.func @transform_1(%arg0: i32) -> (i32, i32) {
    %c0_i32 = arith.constant 0 : i32
    %c0_i32_0 = arith.constant 0 : i32
    %c0_i32_1 = arith.constant 0 : i32
    return %c0_i32, %c0_i32_0 : i32, i32
  }
  func.func @transform_2(%arg0: i32) -> (i32, i32) {
    %c0_i32 = arith.constant 0 : i32
    %c0_i32_0 = arith.constant 0 : i32
    %c0_i32_1 = arith.constant 0 : i32
    return %c0_i32, %c0_i32_0 : i32, i32
  }
  func.func @transform_3(%arg0: i32) -> (i32, i32) {
    %c0_i32 = arith.constant 0 : i32
    %c0_i32_0 = arith.constant 0 : i32
    %c0_i32_1 = arith.constant 0 : i32
    return %c0_i32, %c0_i32_0 : i32, i32
  }
  func.func @transform_4(%arg0: i32) -> (i32, i32) {
    %c0_i32 = arith.constant 0 : i32
    %c0_i32_0 = arith.constant 0 : i32
    %c0_i32_1 = arith.constant 0 : i32
    return %c0_i32, %c0_i32_0 : i32, i32
  }
  func.func @transform_5(%arg0: i32) -> (i32, i32) {
    %c0_i32 = arith.constant 0 : i32
    %c0_i32_0 = arith.constant 0 : i32
    %c0_i32_1 = arith.constant 0 : i32
    return %c0_i32, %c0_i32_0 : i32, i32
  }
  func.func @transform_6(%arg0: i32) -> (i32, i32) {
    %c0_i32 = arith.constant 0 : i32
    %c0_i32_0 = arith.constant 0 : i32
    %c0_i32_1 = arith.constant 0 : i32
    return %c0_i32, %c0_i32_0 : i32, i32
  }
  func.func @transform_7(%arg0: i32) -> (i32, i32) {
    %c0_i32 = arith.constant 0 : i32
    %c0_i32_0 = arith.constant 0 : i32
    %c0_i32_1 = arith.constant 0 : i32
    return %c0_i32, %c0_i32_0 : i32, i32
  }
  func.func @transform_8(%arg0: i32) -> (i32, i32) {
    %c0_i32 = arith.constant 0 : i32
    %c0_i32_0 = arith.constant 0 : i32
    %c0_i32_1 = arith.constant 0 : i32
    return %c0_i32, %c0_i32_0 : i32, i32
  }
  func.func @transform_9(%arg0: i32) -> (i32, i32) {
    %c0_i32 = arith.constant 0 : i32
    %c0_i32_0 = arith.constant 0 : i32
    %c0_i32_1 = arith.constant 0 : i32
    return %c0_i32, %c0_i32_0 : i32, i32
  }
  func.func @transform_10(%arg0: i32) -> (i32, i32) {
    %c0_i32 = arith.constant 0 : i32
    %c0_i32_0 = arith.constant 0 : i32
    %c0_i32_1 = arith.constant 0 : i32
    return %c0_i32, %c0_i32_0 : i32, i32
  }
  func.func @transform_11(%arg0: i32) -> (i32, i32, i32) {
    %c0_i32 = arith.constant 0 : i32
    %c0_i32_0 = arith.constant 0 : i32
    %c0_i32_1 = arith.constant 0 : i32
    return %arg0, %c0_i32, %c0_i32_0 : i32, i32, i32
  }
  func.func @transform_12(%arg0: i32) -> (i32, i32, i32) {
    %c0_i32 = arith.constant 0 : i32
    %c0_i32_0 = arith.constant 0 : i32
    %c0_i32_1 = arith.constant 0 : i32
    return %arg0, %c0_i32, %c0_i32_0 : i32, i32, i32
  }
}

module attributes {stable_mosaic.version = 11 : i64} {
  func.func @_block_s1_kernel(%arg0: i32, %arg1: memref<1x16x8xf32, #tpu.memory_space<vmem>>, %arg2: memref<8x8xf32, #tpu.memory_space<vmem>>, %arg3: memref<1x8xf32, #tpu.memory_space<vmem>>, %arg4: memref<9x8xf32, #tpu.memory_space<vmem>>, %arg5: memref<1x8xf32, #tpu.memory_space<vmem>>, %arg6: memref<8x8xf32, #tpu.memory_space<vmem>>, %arg7: memref<1x8xf32, #tpu.memory_space<vmem>>, %arg8: memref<1x16x8xf32, #tpu.memory_space<vmem>>) attributes {dimension_semantics = [#tpu.dimension_semantics<parallel>], iteration_bounds = array<i64: 2>, scalar_prefetch = 0 : i64, scratch_operands = 0 : i64, tpu.core_type = #tpu.core_type<tc>, window_params = [{transform_indices = @transform_0, window_bounds = array<i64: 1, 16, 8>}, {pipeline_mode = #tpu.pipeline_mode<synchronous>, transform_indices = @transform_1, window_bounds = array<i64: 8, 8>}, {pipeline_mode = #tpu.pipeline_mode<synchronous>, transform_indices = @transform_2, window_bounds = array<i64: 1, 8>}, {pipeline_mode = #tpu.pipeline_mode<synchronous>, transform_indices = @transform_3, window_bounds = array<i64: 9, 8>}, {pipeline_mode = #tpu.pipeline_mode<synchronous>, transform_indices = @transform_4, window_bounds = array<i64: 1, 8>}, {pipeline_mode = #tpu.pipeline_mode<synchronous>, transform_indices = @transform_5, window_bounds = array<i64: 8, 8>}, {pipeline_mode = #tpu.pipeline_mode<synchronous>, transform_indices = @transform_6, window_bounds = array<i64: 1, 8>}, {transform_indices = @transform_7, window_bounds = array<i64: 1, 16, 8>}]} {
    %c0 = arith.constant 0 : index
    %c0_0 = arith.constant 0 : index
    %c0_1 = arith.constant 0 : index
    %0 = vector.load %arg1[%c0, %c0_0, %c0_1] : memref<1x16x8xf32, #tpu.memory_space<vmem>>, vector<1x16x8xf32>
    %1 = vector.shape_cast %0 : vector<1x16x8xf32> to vector<16x8xf32>
    %c0_2 = arith.constant 0 : index
    %c0_3 = arith.constant 0 : index
    %2 = vector.load %arg2[%c0_2, %c0_3] : memref<8x8xf32, #tpu.memory_space<vmem>>, vector<8x8xf32>
    %cst = arith.constant dense<0.000000e+00> : vector<16x8xf32>
    %3 = tpu.matmul %1, %2, %cst {dimension_numbers = #tpu.dot_dimension_numbers<[1], [0], [0], [1], [0, 0, 1, 1], [], []>} : vector<16x8xf32>, vector<8x8xf32>, vector<16x8xf32> -> vector<16x8xf32>
    %c0_4 = arith.constant 0 : index
    %c0_5 = arith.constant 0 : index
    %4 = vector.load %arg3[%c0_4, %c0_5] : memref<1x8xf32, #tpu.memory_space<vmem>>, vector<1x8xf32>
    %5 = vector.broadcast %4 : vector<1x8xf32> to vector<16x8xf32>
    %6 = arith.addf %3, %5 : vector<16x8xf32>
    %cst_6 = arith.constant 0.000000e+00 : f32
    %7 = vector.broadcast %cst_6 : f32 to vector<16x8xf32>
    %8 = arith.maximumf %6, %7 : vector<16x8xf32>
    %c0_7 = arith.constant 0 : index
    %c0_8 = arith.constant 0 : index
    %9 = vector.load %arg4[%c0_7, %c0_8] : memref<9x8xf32, #tpu.memory_space<vmem>>, vector<9x8xf32>
    %c0_9 = arith.constant 0 : index
    %c0_10 = arith.constant 0 : index
    %10 = vector.load %arg5[%c0_9, %c0_10] : memref<1x8xf32, #tpu.memory_space<vmem>>, vector<1x8xf32>
    %11 = tpu.iota {dimensions = array<i32: 0>} : vector<16x1xi32>
    %c4_i32 = arith.constant 4 : i32
    %c0_i32 = arith.constant 0 : i32
    %12 = arith.cmpi eq, %c4_i32, %c0_i32 : i32
    %c1_i32 = arith.constant 1 : i32
    %13 = arith.select %12, %c1_i32, %c4_i32 : i32
    %14 = vector.broadcast %13 : i32 to vector<16x1xi32>
    %15 = arith.remsi %11, %14 : vector<16x1xi32>
    %c0_i32_11 = arith.constant 0 : i32
    %16 = vector.broadcast %c0_i32_11 : i32 to vector<16x1xi32>
    %17 = arith.cmpi ne, %15, %16 : vector<16x1xi32>
    %c0_i32_12 = arith.constant 0 : i32
    %18 = vector.broadcast %c0_i32_12 : i32 to vector<16x1xi32>
    %19 = arith.cmpi slt, %15, %18 : vector<16x1xi32>
    %c0_i32_13 = arith.constant 0 : i32
    %20 = arith.cmpi slt, %13, %c0_i32_13 : i32
    %21 = vector.broadcast %20 : i1 to vector<16x1xi1>
    %22 = vector.broadcast %21 : vector<16x1xi1> to vector<16x1xi1>
    %23 = arith.xori %19, %22 : vector<16x1xi1>
    %24 = arith.andi %23, %17 : vector<16x1xi1>
    %25 = vector.broadcast %13 : i32 to vector<16x1xi32>
    %26 = arith.addi %15, %25 : vector<16x1xi32>
    %27 = arith.select %24, %26, %15 : vector<16x1xi1>, vector<16x1xi32>
    %cst_14 = arith.constant 0.000000e+00 : f32
    %28 = vector.broadcast %cst_14 : f32 to vector<5x8xf32>
    %29 = vector.extract_strided_slice %8 {offsets = [0, 0], sizes = [11, 8], strides = [1, 1]} : vector<16x8xf32> to vector<11x8xf32>
    %30 = tpu.concatenate %28, %29 in 0 : vector<5x8xf32>, vector<11x8xf32> -> vector<16x8xf32>
    %31 = vector.extract_strided_slice %9 {offsets = [0, 0], sizes = [1, 8], strides = [1, 1]} : vector<9x8xf32> to vector<1x8xf32>
    %32 = vector.broadcast %31 : vector<1x8xf32> to vector<16x8xf32>
    %33 = arith.mulf %30, %32 : vector<16x8xf32>
    %c1_i32_15 = arith.constant 1 : i32
    %34 = vector.broadcast %c1_i32_15 : i32 to vector<16x1xi32>
    %35 = arith.cmpi sge, %27, %34 : vector<16x1xi32>
    %cst_16 = arith.constant 0.000000e+00 : f32
    %36 = vector.shape_cast %35 : vector<16x1xi1> to vector<16x1xi1>
    %37 = vector.broadcast %36 : vector<16x1xi1> to vector<16x8xi1>
    %38 = vector.broadcast %cst_16 : f32 to vector<16x8xf32>
    %39 = arith.select %37, %33, %38 : vector<16x8xi1>, vector<16x8xf32>
    %cst_17 = arith.constant 0.000000e+00 : f32
    %40 = vector.broadcast %cst_17 : f32 to vector<4x8xf32>
    %41 = vector.extract_strided_slice %8 {offsets = [0, 0], sizes = [12, 8], strides = [1, 1]} : vector<16x8xf32> to vector<12x8xf32>
    %42 = tpu.concatenate %40, %41 in 0 : vector<4x8xf32>, vector<12x8xf32> -> vector<16x8xf32>
    %43 = vector.extract_strided_slice %9 {offsets = [1, 0], sizes = [1, 8], strides = [1, 1]} : vector<9x8xf32> to vector<1x8xf32>
    %44 = vector.broadcast %43 : vector<1x8xf32> to vector<16x8xf32>
    %45 = arith.mulf %42, %44 : vector<16x8xf32>
    %cst_18 = arith.constant 0.000000e+00 : f32
    %46 = vector.broadcast %cst_18 : f32 to vector<3x8xf32>
    %47 = vector.extract_strided_slice %8 {offsets = [0, 0], sizes = [13, 8], strides = [1, 1]} : vector<16x8xf32> to vector<13x8xf32>
    %48 = tpu.concatenate %46, %47 in 0 : vector<3x8xf32>, vector<13x8xf32> -> vector<16x8xf32>
    %49 = vector.extract_strided_slice %9 {offsets = [2, 0], sizes = [1, 8], strides = [1, 1]} : vector<9x8xf32> to vector<1x8xf32>
    %50 = vector.broadcast %49 : vector<1x8xf32> to vector<16x8xf32>
    %51 = arith.mulf %48, %50 : vector<16x8xf32>
    %c2_i32 = arith.constant 2 : i32
    %52 = vector.broadcast %c2_i32 : i32 to vector<16x1xi32>
    %53 = arith.cmpi sle, %27, %52 : vector<16x1xi32>
    %cst_19 = arith.constant 0.000000e+00 : f32
    %54 = vector.shape_cast %53 : vector<16x1xi1> to vector<16x1xi1>
    %55 = vector.broadcast %54 : vector<16x1xi1> to vector<16x8xi1>
    %56 = vector.broadcast %cst_19 : f32 to vector<16x8xf32>
    %57 = arith.select %55, %51, %56 : vector<16x8xi1>, vector<16x8xf32>
    %cst_20 = arith.constant 0.000000e+00 : f32
    %58 = vector.broadcast %cst_20 : f32 to vector<1x8xf32>
    %59 = vector.extract_strided_slice %8 {offsets = [0, 0], sizes = [15, 8], strides = [1, 1]} : vector<16x8xf32> to vector<15x8xf32>
    %60 = tpu.concatenate %58, %59 in 0 : vector<1x8xf32>, vector<15x8xf32> -> vector<16x8xf32>
    %61 = vector.extract_strided_slice %9 {offsets = [3, 0], sizes = [1, 8], strides = [1, 1]} : vector<9x8xf32> to vector<1x8xf32>
    %62 = vector.broadcast %61 : vector<1x8xf32> to vector<16x8xf32>
    %63 = arith.mulf %60, %62 : vector<16x8xf32>
    %c1_i32_21 = arith.constant 1 : i32
    %64 = vector.broadcast %c1_i32_21 : i32 to vector<16x1xi32>
    %65 = arith.cmpi sge, %27, %64 : vector<16x1xi32>
    %cst_22 = arith.constant 0.000000e+00 : f32
    %66 = vector.shape_cast %65 : vector<16x1xi1> to vector<16x1xi1>
    %67 = vector.broadcast %66 : vector<16x1xi1> to vector<16x8xi1>
    %68 = vector.broadcast %cst_22 : f32 to vector<16x8xf32>
    %69 = arith.select %67, %63, %68 : vector<16x8xi1>, vector<16x8xf32>
    %70 = vector.extract_strided_slice %9 {offsets = [4, 0], sizes = [1, 8], strides = [1, 1]} : vector<9x8xf32> to vector<1x8xf32>
    %71 = vector.broadcast %70 : vector<1x8xf32> to vector<16x8xf32>
    %72 = arith.mulf %8, %71 : vector<16x8xf32>
    %cst_23 = arith.constant 0.000000e+00 : f32
    %73 = vector.broadcast %cst_23 : f32 to vector<1x8xf32>
    %74 = vector.extract_strided_slice %8 {offsets = [1, 0], sizes = [15, 8], strides = [1, 1]} : vector<16x8xf32> to vector<15x8xf32>
    %75 = tpu.concatenate %74, %73 in 0 : vector<15x8xf32>, vector<1x8xf32> -> vector<16x8xf32>
    %76 = vector.extract_strided_slice %9 {offsets = [5, 0], sizes = [1, 8], strides = [1, 1]} : vector<9x8xf32> to vector<1x8xf32>
    %77 = vector.broadcast %76 : vector<1x8xf32> to vector<16x8xf32>
    %78 = arith.mulf %75, %77 : vector<16x8xf32>
    %c2_i32_24 = arith.constant 2 : i32
    %79 = vector.broadcast %c2_i32_24 : i32 to vector<16x1xi32>
    %80 = arith.cmpi sle, %27, %79 : vector<16x1xi32>
    %cst_25 = arith.constant 0.000000e+00 : f32
    %81 = vector.shape_cast %80 : vector<16x1xi1> to vector<16x1xi1>
    %82 = vector.broadcast %81 : vector<16x1xi1> to vector<16x8xi1>
    %83 = vector.broadcast %cst_25 : f32 to vector<16x8xf32>
    %84 = arith.select %82, %78, %83 : vector<16x8xi1>, vector<16x8xf32>
    %cst_26 = arith.constant 0.000000e+00 : f32
    %85 = vector.broadcast %cst_26 : f32 to vector<3x8xf32>
    %86 = vector.extract_strided_slice %8 {offsets = [3, 0], sizes = [13, 8], strides = [1, 1]} : vector<16x8xf32> to vector<13x8xf32>
    %87 = tpu.concatenate %86, %85 in 0 : vector<13x8xf32>, vector<3x8xf32> -> vector<16x8xf32>
    %88 = vector.extract_strided_slice %9 {offsets = [6, 0], sizes = [1, 8], strides = [1, 1]} : vector<9x8xf32> to vector<1x8xf32>
    %89 = vector.broadcast %88 : vector<1x8xf32> to vector<16x8xf32>
    %90 = arith.mulf %87, %89 : vector<16x8xf32>
    %c1_i32_27 = arith.constant 1 : i32
    %91 = vector.broadcast %c1_i32_27 : i32 to vector<16x1xi32>
    %92 = arith.cmpi sge, %27, %91 : vector<16x1xi32>
    %cst_28 = arith.constant 0.000000e+00 : f32
    %93 = vector.shape_cast %92 : vector<16x1xi1> to vector<16x1xi1>
    %94 = vector.broadcast %93 : vector<16x1xi1> to vector<16x8xi1>
    %95 = vector.broadcast %cst_28 : f32 to vector<16x8xf32>
    %96 = arith.select %94, %90, %95 : vector<16x8xi1>, vector<16x8xf32>
    %cst_29 = arith.constant 0.000000e+00 : f32
    %97 = vector.broadcast %cst_29 : f32 to vector<4x8xf32>
    %98 = vector.extract_strided_slice %8 {offsets = [4, 0], sizes = [12, 8], strides = [1, 1]} : vector<16x8xf32> to vector<12x8xf32>
    %99 = tpu.concatenate %98, %97 in 0 : vector<12x8xf32>, vector<4x8xf32> -> vector<16x8xf32>
    %100 = vector.extract_strided_slice %9 {offsets = [7, 0], sizes = [1, 8], strides = [1, 1]} : vector<9x8xf32> to vector<1x8xf32>
    %101 = vector.broadcast %100 : vector<1x8xf32> to vector<16x8xf32>
    %102 = arith.mulf %99, %101 : vector<16x8xf32>
    %cst_30 = arith.constant 0.000000e+00 : f32
    %103 = vector.broadcast %cst_30 : f32 to vector<5x8xf32>
    %104 = vector.extract_strided_slice %8 {offsets = [5, 0], sizes = [11, 8], strides = [1, 1]} : vector<16x8xf32> to vector<11x8xf32>
    %105 = tpu.concatenate %104, %103 in 0 : vector<11x8xf32>, vector<5x8xf32> -> vector<16x8xf32>
    %106 = vector.extract_strided_slice %9 {offsets = [8, 0], sizes = [1, 8], strides = [1, 1]} : vector<9x8xf32> to vector<1x8xf32>
    %107 = vector.broadcast %106 : vector<1x8xf32> to vector<16x8xf32>
    %108 = arith.mulf %105, %107 : vector<16x8xf32>
    %c2_i32_31 = arith.constant 2 : i32
    %109 = vector.broadcast %c2_i32_31 : i32 to vector<16x1xi32>
    %110 = arith.cmpi sle, %27, %109 : vector<16x1xi32>
    %cst_32 = arith.constant 0.000000e+00 : f32
    %111 = vector.shape_cast %110 : vector<16x1xi1> to vector<16x1xi1>
    %112 = vector.broadcast %111 : vector<16x1xi1> to vector<16x8xi1>
    %113 = vector.broadcast %cst_32 : f32 to vector<16x8xf32>
    %114 = arith.select %112, %108, %113 : vector<16x8xi1>, vector<16x8xf32>
    %115 = arith.addf %39, %45 : vector<16x8xf32>
    %116 = arith.addf %57, %69 : vector<16x8xf32>
    %117 = arith.addf %72, %84 : vector<16x8xf32>
    %118 = arith.addf %96, %102 : vector<16x8xf32>
    %119 = arith.addf %115, %116 : vector<16x8xf32>
    %120 = arith.addf %117, %118 : vector<16x8xf32>
    %121 = arith.addf %119, %120 : vector<16x8xf32>
    %122 = arith.addf %121, %114 : vector<16x8xf32>
    %123 = vector.broadcast %10 : vector<1x8xf32> to vector<16x8xf32>
    %124 = arith.addf %122, %123 : vector<16x8xf32>
    %c0_33 = arith.constant 0 : index
    %c0_34 = arith.constant 0 : index
    %125 = vector.load %arg6[%c0_33, %c0_34] : memref<8x8xf32, #tpu.memory_space<vmem>>, vector<8x8xf32>
    %cst_35 = arith.constant dense<0.000000e+00> : vector<16x8xf32>
    %126 = tpu.matmul %124, %125, %cst_35 {dimension_numbers = #tpu.dot_dimension_numbers<[1], [0], [0], [1], [0, 0, 1, 1], [], []>} : vector<16x8xf32>, vector<8x8xf32>, vector<16x8xf32> -> vector<16x8xf32>
    %c0_36 = arith.constant 0 : index
    %c0_37 = arith.constant 0 : index
    %127 = vector.load %arg7[%c0_36, %c0_37] : memref<1x8xf32, #tpu.memory_space<vmem>>, vector<1x8xf32>
    %128 = vector.broadcast %127 : vector<1x8xf32> to vector<16x8xf32>
    %129 = arith.addf %126, %128 : vector<16x8xf32>
    %cst_38 = arith.constant 0.000000e+00 : f32
    %130 = vector.broadcast %cst_38 : f32 to vector<16x8xf32>
    %131 = arith.maximumf %129, %130 : vector<16x8xf32>
    %c0_39 = arith.constant 0 : index
    %c0_40 = arith.constant 0 : index
    %c0_41 = arith.constant 0 : index
    %132 = vector.load %arg8[%c0_39, %c0_40, %c0_41] : memref<1x16x8xf32, #tpu.memory_space<vmem>>, vector<1x16x8xf32>
    %133 = vector.shape_cast %132 : vector<1x16x8xf32> to vector<16x8xf32>
    %134 = vector.shape_cast %131 : vector<16x8xf32> to vector<1x16x8xf32>
    tpu.vector_store %arg8[%c0_39, %c0_40, %c0_41], %134 {strides = array<i32>} : memref<1x16x8xf32, #tpu.memory_space<vmem>>, vector<1x16x8xf32>,
    return
  }
  func.func @transform_0(%arg0: i32) -> (i32, i32, i32) {
    %c0_i32 = arith.constant 0 : i32
    %c0_i32_0 = arith.constant 0 : i32
    %c0_i32_1 = arith.constant 0 : i32
    return %arg0, %c0_i32, %c0_i32_0 : i32, i32, i32
  }
  func.func @transform_1(%arg0: i32) -> (i32, i32) {
    %c0_i32 = arith.constant 0 : i32
    %c0_i32_0 = arith.constant 0 : i32
    %c0_i32_1 = arith.constant 0 : i32
    return %c0_i32, %c0_i32_0 : i32, i32
  }
  func.func @transform_2(%arg0: i32) -> (i32, i32) {
    %c0_i32 = arith.constant 0 : i32
    %c0_i32_0 = arith.constant 0 : i32
    %c0_i32_1 = arith.constant 0 : i32
    return %c0_i32, %c0_i32_0 : i32, i32
  }
  func.func @transform_3(%arg0: i32) -> (i32, i32) {
    %c0_i32 = arith.constant 0 : i32
    %c0_i32_0 = arith.constant 0 : i32
    %c0_i32_1 = arith.constant 0 : i32
    return %c0_i32, %c0_i32_0 : i32, i32
  }
  func.func @transform_4(%arg0: i32) -> (i32, i32) {
    %c0_i32 = arith.constant 0 : i32
    %c0_i32_0 = arith.constant 0 : i32
    %c0_i32_1 = arith.constant 0 : i32
    return %c0_i32, %c0_i32_0 : i32, i32
  }
  func.func @transform_5(%arg0: i32) -> (i32, i32) {
    %c0_i32 = arith.constant 0 : i32
    %c0_i32_0 = arith.constant 0 : i32
    %c0_i32_1 = arith.constant 0 : i32
    return %c0_i32, %c0_i32_0 : i32, i32
  }
  func.func @transform_6(%arg0: i32) -> (i32, i32) {
    %c0_i32 = arith.constant 0 : i32
    %c0_i32_0 = arith.constant 0 : i32
    %c0_i32_1 = arith.constant 0 : i32
    return %c0_i32, %c0_i32_0 : i32, i32
  }
  func.func @transform_7(%arg0: i32) -> (i32, i32, i32) {
    %c0_i32 = arith.constant 0 : i32
    %c0_i32_0 = arith.constant 0 : i32
    %c0_i32_1 = arith.constant 0 : i32
    return %arg0, %c0_i32, %c0_i32_0 : i32, i32, i32
  }
}

module attributes {stable_mosaic.version = 11 : i64} {
  func.func @_block_s2_kernel(%arg0: i32, %arg1: memref<1x4x4x16xf32, #tpu.memory_space<vmem>>, %arg2: memref<9x16xf32, #tpu.memory_space<vmem>>, %arg3: memref<1x16xf32, #tpu.memory_space<vmem>>, %arg4: memref<16x16xf32, #tpu.memory_space<vmem>>, %arg5: memref<1x16xf32, #tpu.memory_space<vmem>>, %arg6: memref<16x16xf32, #tpu.memory_space<vmem>>, %arg7: memref<1x16xf32, #tpu.memory_space<vmem>>, %arg8: memref<9x16xf32, #tpu.memory_space<vmem>>, %arg9: memref<1x16xf32, #tpu.memory_space<vmem>>, %arg10: memref<16x16xf32, #tpu.memory_space<vmem>>, %arg11: memref<1x16xf32, #tpu.memory_space<vmem>>, %arg12: memref<1x4x16xf32, #tpu.memory_space<vmem>>, %arg13: memref<1x4x16xf32, #tpu.memory_space<vmem>>) attributes {dimension_semantics = [#tpu.dimension_semantics<parallel>], iteration_bounds = array<i64: 2>, scalar_prefetch = 0 : i64, scratch_operands = 0 : i64, tpu.core_type = #tpu.core_type<tc>, window_params = [{transform_indices = @transform_0, window_bounds = array<i64: 1, 4, 4, 16>}, {pipeline_mode = #tpu.pipeline_mode<synchronous>, transform_indices = @transform_1, window_bounds = array<i64: 9, 16>}, {pipeline_mode = #tpu.pipeline_mode<synchronous>, transform_indices = @transform_2, window_bounds = array<i64: 1, 16>}, {pipeline_mode = #tpu.pipeline_mode<synchronous>, transform_indices = @transform_3, window_bounds = array<i64: 16, 16>}, {pipeline_mode = #tpu.pipeline_mode<synchronous>, transform_indices = @transform_4, window_bounds = array<i64: 1, 16>}, {pipeline_mode = #tpu.pipeline_mode<synchronous>, transform_indices = @transform_5, window_bounds = array<i64: 16, 16>}, {pipeline_mode = #tpu.pipeline_mode<synchronous>, transform_indices = @transform_6, window_bounds = array<i64: 1, 16>}, {pipeline_mode = #tpu.pipeline_mode<synchronous>, transform_indices = @transform_7, window_bounds = array<i64: 9, 16>}, {pipeline_mode = #tpu.pipeline_mode<synchronous>, transform_indices = @transform_8, window_bounds = array<i64: 1, 16>}, {pipeline_mode = #tpu.pipeline_mode<synchronous>, transform_indices = @transform_9, window_bounds = array<i64: 16, 16>}, {pipeline_mode = #tpu.pipeline_mode<synchronous>, transform_indices = @transform_10, window_bounds = array<i64: 1, 16>}, {transform_indices = @transform_11, window_bounds = array<i64: 1, 4, 16>}, {transform_indices = @transform_12, window_bounds = array<i64: 1, 4, 16>}]} {
    %c0 = arith.constant 0 : index
    %c0_0 = arith.constant 0 : index
    %c0_1 = arith.constant 0 : index
    %c0_2 = arith.constant 0 : index
    %0 = vector.load %arg1[%c0, %c0_0, %c0_1, %c0_2] : memref<1x4x4x16xf32, #tpu.memory_space<vmem>>, vector<1x1x4x16xf32>
    %1 = vector.shape_cast %0 : vector<1x1x4x16xf32> to vector<4x16xf32>
    %c0_3 = arith.constant 0 : index
    %c1 = arith.constant 1 : index
    %c0_4 = arith.constant 0 : index
    %c0_5 = arith.constant 0 : index
    %2 = vector.load %arg1[%c0_3, %c1, %c0_4, %c0_5] : memref<1x4x4x16xf32, #tpu.memory_space<vmem>>, vector<1x1x4x16xf32>
    %3 = vector.shape_cast %2 : vector<1x1x4x16xf32> to vector<4x16xf32>
    %c0_6 = arith.constant 0 : index
    %c2 = arith.constant 2 : index
    %c0_7 = arith.constant 0 : index
    %c0_8 = arith.constant 0 : index
    %4 = vector.load %arg1[%c0_6, %c2, %c0_7, %c0_8] : memref<1x4x4x16xf32, #tpu.memory_space<vmem>>, vector<1x1x4x16xf32>
    %5 = vector.shape_cast %4 : vector<1x1x4x16xf32> to vector<4x16xf32>
    %c0_9 = arith.constant 0 : index
    %c3 = arith.constant 3 : index
    %c0_10 = arith.constant 0 : index
    %c0_11 = arith.constant 0 : index
    %6 = vector.load %arg1[%c0_9, %c3, %c0_10, %c0_11] : memref<1x4x4x16xf32, #tpu.memory_space<vmem>>, vector<1x1x4x16xf32>
    %7 = vector.shape_cast %6 : vector<1x1x4x16xf32> to vector<4x16xf32>
    %c0_12 = arith.constant 0 : index
    %c0_13 = arith.constant 0 : index
    %8 = vector.load %arg2[%c0_12, %c0_13] : memref<9x16xf32, #tpu.memory_space<vmem>>, vector<9x16xf32>
    %c0_14 = arith.constant 0 : index
    %c0_15 = arith.constant 0 : index
    %9 = vector.load %arg3[%c0_14, %c0_15] : memref<1x16xf32, #tpu.memory_space<vmem>>, vector<1x16xf32>
    %10 = tpu.iota {dimensions = array<i32: 0>} : vector<4x1xi32>
    %c2_i32 = arith.constant 2 : i32
    %c0_i32 = arith.constant 0 : i32
    %11 = arith.cmpi eq, %c2_i32, %c0_i32 : i32
    %c1_i32 = arith.constant 1 : i32
    %12 = arith.select %11, %c1_i32, %c2_i32 : i32
    %13 = vector.broadcast %12 : i32 to vector<4x1xi32>
    %14 = arith.remsi %10, %13 : vector<4x1xi32>
    %c0_i32_16 = arith.constant 0 : i32
    %15 = vector.broadcast %c0_i32_16 : i32 to vector<4x1xi32>
    %16 = arith.cmpi ne, %14, %15 : vector<4x1xi32>
    %c0_i32_17 = arith.constant 0 : i32
    %17 = vector.broadcast %c0_i32_17 : i32 to vector<4x1xi32>
    %18 = arith.cmpi slt, %14, %17 : vector<4x1xi32>
    %c0_i32_18 = arith.constant 0 : i32
    %19 = arith.cmpi slt, %12, %c0_i32_18 : i32
    %20 = vector.broadcast %19 : i1 to vector<4x1xi1>
    %21 = vector.broadcast %20 : vector<4x1xi1> to vector<4x1xi1>
    %22 = arith.xori %18, %21 : vector<4x1xi1>
    %23 = arith.andi %22, %16 : vector<4x1xi1>
    %24 = vector.broadcast %12 : i32 to vector<4x1xi32>
    %25 = arith.addi %14, %24 : vector<4x1xi32>
    %26 = arith.select %23, %25, %14 : vector<4x1xi1>, vector<4x1xi32>
    %cst = arith.constant 0.000000e+00 : f32
    %27 = vector.broadcast %cst : f32 to vector<3x16xf32>
    %28 = vector.extract_strided_slice %7 {offsets = [0, 0], sizes = [1, 16], strides = [1, 1]} : vector<4x16xf32> to vector<1x16xf32>
    %29 = tpu.concatenate %27, %28 in 0 : vector<3x16xf32>, vector<1x16xf32> -> vector<4x16xf32>
    %30 = vector.extract_strided_slice %8 {offsets = [0, 0], sizes = [1, 16], strides = [1, 1]} : vector<9x16xf32> to vector<1x16xf32>
    %31 = vector.broadcast %30 : vector<1x16xf32> to vector<4x16xf32>
    %32 = arith.mulf %29, %31 : vector<4x16xf32>
    %c1_i32_19 = arith.constant 1 : i32
    %33 = vector.broadcast %c1_i32_19 : i32 to vector<4x1xi32>
    %34 = arith.cmpi sge, %26, %33 : vector<4x1xi32>
    %cst_20 = arith.constant 0.000000e+00 : f32
    %35 = vector.shape_cast %34 : vector<4x1xi1> to vector<4x1xi1>
    %36 = vector.broadcast %35 : vector<4x1xi1> to vector<4x16xi1>
    %37 = vector.broadcast %cst_20 : f32 to vector<4x16xf32>
    %38 = arith.select %36, %32, %37 : vector<4x16xi1>, vector<4x16xf32>
    %cst_21 = arith.constant 0.000000e+00 : f32
    %39 = vector.broadcast %cst_21 : f32 to vector<2x16xf32>
    %40 = vector.extract_strided_slice %5 {offsets = [0, 0], sizes = [2, 16], strides = [1, 1]} : vector<4x16xf32> to vector<2x16xf32>
    %41 = tpu.concatenate %39, %40 in 0 : vector<2x16xf32>, vector<2x16xf32> -> vector<4x16xf32>
    %42 = vector.extract_strided_slice %8 {offsets = [1, 0], sizes = [1, 16], strides = [1, 1]} : vector<9x16xf32> to vector<1x16xf32>
    %43 = vector.broadcast %42 : vector<1x16xf32> to vector<4x16xf32>
    %44 = arith.mulf %41, %43 : vector<4x16xf32>
    %cst_22 = arith.constant 0.000000e+00 : f32
    %45 = vector.broadcast %cst_22 : f32 to vector<2x16xf32>
    %46 = vector.extract_strided_slice %7 {offsets = [0, 0], sizes = [2, 16], strides = [1, 1]} : vector<4x16xf32> to vector<2x16xf32>
    %47 = tpu.concatenate %45, %46 in 0 : vector<2x16xf32>, vector<2x16xf32> -> vector<4x16xf32>
    %48 = vector.extract_strided_slice %8 {offsets = [2, 0], sizes = [1, 16], strides = [1, 1]} : vector<9x16xf32> to vector<1x16xf32>
    %49 = vector.broadcast %48 : vector<1x16xf32> to vector<4x16xf32>
    %50 = arith.mulf %47, %49 : vector<4x16xf32>
    %cst_23 = arith.constant 0.000000e+00 : f32
    %51 = vector.broadcast %cst_23 : f32 to vector<1x16xf32>
    %52 = vector.extract_strided_slice %3 {offsets = [0, 0], sizes = [3, 16], strides = [1, 1]} : vector<4x16xf32> to vector<3x16xf32>
    %53 = tpu.concatenate %51, %52 in 0 : vector<1x16xf32>, vector<3x16xf32> -> vector<4x16xf32>
    %54 = vector.extract_strided_slice %8 {offsets = [3, 0], sizes = [1, 16], strides = [1, 1]} : vector<9x16xf32> to vector<1x16xf32>
    %55 = vector.broadcast %54 : vector<1x16xf32> to vector<4x16xf32>
    %56 = arith.mulf %53, %55 : vector<4x16xf32>
    %c1_i32_24 = arith.constant 1 : i32
    %57 = vector.broadcast %c1_i32_24 : i32 to vector<4x1xi32>
    %58 = arith.cmpi sge, %26, %57 : vector<4x1xi32>
    %cst_25 = arith.constant 0.000000e+00 : f32
    %59 = vector.shape_cast %58 : vector<4x1xi1> to vector<4x1xi1>
    %60 = vector.broadcast %59 : vector<4x1xi1> to vector<4x16xi1>
    %61 = vector.broadcast %cst_25 : f32 to vector<4x16xf32>
    %62 = arith.select %60, %56, %61 : vector<4x16xi1>, vector<4x16xf32>
    %63 = vector.extract_strided_slice %8 {offsets = [4, 0], sizes = [1, 16], strides = [1, 1]} : vector<9x16xf32> to vector<1x16xf32>
    %64 = vector.broadcast %63 : vector<1x16xf32> to vector<4x16xf32>
    %65 = arith.mulf %1, %64 : vector<4x16xf32>
    %66 = vector.extract_strided_slice %8 {offsets = [5, 0], sizes = [1, 16], strides = [1, 1]} : vector<9x16xf32> to vector<1x16xf32>
    %67 = vector.broadcast %66 : vector<1x16xf32> to vector<4x16xf32>
    %68 = arith.mulf %3, %67 : vector<4x16xf32>
    %cst_26 = arith.constant 0.000000e+00 : f32
    %69 = vector.broadcast %cst_26 : f32 to vector<1x16xf32>
    %70 = vector.extract_strided_slice %7 {offsets = [0, 0], sizes = [3, 16], strides = [1, 1]} : vector<4x16xf32> to vector<3x16xf32>
    %71 = tpu.concatenate %69, %70 in 0 : vector<1x16xf32>, vector<3x16xf32> -> vector<4x16xf32>
    %72 = vector.extract_strided_slice %8 {offsets = [6, 0], sizes = [1, 16], strides = [1, 1]} : vector<9x16xf32> to vector<1x16xf32>
    %73 = vector.broadcast %72 : vector<1x16xf32> to vector<4x16xf32>
    %74 = arith.mulf %71, %73 : vector<4x16xf32>
    %c1_i32_27 = arith.constant 1 : i32
    %75 = vector.broadcast %c1_i32_27 : i32 to vector<4x1xi32>
    %76 = arith.cmpi sge, %26, %75 : vector<4x1xi32>
    %cst_28 = arith.constant 0.000000e+00 : f32
    %77 = vector.shape_cast %76 : vector<4x1xi1> to vector<4x1xi1>
    %78 = vector.broadcast %77 : vector<4x1xi1> to vector<4x16xi1>
    %79 = vector.broadcast %cst_28 : f32 to vector<4x16xf32>
    %80 = arith.select %78, %74, %79 : vector<4x16xi1>, vector<4x16xf32>
    %81 = vector.extract_strided_slice %8 {offsets = [7, 0], sizes = [1, 16], strides = [1, 1]} : vector<9x16xf32> to vector<1x16xf32>
    %82 = vector.broadcast %81 : vector<1x16xf32> to vector<4x16xf32>
    %83 = arith.mulf %5, %82 : vector<4x16xf32>
    %84 = vector.extract_strided_slice %8 {offsets = [8, 0], sizes = [1, 16], strides = [1, 1]} : vector<9x16xf32> to vector<1x16xf32>
    %85 = vector.broadcast %84 : vector<1x16xf32> to vector<4x16xf32>
    %86 = arith.mulf %7, %85 : vector<4x16xf32>
    %87 = arith.addf %38, %44 : vector<4x16xf32>
    %88 = arith.addf %50, %62 : vector<4x16xf32>
    %89 = arith.addf %65, %68 : vector<4x16xf32>
    %90 = arith.addf %80, %83 : vector<4x16xf32>
    %91 = arith.addf %87, %88 : vector<4x16xf32>
    %92 = arith.addf %89, %90 : vector<4x16xf32>
    %93 = arith.addf %91, %92 : vector<4x16xf32>
    %94 = arith.addf %93, %86 : vector<4x16xf32>
    %95 = vector.broadcast %9 : vector<1x16xf32> to vector<4x16xf32>
    %96 = arith.addf %94, %95 : vector<4x16xf32>
    %c0_29 = arith.constant 0 : index
    %c0_30 = arith.constant 0 : index
    %97 = vector.load %arg4[%c0_29, %c0_30] : memref<16x16xf32, #tpu.memory_space<vmem>>, vector<16x16xf32>
    %cst_31 = arith.constant dense<0.000000e+00> : vector<4x16xf32>
    %98 = tpu.matmul %96, %97, %cst_31 {dimension_numbers = #tpu.dot_dimension_numbers<[1], [0], [0], [1], [0, 0, 1, 1], [], []>} : vector<4x16xf32>, vector<16x16xf32>, vector<4x16xf32> -> vector<4x16xf32>
    %c0_32 = arith.constant 0 : index
    %c0_33 = arith.constant 0 : index
    %99 = vector.load %arg5[%c0_32, %c0_33] : memref<1x16xf32, #tpu.memory_space<vmem>>, vector<1x16xf32>
    %100 = vector.broadcast %99 : vector<1x16xf32> to vector<4x16xf32>
    %101 = arith.addf %98, %100 : vector<4x16xf32>
    %cst_34 = arith.constant 0.000000e+00 : f32
    %102 = vector.broadcast %cst_34 : f32 to vector<4x16xf32>
    %103 = arith.maximumf %101, %102 : vector<4x16xf32>
    %c0_35 = arith.constant 0 : index
    %c0_36 = arith.constant 0 : index
    %c0_37 = arith.constant 0 : index
    %104 = vector.load %arg12[%c0_35, %c0_36, %c0_37] : memref<1x4x16xf32, #tpu.memory_space<vmem>>, vector<1x4x16xf32>
    %105 = vector.shape_cast %104 : vector<1x4x16xf32> to vector<4x16xf32>
    %106 = vector.shape_cast %103 : vector<4x16xf32> to vector<1x4x16xf32>
    tpu.vector_store %arg12[%c0_35, %c0_36, %c0_37], %106 {strides = array<i32>} : memref<1x4x16xf32, #tpu.memory_space<vmem>>, vector<1x4x16xf32>,
    %c0_38 = arith.constant 0 : index
    %c0_39 = arith.constant 0 : index
    %107 = vector.load %arg6[%c0_38, %c0_39] : memref<16x16xf32, #tpu.memory_space<vmem>>, vector<16x16xf32>
    %cst_40 = arith.constant dense<0.000000e+00> : vector<4x16xf32>
    %108 = tpu.matmul %1, %107, %cst_40 {dimension_numbers = #tpu.dot_dimension_numbers<[1], [0], [0], [1], [0, 0, 1, 1], [], []>} : vector<4x16xf32>, vector<16x16xf32>, vector<4x16xf32> -> vector<4x16xf32>
    %c0_41 = arith.constant 0 : index
    %c0_42 = arith.constant 0 : index
    %109 = vector.load %arg7[%c0_41, %c0_42] : memref<1x16xf32, #tpu.memory_space<vmem>>, vector<1x16xf32>
    %110 = vector.broadcast %109 : vector<1x16xf32> to vector<4x16xf32>
    %111 = arith.addf %108, %110 : vector<4x16xf32>
    %cst_43 = arith.constant 0.000000e+00 : f32
    %112 = vector.broadcast %cst_43 : f32 to vector<4x16xf32>
    %113 = arith.maximumf %111, %112 : vector<4x16xf32>
    %c0_44 = arith.constant 0 : index
    %c0_45 = arith.constant 0 : index
    %114 = vector.load %arg6[%c0_44, %c0_45] : memref<16x16xf32, #tpu.memory_space<vmem>>, vector<16x16xf32>
    %cst_46 = arith.constant dense<0.000000e+00> : vector<4x16xf32>
    %115 = tpu.matmul %3, %114, %cst_46 {dimension_numbers = #tpu.dot_dimension_numbers<[1], [0], [0], [1], [0, 0, 1, 1], [], []>} : vector<4x16xf32>, vector<16x16xf32>, vector<4x16xf32> -> vector<4x16xf32>
    %c0_47 = arith.constant 0 : index
    %c0_48 = arith.constant 0 : index
    %116 = vector.load %arg7[%c0_47, %c0_48] : memref<1x16xf32, #tpu.memory_space<vmem>>, vector<1x16xf32>
    %117 = vector.broadcast %116 : vector<1x16xf32> to vector<4x16xf32>
    %118 = arith.addf %115, %117 : vector<4x16xf32>
    %cst_49 = arith.constant 0.000000e+00 : f32
    %119 = vector.broadcast %cst_49 : f32 to vector<4x16xf32>
    %120 = arith.maximumf %118, %119 : vector<4x16xf32>
    %c0_50 = arith.constant 0 : index
    %c0_51 = arith.constant 0 : index
    %121 = vector.load %arg6[%c0_50, %c0_51] : memref<16x16xf32, #tpu.memory_space<vmem>>, vector<16x16xf32>
    %cst_52 = arith.constant dense<0.000000e+00> : vector<4x16xf32>
    %122 = tpu.matmul %5, %121, %cst_52 {dimension_numbers = #tpu.dot_dimension_numbers<[1], [0], [0], [1], [0, 0, 1, 1], [], []>} : vector<4x16xf32>, vector<16x16xf32>, vector<4x16xf32> -> vector<4x16xf32>
    %c0_53 = arith.constant 0 : index
    %c0_54 = arith.constant 0 : index
    %123 = vector.load %arg7[%c0_53, %c0_54] : memref<1x16xf32, #tpu.memory_space<vmem>>, vector<1x16xf32>
    %124 = vector.broadcast %123 : vector<1x16xf32> to vector<4x16xf32>
    %125 = arith.addf %122, %124 : vector<4x16xf32>
    %cst_55 = arith.constant 0.000000e+00 : f32
    %126 = vector.broadcast %cst_55 : f32 to vector<4x16xf32>
    %127 = arith.maximumf %125, %126 : vector<4x16xf32>
    %c0_56 = arith.constant 0 : index
    %c0_57 = arith.constant 0 : index
    %128 = vector.load %arg6[%c0_56, %c0_57] : memref<16x16xf32, #tpu.memory_space<vmem>>, vector<16x16xf32>
    %cst_58 = arith.constant dense<0.000000e+00> : vector<4x16xf32>
    %129 = tpu.matmul %7, %128, %cst_58 {dimension_numbers = #tpu.dot_dimension_numbers<[1], [0], [0], [1], [0, 0, 1, 1], [], []>} : vector<4x16xf32>, vector<16x16xf32>, vector<4x16xf32> -> vector<4x16xf32>
    %c0_59 = arith.constant 0 : index
    %c0_60 = arith.constant 0 : index
    %130 = vector.load %arg7[%c0_59, %c0_60] : memref<1x16xf32, #tpu.memory_space<vmem>>, vector<1x16xf32>
    %131 = vector.broadcast %130 : vector<1x16xf32> to vector<4x16xf32>
    %132 = arith.addf %129, %131 : vector<4x16xf32>
    %cst_61 = arith.constant 0.000000e+00 : f32
    %133 = vector.broadcast %cst_61 : f32 to vector<4x16xf32>
    %134 = arith.maximumf %132, %133 : vector<4x16xf32>
    %c0_62 = arith.constant 0 : index
    %c0_63 = arith.constant 0 : index
    %135 = vector.load %arg8[%c0_62, %c0_63] : memref<9x16xf32, #tpu.memory_space<vmem>>, vector<9x16xf32>
    %c0_64 = arith.constant 0 : index
    %c0_65 = arith.constant 0 : index
    %136 = vector.load %arg9[%c0_64, %c0_65] : memref<1x16xf32, #tpu.memory_space<vmem>>, vector<1x16xf32>
    %137 = tpu.iota {dimensions = array<i32: 0>} : vector<4x1xi32>
    %c2_i32_66 = arith.constant 2 : i32
    %c0_i32_67 = arith.constant 0 : i32
    %138 = arith.cmpi eq, %c2_i32_66, %c0_i32_67 : i32
    %c1_i32_68 = arith.constant 1 : i32
    %139 = arith.select %138, %c1_i32_68, %c2_i32_66 : i32
    %140 = vector.broadcast %139 : i32 to vector<4x1xi32>
    %141 = arith.remsi %137, %140 : vector<4x1xi32>
    %c0_i32_69 = arith.constant 0 : i32
    %142 = vector.broadcast %c0_i32_69 : i32 to vector<4x1xi32>
    %143 = arith.cmpi ne, %141, %142 : vector<4x1xi32>
    %c0_i32_70 = arith.constant 0 : i32
    %144 = vector.broadcast %c0_i32_70 : i32 to vector<4x1xi32>
    %145 = arith.cmpi slt, %141, %144 : vector<4x1xi32>
    %c0_i32_71 = arith.constant 0 : i32
    %146 = arith.cmpi slt, %139, %c0_i32_71 : i32
    %147 = vector.broadcast %146 : i1 to vector<4x1xi1>
    %148 = vector.broadcast %147 : vector<4x1xi1> to vector<4x1xi1>
    %149 = arith.xori %145, %148 : vector<4x1xi1>
    %150 = arith.andi %149, %143 : vector<4x1xi1>
    %151 = vector.broadcast %139 : i32 to vector<4x1xi32>
    %152 = arith.addi %141, %151 : vector<4x1xi32>
    %153 = arith.select %150, %152, %141 : vector<4x1xi1>, vector<4x1xi32>
    %cst_72 = arith.constant 0.000000e+00 : f32
    %154 = vector.broadcast %cst_72 : f32 to vector<3x16xf32>
    %155 = vector.extract_strided_slice %134 {offsets = [0, 0], sizes = [1, 16], strides = [1, 1]} : vector<4x16xf32> to vector<1x16xf32>
    %156 = tpu.concatenate %154, %155 in 0 : vector<3x16xf32>, vector<1x16xf32> -> vector<4x16xf32>
    %157 = vector.extract_strided_slice %135 {offsets = [0, 0], sizes = [1, 16], strides = [1, 1]} : vector<9x16xf32> to vector<1x16xf32>
    %158 = vector.broadcast %157 : vector<1x16xf32> to vector<4x16xf32>
    %159 = arith.mulf %156, %158 : vector<4x16xf32>
    %c1_i32_73 = arith.constant 1 : i32
    %160 = vector.broadcast %c1_i32_73 : i32 to vector<4x1xi32>
    %161 = arith.cmpi sge, %153, %160 : vector<4x1xi32>
    %cst_74 = arith.constant 0.000000e+00 : f32
    %162 = vector.shape_cast %161 : vector<4x1xi1> to vector<4x1xi1>
    %163 = vector.broadcast %162 : vector<4x1xi1> to vector<4x16xi1>
    %164 = vector.broadcast %cst_74 : f32 to vector<4x16xf32>
    %165 = arith.select %163, %159, %164 : vector<4x16xi1>, vector<4x16xf32>
    %cst_75 = arith.constant 0.000000e+00 : f32
    %166 = vector.broadcast %cst_75 : f32 to vector<2x16xf32>
    %167 = vector.extract_strided_slice %127 {offsets = [0, 0], sizes = [2, 16], strides = [1, 1]} : vector<4x16xf32> to vector<2x16xf32>
    %168 = tpu.concatenate %166, %167 in 0 : vector<2x16xf32>, vector<2x16xf32> -> vector<4x16xf32>
    %169 = vector.extract_strided_slice %135 {offsets = [1, 0], sizes = [1, 16], strides = [1, 1]} : vector<9x16xf32> to vector<1x16xf32>
    %170 = vector.broadcast %169 : vector<1x16xf32> to vector<4x16xf32>
    %171 = arith.mulf %168, %170 : vector<4x16xf32>
    %cst_76 = arith.constant 0.000000e+00 : f32
    %172 = vector.broadcast %cst_76 : f32 to vector<2x16xf32>
    %173 = vector.extract_strided_slice %134 {offsets = [0, 0], sizes = [2, 16], strides = [1, 1]} : vector<4x16xf32> to vector<2x16xf32>
    %174 = tpu.concatenate %172, %173 in 0 : vector<2x16xf32>, vector<2x16xf32> -> vector<4x16xf32>
    %175 = vector.extract_strided_slice %135 {offsets = [2, 0], sizes = [1, 16], strides = [1, 1]} : vector<9x16xf32> to vector<1x16xf32>
    %176 = vector.broadcast %175 : vector<1x16xf32> to vector<4x16xf32>
    %177 = arith.mulf %174, %176 : vector<4x16xf32>
    %cst_77 = arith.constant 0.000000e+00 : f32
    %178 = vector.broadcast %cst_77 : f32 to vector<1x16xf32>
    %179 = vector.extract_strided_slice %120 {offsets = [0, 0], sizes = [3, 16], strides = [1, 1]} : vector<4x16xf32> to vector<3x16xf32>
    %180 = tpu.concatenate %178, %179 in 0 : vector<1x16xf32>, vector<3x16xf32> -> vector<4x16xf32>
    %181 = vector.extract_strided_slice %135 {offsets = [3, 0], sizes = [1, 16], strides = [1, 1]} : vector<9x16xf32> to vector<1x16xf32>
    %182 = vector.broadcast %181 : vector<1x16xf32> to vector<4x16xf32>
    %183 = arith.mulf %180, %182 : vector<4x16xf32>
    %c1_i32_78 = arith.constant 1 : i32
    %184 = vector.broadcast %c1_i32_78 : i32 to vector<4x1xi32>
    %185 = arith.cmpi sge, %153, %184 : vector<4x1xi32>
    %cst_79 = arith.constant 0.000000e+00 : f32
    %186 = vector.shape_cast %185 : vector<4x1xi1> to vector<4x1xi1>
    %187 = vector.broadcast %186 : vector<4x1xi1> to vector<4x16xi1>
    %188 = vector.broadcast %cst_79 : f32 to vector<4x16xf32>
    %189 = arith.select %187, %183, %188 : vector<4x16xi1>, vector<4x16xf32>
    %190 = vector.extract_strided_slice %135 {offsets = [4, 0], sizes = [1, 16], strides = [1, 1]} : vector<9x16xf32> to vector<1x16xf32>
    %191 = vector.broadcast %190 : vector<1x16xf32> to vector<4x16xf32>
    %192 = arith.mulf %113, %191 : vector<4x16xf32>
    %193 = vector.extract_strided_slice %135 {offsets = [5, 0], sizes = [1, 16], strides = [1, 1]} : vector<9x16xf32> to vector<1x16xf32>
    %194 = vector.broadcast %193 : vector<1x16xf32> to vector<4x16xf32>
    %195 = arith.mulf %120, %194 : vector<4x16xf32>
    %cst_80 = arith.constant 0.000000e+00 : f32
    %196 = vector.broadcast %cst_80 : f32 to vector<1x16xf32>
    %197 = vector.extract_strided_slice %134 {offsets = [0, 0], sizes = [3, 16], strides = [1, 1]} : vector<4x16xf32> to vector<3x16xf32>
    %198 = tpu.concatenate %196, %197 in 0 : vector<1x16xf32>, vector<3x16xf32> -> vector<4x16xf32>
    %199 = vector.extract_strided_slice %135 {offsets = [6, 0], sizes = [1, 16], strides = [1, 1]} : vector<9x16xf32> to vector<1x16xf32>
    %200 = vector.broadcast %199 : vector<1x16xf32> to vector<4x16xf32>
    %201 = arith.mulf %198, %200 : vector<4x16xf32>
    %c1_i32_81 = arith.constant 1 : i32
    %202 = vector.broadcast %c1_i32_81 : i32 to vector<4x1xi32>
    %203 = arith.cmpi sge, %153, %202 : vector<4x1xi32>
    %cst_82 = arith.constant 0.000000e+00 : f32
    %204 = vector.shape_cast %203 : vector<4x1xi1> to vector<4x1xi1>
    %205 = vector.broadcast %204 : vector<4x1xi1> to vector<4x16xi1>
    %206 = vector.broadcast %cst_82 : f32 to vector<4x16xf32>
    %207 = arith.select %205, %201, %206 : vector<4x16xi1>, vector<4x16xf32>
    %208 = vector.extract_strided_slice %135 {offsets = [7, 0], sizes = [1, 16], strides = [1, 1]} : vector<9x16xf32> to vector<1x16xf32>
    %209 = vector.broadcast %208 : vector<1x16xf32> to vector<4x16xf32>
    %210 = arith.mulf %127, %209 : vector<4x16xf32>
    %211 = vector.extract_strided_slice %135 {offsets = [8, 0], sizes = [1, 16], strides = [1, 1]} : vector<9x16xf32> to vector<1x16xf32>
    %212 = vector.broadcast %211 : vector<1x16xf32> to vector<4x16xf32>
    %213 = arith.mulf %134, %212 : vector<4x16xf32>
    %214 = arith.addf %165, %171 : vector<4x16xf32>
    %215 = arith.addf %177, %189 : vector<4x16xf32>
    %216 = arith.addf %192, %195 : vector<4x16xf32>
    %217 = arith.addf %207, %210 : vector<4x16xf32>
    %218 = arith.addf %214, %215 : vector<4x16xf32>
    %219 = arith.addf %216, %217 : vector<4x16xf32>
    %220 = arith.addf %218, %219 : vector<4x16xf32>
    %221 = arith.addf %220, %213 : vector<4x16xf32>
    %222 = vector.broadcast %136 : vector<1x16xf32> to vector<4x16xf32>
    %223 = arith.addf %221, %222 : vector<4x16xf32>
    %c0_83 = arith.constant 0 : index
    %c0_84 = arith.constant 0 : index
    %224 = vector.load %arg10[%c0_83, %c0_84] : memref<16x16xf32, #tpu.memory_space<vmem>>, vector<16x16xf32>
    %cst_85 = arith.constant dense<0.000000e+00> : vector<4x16xf32>
    %225 = tpu.matmul %223, %224, %cst_85 {dimension_numbers = #tpu.dot_dimension_numbers<[1], [0], [0], [1], [0, 0, 1, 1], [], []>} : vector<4x16xf32>, vector<16x16xf32>, vector<4x16xf32> -> vector<4x16xf32>
    %c0_86 = arith.constant 0 : index
    %c0_87 = arith.constant 0 : index
    %226 = vector.load %arg11[%c0_86, %c0_87] : memref<1x16xf32, #tpu.memory_space<vmem>>, vector<1x16xf32>
    %227 = vector.broadcast %226 : vector<1x16xf32> to vector<4x16xf32>
    %228 = arith.addf %225, %227 : vector<4x16xf32>
    %cst_88 = arith.constant 0.000000e+00 : f32
    %229 = vector.broadcast %cst_88 : f32 to vector<4x16xf32>
    %230 = arith.maximumf %228, %229 : vector<4x16xf32>
    %c0_89 = arith.constant 0 : index
    %c0_90 = arith.constant 0 : index
    %c0_91 = arith.constant 0 : index
    %231 = vector.load %arg13[%c0_89, %c0_90, %c0_91] : memref<1x4x16xf32, #tpu.memory_space<vmem>>, vector<1x4x16xf32>
    %232 = vector.shape_cast %231 : vector<1x4x16xf32> to vector<4x16xf32>
    %233 = vector.shape_cast %230 : vector<4x16xf32> to vector<1x4x16xf32>
    tpu.vector_store %arg13[%c0_89, %c0_90, %c0_91], %233 {strides = array<i32>} : memref<1x4x16xf32, #tpu.memory_space<vmem>>, vector<1x4x16xf32>,
    return
  }
  func.func @transform_0(%arg0: i32) -> (i32, i32, i32, i32) {
    %c0_i32 = arith.constant 0 : i32
    %c0_i32_0 = arith.constant 0 : i32
    %c0_i32_1 = arith.constant 0 : i32
    %c0_i32_2 = arith.constant 0 : i32
    return %arg0, %c0_i32, %c0_i32_0, %c0_i32_1 : i32, i32, i32, i32
  }
  func.func @transform_1(%arg0: i32) -> (i32, i32) {
    %c0_i32 = arith.constant 0 : i32
    %c0_i32_0 = arith.constant 0 : i32
    %c0_i32_1 = arith.constant 0 : i32
    return %c0_i32, %c0_i32_0 : i32, i32
  }
  func.func @transform_2(%arg0: i32) -> (i32, i32) {
    %c0_i32 = arith.constant 0 : i32
    %c0_i32_0 = arith.constant 0 : i32
    %c0_i32_1 = arith.constant 0 : i32
    return %c0_i32, %c0_i32_0 : i32, i32
  }
  func.func @transform_3(%arg0: i32) -> (i32, i32) {
    %c0_i32 = arith.constant 0 : i32
    %c0_i32_0 = arith.constant 0 : i32
    %c0_i32_1 = arith.constant 0 : i32
    return %c0_i32, %c0_i32_0 : i32, i32
  }
  func.func @transform_4(%arg0: i32) -> (i32, i32) {
    %c0_i32 = arith.constant 0 : i32
    %c0_i32_0 = arith.constant 0 : i32
    %c0_i32_1 = arith.constant 0 : i32
    return %c0_i32, %c0_i32_0 : i32, i32
  }
  func.func @transform_5(%arg0: i32) -> (i32, i32) {
    %c0_i32 = arith.constant 0 : i32
    %c0_i32_0 = arith.constant 0 : i32
    %c0_i32_1 = arith.constant 0 : i32
    return %c0_i32, %c0_i32_0 : i32, i32
  }
  func.func @transform_6(%arg0: i32) -> (i32, i32) {
    %c0_i32 = arith.constant 0 : i32
    %c0_i32_0 = arith.constant 0 : i32
    %c0_i32_1 = arith.constant 0 : i32
    return %c0_i32, %c0_i32_0 : i32, i32
  }
  func.func @transform_7(%arg0: i32) -> (i32, i32) {
    %c0_i32 = arith.constant 0 : i32
    %c0_i32_0 = arith.constant 0 : i32
    %c0_i32_1 = arith.constant 0 : i32
    return %c0_i32, %c0_i32_0 : i32, i32
  }
  func.func @transform_8(%arg0: i32) -> (i32, i32) {
    %c0_i32 = arith.constant 0 : i32
    %c0_i32_0 = arith.constant 0 : i32
    %c0_i32_1 = arith.constant 0 : i32
    return %c0_i32, %c0_i32_0 : i32, i32
  }
  func.func @transform_9(%arg0: i32) -> (i32, i32) {
    %c0_i32 = arith.constant 0 : i32
    %c0_i32_0 = arith.constant 0 : i32
    %c0_i32_1 = arith.constant 0 : i32
    return %c0_i32, %c0_i32_0 : i32, i32
  }
  func.func @transform_10(%arg0: i32) -> (i32, i32) {
    %c0_i32 = arith.constant 0 : i32
    %c0_i32_0 = arith.constant 0 : i32
    %c0_i32_1 = arith.constant 0 : i32
    return %c0_i32, %c0_i32_0 : i32, i32
  }
  func.func @transform_11(%arg0: i32) -> (i32, i32, i32) {
    %c0_i32 = arith.constant 0 : i32
    %c0_i32_0 = arith.constant 0 : i32
    %c0_i32_1 = arith.constant 0 : i32
    return %arg0, %c0_i32, %c0_i32_0 : i32, i32, i32
  }
  func.func @transform_12(%arg0: i32) -> (i32, i32, i32) {
    %c0_i32 = arith.constant 0 : i32
    %c0_i32_0 = arith.constant 0 : i32
    %c0_i32_1 = arith.constant 0 : i32
    return %arg0, %c0_i32, %c0_i32_0 : i32, i32, i32
  }
}

module attributes {stable_mosaic.version = 11 : i64} {
  func.func @_block_s1_kernel(%arg0: i32, %arg1: memref<1x4x16xf32, #tpu.memory_space<vmem>>, %arg2: memref<16x16xf32, #tpu.memory_space<vmem>>, %arg3: memref<1x16xf32, #tpu.memory_space<vmem>>, %arg4: memref<9x16xf32, #tpu.memory_space<vmem>>, %arg5: memref<1x16xf32, #tpu.memory_space<vmem>>, %arg6: memref<16x16xf32, #tpu.memory_space<vmem>>, %arg7: memref<1x16xf32, #tpu.memory_space<vmem>>, %arg8: memref<1x4x16xf32, #tpu.memory_space<vmem>>) attributes {dimension_semantics = [#tpu.dimension_semantics<parallel>], iteration_bounds = array<i64: 2>, scalar_prefetch = 0 : i64, scratch_operands = 0 : i64, tpu.core_type = #tpu.core_type<tc>, window_params = [{transform_indices = @transform_0, window_bounds = array<i64: 1, 4, 16>}, {pipeline_mode = #tpu.pipeline_mode<synchronous>, transform_indices = @transform_1, window_bounds = array<i64: 16, 16>}, {pipeline_mode = #tpu.pipeline_mode<synchronous>, transform_indices = @transform_2, window_bounds = array<i64: 1, 16>}, {pipeline_mode = #tpu.pipeline_mode<synchronous>, transform_indices = @transform_3, window_bounds = array<i64: 9, 16>}, {pipeline_mode = #tpu.pipeline_mode<synchronous>, transform_indices = @transform_4, window_bounds = array<i64: 1, 16>}, {pipeline_mode = #tpu.pipeline_mode<synchronous>, transform_indices = @transform_5, window_bounds = array<i64: 16, 16>}, {pipeline_mode = #tpu.pipeline_mode<synchronous>, transform_indices = @transform_6, window_bounds = array<i64: 1, 16>}, {transform_indices = @transform_7, window_bounds = array<i64: 1, 4, 16>}]} {
    %c0 = arith.constant 0 : index
    %c0_0 = arith.constant 0 : index
    %c0_1 = arith.constant 0 : index
    %0 = vector.load %arg1[%c0, %c0_0, %c0_1] : memref<1x4x16xf32, #tpu.memory_space<vmem>>, vector<1x4x16xf32>
    %1 = vector.shape_cast %0 : vector<1x4x16xf32> to vector<4x16xf32>
    %c0_2 = arith.constant 0 : index
    %c0_3 = arith.constant 0 : index
    %2 = vector.load %arg2[%c0_2, %c0_3] : memref<16x16xf32, #tpu.memory_space<vmem>>, vector<16x16xf32>
    %cst = arith.constant dense<0.000000e+00> : vector<4x16xf32>
    %3 = tpu.matmul %1, %2, %cst {dimension_numbers = #tpu.dot_dimension_numbers<[1], [0], [0], [1], [0, 0, 1, 1], [], []>} : vector<4x16xf32>, vector<16x16xf32>, vector<4x16xf32> -> vector<4x16xf32>
    %c0_4 = arith.constant 0 : index
    %c0_5 = arith.constant 0 : index
    %4 = vector.load %arg3[%c0_4, %c0_5] : memref<1x16xf32, #tpu.memory_space<vmem>>, vector<1x16xf32>
    %5 = vector.broadcast %4 : vector<1x16xf32> to vector<4x16xf32>
    %6 = arith.addf %3, %5 : vector<4x16xf32>
    %cst_6 = arith.constant 0.000000e+00 : f32
    %7 = vector.broadcast %cst_6 : f32 to vector<4x16xf32>
    %8 = arith.maximumf %6, %7 : vector<4x16xf32>
    %c0_7 = arith.constant 0 : index
    %c0_8 = arith.constant 0 : index
    %9 = vector.load %arg4[%c0_7, %c0_8] : memref<9x16xf32, #tpu.memory_space<vmem>>, vector<9x16xf32>
    %c0_9 = arith.constant 0 : index
    %c0_10 = arith.constant 0 : index
    %10 = vector.load %arg5[%c0_9, %c0_10] : memref<1x16xf32, #tpu.memory_space<vmem>>, vector<1x16xf32>
    %11 = tpu.iota {dimensions = array<i32: 0>} : vector<4x1xi32>
    %c2_i32 = arith.constant 2 : i32
    %c0_i32 = arith.constant 0 : i32
    %12 = arith.cmpi eq, %c2_i32, %c0_i32 : i32
    %c1_i32 = arith.constant 1 : i32
    %13 = arith.select %12, %c1_i32, %c2_i32 : i32
    %14 = vector.broadcast %13 : i32 to vector<4x1xi32>
    %15 = arith.remsi %11, %14 : vector<4x1xi32>
    %c0_i32_11 = arith.constant 0 : i32
    %16 = vector.broadcast %c0_i32_11 : i32 to vector<4x1xi32>
    %17 = arith.cmpi ne, %15, %16 : vector<4x1xi32>
    %c0_i32_12 = arith.constant 0 : i32
    %18 = vector.broadcast %c0_i32_12 : i32 to vector<4x1xi32>
    %19 = arith.cmpi slt, %15, %18 : vector<4x1xi32>
    %c0_i32_13 = arith.constant 0 : i32
    %20 = arith.cmpi slt, %13, %c0_i32_13 : i32
    %21 = vector.broadcast %20 : i1 to vector<4x1xi1>
    %22 = vector.broadcast %21 : vector<4x1xi1> to vector<4x1xi1>
    %23 = arith.xori %19, %22 : vector<4x1xi1>
    %24 = arith.andi %23, %17 : vector<4x1xi1>
    %25 = vector.broadcast %13 : i32 to vector<4x1xi32>
    %26 = arith.addi %15, %25 : vector<4x1xi32>
    %27 = arith.select %24, %26, %15 : vector<4x1xi1>, vector<4x1xi32>
    %cst_14 = arith.constant 0.000000e+00 : f32
    %28 = vector.broadcast %cst_14 : f32 to vector<3x16xf32>
    %29 = vector.extract_strided_slice %8 {offsets = [0, 0], sizes = [1, 16], strides = [1, 1]} : vector<4x16xf32> to vector<1x16xf32>
    %30 = tpu.concatenate %28, %29 in 0 : vector<3x16xf32>, vector<1x16xf32> -> vector<4x16xf32>
    %31 = vector.extract_strided_slice %9 {offsets = [0, 0], sizes = [1, 16], strides = [1, 1]} : vector<9x16xf32> to vector<1x16xf32>
    %32 = vector.broadcast %31 : vector<1x16xf32> to vector<4x16xf32>
    %33 = arith.mulf %30, %32 : vector<4x16xf32>
    %c1_i32_15 = arith.constant 1 : i32
    %34 = vector.broadcast %c1_i32_15 : i32 to vector<4x1xi32>
    %35 = arith.cmpi sge, %27, %34 : vector<4x1xi32>
    %cst_16 = arith.constant 0.000000e+00 : f32
    %36 = vector.shape_cast %35 : vector<4x1xi1> to vector<4x1xi1>
    %37 = vector.broadcast %36 : vector<4x1xi1> to vector<4x16xi1>
    %38 = vector.broadcast %cst_16 : f32 to vector<4x16xf32>
    %39 = arith.select %37, %33, %38 : vector<4x16xi1>, vector<4x16xf32>
    %cst_17 = arith.constant 0.000000e+00 : f32
    %40 = vector.broadcast %cst_17 : f32 to vector<2x16xf32>
    %41 = vector.extract_strided_slice %8 {offsets = [0, 0], sizes = [2, 16], strides = [1, 1]} : vector<4x16xf32> to vector<2x16xf32>
    %42 = tpu.concatenate %40, %41 in 0 : vector<2x16xf32>, vector<2x16xf32> -> vector<4x16xf32>
    %43 = vector.extract_strided_slice %9 {offsets = [1, 0], sizes = [1, 16], strides = [1, 1]} : vector<9x16xf32> to vector<1x16xf32>
    %44 = vector.broadcast %43 : vector<1x16xf32> to vector<4x16xf32>
    %45 = arith.mulf %42, %44 : vector<4x16xf32>
    %cst_18 = arith.constant 0.000000e+00 : f32
    %46 = vector.broadcast %cst_18 : f32 to vector<1x16xf32>
    %47 = vector.extract_strided_slice %8 {offsets = [0, 0], sizes = [3, 16], strides = [1, 1]} : vector<4x16xf32> to vector<3x16xf32>
    %48 = tpu.concatenate %46, %47 in 0 : vector<1x16xf32>, vector<3x16xf32> -> vector<4x16xf32>
    %49 = vector.extract_strided_slice %9 {offsets = [2, 0], sizes = [1, 16], strides = [1, 1]} : vector<9x16xf32> to vector<1x16xf32>
    %50 = vector.broadcast %49 : vector<1x16xf32> to vector<4x16xf32>
    %51 = arith.mulf %48, %50 : vector<4x16xf32>
    %c0_i32_19 = arith.constant 0 : i32
    %52 = vector.broadcast %c0_i32_19 : i32 to vector<4x1xi32>
    %53 = arith.cmpi sle, %27, %52 : vector<4x1xi32>
    %cst_20 = arith.constant 0.000000e+00 : f32
    %54 = vector.shape_cast %53 : vector<4x1xi1> to vector<4x1xi1>
    %55 = vector.broadcast %54 : vector<4x1xi1> to vector<4x16xi1>
    %56 = vector.broadcast %cst_20 : f32 to vector<4x16xf32>
    %57 = arith.select %55, %51, %56 : vector<4x16xi1>, vector<4x16xf32>
    %cst_21 = arith.constant 0.000000e+00 : f32
    %58 = vector.broadcast %cst_21 : f32 to vector<1x16xf32>
    %59 = vector.extract_strided_slice %8 {offsets = [0, 0], sizes = [3, 16], strides = [1, 1]} : vector<4x16xf32> to vector<3x16xf32>
    %60 = tpu.concatenate %58, %59 in 0 : vector<1x16xf32>, vector<3x16xf32> -> vector<4x16xf32>
    %61 = vector.extract_strided_slice %9 {offsets = [3, 0], sizes = [1, 16], strides = [1, 1]} : vector<9x16xf32> to vector<1x16xf32>
    %62 = vector.broadcast %61 : vector<1x16xf32> to vector<4x16xf32>
    %63 = arith.mulf %60, %62 : vector<4x16xf32>
    %c1_i32_22 = arith.constant 1 : i32
    %64 = vector.broadcast %c1_i32_22 : i32 to vector<4x1xi32>
    %65 = arith.cmpi sge, %27, %64 : vector<4x1xi32>
    %cst_23 = arith.constant 0.000000e+00 : f32
    %66 = vector.shape_cast %65 : vector<4x1xi1> to vector<4x1xi1>
    %67 = vector.broadcast %66 : vector<4x1xi1> to vector<4x16xi1>
    %68 = vector.broadcast %cst_23 : f32 to vector<4x16xf32>
    %69 = arith.select %67, %63, %68 : vector<4x16xi1>, vector<4x16xf32>
    %70 = vector.extract_strided_slice %9 {offsets = [4, 0], sizes = [1, 16], strides = [1, 1]} : vector<9x16xf32> to vector<1x16xf32>
    %71 = vector.broadcast %70 : vector<1x16xf32> to vector<4x16xf32>
    %72 = arith.mulf %8, %71 : vector<4x16xf32>
    %cst_24 = arith.constant 0.000000e+00 : f32
    %73 = vector.broadcast %cst_24 : f32 to vector<1x16xf32>
    %74 = vector.extract_strided_slice %8 {offsets = [1, 0], sizes = [3, 16], strides = [1, 1]} : vector<4x16xf32> to vector<3x16xf32>
    %75 = tpu.concatenate %74, %73 in 0 : vector<3x16xf32>, vector<1x16xf32> -> vector<4x16xf32>
    %76 = vector.extract_strided_slice %9 {offsets = [5, 0], sizes = [1, 16], strides = [1, 1]} : vector<9x16xf32> to vector<1x16xf32>
    %77 = vector.broadcast %76 : vector<1x16xf32> to vector<4x16xf32>
    %78 = arith.mulf %75, %77 : vector<4x16xf32>
    %c0_i32_25 = arith.constant 0 : i32
    %79 = vector.broadcast %c0_i32_25 : i32 to vector<4x1xi32>
    %80 = arith.cmpi sle, %27, %79 : vector<4x1xi32>
    %cst_26 = arith.constant 0.000000e+00 : f32
    %81 = vector.shape_cast %80 : vector<4x1xi1> to vector<4x1xi1>
    %82 = vector.broadcast %81 : vector<4x1xi1> to vector<4x16xi1>
    %83 = vector.broadcast %cst_26 : f32 to vector<4x16xf32>
    %84 = arith.select %82, %78, %83 : vector<4x16xi1>, vector<4x16xf32>
    %cst_27 = arith.constant 0.000000e+00 : f32
    %85 = vector.broadcast %cst_27 : f32 to vector<1x16xf32>
    %86 = vector.extract_strided_slice %8 {offsets = [1, 0], sizes = [3, 16], strides = [1, 1]} : vector<4x16xf32> to vector<3x16xf32>
    %87 = tpu.concatenate %86, %85 in 0 : vector<3x16xf32>, vector<1x16xf32> -> vector<4x16xf32>
    %88 = vector.extract_strided_slice %9 {offsets = [6, 0], sizes = [1, 16], strides = [1, 1]} : vector<9x16xf32> to vector<1x16xf32>
    %89 = vector.broadcast %88 : vector<1x16xf32> to vector<4x16xf32>
    %90 = arith.mulf %87, %89 : vector<4x16xf32>
    %c1_i32_28 = arith.constant 1 : i32
    %91 = vector.broadcast %c1_i32_28 : i32 to vector<4x1xi32>
    %92 = arith.cmpi sge, %27, %91 : vector<4x1xi32>
    %cst_29 = arith.constant 0.000000e+00 : f32
    %93 = vector.shape_cast %92 : vector<4x1xi1> to vector<4x1xi1>
    %94 = vector.broadcast %93 : vector<4x1xi1> to vector<4x16xi1>
    %95 = vector.broadcast %cst_29 : f32 to vector<4x16xf32>
    %96 = arith.select %94, %90, %95 : vector<4x16xi1>, vector<4x16xf32>
    %cst_30 = arith.constant 0.000000e+00 : f32
    %97 = vector.broadcast %cst_30 : f32 to vector<2x16xf32>
    %98 = vector.extract_strided_slice %8 {offsets = [2, 0], sizes = [2, 16], strides = [1, 1]} : vector<4x16xf32> to vector<2x16xf32>
    %99 = tpu.concatenate %98, %97 in 0 : vector<2x16xf32>, vector<2x16xf32> -> vector<4x16xf32>
    %100 = vector.extract_strided_slice %9 {offsets = [7, 0], sizes = [1, 16], strides = [1, 1]} : vector<9x16xf32> to vector<1x16xf32>
    %101 = vector.broadcast %100 : vector<1x16xf32> to vector<4x16xf32>
    %102 = arith.mulf %99, %101 : vector<4x16xf32>
    %cst_31 = arith.constant 0.000000e+00 : f32
    %103 = vector.broadcast %cst_31 : f32 to vector<3x16xf32>
    %104 = vector.extract_strided_slice %8 {offsets = [3, 0], sizes = [1, 16], strides = [1, 1]} : vector<4x16xf32> to vector<1x16xf32>
    %105 = tpu.concatenate %104, %103 in 0 : vector<1x16xf32>, vector<3x16xf32> -> vector<4x16xf32>
    %106 = vector.extract_strided_slice %9 {offsets = [8, 0], sizes = [1, 16], strides = [1, 1]} : vector<9x16xf32> to vector<1x16xf32>
    %107 = vector.broadcast %106 : vector<1x16xf32> to vector<4x16xf32>
    %108 = arith.mulf %105, %107 : vector<4x16xf32>
    %c0_i32_32 = arith.constant 0 : i32
    %109 = vector.broadcast %c0_i32_32 : i32 to vector<4x1xi32>
    %110 = arith.cmpi sle, %27, %109 : vector<4x1xi32>
    %cst_33 = arith.constant 0.000000e+00 : f32
    %111 = vector.shape_cast %110 : vector<4x1xi1> to vector<4x1xi1>
    %112 = vector.broadcast %111 : vector<4x1xi1> to vector<4x16xi1>
    %113 = vector.broadcast %cst_33 : f32 to vector<4x16xf32>
    %114 = arith.select %112, %108, %113 : vector<4x16xi1>, vector<4x16xf32>
    %115 = arith.addf %39, %45 : vector<4x16xf32>
    %116 = arith.addf %57, %69 : vector<4x16xf32>
    %117 = arith.addf %72, %84 : vector<4x16xf32>
    %118 = arith.addf %96, %102 : vector<4x16xf32>
    %119 = arith.addf %115, %116 : vector<4x16xf32>
    %120 = arith.addf %117, %118 : vector<4x16xf32>
    %121 = arith.addf %119, %120 : vector<4x16xf32>
    %122 = arith.addf %121, %114 : vector<4x16xf32>
    %123 = vector.broadcast %10 : vector<1x16xf32> to vector<4x16xf32>
    %124 = arith.addf %122, %123 : vector<4x16xf32>
    %c0_34 = arith.constant 0 : index
    %c0_35 = arith.constant 0 : index
    %125 = vector.load %arg6[%c0_34, %c0_35] : memref<16x16xf32, #tpu.memory_space<vmem>>, vector<16x16xf32>
    %cst_36 = arith.constant dense<0.000000e+00> : vector<4x16xf32>
    %126 = tpu.matmul %124, %125, %cst_36 {dimension_numbers = #tpu.dot_dimension_numbers<[1], [0], [0], [1], [0, 0, 1, 1], [], []>} : vector<4x16xf32>, vector<16x16xf32>, vector<4x16xf32> -> vector<4x16xf32>
    %c0_37 = arith.constant 0 : index
    %c0_38 = arith.constant 0 : index
    %127 = vector.load %arg7[%c0_37, %c0_38] : memref<1x16xf32, #tpu.memory_space<vmem>>, vector<1x16xf32>
    %128 = vector.broadcast %127 : vector<1x16xf32> to vector<4x16xf32>
    %129 = arith.addf %126, %128 : vector<4x16xf32>
    %cst_39 = arith.constant 0.000000e+00 : f32
    %130 = vector.broadcast %cst_39 : f32 to vector<4x16xf32>
    %131 = arith.maximumf %129, %130 : vector<4x16xf32>
    %c0_40 = arith.constant 0 : index
    %c0_41 = arith.constant 0 : index
    %c0_42 = arith.constant 0 : index
    %132 = vector.load %arg8[%c0_40, %c0_41, %c0_42] : memref<1x4x16xf32, #tpu.memory_space<vmem>>, vector<1x4x16xf32>
    %133 = vector.shape_cast %132 : vector<1x4x16xf32> to vector<4x16xf32>
    %134 = vector.shape_cast %131 : vector<4x16xf32> to vector<1x4x16xf32>
    tpu.vector_store %arg8[%c0_40, %c0_41, %c0_42], %134 {strides = array<i32>} : memref<1x4x16xf32, #tpu.memory_space<vmem>>, vector<1x4x16xf32>,
    return
  }
  func.func @transform_0(%arg0: i32) -> (i32, i32, i32) {
    %c0_i32 = arith.constant 0 : i32
    %c0_i32_0 = arith.constant 0 : i32
    %c0_i32_1 = arith.constant 0 : i32
    return %arg0, %c0_i32, %c0_i32_0 : i32, i32, i32
  }
  func.func @transform_1(%arg0: i32) -> (i32, i32) {
    %c0_i32 = arith.constant 0 : i32
    %c0_i32_0 = arith.constant 0 : i32
    %c0_i32_1 = arith.constant 0 : i32
    return %c0_i32, %c0_i32_0 : i32, i32
  }
  func.func @transform_2(%arg0: i32) -> (i32, i32) {
    %c0_i32 = arith.constant 0 : i32
    %c0_i32_0 = arith.constant 0 : i32
    %c0_i32_1 = arith.constant 0 : i32
    return %c0_i32, %c0_i32_0 : i32, i32
  }
  func.func @transform_3(%arg0: i32) -> (i32, i32) {
    %c0_i32 = arith.constant 0 : i32
    %c0_i32_0 = arith.constant 0 : i32
    %c0_i32_1 = arith.constant 0 : i32
    return %c0_i32, %c0_i32_0 : i32, i32
  }
  func.func @transform_4(%arg0: i32) -> (i32, i32) {
    %c0_i32 = arith.constant 0 : i32
    %c0_i32_0 = arith.constant 0 : i32
    %c0_i32_1 = arith.constant 0 : i32
    return %c0_i32, %c0_i32_0 : i32, i32
  }
  func.func @transform_5(%arg0: i32) -> (i32, i32) {
    %c0_i32 = arith.constant 0 : i32
    %c0_i32_0 = arith.constant 0 : i32
    %c0_i32_1 = arith.constant 0 : i32
    return %c0_i32, %c0_i32_0 : i32, i32
  }
  func.func @transform_6(%arg0: i32) -> (i32, i32) {
    %c0_i32 = arith.constant 0 : i32
    %c0_i32_0 = arith.constant 0 : i32
    %c0_i32_1 = arith.constant 0 : i32
    return %c0_i32, %c0_i32_0 : i32, i32
  }
  func.func @transform_7(%arg0: i32) -> (i32, i32, i32) {
    %c0_i32 = arith.constant 0 : i32
    %c0_i32_0 = arith.constant 0 : i32
    %c0_i32_1 = arith.constant 0 : i32
    return %arg0, %c0_i32, %c0_i32_0 : i32, i32, i32
  }
}

module attributes {stable_mosaic.version = 11 : i64} {
  func.func @_block_s2_kernel(%arg0: i32, %arg1: memref<1x4x1x32xf32, #tpu.memory_space<vmem>>, %arg2: memref<9x32xf32, #tpu.memory_space<vmem>>, %arg3: memref<1x32xf32, #tpu.memory_space<vmem>>, %arg4: memref<32x32xf32, #tpu.memory_space<vmem>>, %arg5: memref<1x32xf32, #tpu.memory_space<vmem>>, %arg6: memref<32x32xf32, #tpu.memory_space<vmem>>, %arg7: memref<1x32xf32, #tpu.memory_space<vmem>>, %arg8: memref<9x32xf32, #tpu.memory_space<vmem>>, %arg9: memref<1x32xf32, #tpu.memory_space<vmem>>, %arg10: memref<32x32xf32, #tpu.memory_space<vmem>>, %arg11: memref<1x32xf32, #tpu.memory_space<vmem>>, %arg12: memref<1x1x32xf32, #tpu.memory_space<vmem>>, %arg13: memref<1x1x32xf32, #tpu.memory_space<vmem>>) attributes {dimension_semantics = [#tpu.dimension_semantics<parallel>], iteration_bounds = array<i64: 2>, scalar_prefetch = 0 : i64, scratch_operands = 0 : i64, tpu.core_type = #tpu.core_type<tc>, window_params = [{transform_indices = @transform_0, window_bounds = array<i64: 1, 4, 1, 32>}, {pipeline_mode = #tpu.pipeline_mode<synchronous>, transform_indices = @transform_1, window_bounds = array<i64: 9, 32>}, {pipeline_mode = #tpu.pipeline_mode<synchronous>, transform_indices = @transform_2, window_bounds = array<i64: 1, 32>}, {pipeline_mode = #tpu.pipeline_mode<synchronous>, transform_indices = @transform_3, window_bounds = array<i64: 32, 32>}, {pipeline_mode = #tpu.pipeline_mode<synchronous>, transform_indices = @transform_4, window_bounds = array<i64: 1, 32>}, {pipeline_mode = #tpu.pipeline_mode<synchronous>, transform_indices = @transform_5, window_bounds = array<i64: 32, 32>}, {pipeline_mode = #tpu.pipeline_mode<synchronous>, transform_indices = @transform_6, window_bounds = array<i64: 1, 32>}, {pipeline_mode = #tpu.pipeline_mode<synchronous>, transform_indices = @transform_7, window_bounds = array<i64: 9, 32>}, {pipeline_mode = #tpu.pipeline_mode<synchronous>, transform_indices = @transform_8, window_bounds = array<i64: 1, 32>}, {pipeline_mode = #tpu.pipeline_mode<synchronous>, transform_indices = @transform_9, window_bounds = array<i64: 32, 32>}, {pipeline_mode = #tpu.pipeline_mode<synchronous>, transform_indices = @transform_10, window_bounds = array<i64: 1, 32>}, {transform_indices = @transform_11, window_bounds = array<i64: 1, 1, 32>}, {transform_indices = @transform_12, window_bounds = array<i64: 1, 1, 32>}]} {
    %c0 = arith.constant 0 : index
    %c0_0 = arith.constant 0 : index
    %c0_1 = arith.constant 0 : index
    %c0_2 = arith.constant 0 : index
    %0 = vector.load %arg1[%c0, %c0_0, %c0_1, %c0_2] : memref<1x4x1x32xf32, #tpu.memory_space<vmem>>, vector<1x1x1x32xf32>
    %1 = vector.shape_cast %0 : vector<1x1x1x32xf32> to vector<1x32xf32>
    %c0_3 = arith.constant 0 : index
    %c1 = arith.constant 1 : index
    %c0_4 = arith.constant 0 : index
    %c0_5 = arith.constant 0 : index
    %2 = vector.load %arg1[%c0_3, %c1, %c0_4, %c0_5] : memref<1x4x1x32xf32, #tpu.memory_space<vmem>>, vector<1x1x1x32xf32>
    %3 = vector.shape_cast %2 : vector<1x1x1x32xf32> to vector<1x32xf32>
    %c0_6 = arith.constant 0 : index
    %c2 = arith.constant 2 : index
    %c0_7 = arith.constant 0 : index
    %c0_8 = arith.constant 0 : index
    %4 = vector.load %arg1[%c0_6, %c2, %c0_7, %c0_8] : memref<1x4x1x32xf32, #tpu.memory_space<vmem>>, vector<1x1x1x32xf32>
    %5 = vector.shape_cast %4 : vector<1x1x1x32xf32> to vector<1x32xf32>
    %c0_9 = arith.constant 0 : index
    %c3 = arith.constant 3 : index
    %c0_10 = arith.constant 0 : index
    %c0_11 = arith.constant 0 : index
    %6 = vector.load %arg1[%c0_9, %c3, %c0_10, %c0_11] : memref<1x4x1x32xf32, #tpu.memory_space<vmem>>, vector<1x1x1x32xf32>
    %7 = vector.shape_cast %6 : vector<1x1x1x32xf32> to vector<1x32xf32>
    %c0_12 = arith.constant 0 : index
    %c0_13 = arith.constant 0 : index
    %8 = vector.load %arg2[%c0_12, %c0_13] : memref<9x32xf32, #tpu.memory_space<vmem>>, vector<9x32xf32>
    %c0_14 = arith.constant 0 : index
    %c0_15 = arith.constant 0 : index
    %9 = vector.load %arg3[%c0_14, %c0_15] : memref<1x32xf32, #tpu.memory_space<vmem>>, vector<1x32xf32>
    %10 = vector.extract_strided_slice %8 {offsets = [4, 0], sizes = [1, 32], strides = [1, 1]} : vector<9x32xf32> to vector<1x32xf32>
    %11 = arith.mulf %1, %10 : vector<1x32xf32>
    %12 = vector.extract_strided_slice %8 {offsets = [5, 0], sizes = [1, 32], strides = [1, 1]} : vector<9x32xf32> to vector<1x32xf32>
    %13 = arith.mulf %3, %12 : vector<1x32xf32>
    %14 = vector.extract_strided_slice %8 {offsets = [7, 0], sizes = [1, 32], strides = [1, 1]} : vector<9x32xf32> to vector<1x32xf32>
    %15 = arith.mulf %5, %14 : vector<1x32xf32>
    %16 = vector.extract_strided_slice %8 {offsets = [8, 0], sizes = [1, 32], strides = [1, 1]} : vector<9x32xf32> to vector<1x32xf32>
    %17 = arith.mulf %7, %16 : vector<1x32xf32>
    %18 = arith.addf %11, %13 : vector<1x32xf32>
    %19 = arith.addf %15, %17 : vector<1x32xf32>
    %20 = arith.addf %18, %19 : vector<1x32xf32>
    %21 = arith.addf %20, %9 : vector<1x32xf32>
    %c0_16 = arith.constant 0 : index
    %c0_17 = arith.constant 0 : index
    %22 = vector.load %arg4[%c0_16, %c0_17] : memref<32x32xf32, #tpu.memory_space<vmem>>, vector<32x32xf32>
    %cst = arith.constant dense<0.000000e+00> : vector<1x32xf32>
    %23 = tpu.matmul %21, %22, %cst {dimension_numbers = #tpu.dot_dimension_numbers<[1], [0], [0], [1], [0, 0, 1, 1], [], []>} : vector<1x32xf32>, vector<32x32xf32>, vector<1x32xf32> -> vector<1x32xf32>
    %c0_18 = arith.constant 0 : index
    %c0_19 = arith.constant 0 : index
    %24 = vector.load %arg5[%c0_18, %c0_19] : memref<1x32xf32, #tpu.memory_space<vmem>>, vector<1x32xf32>
    %25 = arith.addf %23, %24 : vector<1x32xf32>
    %cst_20 = arith.constant 0.000000e+00 : f32
    %26 = vector.broadcast %cst_20 : f32 to vector<1x32xf32>
    %27 = arith.maximumf %25, %26 : vector<1x32xf32>
    %c0_21 = arith.constant 0 : index
    %c0_22 = arith.constant 0 : index
    %c0_23 = arith.constant 0 : index
    %28 = vector.load %arg12[%c0_21, %c0_22, %c0_23] : memref<1x1x32xf32, #tpu.memory_space<vmem>>, vector<1x1x32xf32>
    %29 = vector.shape_cast %28 : vector<1x1x32xf32> to vector<1x32xf32>
    %30 = vector.shape_cast %27 : vector<1x32xf32> to vector<1x1x32xf32>
    tpu.vector_store %arg12[%c0_21, %c0_22, %c0_23], %30 {strides = array<i32>} : memref<1x1x32xf32, #tpu.memory_space<vmem>>, vector<1x1x32xf32>,
    %c0_24 = arith.constant 0 : index
    %c0_25 = arith.constant 0 : index
    %31 = vector.load %arg6[%c0_24, %c0_25] : memref<32x32xf32, #tpu.memory_space<vmem>>, vector<32x32xf32>
    %cst_26 = arith.constant dense<0.000000e+00> : vector<1x32xf32>
    %32 = tpu.matmul %1, %31, %cst_26 {dimension_numbers = #tpu.dot_dimension_numbers<[1], [0], [0], [1], [0, 0, 1, 1], [], []>} : vector<1x32xf32>, vector<32x32xf32>, vector<1x32xf32> -> vector<1x32xf32>
    %c0_27 = arith.constant 0 : index
    %c0_28 = arith.constant 0 : index
    %33 = vector.load %arg7[%c0_27, %c0_28] : memref<1x32xf32, #tpu.memory_space<vmem>>, vector<1x32xf32>
    %34 = arith.addf %32, %33 : vector<1x32xf32>
    %cst_29 = arith.constant 0.000000e+00 : f32
    %35 = vector.broadcast %cst_29 : f32 to vector<1x32xf32>
    %36 = arith.maximumf %34, %35 : vector<1x32xf32>
    %c0_30 = arith.constant 0 : index
    %c0_31 = arith.constant 0 : index
    %37 = vector.load %arg6[%c0_30, %c0_31] : memref<32x32xf32, #tpu.memory_space<vmem>>, vector<32x32xf32>
    %cst_32 = arith.constant dense<0.000000e+00> : vector<1x32xf32>
    %38 = tpu.matmul %3, %37, %cst_32 {dimension_numbers = #tpu.dot_dimension_numbers<[1], [0], [0], [1], [0, 0, 1, 1], [], []>} : vector<1x32xf32>, vector<32x32xf32>, vector<1x32xf32> -> vector<1x32xf32>
    %c0_33 = arith.constant 0 : index
    %c0_34 = arith.constant 0 : index
    %39 = vector.load %arg7[%c0_33, %c0_34] : memref<1x32xf32, #tpu.memory_space<vmem>>, vector<1x32xf32>
    %40 = arith.addf %38, %39 : vector<1x32xf32>
    %cst_35 = arith.constant 0.000000e+00 : f32
    %41 = vector.broadcast %cst_35 : f32 to vector<1x32xf32>
    %42 = arith.maximumf %40, %41 : vector<1x32xf32>
    %c0_36 = arith.constant 0 : index
    %c0_37 = arith.constant 0 : index
    %43 = vector.load %arg6[%c0_36, %c0_37] : memref<32x32xf32, #tpu.memory_space<vmem>>, vector<32x32xf32>
    %cst_38 = arith.constant dense<0.000000e+00> : vector<1x32xf32>
    %44 = tpu.matmul %5, %43, %cst_38 {dimension_numbers = #tpu.dot_dimension_numbers<[1], [0], [0], [1], [0, 0, 1, 1], [], []>} : vector<1x32xf32>, vector<32x32xf32>, vector<1x32xf32> -> vector<1x32xf32>
    %c0_39 = arith.constant 0 : index
    %c0_40 = arith.constant 0 : index
    %45 = vector.load %arg7[%c0_39, %c0_40] : memref<1x32xf32, #tpu.memory_space<vmem>>, vector<1x32xf32>
    %46 = arith.addf %44, %45 : vector<1x32xf32>
    %cst_41 = arith.constant 0.000000e+00 : f32
    %47 = vector.broadcast %cst_41 : f32 to vector<1x32xf32>
    %48 = arith.maximumf %46, %47 : vector<1x32xf32>
    %c0_42 = arith.constant 0 : index
    %c0_43 = arith.constant 0 : index
    %49 = vector.load %arg6[%c0_42, %c0_43] : memref<32x32xf32, #tpu.memory_space<vmem>>, vector<32x32xf32>
    %cst_44 = arith.constant dense<0.000000e+00> : vector<1x32xf32>
    %50 = tpu.matmul %7, %49, %cst_44 {dimension_numbers = #tpu.dot_dimension_numbers<[1], [0], [0], [1], [0, 0, 1, 1], [], []>} : vector<1x32xf32>, vector<32x32xf32>, vector<1x32xf32> -> vector<1x32xf32>
    %c0_45 = arith.constant 0 : index
    %c0_46 = arith.constant 0 : index
    %51 = vector.load %arg7[%c0_45, %c0_46] : memref<1x32xf32, #tpu.memory_space<vmem>>, vector<1x32xf32>
    %52 = arith.addf %50, %51 : vector<1x32xf32>
    %cst_47 = arith.constant 0.000000e+00 : f32
    %53 = vector.broadcast %cst_47 : f32 to vector<1x32xf32>
    %54 = arith.maximumf %52, %53 : vector<1x32xf32>
    %c0_48 = arith.constant 0 : index
    %c0_49 = arith.constant 0 : index
    %55 = vector.load %arg8[%c0_48, %c0_49] : memref<9x32xf32, #tpu.memory_space<vmem>>, vector<9x32xf32>
    %c0_50 = arith.constant 0 : index
    %c0_51 = arith.constant 0 : index
    %56 = vector.load %arg9[%c0_50, %c0_51] : memref<1x32xf32, #tpu.memory_space<vmem>>, vector<1x32xf32>
    %57 = vector.extract_strided_slice %55 {offsets = [4, 0], sizes = [1, 32], strides = [1, 1]} : vector<9x32xf32> to vector<1x32xf32>
    %58 = arith.mulf %36, %57 : vector<1x32xf32>
    %59 = vector.extract_strided_slice %55 {offsets = [5, 0], sizes = [1, 32], strides = [1, 1]} : vector<9x32xf32> to vector<1x32xf32>
    %60 = arith.mulf %42, %59 : vector<1x32xf32>
    %61 = vector.extract_strided_slice %55 {offsets = [7, 0], sizes = [1, 32], strides = [1, 1]} : vector<9x32xf32> to vector<1x32xf32>
    %62 = arith.mulf %48, %61 : vector<1x32xf32>
    %63 = vector.extract_strided_slice %55 {offsets = [8, 0], sizes = [1, 32], strides = [1, 1]} : vector<9x32xf32> to vector<1x32xf32>
    %64 = arith.mulf %54, %63 : vector<1x32xf32>
    %65 = arith.addf %58, %60 : vector<1x32xf32>
    %66 = arith.addf %62, %64 : vector<1x32xf32>
    %67 = arith.addf %65, %66 : vector<1x32xf32>
    %68 = arith.addf %67, %56 : vector<1x32xf32>
    %c0_52 = arith.constant 0 : index
    %c0_53 = arith.constant 0 : index
    %69 = vector.load %arg10[%c0_52, %c0_53] : memref<32x32xf32, #tpu.memory_space<vmem>>, vector<32x32xf32>
    %cst_54 = arith.constant dense<0.000000e+00> : vector<1x32xf32>
    %70 = tpu.matmul %68, %69, %cst_54 {dimension_numbers = #tpu.dot_dimension_numbers<[1], [0], [0], [1], [0, 0, 1, 1], [], []>} : vector<1x32xf32>, vector<32x32xf32>, vector<1x32xf32> -> vector<1x32xf32>
    %c0_55 = arith.constant 0 : index
    %c0_56 = arith.constant 0 : index
    %71 = vector.load %arg11[%c0_55, %c0_56] : memref<1x32xf32, #tpu.memory_space<vmem>>, vector<1x32xf32>
    %72 = arith.addf %70, %71 : vector<1x32xf32>
    %cst_57 = arith.constant 0.000000e+00 : f32
    %73 = vector.broadcast %cst_57 : f32 to vector<1x32xf32>
    %74 = arith.maximumf %72, %73 : vector<1x32xf32>
    %c0_58 = arith.constant 0 : index
    %c0_59 = arith.constant 0 : index
    %c0_60 = arith.constant 0 : index
    %75 = vector.load %arg13[%c0_58, %c0_59, %c0_60] : memref<1x1x32xf32, #tpu.memory_space<vmem>>, vector<1x1x32xf32>
    %76 = vector.shape_cast %75 : vector<1x1x32xf32> to vector<1x32xf32>
    %77 = vector.shape_cast %74 : vector<1x32xf32> to vector<1x1x32xf32>
    tpu.vector_store %arg13[%c0_58, %c0_59, %c0_60], %77 {strides = array<i32>} : memref<1x1x32xf32, #tpu.memory_space<vmem>>, vector<1x1x32xf32>,
    return
  }
  func.func @transform_0(%arg0: i32) -> (i32, i32, i32, i32) {
    %c0_i32 = arith.constant 0 : i32
    %c0_i32_0 = arith.constant 0 : i32
    %c0_i32_1 = arith.constant 0 : i32
    %c0_i32_2 = arith.constant 0 : i32
    return %arg0, %c0_i32, %c0_i32_0, %c0_i32_1 : i32, i32, i32, i32
  }
  func.func @transform_1(%arg0: i32) -> (i32, i32) {
    %c0_i32 = arith.constant 0 : i32
    %c0_i32_0 = arith.constant 0 : i32
    %c0_i32_1 = arith.constant 0 : i32
    return %c0_i32, %c0_i32_0 : i32, i32
  }
  func.func @transform_2(%arg0: i32) -> (i32, i32) {
    %c0_i32 = arith.constant 0 : i32
    %c0_i32_0 = arith.constant 0 : i32
    %c0_i32_1 = arith.constant 0 : i32
    return %c0_i32, %c0_i32_0 : i32, i32
  }
  func.func @transform_3(%arg0: i32) -> (i32, i32) {
    %c0_i32 = arith.constant 0 : i32
    %c0_i32_0 = arith.constant 0 : i32
    %c0_i32_1 = arith.constant 0 : i32
    return %c0_i32, %c0_i32_0 : i32, i32
  }
  func.func @transform_4(%arg0: i32) -> (i32, i32) {
    %c0_i32 = arith.constant 0 : i32
    %c0_i32_0 = arith.constant 0 : i32
    %c0_i32_1 = arith.constant 0 : i32
    return %c0_i32, %c0_i32_0 : i32, i32
  }
  func.func @transform_5(%arg0: i32) -> (i32, i32) {
    %c0_i32 = arith.constant 0 : i32
    %c0_i32_0 = arith.constant 0 : i32
    %c0_i32_1 = arith.constant 0 : i32
    return %c0_i32, %c0_i32_0 : i32, i32
  }
  func.func @transform_6(%arg0: i32) -> (i32, i32) {
    %c0_i32 = arith.constant 0 : i32
    %c0_i32_0 = arith.constant 0 : i32
    %c0_i32_1 = arith.constant 0 : i32
    return %c0_i32, %c0_i32_0 : i32, i32
  }
  func.func @transform_7(%arg0: i32) -> (i32, i32) {
    %c0_i32 = arith.constant 0 : i32
    %c0_i32_0 = arith.constant 0 : i32
    %c0_i32_1 = arith.constant 0 : i32
    return %c0_i32, %c0_i32_0 : i32, i32
  }
  func.func @transform_8(%arg0: i32) -> (i32, i32) {
    %c0_i32 = arith.constant 0 : i32
    %c0_i32_0 = arith.constant 0 : i32
    %c0_i32_1 = arith.constant 0 : i32
    return %c0_i32, %c0_i32_0 : i32, i32
  }
  func.func @transform_9(%arg0: i32) -> (i32, i32) {
    %c0_i32 = arith.constant 0 : i32
    %c0_i32_0 = arith.constant 0 : i32
    %c0_i32_1 = arith.constant 0 : i32
    return %c0_i32, %c0_i32_0 : i32, i32
  }
  func.func @transform_10(%arg0: i32) -> (i32, i32) {
    %c0_i32 = arith.constant 0 : i32
    %c0_i32_0 = arith.constant 0 : i32
    %c0_i32_1 = arith.constant 0 : i32
    return %c0_i32, %c0_i32_0 : i32, i32
  }
  func.func @transform_11(%arg0: i32) -> (i32, i32, i32) {
    %c0_i32 = arith.constant 0 : i32
    %c0_i32_0 = arith.constant 0 : i32
    %c0_i32_1 = arith.constant 0 : i32
    return %arg0, %c0_i32, %c0_i32_0 : i32, i32, i32
  }
  func.func @transform_12(%arg0: i32) -> (i32, i32, i32) {
    %c0_i32 = arith.constant 0 : i32
    %c0_i32_0 = arith.constant 0 : i32
    %c0_i32_1 = arith.constant 0 : i32
    return %arg0, %c0_i32, %c0_i32_0 : i32, i32, i32
  }
}

module attributes {stable_mosaic.version = 11 : i64} {
  func.func @_block_s1_kernel(%arg0: i32, %arg1: memref<1x1x32xf32, #tpu.memory_space<vmem>>, %arg2: memref<32x32xf32, #tpu.memory_space<vmem>>, %arg3: memref<1x32xf32, #tpu.memory_space<vmem>>, %arg4: memref<9x32xf32, #tpu.memory_space<vmem>>, %arg5: memref<1x32xf32, #tpu.memory_space<vmem>>, %arg6: memref<32x32xf32, #tpu.memory_space<vmem>>, %arg7: memref<1x32xf32, #tpu.memory_space<vmem>>, %arg8: memref<1x1x32xf32, #tpu.memory_space<vmem>>) attributes {dimension_semantics = [#tpu.dimension_semantics<parallel>], iteration_bounds = array<i64: 2>, scalar_prefetch = 0 : i64, scratch_operands = 0 : i64, tpu.core_type = #tpu.core_type<tc>, window_params = [{transform_indices = @transform_0, window_bounds = array<i64: 1, 1, 32>}, {pipeline_mode = #tpu.pipeline_mode<synchronous>, transform_indices = @transform_1, window_bounds = array<i64: 32, 32>}, {pipeline_mode = #tpu.pipeline_mode<synchronous>, transform_indices = @transform_2, window_bounds = array<i64: 1, 32>}, {pipeline_mode = #tpu.pipeline_mode<synchronous>, transform_indices = @transform_3, window_bounds = array<i64: 9, 32>}, {pipeline_mode = #tpu.pipeline_mode<synchronous>, transform_indices = @transform_4, window_bounds = array<i64: 1, 32>}, {pipeline_mode = #tpu.pipeline_mode<synchronous>, transform_indices = @transform_5, window_bounds = array<i64: 32, 32>}, {pipeline_mode = #tpu.pipeline_mode<synchronous>, transform_indices = @transform_6, window_bounds = array<i64: 1, 32>}, {transform_indices = @transform_7, window_bounds = array<i64: 1, 1, 32>}]} {
    %c0 = arith.constant 0 : index
    %c0_0 = arith.constant 0 : index
    %c0_1 = arith.constant 0 : index
    %0 = vector.load %arg1[%c0, %c0_0, %c0_1] : memref<1x1x32xf32, #tpu.memory_space<vmem>>, vector<1x1x32xf32>
    %1 = vector.shape_cast %0 : vector<1x1x32xf32> to vector<1x32xf32>
    %c0_2 = arith.constant 0 : index
    %c0_3 = arith.constant 0 : index
    %2 = vector.load %arg2[%c0_2, %c0_3] : memref<32x32xf32, #tpu.memory_space<vmem>>, vector<32x32xf32>
    %cst = arith.constant dense<0.000000e+00> : vector<1x32xf32>
    %3 = tpu.matmul %1, %2, %cst {dimension_numbers = #tpu.dot_dimension_numbers<[1], [0], [0], [1], [0, 0, 1, 1], [], []>} : vector<1x32xf32>, vector<32x32xf32>, vector<1x32xf32> -> vector<1x32xf32>
    %c0_4 = arith.constant 0 : index
    %c0_5 = arith.constant 0 : index
    %4 = vector.load %arg3[%c0_4, %c0_5] : memref<1x32xf32, #tpu.memory_space<vmem>>, vector<1x32xf32>
    %5 = arith.addf %3, %4 : vector<1x32xf32>
    %cst_6 = arith.constant 0.000000e+00 : f32
    %6 = vector.broadcast %cst_6 : f32 to vector<1x32xf32>
    %7 = arith.maximumf %5, %6 : vector<1x32xf32>
    %c0_7 = arith.constant 0 : index
    %c0_8 = arith.constant 0 : index
    %8 = vector.load %arg4[%c0_7, %c0_8] : memref<9x32xf32, #tpu.memory_space<vmem>>, vector<9x32xf32>
    %c0_9 = arith.constant 0 : index
    %c0_10 = arith.constant 0 : index
    %9 = vector.load %arg5[%c0_9, %c0_10] : memref<1x32xf32, #tpu.memory_space<vmem>>, vector<1x32xf32>
    %10 = vector.extract_strided_slice %8 {offsets = [4, 0], sizes = [1, 32], strides = [1, 1]} : vector<9x32xf32> to vector<1x32xf32>
    %11 = arith.mulf %7, %10 : vector<1x32xf32>
    %12 = arith.addf %11, %9 : vector<1x32xf32>
    %c0_11 = arith.constant 0 : index
    %c0_12 = arith.constant 0 : index
    %13 = vector.load %arg6[%c0_11, %c0_12] : memref<32x32xf32, #tpu.memory_space<vmem>>, vector<32x32xf32>
    %cst_13 = arith.constant dense<0.000000e+00> : vector<1x32xf32>
    %14 = tpu.matmul %12, %13, %cst_13 {dimension_numbers = #tpu.dot_dimension_numbers<[1], [0], [0], [1], [0, 0, 1, 1], [], []>} : vector<1x32xf32>, vector<32x32xf32>, vector<1x32xf32> -> vector<1x32xf32>
    %c0_14 = arith.constant 0 : index
    %c0_15 = arith.constant 0 : index
    %15 = vector.load %arg7[%c0_14, %c0_15] : memref<1x32xf32, #tpu.memory_space<vmem>>, vector<1x32xf32>
    %16 = arith.addf %14, %15 : vector<1x32xf32>
    %cst_16 = arith.constant 0.000000e+00 : f32
    %17 = vector.broadcast %cst_16 : f32 to vector<1x32xf32>
    %18 = arith.maximumf %16, %17 : vector<1x32xf32>
    %c0_17 = arith.constant 0 : index
    %c0_18 = arith.constant 0 : index
    %c0_19 = arith.constant 0 : index
    %19 = vector.load %arg8[%c0_17, %c0_18, %c0_19] : memref<1x1x32xf32, #tpu.memory_space<vmem>>, vector<1x1x32xf32>
    %20 = vector.shape_cast %19 : vector<1x1x32xf32> to vector<1x32xf32>
    %21 = vector.shape_cast %18 : vector<1x32xf32> to vector<1x1x32xf32>
    tpu.vector_store %arg8[%c0_17, %c0_18, %c0_19], %21 {strides = array<i32>} : memref<1x1x32xf32, #tpu.memory_space<vmem>>, vector<1x1x32xf32>,
    return
  }
  func.func @transform_0(%arg0: i32) -> (i32, i32, i32) {
    %c0_i32 = arith.constant 0 : i32
    %c0_i32_0 = arith.constant 0 : i32
    %c0_i32_1 = arith.constant 0 : i32
    return %arg0, %c0_i32, %c0_i32_0 : i32, i32, i32
  }
  func.func @transform_1(%arg0: i32) -> (i32, i32) {
    %c0_i32 = arith.constant 0 : i32
    %c0_i32_0 = arith.constant 0 : i32
    %c0_i32_1 = arith.constant 0 : i32
    return %c0_i32, %c0_i32_0 : i32, i32
  }
  func.func @transform_2(%arg0: i32) -> (i32, i32) {
    %c0_i32 = arith.constant 0 : i32
    %c0_i32_0 = arith.constant 0 : i32
    %c0_i32_1 = arith.constant 0 : i32
    return %c0_i32, %c0_i32_0 : i32, i32
  }
  func.func @transform_3(%arg0: i32) -> (i32, i32) {
    %c0_i32 = arith.constant 0 : i32
    %c0_i32_0 = arith.constant 0 : i32
    %c0_i32_1 = arith.constant 0 : i32
    return %c0_i32, %c0_i32_0 : i32, i32
  }
  func.func @transform_4(%arg0: i32) -> (i32, i32) {
    %c0_i32 = arith.constant 0 : i32
    %c0_i32_0 = arith.constant 0 : i32
    %c0_i32_1 = arith.constant 0 : i32
    return %c0_i32, %c0_i32_0 : i32, i32
  }
  func.func @transform_5(%arg0: i32) -> (i32, i32) {
    %c0_i32 = arith.constant 0 : i32
    %c0_i32_0 = arith.constant 0 : i32
    %c0_i32_1 = arith.constant 0 : i32
    return %c0_i32, %c0_i32_0 : i32, i32
  }
  func.func @transform_6(%arg0: i32) -> (i32, i32) {
    %c0_i32 = arith.constant 0 : i32
    %c0_i32_0 = arith.constant 0 : i32
    %c0_i32_1 = arith.constant 0 : i32
    return %c0_i32, %c0_i32_0 : i32, i32
  }
  func.func @transform_7(%arg0: i32) -> (i32, i32, i32) {
    %c0_i32 = arith.constant 0 : i32
    %c0_i32_0 = arith.constant 0 : i32
    %c0_i32_1 = arith.constant 0 : i32
    return %arg0, %c0_i32, %c0_i32_0 : i32, i32, i32
  }
}

module attributes {stable_mosaic.version = 11 : i64} {
  func.func @_head_kernel(%arg0: i32, %arg1: memref<1x1x64xf32, #tpu.memory_space<vmem>>, %arg2: memref<64x64xf32, #tpu.memory_space<vmem>>, %arg3: memref<1x64xf32, #tpu.memory_space<vmem>>, %arg4: memref<64x10xf32, #tpu.memory_space<vmem>>, %arg5: memref<1x1x10xf32, #tpu.memory_space<vmem>>) attributes {dimension_semantics = [#tpu.dimension_semantics<parallel>], iteration_bounds = array<i64: 2>, scalar_prefetch = 0 : i64, scratch_operands = 0 : i64, tpu.core_type = #tpu.core_type<tc>, window_params = [{transform_indices = @transform_0, window_bounds = array<i64: 1, 1, 64>}, {pipeline_mode = #tpu.pipeline_mode<synchronous>, transform_indices = @transform_1, window_bounds = array<i64: 64, 64>}, {pipeline_mode = #tpu.pipeline_mode<synchronous>, transform_indices = @transform_2, window_bounds = array<i64: 1, 64>}, {pipeline_mode = #tpu.pipeline_mode<synchronous>, transform_indices = @transform_3, window_bounds = array<i64: 64, 10>}, {transform_indices = @transform_4, window_bounds = array<i64: 1, 1, 10>}]} {
    %c0 = arith.constant 0 : index
    %c0_0 = arith.constant 0 : index
    %c0_1 = arith.constant 0 : index
    %0 = vector.load %arg1[%c0, %c0_0, %c0_1] : memref<1x1x64xf32, #tpu.memory_space<vmem>>, vector<1x1x64xf32>
    %1 = vector.shape_cast %0 : vector<1x1x64xf32> to vector<1x64xf32>
    %c0_2 = arith.constant 0 : index
    %c0_3 = arith.constant 0 : index
    %2 = vector.load %arg2[%c0_2, %c0_3] : memref<64x64xf32, #tpu.memory_space<vmem>>, vector<64x64xf32>
    %cst = arith.constant dense<0.000000e+00> : vector<1x64xf32>
    %3 = tpu.matmul %1, %2, %cst {dimension_numbers = #tpu.dot_dimension_numbers<[1], [0], [0], [1], [0, 0, 1, 1], [], []>} : vector<1x64xf32>, vector<64x64xf32>, vector<1x64xf32> -> vector<1x64xf32>
    %c0_4 = arith.constant 0 : index
    %c0_5 = arith.constant 0 : index
    %4 = vector.load %arg3[%c0_4, %c0_5] : memref<1x64xf32, #tpu.memory_space<vmem>>, vector<1x64xf32>
    %5 = arith.addf %3, %4 : vector<1x64xf32>
    %cst_6 = arith.constant 0.000000e+00 : f32
    %6 = vector.broadcast %cst_6 : f32 to vector<1x64xf32>
    %7 = arith.maximumf %5, %6 : vector<1x64xf32>
    %cst_7 = arith.constant dense<0.000000e+00> : vector<64xf32>
    %8 = vector.multi_reduction <add>, %7, %cst_7 [0] : vector<1x64xf32> to vector<64xf32>
    %9 = vector.shape_cast %8 : vector<64xf32> to vector<1x64xf32>
    %cst_8 = arith.constant 1.000000e+00 : f32
    %10 = vector.broadcast %cst_8 : f32 to vector<1x64xf32>
    %11 = arith.divf %9, %10 : vector<1x64xf32>
    %c0_9 = arith.constant 0 : index
    %c0_10 = arith.constant 0 : index
    %12 = vector.load %arg4[%c0_9, %c0_10] : memref<64x10xf32, #tpu.memory_space<vmem>>, vector<64x10xf32>
    %cst_11 = arith.constant dense<0.000000e+00> : vector<1x10xf32>
    %13 = tpu.matmul %11, %12, %cst_11 {dimension_numbers = #tpu.dot_dimension_numbers<[1], [0], [0], [1], [0, 0, 1, 1], [], []>} : vector<1x64xf32>, vector<64x10xf32>, vector<1x10xf32> -> vector<1x10xf32>
    %c0_12 = arith.constant 0 : index
    %c0_13 = arith.constant 0 : index
    %c0_14 = arith.constant 0 : index
    %14 = vector.load %arg5[%c0_12, %c0_13, %c0_14] : memref<1x1x10xf32, #tpu.memory_space<vmem>>, vector<1x1x10xf32>
    %15 = vector.shape_cast %14 : vector<1x1x10xf32> to vector<1x10xf32>
    %16 = vector.shape_cast %13 : vector<1x10xf32> to vector<1x1x10xf32>
    tpu.vector_store %arg5[%c0_12, %c0_13, %c0_14], %16 {strides = array<i32>} : memref<1x1x10xf32, #tpu.memory_space<vmem>>, vector<1x1x10xf32>,
    return
  }
  func.func @transform_0(%arg0: i32) -> (i32, i32, i32) {
    %c0_i32 = arith.constant 0 : i32
    %c0_i32_0 = arith.constant 0 : i32
    %c0_i32_1 = arith.constant 0 : i32
    return %arg0, %c0_i32, %c0_i32_0 : i32, i32, i32
  }
  func.func @transform_1(%arg0: i32) -> (i32, i32) {
    %c0_i32 = arith.constant 0 : i32
    %c0_i32_0 = arith.constant 0 : i32
    %c0_i32_1 = arith.constant 0 : i32
    return %c0_i32, %c0_i32_0 : i32, i32
  }
  func.func @transform_2(%arg0: i32) -> (i32, i32) {
    %c0_i32 = arith.constant 0 : i32
    %c0_i32_0 = arith.constant 0 : i32
    %c0_i32_1 = arith.constant 0 : i32
    return %c0_i32, %c0_i32_0 : i32, i32
  }
  func.func @transform_3(%arg0: i32) -> (i32, i32) {
    %c0_i32 = arith.constant 0 : i32
    %c0_i32_0 = arith.constant 0 : i32
    %c0_i32_1 = arith.constant 0 : i32
    return %c0_i32, %c0_i32_0 : i32, i32
  }
  func.func @transform_4(%arg0: i32) -> (i32, i32, i32) {
    %c0_i32 = arith.constant 0 : i32
    %c0_i32_0 = arith.constant 0 : i32
    %c0_i32_1 = arith.constant 0 : i32
    return %arg0, %c0_i32, %c0_i32_0 : i32, i32, i32
  }
}

</mosaic_0001>

<llo_original>
// kernel: _lambda_.9
$region0: #{_lambda_.9}
  #allocation0 [shape = 'u32[]', space=smem, size = 0x4, offset = 0x4, fixed_abs, tag = 'smem constant byte address 0x4 - core index']
  #allocation1 [shape = 'u32[144,128]{1,0:T(1,128)}', space=vmem, size = 0x12000, scoped, tag = 'internal scratch']
  %s0 = inlined_call_operand.vmem [shape: f32[2,256,27], index: 0, kind: input, shape index: {}]
  %s1 = inlined_call_operand.vmem [shape: f32[27,8], index: 1, kind: input, shape index: {}]
  %s2 = inlined_call_operand.vmem [shape: f32[1,8], index: 2, kind: input, shape index: {}]
  %s3 = inlined_call_operand.vmem [shape: f32[2,256,8], index: 3, kind: output, shape index: {}]
  %s4 = sld [smem:[#allocation0]]
  $region45: #{_lambda_.9} parent=0
    _
  %s6 = ssub.s32 1, %s4
  %s7 = scalar_select 0, %s6, %s4
  loop: start=0, step=1, limit=4
  $region2: #{_lambda_.9} parent=0 // loop_pre_header
    _
  $region3: #{_lambda_.9} parent=0 // loop_header
    %s9 = sphi 0, %s13
    %p10 = scmp.ge.s32.totalorder %s9, 4
    %s16 = sphi 0, %s28
    %s17 = sphi 0, %s24
    %s18 = sphi 0, %s16
    %s19 = sphi 0, %s17
    %s20 = sphi 0, %s18
    %s21 = sphi 0, %s19
    %s33 = sphi 0, %s35
    %s36 = sphi 0, %s33
    %s37 = sphi 0, %s36
    %s53 = sphi 0, %s37
    %s57 = sphi 0, %s57
    %s59 = sphi 0, %s57
    %s60 = sphi 0, %s59
    %s74 = sphi 0, %s60
    %s78 = sphi 0, %s78
    %s80 = sphi 0, %s78
    %s81 = sphi 0, %s80
    %s95 = sphi 0, %s81
    %s103 = sphi 0, %s105
    %s106 = sphi 0, %s103
    %s107 = sphi 0, %s106
    %s123 = sphi 0, %s107
  $region4: #{_lambda_.9} parent=0 // loop_header_branch
    %12 = sbr.rel (%p10) target = $region8
  $region5: #{_lambda_.9} parent=0 // loop_body
    %s14 = ssub.s32 %s9, 1
    %s15 = ssub.s32 %s9, 2
    %s22 = sadd.s32 1, %s17
    %p23 = scmp.ge.s32.totalorder %s22, 1
    %s24 = scalar_select %p23, 0, %s22
    %s25 = sadd.s32 1, %s16
    %s26 = scalar_select %p23, %s25, %s16
    %p27 = scmp.ge.s32.totalorder %s26, 2
    %s28 = scalar_select %p27, 0, %s26
    %s29 = ssub.s32 %s16, %s28
    %s30 = ssub.s32 %s17, %s24
    %s31 = sor.u32 %s29, %s30
    %p32 = scmp.eq.s32.totalorder %s31, 0
    %s34 = sadd.s32 %s33, 1
    %s35 = scalar_select %p32, %s33, %s34
    %p38 = pneg %p32
    %p39 = scmp.eq.s32.totalorder %s9, 1
    %p40 = por %p38, %p39
    %p41 = scmp.ne.s32.totalorder %s33, %s36
    %p42 = scmp.eq.s32.totalorder %s9, 0
    %p43 = por %p41, %p42
    %p44 = scmp.ne.s32.totalorder %s33, %s36
    %p45 = scmp.eq.s32.totalorder %s14, 1
    %p46 = por %p44, %p45
    %p47 = scmp.ne.s32.totalorder %s36, %s37
    %p48 = scmp.eq.s32.totalorder %s14, 0
    %p49 = por %p47, %p48
    %p50 = scmp.ne.s32.totalorder %s36, %s37
    %p51 = scmp.eq.s32.totalorder %s15, 1
    %p52 = por %p50, %p51
    %p54 = scmp.ne.s32.totalorder %s37, %s53
    %p55 = scmp.eq.s32.totalorder %s15, 0
    %p56 = por %p54, %p55
    %s58 = sadd.s32 %s57, 1
    %p61 = scmp.eq.s32.totalorder %s9, 1
    %p62 = scmp.ne.s32.totalorder %s57, %s59
    %p63 = scmp.eq.s32.totalorder %s9, 0
    %p64 = por %p62, %p63
    %p65 = scmp.ne.s32.totalorder %s57, %s59
    %p66 = scmp.eq.s32.totalorder %s14, 1
    %p67 = por %p65, %p66
    %p68 = scmp.ne.s32.totalorder %s59, %s60
    %p69 = scmp.eq.s32.totalorder %s14, 0
    %p70 = por %p68, %p69
    %p71 = scmp.ne.s32.totalorder %s59, %s60
    %p72 = scmp.eq.s32.totalorder %s15, 1
    %p73 = por %p71, %p72
    %p75 = scmp.ne.s32.totalorder %s60, %s74
    %p76 = scmp.eq.s32.totalorder %s15, 0
    %p77 = por %p75, %p76
    %s79 = sadd.s32 %s78, 1
    %p82 = scmp.eq.s32.totalorder %s9, 1
    %p83 = scmp.ne.s32.totalorder %s78, %s80
    %p84 = scmp.eq.s32.totalorder %s9, 0
    %p85 = por %p83, %p84
    %p86 = scmp.ne.s32.totalorder %s78, %s80
    %p87 = scmp.eq.s32.totalorder %s14, 1
    %p88 = por %p86, %p87
    %p89 = scmp.ne.s32.totalorder %s80, %s81
    %p90 = scmp.eq.s32.totalorder %s14, 0
    %p91 = por %p89, %p90
    %p92 = scmp.ne.s32.totalorder %s80, %s81
    %p93 = scmp.eq.s32.totalorder %s15, 1
    %p94 = por %p92, %p93
    %p96 = scmp.ne.s32.totalorder %s81, %s95
    %p97 = scmp.eq.s32.totalorder %s15, 0
    %p98 = por %p96, %p97
    %s99 = ssub.s32 %s16, %s28
    %s100 = ssub.s32 %s17, %s24
    %s101 = sor.u32 %s99, %s100
    %p102 = scmp.eq.s32.totalorder %s101, 0
    %s104 = sadd.s32 %s103, 1
    %s105 = scalar_select %p102, %s103, %s104
    %p108 = pneg %p102
    %p109 = scmp.eq.s32.totalorder %s9, 1
    %p110 = por %p108, %p109
    %p111 = scmp.ne.s32.totalorder %s103, %s106
    %p112 = scmp.eq.s32.totalorder %s9, 0
    %p113 = por %p111, %p112
    %p114 = scmp.ne.s32.totalorder %s103, %s106
    %p115 = scmp.eq.s32.totalorder %s14, 1
    %p116 = por %p114, %p115
    %p117 = scmp.ne.s32.totalorder %s106, %s107
    %p118 = scmp.eq.s32.totalorder %s14, 0
    %p119 = por %p117, %p118
    %p120 = scmp.ne.s32.totalorder %s106, %s107
    %p121 = scmp.eq.s32.totalorder %s15, 1
    %p122 = por %p120, %p121
    %p124 = scmp.ne.s32.totalorder %s107, %s123
    %p125 = scmp.eq.s32.totalorder %s15, 0
    %p126 = por %p124, %p125
    %p127 = scmp.le.s32.totalorder 1, %s9
    %p128 = scmp.lt.s32.totalorder %s9, 3
    %p129 = pnand %p127, %p128
    %p130 = pneg %p129
    // Predicated region
    $region9: #{_lambda_.9} parent=5 // pred_check
      _
    $region10: #{_lambda_.9} parent=5 // pred_check_branch
      %132 = sbr.rel (%p129) target = $region12
    $region11: #{_lambda_.9} parent=5 // pred_region
      %s133 = ssub.s32 %s9, 1
      // Predicated region
      $region13: #{_lambda_.9} parent=11 // pred_check
        %p134 = pneg %p70
      $region14: #{_lambda_.9} parent=11 // pred_check_branch
        %136 = sbr.rel (%p134) target = $region16
      $region15: #{_lambda_.9} parent=11 // pred_region
        _
      $region16: #{_lambda_.9} parent=11 // pred_fallthru
        _
      // Predicated region
      $region17: #{_lambda_.9} parent=11 // pred_check
        %p137 = pneg %p91
      $region18: #{_lambda_.9} parent=11 // pred_check_branch
        %139 = sbr.rel (%p137) target = $region20
      $region19: #{_lambda_.9} parent=11 // pred_region
        _
      $region20: #{_lambda_.9} parent=11 // pred_fallthru
        _
    $region12: #{_lambda_.9} parent=5 // pred_fallthru
      _
    %p140 = scmp.lt.s32.totalorder %s9, 2
    // Predicated region
    $region21: #{_lambda_.9} parent=5 // pred_check
      %p141 = pneg %p140
    $region22: #{_lambda_.9} parent=5 // pred_check_branch
      %143 = sbr.rel (%p141) target = $region24
    $region23: #{_lambda_.9} parent=5 // pred_region
      // Predicated region
      $region25: #{_lambda_.9} parent=23 // pred_check
        %p144 = pneg %p43
      $region26: #{_lambda_.9} parent=23 // pred_check_branch
        %146 = sbr.rel (%p144) target = $region28
      $region27: #{_lambda_.9} parent=23 // pred_region
        %s147 = smul.u32 32, %s17
        %p148 = scmp.lt.s32.totalorder %s16, 1
        %s149 = scalar_select %p148, %s16, 1
        %p150 = scmp.lt.s32.totalorder %s147, 31
        %s151 = scalar_select %p150, %s147, 31
        %s152 = smul.addr %s149, 32
        %s153 = sadd.s32 %s151, %s152
        %s154 = smul.addr %s153, 8
        %s155 = scalar_lea.vmem %s0, %s154
        %s156 = smul.u32 32, %s17
      $region28: #{_lambda_.9} parent=23 // pred_fallthru
        _
    $region24: #{_lambda_.9} parent=5 // pred_fallthru
      _
    %p157 = scmp.le.s32.totalorder 1, %s9
    %p158 = scmp.lt.s32.totalorder %s9, 3
    %p159 = pnand %p157, %p158
    %p160 = pneg %p159
    // Predicated region
    $region29: #{_lambda_.9} parent=5 // pred_check
      _
    $region30: #{_lambda_.9} parent=5 // pred_check_branch
      %162 = sbr.rel (%p159) target = $region32
    $region31: #{_lambda_.9} parent=5 // pred_region
      %s163 = ssub.s32 %s9, 1
      %s164 = smul.u32 32, %s19
      %p165 = scmp.lt.s32.totalorder %s18, 1
      %s166 = scalar_select %p165, %s18, 1
      %p167 = scmp.lt.s32.totalorder %s164, 31
      %s168 = scalar_select %p167, %s164, 31
      %s169 = smul.addr %s166, 32
      %s170 = sadd.s32 %s168, %s169
      %s171 = smul.addr %s170, 8
      %s172 = scalar_lea.vmem %s0, %s171
      %p173 = pneg %p49
      %p174 = pneg %p46
      %p175 = pneg %p70
      %p176 = pneg %p67
      %p177 = pneg %p91
      %p178 = pneg %p88
      %p179 = pneg %p119
      %p180 = pneg %p116
      %s181 = smul.u32 32, %s19
      %p182 = scmp.lt.s32.totalorder %s18, 1
      %s183 = scalar_select %p182, %s18, 1
      %p184 = scmp.lt.s32.totalorder %s181, 31
      %s185 = scalar_select %p184, %s181, 31
      %s186 = smul.addr %s183, 32
      %s187 = sadd.s32 %s185, %s186
      %s188 = smul.addr %s187, 8
      %s189 = scalar_lea.vmem %s3, %s188
      %s190 = smul.u32 32, %s19
      %p191 = scmp.lt.s32.totalorder %s18, 1
      %s192 = scalar_select %p191, %s18, 1
      %p193 = scmp.lt.s32.totalorder %s190, 31
      %s194 = scalar_select %p193, %s190, 31
      %s195 = smul.addr %s192, 32
      %s196 = sadd.s32 %s194, %s195
      %s197 = smul.addr %s196, 8
      %s198 = scalar_lea.vmem %s0, %s197
      %s199 = smul.u32 32, %s19
      %s200 = smul.u32 32, %s19
      %p201 = scmp.lt.s32.totalorder %s18, 1
      %s202 = scalar_select %p201, %s18, 1
      %p203 = scmp.lt.s32.totalorder %s200, 31
      %s204 = scalar_select %p203, %s200, 31
      %s205 = smul.addr %s202, 32
      %s206 = sadd.s32 %s204, %s205
      %s207 = smul.addr %s206, 8
      %s208 = scalar_lea.vmem %s3, %s207
      %s209 = smul.u32 32, %s19
      %v210 = vld [vmem:[%s198] sm:$0xff]
      %v211 = vld [vmem:[%s198 + $0x8] sm:$0xff]
      %v212 = vld [vmem:[%s198 + $0x10] sm:$0xff]
      %v213 = vld [vmem:[%s198 + $0x18] sm:$0xff]
      %v214 = vld [vmem:[%s198 + $0x20] sm:$0xff]
      %v215 = vld [vmem:[%s198 + $0x28] sm:$0xff]
      %v216 = vld [vmem:[%s198 + $0x30] sm:$0xff]
      %v217 = vld [vmem:[%s198 + $0x38] sm:$0xff]
      %v218 = vld [vmem:[%s198 + $0x40] sm:$0xff]
      %v219 = vld [vmem:[%s198 + $0x48] sm:$0xff]
      %v220 = vld [vmem:[%s198 + $0x50] sm:$0xff]
      %v221 = vld [vmem:[%s198 + $0x58] sm:$0xff]
      %v222 = vld [vmem:[%s198 + $0x60] sm:$0xff]
      %v223 = vld [vmem:[%s198 + $0x68] sm:$0xff]
      %v224 = vld [vmem:[%s198 + $0x70] sm:$0xff]
      %v225 = vld [vmem:[%s198 + $0x78] sm:$0xff]
      %v226 = vld [vmem:[%s198 + $0x80] sm:$0xff]
      %v227 = vld [vmem:[%s198 + $0x88] sm:$0xff]
      %v228 = vld [vmem:[%s198 + $0x90] sm:$0xff]
      %v229 = vld [vmem:[%s198 + $0x98] sm:$0xff]
      %v230 = vld [vmem:[%s198 + $0xa0] sm:$0xff]
      %v231 = vld [vmem:[%s198 + $0xa8] sm:$0xff]
      %v232 = vld [vmem:[%s198 + $0xb0] sm:$0xff]
      %v233 = vld [vmem:[%s198 + $0xb8] sm:$0xff]
      %v234 = vld [vmem:[%s198 + $0xc0] sm:$0xff]
      %v235 = vld [vmem:[%s198 + $0xc8] sm:$0xff]
      %v236 = vld [vmem:[%s198 + $0xd0] sm:$0xff]
      %v237 = vld [vmem:[%s198 + $0xd8] sm:$0xff]
      %v238 = vld [vmem:[%s198 + $0xe0] sm:$0xff]
      %v239 = vld [vmem:[%s198 + $0xe8] sm:$0xff]
      %v240 = vld [vmem:[%s198 + $0xf0] sm:$0xff]
      %v241 = vld [vmem:[%s198 + $0xf8] sm:$0xff]
      %v242 = vld [vmem:[%s1] sm:$0xff]
      %v243 = vld [vmem:[%s1 + $0x8] sm:$0xff]
      %v244 = vld [vmem:[%s1 + $0x10] sm:$0xff]
      %v245 = vld [vmem:[%s1 + $0x18] sm:$0x7]
      %v246 = vld [vmem:[%s2] sm:$0x1]
      %v248 = vlaneseq
      %v249 = vshrl.u32 %v248, 7
      %v250 = vsub.s32 0, %v249
      %v251 = vrot.slane %v246, %v250
      %vm253 = vcmask 220160
      %v255 = vsel %vm253, %v210, 0
      %v258 = vsel %vm253, %v211, 0
      %v261 = vsel %vm253, %v212, 0
      %v264 = vsel %vm253, %v213, 0
      %v267 = vsel %vm253, %v214, 0
      %v270 = vsel %vm253, %v215, 0
      %v273 = vsel %vm253, %v216, 0
      %v276 = vsel %vm253, %v217, 0
      %v279 = vsel %vm253, %v218, 0
      %v282 = vsel %vm253, %v219, 0
      %v285 = vsel %vm253, %v220, 0
      %v288 = vsel %vm253, %v221, 0
      %v291 = vsel %vm253, %v222, 0
      %v294 = vsel %vm253, %v223, 0
      %v297 = vsel %vm253, %v224, 0
      %v300 = vsel %vm253, %v225, 0
      %v303 = vsel %vm253, %v226, 0
      %v306 = vsel %vm253, %v227, 0
      %v309 = vsel %vm253, %v228, 0
      %v312 = vsel %vm253, %v229, 0
      %v315 = vsel %vm253, %v230, 0
      %v318 = vsel %vm253, %v231, 0
      %v321 = vsel %vm253, %v232, 0
      %v324 = vsel %vm253, %v233, 0
      %v327 = vsel %vm253, %v234, 0
      %v330 = vsel %vm253, %v235, 0
      %v333 = vsel %vm253, %v236, 0
      %v336 = vsel %vm253, %v237, 0
      %v339 = vsel %vm253, %v238, 0
      %v342 = vsel %vm253, %v239, 0
      %v345 = vsel %vm253, %v240, 0
      %v348 = vsel %vm253, %v241, 0
      %vm350 = vcmask 1042432
      %v352 = vsel %vm350, %v245, 0
      %354 = vmatprep.subr.mxu0 0.0
      %355 = vmatpush1.msra.mxu0 %v242
      %356 = vmatprep.subr.mxu0 0.0
      %357 = vmatpush1.msra.mxu0 %v243
      %358 = vmatprep.subr.mxu0 0.0
      %359 = vmatpush1.msra.mxu0 %v244
      %360 = vmatprep.subr.mxu0 0.0
      %361 = vmatpush1.msra.mxu0 %v352
      %362 = vmatprep.subr.mxu0 0.0
      %363 = vmatpush1.msra.mxu0 0.0
      %364 = vmatprep.subr.mxu0 0.0
      %365 = vmatpush1.msra.mxu0 0.0
      %366 = vmatprep.subr.mxu0 0.0
      %367 = vmatpush1.msra.mxu0 0.0
      %368 = vmatprep.subr.mxu0 0.0
      %369 = vmatpush1.msra.mxu0 0.0
      %370 = vmatprep.subr.mxu0 0.0
      %371 = vmatpush1.msra.mxu0 0.0
      %372 = vmatprep.subr.mxu0 0.0
      %373 = vmatpush1.msra.mxu0 0.0
      %374 = vmatprep.subr.mxu0 0.0
      %375 = vmatpush1.msra.mxu0 0.0
      %376 = vmatprep.subr.mxu0 0.0
      %377 = vmatpush1.msra.mxu0 0.0
      %378 = vmatprep.subr.mxu0 0.0
      %379 = vmatpush1.msra.mxu0 0.0
      %380 = vmatprep.subr.mxu0 0.0
      %381 = vmatpush1.msra.mxu0 0.0
      %382 = vmatprep.subr.mxu0 0.0
      %383 = vmatpush1.msra.mxu0 0.0
      %384 = vmatprep.subr.mxu0 0.0
      %385 = vmatpush1.msra.mxu0 0.0
      %386 = vmatprep.subr.mxu0 0.0
      %387 = vmatpush1.msra.mxu0 0.0
      %388 = vmatprep.subr.mxu0 0.0
      %389 = vmatpush1.msra.mxu0 0.0
      %390 = vmatprep.subr.mxu0 0.0
      %391 = vmatpush1.msra.mxu0 0.0
      %392 = vmatprep.subr.mxu0 0.0
      %393 = vmatpush1.msra.mxu0 0.0
      %394 = vmatprep.subr.mxu0 0.0
      %395 = vmatpush1.msra.mxu0 0.0
      %396 = vmatprep.subr.mxu0 0.0
      %397 = vmatpush1.msra.mxu0 0.0
      %398 = vmatprep.subr.mxu0 0.0
      %399 = vmatpush1.msra.mxu0 0.0
      %400 = vmatprep.subr.mxu0 0.0
      %401 = vmatpush1.msra.mxu0 0.0
      %402 = vmatprep.subr.mxu0 0.0
      %403 = vmatpush1.msra.mxu0 0.0
      %404 = vmatprep.subr.mxu0 0.0
      %405 = vmatpush1.msra.mxu0 0.0
      %406 = vmatprep.subr.mxu0 0.0
      %407 = vmatpush1.msra.mxu0 0.0
      %408 = vmatprep.subr.mxu0 0.0
      %409 = vmatpush1.msra.mxu0 0.0
      %410 = vmatprep.subr.mxu0 0.0
      %411 = vmatpush1.msra.mxu0 0.0
      %412 = vmatprep.subr.mxu0 0.0
      %413 = vmatpush1.msra.mxu0 0.0
      %414 = vmatprep.subr.mxu0 0.0
      %415 = vmatpush1.msra.mxu0 0.0
      %416 = vmatprep.subr.mxu0 0.0
      %417 = vmatpush1.msra.mxu0 0.0
      %418 = vmatprep.mubr.f32.mxu0 0.0
      %419 = vmatmul.mubr.f32.gmra.mrb[0].mxu0 %v255
      %v420 = vpop.f32.mrb[0].mxu0
      %v421 = vadd.f32 %v251, %v420
      %v422 = vpop.f32.mrb[0].mxu0
      %423 = vmatprep.mubr.f32.mxu0 0.0
      %424 = vmatmul.mubr.f32.gmra.mrb[0].mxu0 %v258
      %v425 = vpop.f32.mrb[0].mxu0
      %v426 = vadd.f32 %v251, %v425
      %v427 = vpop.f32.mrb[0].mxu0
      %428 = vmatprep.mubr.f32.mxu0 0.0
      %429 = vmatmul.mubr.f32.gmra.mrb[0].mxu0 %v261
      %v430 = vpop.f32.mrb[0].mxu0
      %v431 = vadd.f32 %v251, %v430
      %v432 = vpop.f32.mrb[0].mxu0
      %433 = vmatprep.mubr.f32.mxu0 0.0
      %434 = vmatmul.mubr.f32.gmra.mrb[0].mxu0 %v264
      %v435 = vpop.f32.mrb[0].mxu0
      %v436 = vadd.f32 %v251, %v435
      %v437 = vpop.f32.mrb[0].mxu0
      %438 = vmatprep.mubr.f32.mxu0 0.0
      %439 = vmatmul.mubr.f32.gmra.mrb[0].mxu0 %v267
      %v440 = vpop.f32.mrb[0].mxu0
      %v441 = vadd.f32 %v251, %v440
      %v442 = vpop.f32.mrb[0].mxu0
      %443 = vmatprep.mubr.f32.mxu0 0.0
      %444 = vmatmul.mubr.f32.gmra.mrb[0].mxu0 %v270
      %v445 = vpop.f32.mrb[0].mxu0
      %v446 = vadd.f32 %v251, %v445
      %v447 = vpop.f32.mrb[0].mxu0
      %448 = vmatprep.mubr.f32.mxu0 0.0
      %449 = vmatmul.mubr.f32.gmra.mrb[0].mxu0 %v273
      %v450 = vpop.f32.mrb[0].mxu0
      %v451 = vadd.f32 %v251, %v450
      %v452 = vpop.f32.mrb[0].mxu0
      %453 = vmatprep.mubr.f32.mxu0 0.0
      %454 = vmatmul.mubr.f32.gmra.mrb[0].mxu0 %v276
      %v455 = vpop.f32.mrb[0].mxu0
      %v456 = vadd.f32 %v251, %v455
      %v457 = vpop.f32.mrb[0].mxu0
      %458 = vmatprep.mubr.f32.mxu0 0.0
      %459 = vmatmul.mubr.f32.gmra.mrb[0].mxu0 %v279
      %v460 = vpop.f32.mrb[0].mxu0
      %v461 = vadd.f32 %v251, %v460
      %v462 = vpop.f32.mrb[0].mxu0
      %463 = vmatprep.mubr.f32.mxu0 0.0
      %464 = vmatmul.mubr.f32.gmra.mrb[0].mxu0 %v282
      %v465 = vpop.f32.mrb[0].mxu0
      %v466 = vadd.f32 %v251, %v465
      %v467 = vpop.f32.mrb[0].mxu0
      %468 = vmatprep.mubr.f32.mxu0 0.0
      %469 = vmatmul.mubr.f32.gmra.mrb[0].mxu0 %v285
      %v470 = vpop.f32.mrb[0].mxu0
      %v471 = vadd.f32 %v251, %v470
      %v472 = vpop.f32.mrb[0].mxu0
      %473 = vmatprep.mubr.f32.mxu0 0.0
      %474 = vmatmul.mubr.f32.gmra.mrb[0].mxu0 %v288
      %v475 = vpop.f32.mrb[0].mxu0
      %v476 = vadd.f32 %v251, %v475
      %v477 = vpop.f32.mrb[0].mxu0
      %478 = vmatprep.mubr.f32.mxu0 0.0
      %479 = vmatmul.mubr.f32.gmra.mrb[0].mxu0 %v291
      %v480 = vpop.f32.mrb[0].mxu0
      %v481 = vadd.f32 %v251, %v480
      %v482 = vpop.f32.mrb[0].mxu0
      %483 = vmatprep.mubr.f32.mxu0 0.0
      %484 = vmatmul.mubr.f32.gmra.mrb[0].mxu0 %v294
      %v485 = vpop.f32.mrb[0].mxu0
      %v486 = vadd.f32 %v251, %v485
      %v487 = vpop.f32.mrb[0].mxu0
      %488 = vmatprep.mubr.f32.mxu0 0.0
      %489 = vmatmul.mubr.f32.gmra.mrb[0].mxu0 %v297
      %v490 = vpop.f32.mrb[0].mxu0
      %v491 = vadd.f32 %v251, %v490
      %v492 = vpop.f32.mrb[0].mxu0
      %493 = vmatprep.mubr.f32.mxu0 0.0
      %494 = vmatmul.mubr.f32.gmra.mrb[0].mxu0 %v300
      %v495 = vpop.f32.mrb[0].mxu0
      %v496 = vadd.f32 %v251, %v495
      %v497 = vpop.f32.mrb[0].mxu0
      %498 = vmatprep.mubr.f32.mxu0 0.0
      %499 = vmatmul.mubr.f32.gmra.mrb[0].mxu0 %v303
      %v500 = vpop.f32.mrb[0].mxu0
      %v501 = vadd.f32 %v251, %v500
      %v502 = vpop.f32.mrb[0].mxu0
      %503 = vmatprep.mubr.f32.mxu0 0.0
      %504 = vmatmul.mubr.f32.gmra.mrb[0].mxu0 %v306
      %v505 = vpop.f32.mrb[0].mxu0
      %v506 = vadd.f32 %v251, %v505
      %v507 = vpop.f32.mrb[0].mxu0
      %508 = vmatprep.mubr.f32.mxu0 0.0
      %509 = vmatmul.mubr.f32.gmra.mrb[0].mxu0 %v309
      %v510 = vpop.f32.mrb[0].mxu0
      %v511 = vadd.f32 %v251, %v510
      %v512 = vpop.f32.mrb[0].mxu0
      %513 = vmatprep.mubr.f32.mxu0 0.0
      %514 = vmatmul.mubr.f32.gmra.mrb[0].mxu0 %v312
      %v515 = vpop.f32.mrb[0].mxu0
      %v516 = vadd.f32 %v251, %v515
      %v517 = vpop.f32.mrb[0].mxu0
      %518 = vmatprep.mubr.f32.mxu0 0.0
      %519 = vmatmul.mubr.f32.gmra.mrb[0].mxu0 %v315
      %v520 = vpop.f32.mrb[0].mxu0
      %v521 = vadd.f32 %v251, %v520
      %v522 = vpop.f32.mrb[0].mxu0
      %523 = vmatprep.mubr.f32.mxu0 0.0
      %524 = vmatmul.mubr.f32.gmra.mrb[0].mxu0 %v318
      %v525 = vpop.f32.mrb[0].mxu0
      %v526 = vadd.f32 %v251, %v525
      %v527 = vpop.f32.mrb[0].mxu0
      %528 = vmatprep.mubr.f32.mxu0 0.0
      %529 = vmatmul.mubr.f32.gmra.mrb[0].mxu0 %v321
      %v530 = vpop.f32.mrb[0].mxu0
      %v531 = vadd.f32 %v251, %v530
      %v532 = vpop.f32.mrb[0].mxu0
      %533 = vmatprep.mubr.f32.mxu0 0.0
      %534 = vmatmul.mubr.f32.gmra.mrb[0].mxu0 %v324
      %v535 = vpop.f32.mrb[0].mxu0
      %v536 = vadd.f32 %v251, %v535
      %v537 = vpop.f32.mrb[0].mxu0
      %538 = vmatprep.mubr.f32.mxu0 0.0
      %539 = vmatmul.mubr.f32.gmra.mrb[0].mxu0 %v327
      %v540 = vpop.f32.mrb[0].mxu0
      %v541 = vadd.f32 %v251, %v540
      %v542 = vpop.f32.mrb[0].mxu0
      %543 = vmatprep.mubr.f32.mxu0 0.0
      %544 = vmatmul.mubr.f32.gmra.mrb[0].mxu0 %v330
      %v545 = vpop.f32.mrb[0].mxu0
      %v546 = vadd.f32 %v251, %v545
      %v547 = vpop.f32.mrb[0].mxu0
      %548 = vmatprep.mubr.f32.mxu0 0.0
      %549 = vmatmul.mubr.f32.gmra.mrb[0].mxu0 %v333
      %v550 = vpop.f32.mrb[0].mxu0
      %v551 = vadd.f32 %v251, %v550
      %v552 = vpop.f32.mrb[0].mxu0
      %553 = vmatprep.mubr.f32.mxu0 0.0
      %554 = vmatmul.mubr.f32.gmra.mrb[0].mxu0 %v336
      %v555 = vpop.f32.mrb[0].mxu0
      %v556 = vadd.f32 %v251, %v555
      %v557 = vpop.f32.mrb[0].mxu0
      %558 = vmatprep.mubr.f32.mxu0 0.0
      %559 = vmatmul.mubr.f32.gmra.mrb[0].mxu0 %v339
      %v560 = vpop.f32.mrb[0].mxu0
      %v561 = vadd.f32 %v251, %v560
      %v562 = vpop.f32.mrb[0].mxu0
      %563 = vmatprep.mubr.f32.mxu0 0.0
      %564 = vmatmul.mubr.f32.gmra.mrb[0].mxu0 %v342
      %v565 = vpop.f32.mrb[0].mxu0
      %v566 = vadd.f32 %v251, %v565
      %v567 = vpop.f32.mrb[0].mxu0
      %568 = vmatprep.mubr.f32.mxu0 0.0
      %569 = vmatmul.mubr.f32.gmra.mrb[0].mxu0 %v345
      %v570 = vpop.f32.mrb[0].mxu0
      %v571 = vadd.f32 %v251, %v570
      %v572 = vpop.f32.mrb[0].mxu0
      %573 = vmatprep.mubr.f32.mxu0 0.0
      %574 = vmatmul.mubr.f32.gmra.mrb[0].mxu0 %v348
      %v575 = vpop.f32.mrb[0].mxu0
      %v576 = vadd.f32 %v251, %v575
      %v577 = vpop.f32.mrb[0].mxu0
      %578 = vdwg.mxu0
      %v579 = vmax.f32 %v421, 0.0
      %v580 = vmax.f32 %v426, 0.0
      %v581 = vmax.f32 %v431, 0.0
      %v582 = vmax.f32 %v436, 0.0
      %v583 = vmax.f32 %v441, 0.0
      %v584 = vmax.f32 %v446, 0.0
      %v585 = vmax.f32 %v451, 0.0
      %v586 = vmax.f32 %v456, 0.0
      %v587 = vmax.f32 %v461, 0.0
      %v588 = vmax.f32 %v466, 0.0
      %v589 = vmax.f32 %v471, 0.0
      %v590 = vmax.f32 %v476, 0.0
      %v591 = vmax.f32 %v481, 0.0
      %v592 = vmax.f32 %v486, 0.0
      %v593 = vmax.f32 %v491, 0.0
      %v594 = vmax.f32 %v496, 0.0
      %v595 = vmax.f32 %v501, 0.0
      %v596 = vmax.f32 %v506, 0.0
      %v597 = vmax.f32 %v511, 0.0
      %v598 = vmax.f32 %v516, 0.0
      %v599 = vmax.f32 %v521, 0.0
      %v600 = vmax.f32 %v526, 0.0
      %v601 = vmax.f32 %v531, 0.0
      %v602 = vmax.f32 %v536, 0.0
      %v603 = vmax.f32 %v541, 0.0
      %v604 = vmax.f32 %v546, 0.0
      %v605 = vmax.f32 %v551, 0.0
      %v606 = vmax.f32 %v556, 0.0
      %v607 = vmax.f32 %v561, 0.0
      %v608 = vmax.f32 %v566, 0.0
      %v609 = vmax.f32 %v571, 0.0
      %v610 = vmax.f32 %v576, 0.0
      %vm611 = vcmask 64512
      %612 = vst.msk [vmem:[%s208] sm:$0xff] %vm611, %v579
      %613 = vst.msk [vmem:[%s208 + $0x8] sm:$0xff] %vm611, %v580
      %614 = vst.msk [vmem:[%s208 + $0x10] sm:$0xff] %vm611, %v581
      %615 = vst.msk [vmem:[%s208 + $0x18] sm:$0xff] %vm611, %v582
      %616 = vst.msk [vmem:[%s208 + $0x20] sm:$0xff] %vm611, %v583
      %617 = vst.msk [vmem:[%s208 + $0x28] sm:$0xff] %vm611, %v584
      %618 = vst.msk [vmem:[%s208 + $0x30] sm:$0xff] %vm611, %v585
      %619 = vst.msk [vmem:[%s208 + $0x38] sm:$0xff] %vm611, %v586
      %620 = vst.msk [vmem:[%s208 + $0x40] sm:$0xff] %vm611, %v587
      %621 = vst.msk [vmem:[%s208 + $0x48] sm:$0xff] %vm611, %v588
      %622 = vst.msk [vmem:[%s208 + $0x50] sm:$0xff] %vm611, %v589
      %623 = vst.msk [vmem:[%s208 + $0x58] sm:$0xff] %vm611, %v590
      %624 = vst.msk [vmem:[%s208 + $0x60] sm:$0xff] %vm611, %v591
      %625 = vst.msk [vmem:[%s208 + $0x68] sm:$0xff] %vm611, %v592
      %626 = vst.msk [vmem:[%s208 + $0x70] sm:$0xff] %vm611, %v593
      %627 = vst.msk [vmem:[%s208 + $0x78] sm:$0xff] %vm611, %v594
      %628 = vst.msk [vmem:[%s208 + $0x80] sm:$0xff] %vm611, %v595
      %629 = vst.msk [vmem:[%s208 + $0x88] sm:$0xff] %vm611, %v596
      %630 = vst.msk [vmem:[%s208 + $0x90] sm:$0xff] %vm611, %v597
      %631 = vst.msk [vmem:[%s208 + $0x98] sm:$0xff] %vm611, %v598
      %632 = vst.msk [vmem:[%s208 + $0xa0] sm:$0xff] %vm611, %v599
      %633 = vst.msk [vmem:[%s208 + $0xa8] sm:$0xff] %vm611, %v600
      %634 = vst.msk [vmem:[%s208 + $0xb0] sm:$0xff] %vm611, %v601
      %635 = vst.msk [vmem:[%s208 + $0xb8] sm:$0xff] %vm611, %v602
      %636 = vst.msk [vmem:[%s208 + $0xc0] sm:$0xff] %vm611, %v603
      %637 = vst.msk [vmem:[%s208 + $0xc8] sm:$0xff] %vm611, %v604
      %638 = vst.msk [vmem:[%s208 + $0xd0] sm:$0xff] %vm611, %v605
      %639 = vst.msk [vmem:[%s208 + $0xd8] sm:$0xff] %vm611, %v606
      %640 = vst.msk [vmem:[%s208 + $0xe0] sm:$0xff] %vm611, %v607
      %641 = vst.msk [vmem:[%s208 + $0xe8] sm:$0xff] %vm611, %v608
      %642 = vst.msk [vmem:[%s208 + $0xf0] sm:$0xff] %vm611, %v609
      %643 = vst.msk [vmem:[%s208 + $0xf8] sm:$0xff] %vm611, %v610
      %s644 = smul.u32 32, %s19
      %p645 = scmp.lt.s32.totalorder %s18, 1
      %s646 = scalar_select %p645, %s18, 1
      %p647 = scmp.lt.s32.totalorder %s644, 31
      %s648 = scalar_select %p647, %s644, 31
      %s649 = smul.addr %s646, 32
      %s650 = sadd.s32 %s648, %s649
      %s651 = smul.addr %s650, 8
      %s652 = scalar_lea.vmem %s3, %s651
      // Predicated region
      $region33: #{_lambda_.9} parent=31 // pred_check
        %p653 = pneg %p116
      $region34: #{_lambda_.9} parent=31 // pred_check_branch
        %655 = sbr.rel (%p653) target = $region36
      $region35: #{_lambda_.9} parent=31 // pred_region
        %s656 = smul.u32 32, %s19
      $region36: #{_lambda_.9} parent=31 // pred_fallthru
        _
    $region32: #{_lambda_.9} parent=5 // pred_fallthru
      _
    %p657 = scmp.le.s32.totalorder 2, %s9
    // Predicated region
    $region37: #{_lambda_.9} parent=5 // pred_check
      %p658 = pneg %p657
    $region38: #{_lambda_.9} parent=5 // pred_check_branch
      %660 = sbr.rel (%p658) target = $region40
    $region39: #{_lambda_.9} parent=5 // pred_region
      %s661 = ssub.s32 %s9, 2
      // Predicated region
      $region41: #{_lambda_.9} parent=39 // pred_check
        %p662 = pneg %p122
      $region42: #{_lambda_.9} parent=39 // pred_check_branch
        %664 = sbr.rel (%p662) target = $region44
      $region43: #{_lambda_.9} parent=39 // pred_region
        %s665 = smul.u32 32, %s21
        %p666 = scmp.lt.s32.totalorder %s20, 1
        %s667 = scalar_select %p666, %s20, 1
        %p668 = scmp.lt.s32.totalorder %s665, 31
        %s669 = scalar_select %p668, %s665, 31
        %s670 = smul.addr %s667, 32
        %s671 = sadd.s32 %s669, %s670
        %s672 = smul.addr %s671, 8
        %s673 = scalar_lea.vmem %s3, %s672
      $region44: #{_lambda_.9} parent=39 // pred_fallthru
        _
    $region40: #{_lambda_.9} parent=5 // pred_fallthru
      _
  $region6: #{_lambda_.9} parent=0 // loop_footer
    %s13 = sadd.s32 1, %s9
  $region7: #{_lambda_.9} parent=0 // loop_footer_branch
    %8 = sbr.rel target = $region3
  $region8: #{_lambda_.9} parent=0 // loop_exit
    _

// kernel: _lambda_.10
$region0: #{_lambda_.10}
  #allocation0 [shape = 'u32[]', space=smem, size = 0x4, offset = 0x4, fixed_abs, tag = 'smem constant byte address 0x4 - core index']
  #allocation1 [shape = 'u32[144,128]{1,0:T(1,128)}', space=vmem, size = 0x12000, scoped, tag = 'internal scratch']
  %s0 = inlined_call_operand.vmem [shape: f32[2,4,64,8], index: 0, kind: input, shape index: {}]
  %s1 = inlined_call_operand.vmem [shape: f32[2,64,8], index: 1, kind: output, shape index: {}]
  %s2 = sld [smem:[#allocation0]]
  $region37: #{_lambda_.10} parent=0
    _
  %s4 = ssub.s32 1, %s2
  %s5 = scalar_select 0, %s4, %s2
  loop: start=0, step=1, limit=4
  $region2: #{_lambda_.10} parent=0 // loop_pre_header
    _
  $region3: #{_lambda_.10} parent=0 // loop_header
    %s7 = sphi 0, %s11
    %p8 = scmp.ge.s32.totalorder %s7, 4
    %s17 = sphi 0, %s19
    %s20 = sphi 0, %s17
    %s21 = sphi 0, %s20
    %s37 = sphi 0, %s21
    %s43 = sphi 0, %s45
    %s46 = sphi 0, %s43
    %s47 = sphi 0, %s46
    %s63 = sphi 0, %s47
  $region4: #{_lambda_.10} parent=0 // loop_header_branch
    %10 = sbr.rel (%p8) target = $region8
  $region5: #{_lambda_.10} parent=0 // loop_body
    %s12 = ssub.s32 %s7, 1
    %s13 = ssub.s32 %s7, 2
    %s14 = sadd.s32 %s7, 1
    %s15 = ssub.s32 %s7, %s14
    %p16 = scmp.eq.s32.totalorder %s15, 0
    %s18 = sadd.s32 %s17, 1
    %s19 = scalar_select %p16, %s17, %s18
    %p22 = pneg %p16
    %p23 = scmp.eq.s32.totalorder %s7, 1
    %p24 = por %p22, %p23
    %p25 = scmp.ne.s32.totalorder %s17, %s20
    %p26 = scmp.eq.s32.totalorder %s7, 0
    %p27 = por %p25, %p26
    %p28 = scmp.ne.s32.totalorder %s17, %s20
    %p29 = scmp.eq.s32.totalorder %s12, 1
    %p30 = por %p28, %p29
    %p31 = scmp.ne.s32.totalorder %s20, %s21
    %p32 = scmp.eq.s32.totalorder %s12, 0
    %p33 = por %p31, %p32
    %p34 = scmp.ne.s32.totalorder %s20, %s21
    %p35 = scmp.eq.s32.totalorder %s13, 1
    %p36 = por %p34, %p35
    %p38 = scmp.ne.s32.totalorder %s21, %s37
    %p39 = scmp.eq.s32.totalorder %s13, 0
    %p40 = por %p38, %p39
    %s41 = ssub.s32 %s7, %s14
    %p42 = scmp.eq.s32.totalorder %s41, 0
    %s44 = sadd.s32 %s43, 1
    %s45 = scalar_select %p42, %s43, %s44
    %p48 = pneg %p42
    %p49 = scmp.eq.s32.totalorder %s7, 1
    %p50 = por %p48, %p49
    %p51 = scmp.ne.s32.totalorder %s43, %s46
    %p52 = scmp.eq.s32.totalorder %s7, 0
    %p53 = por %p51, %p52
    %p54 = scmp.ne.s32.totalorder %s43, %s46
    %p55 = scmp.eq.s32.totalorder %s12, 1
    %p56 = por %p54, %p55
    %p57 = scmp.ne.s32.totalorder %s46, %s47
    %p58 = scmp.eq.s32.totalorder %s12, 0
    %p59 = por %p57, %p58
    %p60 = scmp.ne.s32.totalorder %s46, %s47
    %p61 = scmp.eq.s32.totalorder %s13, 1
    %p62 = por %p60, %p61
    %p64 = scmp.ne.s32.totalorder %s47, %s63
    %p65 = scmp.eq.s32.totalorder %s13, 0
    %p66 = por %p64, %p65
    %p67 = scmp.le.s32.totalorder 1, %s7
    %p68 = scmp.lt.s32.totalorder %s7, 3
    %p69 = pnand %p67, %p68
    %p70 = pneg %p69
    // Predicated region
    $region9: #{_lambda_.10} parent=5 // pred_check
      _
    $region10: #{_lambda_.10} parent=5 // pred_check_branch
      %72 = sbr.rel (%p69) target = $region12
    $region11: #{_lambda_.10} parent=5 // pred_region
      %s73 = ssub.s32 %s7, 1
    $region12: #{_lambda_.10} parent=5 // pred_fallthru
      _
    %p74 = scmp.lt.s32.totalorder %s7, 2
    // Predicated region
    $region13: #{_lambda_.10} parent=5 // pred_check
      %p75 = pneg %p74
    $region14: #{_lambda_.10} parent=5 // pred_check_branch
      %77 = sbr.rel (%p75) target = $region16
    $region15: #{_lambda_.10} parent=5 // pred_region
      // Predicated region
      $region17: #{_lambda_.10} parent=15 // pred_check
        %p78 = pneg %p27
      $region18: #{_lambda_.10} parent=15 // pred_check_branch
        %80 = sbr.rel (%p78) target = $region20
      $region19: #{_lambda_.10} parent=15 // pred_region
        %p81 = scmp.lt.s32.totalorder %s7, 1
        %s82 = scalar_select %p81, %s7, 1
        %s83 = smul.addr %s82, 32
        %s84 = smul.addr %s83, 8
        %s85 = scalar_lea.vmem %s0, %s84
      $region20: #{_lambda_.10} parent=15 // pred_fallthru
        _
    $region16: #{_lambda_.10} parent=5 // pred_fallthru
      _
    %p86 = scmp.le.s32.totalorder 1, %s7
    %p87 = scmp.lt.s32.totalorder %s7, 3
    %p88 = pnand %p86, %p87
    %p89 = pneg %p88
    // Predicated region
    $region21: #{_lambda_.10} parent=5 // pred_check
      _
    $region22: #{_lambda_.10} parent=5 // pred_check_branch
      %91 = sbr.rel (%p88) target = $region24
    $region23: #{_lambda_.10} parent=5 // pred_region
      %s92 = ssub.s32 %s7, 1
      %p93 = scmp.lt.s32.totalorder %s12, 1
      %s94 = scalar_select %p93, %s12, 1
      %s95 = smul.addr %s94, 32
      %s96 = smul.addr %s95, 8
      %s97 = scalar_lea.vmem %s0, %s96
      %p98 = pneg %p33
      %p99 = pneg %p30
      %p100 = pneg %p59
      %p101 = pneg %p56
      %p102 = scmp.lt.s32.totalorder %s12, 1
      %s103 = scalar_select %p102, %s12, 1
      %s104 = smul.addr %s103, 8
      %s105 = smul.addr %s104, 8
      %s106 = scalar_lea.vmem %s1, %s105
      %p107 = scmp.lt.s32.totalorder %s12, 1
      %s108 = scalar_select %p107, %s12, 1
      %s109 = smul.addr %s108, 32
      %s110 = smul.addr %s109, 8
      %s111 = scalar_lea.vmem %s0, %s110
      %p112 = scmp.lt.s32.totalorder %s12, 1
      %s113 = scalar_select %p112, %s12, 1
      %s114 = smul.addr %s113, 8
      %s115 = smul.addr %s114, 8
      %s116 = scalar_lea.vmem %s1, %s115
      %v117 = vld [vmem:[%s111] sm:$0xff]
      %v118 = vld [vmem:[%s111 + $0x8] sm:$0xff]
      %v119 = vld [vmem:[%s111 + $0x10] sm:$0xff]
      %v120 = vld [vmem:[%s111 + $0x18] sm:$0xff]
      %v121 = vld [vmem:[%s111 + $0x20] sm:$0xff]
      %v122 = vld [vmem:[%s111 + $0x28] sm:$0xff]
      %v123 = vld [vmem:[%s111 + $0x30] sm:$0xff]
      %v124 = vld [vmem:[%s111 + $0x38] sm:$0xff]
      %s125 = scalar_lea.vmem %s111, 64
      %v126 = vld [vmem:[%s125] sm:$0xff]
      %v127 = vld [vmem:[%s125 + $0x8] sm:$0xff]
      %v128 = vld [vmem:[%s125 + $0x10] sm:$0xff]
      %v129 = vld [vmem:[%s125 + $0x18] sm:$0xff]
      %v130 = vld [vmem:[%s125 + $0x20] sm:$0xff]
      %v131 = vld [vmem:[%s125 + $0x28] sm:$0xff]
      %v132 = vld [vmem:[%s125 + $0x30] sm:$0xff]
      %v133 = vld [vmem:[%s125 + $0x38] sm:$0xff]
      %s134 = scalar_lea.vmem %s111, 128
      %v135 = vld [vmem:[%s134] sm:$0xff]
      %v136 = vld [vmem:[%s134 + $0x8] sm:$0xff]
      %v137 = vld [vmem:[%s134 + $0x10] sm:$0xff]
      %v138 = vld [vmem:[%s134 + $0x18] sm:$0xff]
      %v139 = vld [vmem:[%s134 + $0x20] sm:$0xff]
      %v140 = vld [vmem:[%s134 + $0x28] sm:$0xff]
      %v141 = vld [vmem:[%s134 + $0x30] sm:$0xff]
      %v142 = vld [vmem:[%s134 + $0x38] sm:$0xff]
      %s143 = scalar_lea.vmem %s111, 192
      %v144 = vld [vmem:[%s143] sm:$0xff]
      %v145 = vld [vmem:[%s143 + $0x8] sm:$0xff]
      %v146 = vld [vmem:[%s143 + $0x10] sm:$0xff]
      %v147 = vld [vmem:[%s143 + $0x18] sm:$0xff]
      %v148 = vld [vmem:[%s143 + $0x20] sm:$0xff]
      %v149 = vld [vmem:[%s143 + $0x28] sm:$0xff]
      %v150 = vld [vmem:[%s143 + $0x30] sm:$0xff]
      %v151 = vld [vmem:[%s143 + $0x38] sm:$0xff]
      %v152 = vlaneseq
      %v153 = vshrl.u32 %v152, 7
      %v154 = vadd.s32 %v153, 8
      %v155 = vadd.s32 %v153, 16
      %v156 = vadd.s32 %v153, 24
      %v157 = vadd.s32 %v153, 32
      %v158 = vadd.s32 %v153, 40
      %v159 = vadd.s32 %v153, 48
      %v160 = vadd.s32 %v153, 56
      %vm161 = vcmp.lt.s32.totalorder %v153, 0
      %v162 = vsub.s32 0, %v153
      %v163 = vsel %vm161, %v162, %v153
      %v164 = vshrl.u32 %v163, 3
      %v165 = vand.u32 %v163, 7
      %v166 = vsub.s32 0, %v165
      %v167 = vsel %vm161, %v166, %v165
      %vm168 = vcmp.lt.s32.totalorder %v154, 0
      %v169 = vsub.s32 0, %v154
      %v170 = vsel %vm168, %v169, %v154
      %v171 = vshrl.u32 %v170, 3
      %v172 = vand.u32 %v170, 7
      %v173 = vsub.s32 0, %v172
      %v174 = vsel %vm168, %v173, %v172
      %vm175 = vcmp.lt.s32.totalorder %v155, 0
      %v176 = vsub.s32 0, %v155
      %v177 = vsel %vm175, %v176, %v155
      %v178 = vshrl.u32 %v177, 3
      %v179 = vand.u32 %v177, 7
      %v180 = vsub.s32 0, %v179
      %v181 = vsel %vm175, %v180, %v179
      %vm182 = vcmp.lt.s32.totalorder %v156, 0
      %v183 = vsub.s32 0, %v156
      %v184 = vsel %vm182, %v183, %v156
      %v185 = vshrl.u32 %v184, 3
      %v186 = vand.u32 %v184, 7
      %v187 = vsub.s32 0, %v186
      %v188 = vsel %vm182, %v187, %v186
      %vm189 = vcmp.lt.s32.totalorder %v157, 0
      %v190 = vsub.s32 0, %v157
      %v191 = vsel %vm189, %v190, %v157
      %v192 = vshrl.u32 %v191, 3
      %v193 = vand.u32 %v191, 7
      %v194 = vsub.s32 0, %v193
      %v195 = vsel %vm189, %v194, %v193
      %vm196 = vcmp.lt.s32.totalorder %v158, 0
      %v197 = vsub.s32 0, %v158
      %v198 = vsel %vm196, %v197, %v158
      %v199 = vshrl.u32 %v198, 3
      %v200 = vand.u32 %v198, 7
      %v201 = vsub.s32 0, %v200
      %v202 = vsel %vm196, %v201, %v200
      %vm203 = vcmp.lt.s32.totalorder %v159, 0
      %v204 = vsub.s32 0, %v159
      %v205 = vsel %vm203, %v204, %v159
      %v206 = vshrl.u32 %v205, 3
      %v207 = vand.u32 %v205, 7
      %v208 = vsub.s32 0, %v207
      %v209 = vsel %vm203, %v208, %v207
      %vm210 = vcmp.lt.s32.totalorder %v160, 0
      %v211 = vsub.s32 0, %v160
      %v212 = vsel %vm210, %v211, %v160
      %v213 = vshrl.u32 %v212, 3
      %v214 = vand.u32 %v212, 7
      %v215 = vsub.s32 0, %v214
      %v216 = vsel %vm210, %v215, %v214
      %vm217 = vcmp.ne.s32.totalorder %v167, 0
      %vm218 = vcmp.ne.s32.totalorder %v174, 0
      %vm219 = vcmp.ne.s32.totalorder %v181, 0
      %vm220 = vcmp.ne.s32.totalorder %v188, 0
      %vm221 = vcmp.ne.s32.totalorder %v195, 0
      %vm222 = vcmp.ne.s32.totalorder %v202, 0
      %vm223 = vcmp.ne.s32.totalorder %v209, 0
      %vm224 = vcmp.ne.s32.totalorder %v216, 0
      %vm225 = vcmp.lt.s32.totalorder %v167, 0
      %vm226 = vcmp.lt.s32.totalorder %v174, 0
      %vm227 = vcmp.lt.s32.totalorder %v181, 0
      %vm228 = vcmp.lt.s32.totalorder %v188, 0
      %vm229 = vcmp.lt.s32.totalorder %v195, 0
      %vm230 = vcmp.lt.s32.totalorder %v202, 0
      %vm231 = vcmp.lt.s32.totalorder %v209, 0
      %vm232 = vcmp.lt.s32.totalorder %v216, 0
      %vm233 = vmand %vm225, %vm217
      %vm234 = vmand %vm226, %vm218
      %vm235 = vmand %vm227, %vm219
      %vm236 = vmand %vm228, %vm220
      %vm237 = vmand %vm229, %vm221
      %vm238 = vmand %vm230, %vm222
      %vm239 = vmand %vm231, %vm223
      %vm240 = vmand %vm232, %vm224
      %v241 = vadd.s32 %v167, 8
      %v242 = vadd.s32 %v174, 8
      %v243 = vadd.s32 %v181, 8
      %v244 = vadd.s32 %v188, 8
      %v245 = vadd.s32 %v195, 8
      %v246 = vadd.s32 %v202, 8
      %v247 = vadd.s32 %v209, 8
      %v248 = vadd.s32 %v216, 8
      %v249 = vsel %vm233, %v241, %v167
      %v250 = vsel %vm234, %v242, %v174
      %v251 = vsel %vm235, %v243, %v181
      %v252 = vsel %vm236, %v244, %v188
      %v253 = vsel %vm237, %v245, %v195
      %v254 = vsel %vm238, %v246, %v202
      %v255 = vsel %vm239, %v247, %v209
      %v256 = vsel %vm240, %v248, %v216
      %vm264 = vcmask 1040384
      %v265 = vrot.slane %v144, 7
      %v266 = vrot.slane %v145, 7
      %v267 = vsel %vm264, %v265, %v266
      %v268 = vrot.slane %v146, 7
      %v269 = vsel %vm264, %v266, %v268
      %v270 = vrot.slane %v147, 7
      %v271 = vsel %vm264, %v268, %v270
      %v272 = vrot.slane %v148, 7
      %v273 = vsel %vm264, %v270, %v272
      %v274 = vrot.slane %v149, 7
      %v275 = vsel %vm264, %v272, %v274
      %v276 = vrot.slane %v150, 7
      %v277 = vsel %vm264, %v274, %v276
      %v285 = vsel %vm264, -1e+30, %v265
      %vm286 = vcmp.ge.s32.totalorder %v249, 1
      %vm287 = vcmp.ge.s32.totalorder %v250, 1
      %vm288 = vcmp.ge.s32.totalorder %v251, 1
      %vm289 = vcmp.ge.s32.totalorder %v252, 1
      %vm290 = vcmp.ge.s32.totalorder %v253, 1
      %vm291 = vcmp.ge.s32.totalorder %v254, 1
      %vm292 = vcmp.ge.s32.totalorder %v255, 1
      %vm293 = vcmp.ge.s32.totalorder %v256, 1
      %v294 = vsel %vm286, 1, 0
      %v295 = vsel %vm287, 1, 0
      %v296 = vsel %vm288, 1, 0
      %v297 = vsel %vm289, 1, 0
      %v298 = vsel %vm290, 1, 0
      %v299 = vsel %vm291, 1, 0
      %v300 = vsel %vm292, 1, 0
      %v301 = vsel %vm293, 1, 0
      %vm302 = vcmp.eq.s32.totalorder %v294, 1
      %vm303 = vcmp.eq.s32.totalorder %v295, 1
      %vm304 = vcmp.eq.s32.totalorder %v296, 1
      %vm305 = vcmp.eq.s32.totalorder %v297, 1
      %vm306 = vcmp.eq.s32.totalorder %v298, 1
      %vm307 = vcmp.eq.s32.totalorder %v299, 1
      %vm308 = vcmp.eq.s32.totalorder %v300, 1
      %vm309 = vcmp.eq.s32.totalorder %v301, 1
      %v310 = vsel %vm303, %v285, -1e+30
      %v311 = vsel %vm304, %v267, -1e+30
      %v312 = vsel %vm305, %v269, -1e+30
      %v313 = vsel %vm306, %v271, -1e+30
      %v314 = vsel %vm307, %v273, -1e+30
      %v315 = vsel %vm308, %v275, -1e+30
      %v316 = vsel %vm309, %v277, -1e+30
      %v325 = vrot.slane %v126, 7
      %v326 = vrot.slane %v127, 7
      %v327 = vsel %vm264, %v325, %v326
      %v328 = vrot.slane %v128, 7
      %v329 = vsel %vm264, %v326, %v328
      %v330 = vrot.slane %v129, 7
      %v331 = vsel %vm264, %v328, %v330
      %v332 = vrot.slane %v130, 7
      %v333 = vsel %vm264, %v330, %v332
      %v334 = vrot.slane %v131, 7
      %v335 = vsel %vm264, %v332, %v334
      %v336 = vrot.slane %v132, 7
      %v337 = vsel %vm264, %v334, %v336
      %v338 = vrot.slane %v133, 7
      %v339 = vsel %vm264, %v336, %v338
      %v348 = vsel %vm264, -1e+30, %v325
      %v349 = vsel %vm302, %v348, -1e+30
      %v350 = vsel %vm303, %v327, -1e+30
      %v351 = vsel %vm304, %v329, -1e+30
      %v352 = vsel %vm305, %v331, -1e+30
      %v353 = vsel %vm306, %v333, -1e+30
      %v354 = vsel %vm307, %v335, -1e+30
      %v355 = vsel %vm308, %v337, -1e+30
      %v356 = vsel %vm309, %v339, -1e+30
      %v358 = vrot.slane %v151, 7
      %v359 = vsel %vm264, %v276, %v358
      %v361 = vsel %vm302, %v285, -1e+30
      %v362 = vsel %vm303, %v267, -1e+30
      %v363 = vsel %vm304, %v269, -1e+30
      %v364 = vsel %vm305, %v271, -1e+30
      %v365 = vsel %vm306, %v273, -1e+30
      %v366 = vsel %vm307, %v275, -1e+30
      %v367 = vsel %vm308, %v277, -1e+30
      %v368 = vsel %vm309, %v359, -1e+30
      %v369 = vmax.f32 %v310, %v135
      %v370 = vmax.f32 %v311, %v136
      %v371 = vmax.f32 %v312, %v137
      %v372 = vmax.f32 %v313, %v138
      %v373 = vmax.f32 %v314, %v139
      %v374 = vmax.f32 %v315, %v140
      %v375 = vmax.f32 %v316, %v141
      %v376 = vmax.f32 %v349, -1e+30
      %v377 = vmax.f32 %v144, %v350
      %v378 = vmax.f32 %v145, %v351
      %v379 = vmax.f32 %v146, %v352
      %v380 = vmax.f32 %v147, %v353
      %v381 = vmax.f32 %v148, %v354
      %v382 = vmax.f32 %v149, %v355
      %v383 = vmax.f32 %v150, %v356
      %v384 = vmax.f32 %v117, %v126
      %v385 = vmax.f32 %v118, %v127
      %v386 = vmax.f32 %v119, %v128
      %v387 = vmax.f32 %v120, %v129
      %v388 = vmax.f32 %v121, %v130
      %v389 = vmax.f32 %v122, %v131
      %v390 = vmax.f32 %v123, %v132
      %v391 = vmax.f32 %v124, %v133
      %v392 = vmax.f32 %v361, %v135
      %v393 = vmax.f32 %v362, %v136
      %v394 = vmax.f32 %v363, %v137
      %v395 = vmax.f32 %v364, %v138
      %v396 = vmax.f32 %v365, %v139
      %v397 = vmax.f32 %v366, %v140
      %v398 = vmax.f32 %v367, %v141
      %v399 = vmax.f32 %v368, %v142
      %v400 = vmax.f32 %v376, -1e+30
      %v401 = vmax.f32 %v369, %v377
      %v402 = vmax.f32 %v370, %v378
      %v403 = vmax.f32 %v371, %v379
      %v404 = vmax.f32 %v372, %v380
      %v405 = vmax.f32 %v373, %v381
      %v406 = vmax.f32 %v374, %v382
      %v407 = vmax.f32 %v375, %v383
      %v408 = vmax.f32 %v384, %v392
      %v409 = vmax.f32 %v385, %v393
      %v410 = vmax.f32 %v386, %v394
      %v411 = vmax.f32 %v387, %v395
      %v412 = vmax.f32 %v388, %v396
      %v413 = vmax.f32 %v389, %v397
      %v414 = vmax.f32 %v390, %v398
      %v415 = vmax.f32 %v391, %v399
      %v416 = vmax.f32 %v400, %v408
      %v417 = vmax.f32 %v401, %v409
      %v418 = vmax.f32 %v402, %v410
      %v419 = vmax.f32 %v403, %v411
      %v420 = vmax.f32 %v404, %v412
      %v421 = vmax.f32 %v405, %v413
      %v422 = vmax.f32 %v406, %v414
      %v423 = vmax.f32 %v407, %v415
      %v424 = vmax.f32 %v416, %v144
      %v425 = vmax.f32 %v417, %v145
      %v426 = vmax.f32 %v418, %v146
      %v427 = vmax.f32 %v419, %v147
      %v428 = vmax.f32 %v420, %v148
      %v429 = vmax.f32 %v421, %v149
      %v430 = vmax.f32 %v422, %v150
      %v431 = vmax.f32 %v423, %v151
      %vm432 = vcmask 64512
      %433 = vst.msk [vmem:[%s116] sm:$0xff] %vm432, %v424
      %434 = vst.msk [vmem:[%s116 + $0x8] sm:$0xff] %vm432, %v425
      %435 = vst.msk [vmem:[%s116 + $0x10] sm:$0xff] %vm432, %v426
      %436 = vst.msk [vmem:[%s116 + $0x18] sm:$0xff] %vm432, %v427
      %437 = vst.msk [vmem:[%s116 + $0x20] sm:$0xff] %vm432, %v428
      %438 = vst.msk [vmem:[%s116 + $0x28] sm:$0xff] %vm432, %v429
      %439 = vst.msk [vmem:[%s116 + $0x30] sm:$0xff] %vm432, %v430
      %440 = vst.msk [vmem:[%s116 + $0x38] sm:$0xff] %vm432, %v431
      %p441 = scmp.lt.s32.totalorder %s12, 1
      %s442 = scalar_select %p441, %s12, 1
      %s443 = smul.addr %s442, 8
      %s444 = smul.addr %s443, 8
      %s445 = scalar_lea.vmem %s1, %s444
      // Predicated region
      $region25: #{_lambda_.10} parent=23 // pred_check
        %p446 = pneg %p56
      $region26: #{_lambda_.10} parent=23 // pred_check_branch
        %448 = sbr.rel (%p446) target = $region28
      $region27: #{_lambda_.10} parent=23 // pred_region
        _
      $region28: #{_lambda_.10} parent=23 // pred_fallthru
        _
    $region24: #{_lambda_.10} parent=5 // pred_fallthru
      _
    %p449 = scmp.le.s32.totalorder 2, %s7
    // Predicated region
    $region29: #{_lambda_.10} parent=5 // pred_check
      %p450 = pneg %p449
    $region30: #{_lambda_.10} parent=5 // pred_check_branch
      %452 = sbr.rel (%p450) target = $region32
    $region31: #{_lambda_.10} parent=5 // pred_region
      %s453 = ssub.s32 %s7, 2
      // Predicated region
      $region33: #{_lambda_.10} parent=31 // pred_check
        %p454 = pneg %p62
      $region34: #{_lambda_.10} parent=31 // pred_check_branch
        %456 = sbr.rel (%p454) target = $region36
      $region35: #{_lambda_.10} parent=31 // pred_region
        %p457 = scmp.lt.s32.totalorder %s13, 1
        %s458 = scalar_select %p457, %s13, 1
        %s459 = smul.addr %s458, 8
        %s460 = smul.addr %s459, 8
        %s461 = scalar_lea.vmem %s1, %s460
      $region36: #{_lambda_.10} parent=31 // pred_fallthru
        _
    $region32: #{_lambda_.10} parent=5 // pred_fallthru
      _
  $region6: #{_lambda_.10} parent=0 // loop_footer
    %s11 = sadd.s32 1, %s7
  $region7: #{_lambda_.10} parent=0 // loop_footer_branch
    %6 = sbr.rel target = $region3
  $region8: #{_lambda_.10} parent=0 // loop_exit
    _

// kernel: _lambda_.11
$region0: #{_lambda_.11}
  #allocation0 [shape = 'u32[]', space=smem, size = 0x4, offset = 0x4, fixed_abs, tag = 'smem constant byte address 0x4 - core index']
  #allocation1 [shape = 'u32[144,128]{1,0:T(1,128)}', space=vmem, size = 0x12000, scoped, tag = 'internal scratch']
  %s0 = inlined_call_operand.vmem [shape: f32[2,4,16,8], index: 0, kind: input, shape index: {}]
  %s1 = inlined_call_operand.vmem [shape: f32[9,8], index: 1, kind: input, shape index: {}]
  %s2 = inlined_call_operand.vmem [shape: f32[1,8], index: 2, kind: input, shape index: {}, may-alias: {2,4,6,8,10}]
  %s3 = inlined_call_operand.vmem [shape: f32[8,8], index: 3, kind: input, shape index: {}]
  %s4 = inlined_call_operand.vmem [shape: f32[1,8], index: 4, kind: input, shape index: {}, may-alias: {2,4,6,8,10}]
  %s5 = inlined_call_operand.vmem [shape: f32[8,8], index: 5, kind: input, shape index: {}]
  %s6 = inlined_call_operand.vmem [shape: f32[1,8], index: 6, kind: input, shape index: {}, may-alias: {2,4,6,8,10}]
  %s7 = inlined_call_operand.vmem [shape: f32[9,8], index: 7, kind: input, shape index: {}]
  %s8 = inlined_call_operand.vmem [shape: f32[1,8], index: 8, kind: input, shape index: {}, may-alias: {2,4,6,8,10}]
  %s9 = inlined_call_operand.vmem [shape: f32[8,8], index: 9, kind: input, shape index: {}]
  %s10 = inlined_call_operand.vmem [shape: f32[1,8], index: 10, kind: input, shape index: {}, may-alias: {2,4,6,8,10}]
  %s11 = inlined_call_operand.vmem [shape: f32[2,16,8], index: 11, kind: output, shape index: {0}]
  %s12 = inlined_call_operand.vmem [shape: f32[2,16,8], index: 12, kind: output, shape index: {1}]
  %13 = xla_tuple %s11, %s12
  %s14 = sld [smem:[#allocation0]]
  $region85: #{_lambda_.11} parent=0
    _
  %s16 = ssub.s32 1, %s14
  %s17 = scalar_select 0, %s16, %s14
  loop: start=0, step=1, limit=4
  $region2: #{_lambda_.11} parent=0 // loop_pre_header
    _
  $region3: #{_lambda_.11} parent=0 // loop_header
    %s19 = sphi 0, %s23
    %p20 = scmp.ge.s32.totalorder %s19, 4
    %s29 = sphi 0, %s31
    %s32 = sphi 0, %s29
    %s33 = sphi 0, %s32
    %s49 = sphi 0, %s33
    %s53 = sphi 0, %s53
    %s55 = sphi 0, %s53
    %s56 = sphi 0, %s55
    %s70 = sphi 0, %s56
    %s74 = sphi 0, %s74
    %s76 = sphi 0, %s74
    %s77 = sphi 0, %s76
    %s91 = sphi 0, %s77
    %s95 = sphi 0, %s95
    %s97 = sphi 0, %s95
    %s98 = sphi 0, %s97
    %s112 = sphi 0, %s98
    %s116 = sphi 0, %s116
    %s118 = sphi 0, %s116
    %s119 = sphi 0, %s118
    %s133 = sphi 0, %s119
    %s137 = sphi 0, %s137
    %s139 = sphi 0, %s137
    %s140 = sphi 0, %s139
    %s154 = sphi 0, %s140
    %s158 = sphi 0, %s158
    %s160 = sphi 0, %s158
    %s161 = sphi 0, %s160
    %s175 = sphi 0, %s161
    %s179 = sphi 0, %s179
    %s181 = sphi 0, %s179
    %s182 = sphi 0, %s181
    %s196 = sphi 0, %s182
    %s200 = sphi 0, %s200
    %s202 = sphi 0, %s200
    %s203 = sphi 0, %s202
    %s217 = sphi 0, %s203
    %s221 = sphi 0, %s221
    %s223 = sphi 0, %s221
    %s224 = sphi 0, %s223
    %s238 = sphi 0, %s224
    %s242 = sphi 0, %s242
    %s244 = sphi 0, %s242
    %s245 = sphi 0, %s244
    %s259 = sphi 0, %s245
    %s265 = sphi 0, %s267
    %s268 = sphi 0, %s265
    %s269 = sphi 0, %s268
    %s285 = sphi 0, %s269
    %s291 = sphi 0, %s293
    %s294 = sphi 0, %s291
    %s295 = sphi 0, %s294
    %s311 = sphi 0, %s295
  $region4: #{_lambda_.11} parent=0 // loop_header_branch
    %22 = sbr.rel (%p20) target = $region8
  $region5: #{_lambda_.11} parent=0 // loop_body
    %s24 = ssub.s32 %s19, 1
    %s25 = ssub.s32 %s19, 2
    %s26 = sadd.s32 %s19, 1
    %s27 = ssub.s32 %s19, %s26
    %p28 = scmp.eq.s32.totalorder %s27, 0
    %s30 = sadd.s32 %s29, 1
    %s31 = scalar_select %p28, %s29, %s30
    %p34 = pneg %p28
    %p35 = scmp.eq.s32.totalorder %s19, 1
    %p36 = por %p34, %p35
    %p37 = scmp.ne.s32.totalorder %s29, %s32
    %p38 = scmp.eq.s32.totalorder %s19, 0
    %p39 = por %p37, %p38
    %p40 = scmp.ne.s32.totalorder %s29, %s32
    %p41 = scmp.eq.s32.totalorder %s24, 1
    %p42 = por %p40, %p41
    %p43 = scmp.ne.s32.totalorder %s32, %s33
    %p44 = scmp.eq.s32.totalorder %s24, 0
    %p45 = por %p43, %p44
    %p46 = scmp.ne.s32.totalorder %s32, %s33
    %p47 = scmp.eq.s32.totalorder %s25, 1
    %p48 = por %p46, %p47
    %p50 = scmp.ne.s32.totalorder %s33, %s49
    %p51 = scmp.eq.s32.totalorder %s25, 0
    %p52 = por %p50, %p51
    %s54 = sadd.s32 %s53, 1
    %p57 = scmp.eq.s32.totalorder %s19, 1
    %p58 = scmp.ne.s32.totalorder %s53, %s55
    %p59 = scmp.eq.s32.totalorder %s19, 0
    %p60 = por %p58, %p59
    %p61 = scmp.ne.s32.totalorder %s53, %s55
    %p62 = scmp.eq.s32.totalorder %s24, 1
    %p63 = por %p61, %p62
    %p64 = scmp.ne.s32.totalorder %s55, %s56
    %p65 = scmp.eq.s32.totalorder %s24, 0
    %p66 = por %p64, %p65
    %p67 = scmp.ne.s32.totalorder %s55, %s56
    %p68 = scmp.eq.s32.totalorder %s25, 1
    %p69 = por %p67, %p68
    %p71 = scmp.ne.s32.totalorder %s56, %s70
    %p72 = scmp.eq.s32.totalorder %s25, 0
    %p73 = por %p71, %p72
    %s75 = sadd.s32 %s74, 1
    %p78 = scmp.eq.s32.totalorder %s19, 1
    %p79 = scmp.ne.s32.totalorder %s74, %s76
    %p80 = scmp.eq.s32.totalorder %s19, 0
    %p81 = por %p79, %p80
    %p82 = scmp.ne.s32.totalorder %s74, %s76
    %p83 = scmp.eq.s32.totalorder %s24, 1
    %p84 = por %p82, %p83
    %p85 = scmp.ne.s32.totalorder %s76, %s77
    %p86 = scmp.eq.s32.totalorder %s24, 0
    %p87 = por %p85, %p86
    %p88 = scmp.ne.s32.totalorder %s76, %s77
    %p89 = scmp.eq.s32.totalorder %s25, 1
    %p90 = por %p88, %p89
    %p92 = scmp.ne.s32.totalorder %s77, %s91
    %p93 = scmp.eq.s32.totalorder %s25, 0
    %p94 = por %p92, %p93
    %s96 = sadd.s32 %s95, 1
    %p99 = scmp.eq.s32.totalorder %s19, 1
    %p100 = scmp.ne.s32.totalorder %s95, %s97
    %p101 = scmp.eq.s32.totalorder %s19, 0
    %p102 = por %p100, %p101
    %p103 = scmp.ne.s32.totalorder %s95, %s97
    %p104 = scmp.eq.s32.totalorder %s24, 1
    %p105 = por %p103, %p104
    %p106 = scmp.ne.s32.totalorder %s97, %s98
    %p107 = scmp.eq.s32.totalorder %s24, 0
    %p108 = por %p106, %p107
    %p109 = scmp.ne.s32.totalorder %s97, %s98
    %p110 = scmp.eq.s32.totalorder %s25, 1
    %p111 = por %p109, %p110
    %p113 = scmp.ne.s32.totalorder %s98, %s112
    %p114 = scmp.eq.s32.totalorder %s25, 0
    %p115 = por %p113, %p114
    %s117 = sadd.s32 %s116, 1
    %p120 = scmp.eq.s32.totalorder %s19, 1
    %p121 = scmp.ne.s32.totalorder %s116, %s118
    %p122 = scmp.eq.s32.totalorder %s19, 0
    %p123 = por %p121, %p122
    %p124 = scmp.ne.s32.totalorder %s116, %s118
    %p125 = scmp.eq.s32.totalorder %s24, 1
    %p126 = por %p124, %p125
    %p127 = scmp.ne.s32.totalorder %s118, %s119
    %p128 = scmp.eq.s32.totalorder %s24, 0
    %p129 = por %p127, %p128
    %p130 = scmp.ne.s32.totalorder %s118, %s119
    %p131 = scmp.eq.s32.totalorder %s25, 1
    %p132 = por %p130, %p131
    %p134 = scmp.ne.s32.totalorder %s119, %s133
    %p135 = scmp.eq.s32.totalorder %s25, 0
    %p136 = por %p134, %p135
    %s138 = sadd.s32 %s137, 1
    %p141 = scmp.eq.s32.totalorder %s19, 1
    %p142 = scmp.ne.s32.totalorder %s137, %s139
    %p143 = scmp.eq.s32.totalorder %s19, 0
    %p144 = por %p142, %p143
    %p145 = scmp.ne.s32.totalorder %s137, %s139
    %p146 = scmp.eq.s32.totalorder %s24, 1
    %p147 = por %p145, %p146
    %p148 = scmp.ne.s32.totalorder %s139, %s140
    %p149 = scmp.eq.s32.totalorder %s24, 0
    %p150 = por %p148, %p149
    %p151 = scmp.ne.s32.totalorder %s139, %s140
    %p152 = scmp.eq.s32.totalorder %s25, 1
    %p153 = por %p151, %p152
    %p155 = scmp.ne.s32.totalorder %s140, %s154
    %p156 = scmp.eq.s32.totalorder %s25, 0
    %p157 = por %p155, %p156
    %s159 = sadd.s32 %s158, 1
    %p162 = scmp.eq.s32.totalorder %s19, 1
    %p163 = scmp.ne.s32.totalorder %s158, %s160
    %p164 = scmp.eq.s32.totalorder %s19, 0
    %p165 = por %p163, %p164
    %p166 = scmp.ne.s32.totalorder %s158, %s160
    %p167 = scmp.eq.s32.totalorder %s24, 1
    %p168 = por %p166, %p167
    %p169 = scmp.ne.s32.totalorder %s160, %s161
    %p170 = scmp.eq.s32.totalorder %s24, 0
    %p171 = por %p169, %p170
    %p172 = scmp.ne.s32.totalorder %s160, %s161
    %p173 = scmp.eq.s32.totalorder %s25, 1
    %p174 = por %p172, %p173
    %p176 = scmp.ne.s32.totalorder %s161, %s175
    %p177 = scmp.eq.s32.totalorder %s25, 0
    %p178 = por %p176, %p177
    %s180 = sadd.s32 %s179, 1
    %p183 = scmp.eq.s32.totalorder %s19, 1
    %p184 = scmp.ne.s32.totalorder %s179, %s181
    %p185 = scmp.eq.s32.totalorder %s19, 0
    %p186 = por %p184, %p185
    %p187 = scmp.ne.s32.totalorder %s179, %s181
    %p188 = scmp.eq.s32.totalorder %s24, 1
    %p189 = por %p187, %p188
    %p190 = scmp.ne.s32.totalorder %s181, %s182
    %p191 = scmp.eq.s32.totalorder %s24, 0
    %p192 = por %p190, %p191
    %p193 = scmp.ne.s32.totalorder %s181, %s182
    %p194 = scmp.eq.s32.totalorder %s25, 1
    %p195 = por %p193, %p194
    %p197 = scmp.ne.s32.totalorder %s182, %s196
    %p198 = scmp.eq.s32.totalorder %s25, 0
    %p199 = por %p197, %p198
    %s201 = sadd.s32 %s200, 1
    %p204 = scmp.eq.s32.totalorder %s19, 1
    %p205 = scmp.ne.s32.totalorder %s200, %s202
    %p206 = scmp.eq.s32.totalorder %s19, 0
    %p207 = por %p205, %p206
    %p208 = scmp.ne.s32.totalorder %s200, %s202
    %p209 = scmp.eq.s32.totalorder %s24, 1
    %p210 = por %p208, %p209
    %p211 = scmp.ne.s32.totalorder %s202, %s203
    %p212 = scmp.eq.s32.totalorder %s24, 0
    %p213 = por %p211, %p212
    %p214 = scmp.ne.s32.totalorder %s202, %s203
    %p215 = scmp.eq.s32.totalorder %s25, 1
    %p216 = por %p214, %p215
    %p218 = scmp.ne.s32.totalorder %s203, %s217
    %p219 = scmp.eq.s32.totalorder %s25, 0
    %p220 = por %p218, %p219
    %s222 = sadd.s32 %s221, 1
    %p225 = scmp.eq.s32.totalorder %s19, 1
    %p226 = scmp.ne.s32.totalorder %s221, %s223
    %p227 = scmp.eq.s32.totalorder %s19, 0
    %p228 = por %p226, %p227
    %p229 = scmp.ne.s32.totalorder %s221, %s223
    %p230 = scmp.eq.s32.totalorder %s24, 1
    %p231 = por %p229, %p230
    %p232 = scmp.ne.s32.totalorder %s223, %s224
    %p233 = scmp.eq.s32.totalorder %s24, 0
    %p234 = por %p232, %p233
    %p235 = scmp.ne.s32.totalorder %s223, %s224
    %p236 = scmp.eq.s32.totalorder %s25, 1
    %p237 = por %p235, %p236
    %p239 = scmp.ne.s32.totalorder %s224, %s238
    %p240 = scmp.eq.s32.totalorder %s25, 0
    %p241 = por %p239, %p240
    %s243 = sadd.s32 %s242, 1
    %p246 = scmp.eq.s32.totalorder %s19, 1
    %p247 = scmp.ne.s32.totalorder %s242, %s244
    %p248 = scmp.eq.s32.totalorder %s19, 0
    %p249 = por %p247, %p248
    %p250 = scmp.ne.s32.totalorder %s242, %s244
    %p251 = scmp.eq.s32.totalorder %s24, 1
    %p252 = por %p250, %p251
    %p253 = scmp.ne.s32.totalorder %s244, %s245
    %p254 = scmp.eq.s32.totalorder %s24, 0
    %p255 = por %p253, %p254
    %p256 = scmp.ne.s32.totalorder %s244, %s245
    %p257 = scmp.eq.s32.totalorder %s25, 1
    %p258 = por %p256, %p257
    %p260 = scmp.ne.s32.totalorder %s245, %s259
    %p261 = scmp.eq.s32.totalorder %s25, 0
    %p262 = por %p260, %p261
    %s263 = ssub.s32 %s19, %s26
    %p264 = scmp.eq.s32.totalorder %s263, 0
    %s266 = sadd.s32 %s265, 1
    %s267 = scalar_select %p264, %s265, %s266
    %p270 = pneg %p264
    %p271 = scmp.eq.s32.totalorder %s19, 1
    %p272 = por %p270, %p271
    %p273 = scmp.ne.s32.totalorder %s265, %s268
    %p274 = scmp.eq.s32.totalorder %s19, 0
    %p275 = por %p273, %p274
    %p276 = scmp.ne.s32.totalorder %s265, %s268
    %p277 = scmp.eq.s32.totalorder %s24, 1
    %p278 = por %p276, %p277
    %p279 = scmp.ne.s32.totalorder %s268, %s269
    %p280 = scmp.eq.s32.totalorder %s24, 0
    %p281 = por %p279, %p280
    %p282 = scmp.ne.s32.totalorder %s268, %s269
    %p283 = scmp.eq.s32.totalorder %s25, 1
    %p284 = por %p282, %p283
    %p286 = scmp.ne.s32.totalorder %s269, %s285
    %p287 = scmp.eq.s32.totalorder %s25, 0
    %p288 = por %p286, %p287
    %s289 = ssub.s32 %s19, %s26
    %p290 = scmp.eq.s32.totalorder %s289, 0
    %s292 = sadd.s32 %s291, 1
    %s293 = scalar_select %p290, %s291, %s292
    %p296 = pneg %p290
    %p297 = scmp.eq.s32.totalorder %s19, 1
    %p298 = por %p296, %p297
    %p299 = scmp.ne.s32.totalorder %s291, %s294
    %p300 = scmp.eq.s32.totalorder %s19, 0
    %p301 = por %p299, %p300
    %p302 = scmp.ne.s32.totalorder %s291, %s294
    %p303 = scmp.eq.s32.totalorder %s24, 1
    %p304 = por %p302, %p303
    %p305 = scmp.ne.s32.totalorder %s294, %s295
    %p306 = scmp.eq.s32.totalorder %s24, 0
    %p307 = por %p305, %p306
    %p308 = scmp.ne.s32.totalorder %s294, %s295
    %p309 = scmp.eq.s32.totalorder %s25, 1
    %p310 = por %p308, %p309
    %p312 = scmp.ne.s32.totalorder %s295, %s311
    %p313 = scmp.eq.s32.totalorder %s25, 0
    %p314 = por %p312, %p313
    %p315 = scmp.le.s32.totalorder 1, %s19
    %p316 = scmp.lt.s32.totalorder %s19, 3
    %p317 = pnand %p315, %p316
    %p318 = pneg %p317
    // Predicated region
    $region9: #{_lambda_.11} parent=5 // pred_check
      _
    $region10: #{_lambda_.11} parent=5 // pred_check_branch
      %320 = sbr.rel (%p317) target = $region12
    $region11: #{_lambda_.11} parent=5 // pred_region
      %s321 = ssub.s32 %s19, 1
      // Predicated region
      $region13: #{_lambda_.11} parent=11 // pred_check
        %p322 = pneg %p66
      $region14: #{_lambda_.11} parent=11 // pred_check_branch
        %324 = sbr.rel (%p322) target = $region16
      $region15: #{_lambda_.11} parent=11 // pred_region
        _
      $region16: #{_lambda_.11} parent=11 // pred_fallthru
        _
      // Predicated region
      $region17: #{_lambda_.11} parent=11 // pred_check
        %p325 = pneg %p87
      $region18: #{_lambda_.11} parent=11 // pred_check_branch
        %327 = sbr.rel (%p325) target = $region20
      $region19: #{_lambda_.11} parent=11 // pred_region
        _
      $region20: #{_lambda_.11} parent=11 // pred_fallthru
        _
      // Predicated region
      $region21: #{_lambda_.11} parent=11 // pred_check
        %p328 = pneg %p108
      $region22: #{_lambda_.11} parent=11 // pred_check_branch
        %330 = sbr.rel (%p328) target = $region24
      $region23: #{_lambda_.11} parent=11 // pred_region
        _
      $region24: #{_lambda_.11} parent=11 // pred_fallthru
        _
      // Predicated region
      $region25: #{_lambda_.11} parent=11 // pred_check
        %p331 = pneg %p129
      $region26: #{_lambda_.11} parent=11 // pred_check_branch
        %333 = sbr.rel (%p331) target = $region28
      $region27: #{_lambda_.11} parent=11 // pred_region
        _
      $region28: #{_lambda_.11} parent=11 // pred_fallthru
        _
      // Predicated region
      $region29: #{_lambda_.11} parent=11 // pred_check
        %p334 = pneg %p150
      $region30: #{_lambda_.11} parent=11 // pred_check_branch
        %336 = sbr.rel (%p334) target = $region32
      $region31: #{_lambda_.11} parent=11 // pred_region
        _
      $region32: #{_lambda_.11} parent=11 // pred_fallthru
        _
      // Predicated region
      $region33: #{_lambda_.11} parent=11 // pred_check
        %p337 = pneg %p171
      $region34: #{_lambda_.11} parent=11 // pred_check_branch
        %339 = sbr.rel (%p337) target = $region36
      $region35: #{_lambda_.11} parent=11 // pred_region
        _
      $region36: #{_lambda_.11} parent=11 // pred_fallthru
        _
      // Predicated region
      $region37: #{_lambda_.11} parent=11 // pred_check
        %p340 = pneg %p192
      $region38: #{_lambda_.11} parent=11 // pred_check_branch
        %342 = sbr.rel (%p340) target = $region40
      $region39: #{_lambda_.11} parent=11 // pred_region
        _
      $region40: #{_lambda_.11} parent=11 // pred_fallthru
        _
      // Predicated region
      $region41: #{_lambda_.11} parent=11 // pred_check
        %p343 = pneg %p213
      $region42: #{_lambda_.11} parent=11 // pred_check_branch
        %345 = sbr.rel (%p343) target = $region44
      $region43: #{_lambda_.11} parent=11 // pred_region
        _
      $region44: #{_lambda_.11} parent=11 // pred_fallthru
        _
      // Predicated region
      $region45: #{_lambda_.11} parent=11 // pred_check
        %p346 = pneg %p234
      $region46: #{_lambda_.11} parent=11 // pred_check_branch
        %348 = sbr.rel (%p346) target = $region48
      $region47: #{_lambda_.11} parent=11 // pred_region
        _
      $region48: #{_lambda_.11} parent=11 // pred_fallthru
        _
      // Predicated region
      $region49: #{_lambda_.11} parent=11 // pred_check
        %p349 = pneg %p255
      $region50: #{_lambda_.11} parent=11 // pred_check_branch
        %351 = sbr.rel (%p349) target = $region52
      $region51: #{_lambda_.11} parent=11 // pred_region
        _
      $region52: #{_lambda_.11} parent=11 // pred_fallthru
        _
    $region12: #{_lambda_.11} parent=5 // pred_fallthru
      _
    %p352 = scmp.lt.s32.totalorder %s19, 2
    // Predicated region
    $region53: #{_lambda_.11} parent=5 // pred_check
      %p353 = pneg %p352
    $region54: #{_lambda_.11} parent=5 // pred_check_branch
      %355 = sbr.rel (%p353) target = $region56
    $region55: #{_lambda_.11} parent=5 // pred_region
      // Predicated region
      $region57: #{_lambda_.11} parent=55 // pred_check
        %p356 = pneg %p39
      $region58: #{_lambda_.11} parent=55 // pred_check_branch
        %358 = sbr.rel (%p356) target = $region60
      $region59: #{_lambda_.11} parent=55 // pred_region
        %p359 = scmp.lt.s32.totalorder %s19, 1
        %s360 = scalar_select %p359, %s19, 1
        %s361 = smul.addr %s360, 8
        %s362 = smul.addr %s361, 8
        %s363 = scalar_lea.vmem %s0, %s362
      $region60: #{_lambda_.11} parent=55 // pred_fallthru
        _
    $region56: #{_lambda_.11} parent=5 // pred_fallthru
      _
    %p364 = scmp.le.s32.totalorder 1, %s19
    %p365 = scmp.lt.s32.totalorder %s19, 3
    %p366 = pnand %p364, %p365
    %p367 = pneg %p366
    // Predicated region
    $region61: #{_lambda_.11} parent=5 // pred_check
      _
    $region62: #{_lambda_.11} parent=5 // pred_check_branch
      %369 = sbr.rel (%p366) target = $region64
    $region63: #{_lambda_.11} parent=5 // pred_region
      %s370 = ssub.s32 %s19, 1
      %p371 = scmp.lt.s32.totalorder %s24, 1
      %s372 = scalar_select %p371, %s24, 1
      %s373 = smul.addr %s372, 8
      %s374 = smul.addr %s373, 8
      %s375 = scalar_lea.vmem %s0, %s374
      %p376 = pneg %p45
      %p377 = pneg %p42
      %p378 = pneg %p66
      %p379 = pneg %p63
      %p380 = pneg %p87
      %p381 = pneg %p84
      %p382 = pneg %p108
      %p383 = pneg %p105
      %p384 = pneg %p129
      %p385 = pneg %p126
      %p386 = pneg %p150
      %p387 = pneg %p147
      %p388 = pneg %p171
      %p389 = pneg %p168
      %p390 = pneg %p192
      %p391 = pneg %p189
      %p392 = pneg %p213
      %p393 = pneg %p210
      %p394 = pneg %p234
      %p395 = pneg %p231
      %p396 = pneg %p255
      %p397 = pneg %p252
      %p398 = pneg %p281
      %p399 = pneg %p278
      %p400 = scmp.lt.s32.totalorder %s24, 1
      %s401 = scalar_select %p400, %s24, 1
      %s402 = smul.addr %s401, 2
      %s403 = smul.addr %s402, 8
      %s404 = scalar_lea.vmem %s11, %s403
      %p405 = pneg %p307
      %p406 = pneg %p304
      %p407 = scmp.lt.s32.totalorder %s24, 1
      %s408 = scalar_select %p407, %s24, 1
      %s409 = smul.addr %s408, 2
      %s410 = smul.addr %s409, 8
      %s411 = scalar_lea.vmem %s12, %s410
      %p412 = scmp.lt.s32.totalorder %s24, 1
      %s413 = scalar_select %p412, %s24, 1
      %s414 = smul.addr %s413, 8
      %s415 = smul.addr %s414, 8
      %s416 = scalar_lea.vmem %s0, %s415
      %p417 = scmp.lt.s32.totalorder %s24, 1
      %s418 = scalar_select %p417, %s24, 1
      %s419 = smul.addr %s418, 2
      %s420 = smul.addr %s419, 8
      %s421 = scalar_lea.vmem %s11, %s420
      %p422 = scmp.lt.s32.totalorder %s24, 1
      %s423 = scalar_select %p422, %s24, 1
      %s424 = smul.addr %s423, 2
      %s425 = smul.addr %s424, 8
      %s426 = scalar_lea.vmem %s12, %s425
      %v427 = vld [vmem:[%s416] sm:$0xff]
      %v428 = vld [vmem:[%s416 + $0x8] sm:$0xff]
      %s429 = scalar_lea.vmem %s416, 16
      %v430 = vld [vmem:[%s429] sm:$0xff]
      %v431 = vld [vmem:[%s429 + $0x8] sm:$0xff]
      %s432 = scalar_lea.vmem %s416, 32
      %v433 = vld [vmem:[%s432] sm:$0xff]
      %v434 = vld [vmem:[%s432 + $0x8] sm:$0xff]
      %s435 = scalar_lea.vmem %s416, 48
      %v436 = vld [vmem:[%s435] sm:$0xff]
      %v437 = vld [vmem:[%s435 + $0x8] sm:$0xff]
      %v438 = vld [vmem:[%s1] sm:$0xff]
      %v439 = vld [vmem:[%s1 + $0x8] sm:$0x1]
      %v440 = vld [vmem:[%s2] sm:$0x1]
      %v441 = vlaneseq
      %v442 = vshrl.u32 %v441, 7
      %v443 = vadd.s32 %v442, 8
      %vm444 = vcmp.lt.s32.totalorder %v442, 0
      %v445 = vsub.s32 0, %v442
      %v446 = vsel %vm444, %v445, %v442
      %v447 = vshrl.u32 %v446, 2
      %v448 = vand.u32 %v446, 3
      %v449 = vsub.s32 0, %v448
      %v450 = vsel %vm444, %v449, %v448
      %vm451 = vcmp.lt.s32.totalorder %v443, 0
      %v452 = vsub.s32 0, %v443
      %v453 = vsel %vm451, %v452, %v443
      %v454 = vshrl.u32 %v453, 2
      %v455 = vand.u32 %v453, 3
      %v456 = vsub.s32 0, %v455
      %v457 = vsel %vm451, %v456, %v455
      %vm458 = vcmp.ne.s32.totalorder %v450, 0
      %vm459 = vcmp.ne.s32.totalorder %v457, 0
      %vm460 = vcmp.lt.s32.totalorder %v450, 0
      %vm461 = vcmp.lt.s32.totalorder %v457, 0
      %vm462 = vmand %vm460, %vm458
      %vm463 = vmand %vm461, %vm459
      %v464 = vadd.s32 %v450, 4
      %v465 = vadd.s32 %v457, 4
      %v466 = vsel %vm462, %v464, %v450
      %v467 = vsel %vm463, %v465, %v457
      %vm470 = vcmask 1044480
      %v471 = vrot.slane %v436, 3
      %v472 = vrot.slane %v437, 3
      %v473 = vsel %vm470, %v471, %v472
      %v476 = vsel %vm470, 0.0, %v471
      %v477 = vlaneseq
      %v478 = vshrl.u32 %v477, 7
      %v479 = vsub.s32 0, %v478
      %v480 = vrot.slane %v438, %v479
      %v481 = vmul.f32 %v476, %v480
      %v482 = vmul.f32 %v473, %v480
      %vm483 = vcmp.ge.s32.totalorder %v466, 1
      %vm484 = vcmp.ge.s32.totalorder %v467, 1
      %v485 = vsel %vm483, 1, 0
      %v486 = vsel %vm484, 1, 0
      %vm487 = vcmp.eq.s32.totalorder %v485, 1
      %vm488 = vcmp.eq.s32.totalorder %v486, 1
      %v489 = vsel %vm487, %v481, 0.0
      %v490 = vsel %vm488, %v482, 0.0
      %vm493 = vcmask 1043456
      %v494 = vrot.slane %v433, 4
      %v495 = vrot.slane %v434, 4
      %v496 = vsel %vm493, %v494, %v495
      %v499 = vsel %vm493, 0.0, %v494
      %v500 = vlaneseq
      %v501 = vshrl.u32 %v500, 7
      %v502 = vsub.s32 1, %v501
      %v503 = vrot.slane %v438, %v502
      %v504 = vmul.f32 %v499, %v503
      %v505 = vmul.f32 %v496, %v503
      %v506 = vrot.slane %v436, 4
      %v507 = vrot.slane %v437, 4
      %v508 = vsel %vm493, %v506, %v507
      %v511 = vsel %vm493, 0.0, %v506
      %v512 = vlaneseq
      %v513 = vshrl.u32 %v512, 7
      %v514 = vsub.s32 2, %v513
      %v515 = vrot.slane %v438, %v514
      %v516 = vmul.f32 %v511, %v515
      %v517 = vmul.f32 %v508, %v515
      %vm520 = vcmask 1040384
      %v521 = vrot.slane %v430, 7
      %v522 = vrot.slane %v431, 7
      %v523 = vsel %vm520, %v521, %v522
      %v526 = vsel %vm520, 0.0, %v521
      %v527 = vlaneseq
      %v528 = vshrl.u32 %v527, 7
      %v529 = vsub.s32 3, %v528
      %v530 = vrot.slane %v438, %v529
      %v531 = vmul.f32 %v526, %v530
      %v532 = vmul.f32 %v523, %v530
      %v533 = vsel %vm487, %v531, 0.0
      %v534 = vsel %vm488, %v532, 0.0
      %v535 = vlaneseq
      %v536 = vshrl.u32 %v535, 7
      %v537 = vsub.s32 4, %v536
      %v538 = vrot.slane %v438, %v537
      %v539 = vmul.f32 %v427, %v538
      %v540 = vmul.f32 %v428, %v538
      %v541 = vlaneseq
      %v542 = vshrl.u32 %v541, 7
      %v543 = vsub.s32 5, %v542
      %v544 = vrot.slane %v438, %v543
      %v545 = vmul.f32 %v430, %v544
      %v546 = vmul.f32 %v431, %v544
      %v547 = vrot.slane %v436, 7
      %v548 = vrot.slane %v437, 7
      %v549 = vsel %vm520, %v547, %v548
      %v552 = vsel %vm520, 0.0, %v547
      %v553 = vlaneseq
      %v554 = vshrl.u32 %v553, 7
      %v555 = vsub.s32 6, %v554
      %v556 = vrot.slane %v438, %v555
      %v557 = vmul.f32 %v552, %v556
      %v558 = vmul.f32 %v549, %v556
      %v559 = vsel %vm487, %v557, 0.0
      %v560 = vsel %vm488, %v558, 0.0
      %v561 = vlaneseq
      %v562 = vshrl.u32 %v561, 7
      %v563 = vsub.s32 7, %v562
      %v564 = vrot.slane %v438, %v563
      %v565 = vmul.f32 %v433, %v564
      %v566 = vmul.f32 %v434, %v564
      %v567 = vlaneseq
      %v568 = vshrl.u32 %v567, 7
      %v569 = vsub.s32 0, %v568
      %v570 = vrot.slane %v439, %v569
      %v571 = vmul.f32 %v436, %v570
      %v572 = vmul.f32 %v437, %v570
      %v573 = vadd.f32 %v489, %v504
      %v574 = vadd.f32 %v490, %v505
      %v575 = vadd.f32 %v516, %v533
      %v576 = vadd.f32 %v517, %v534
      %v577 = vadd.f32 %v539, %v545
      %v578 = vadd.f32 %v540, %v546
      %v579 = vadd.f32 %v559, %v565
      %v580 = vadd.f32 %v560, %v566
      %v581 = vadd.f32 %v573, %v575
      %v582 = vadd.f32 %v574, %v576
      %v583 = vadd.f32 %v577, %v579
      %v584 = vadd.f32 %v578, %v580
      %v585 = vadd.f32 %v581, %v583
      %v586 = vadd.f32 %v582, %v584
      %v587 = vadd.f32 %v585, %v571
      %v588 = vadd.f32 %v586, %v572
      %v590 = vlaneseq
      %v591 = vshrl.u32 %v590, 7
      %v592 = vsub.s32 0, %v591
      %v593 = vrot.slane %v440, %v592
      %v595 = vadd.f32 %v587, %v593
      %v596 = vadd.f32 %v588, %v593
      %v597 = vld [vmem:[%s3] sm:$0xff]
      %v598 = vld [vmem:[%s4] sm:$0x1]
      %v600 = vlaneseq
      %v601 = vshrl.u32 %v600, 7
      %v602 = vsub.s32 0, %v601
      %v603 = vrot.slane %v598, %v602
      %vm605 = vcmask 64512
      %v607 = vsel %vm605, %v595, 0
      %v610 = vsel %vm605, %v596, 0
      %612 = vmatprep.subr.mxu0 0.0
      %613 = vmatpush1.msra.mxu0 %v597
      %614 = vmatprep.subr.mxu0 0.0
      %615 = vmatpush1.msra.mxu0 0.0
      %616 = vmatprep.subr.mxu0 0.0
      %617 = vmatpush1.msra.mxu0 0.0
      %618 = vmatprep.subr.mxu0 0.0
      %619 = vmatpush1.msra.mxu0 0.0
      %620 = vmatprep.subr.mxu0 0.0
      %621 = vmatpush1.msra.mxu0 0.0
      %622 = vmatprep.subr.mxu0 0.0
      %623 = vmatpush1.msra.mxu0 0.0
      %624 = vmatprep.subr.mxu0 0.0
      %625 = vmatpush1.msra.mxu0 0.0
      %626 = vmatprep.subr.mxu0 0.0
      %627 = vmatpush1.msra.mxu0 0.0
      %628 = vmatprep.subr.mxu0 0.0
      %629 = vmatpush1.msra.mxu0 0.0
      %630 = vmatprep.subr.mxu0 0.0
      %631 = vmatpush1.msra.mxu0 0.0
      %632 = vmatprep.subr.mxu0 0.0
      %633 = vmatpush1.msra.mxu0 0.0
      %634 = vmatprep.subr.mxu0 0.0
      %635 = vmatpush1.msra.mxu0 0.0
      %636 = vmatprep.subr.mxu0 0.0
      %637 = vmatpush1.msra.mxu0 0.0
      %638 = vmatprep.subr.mxu0 0.0
      %639 = vmatpush1.msra.mxu0 0.0
      %640 = vmatprep.subr.mxu0 0.0
      %641 = vmatpush1.msra.mxu0 0.0
      %642 = vmatprep.subr.mxu0 0.0
      %643 = vmatpush1.msra.mxu0 0.0
      %644 = vmatprep.subr.mxu0 0.0
      %645 = vmatpush1.msra.mxu0 0.0
      %646 = vmatprep.subr.mxu0 0.0
      %647 = vmatpush1.msra.mxu0 0.0
      %648 = vmatprep.subr.mxu0 0.0
      %649 = vmatpush1.msra.mxu0 0.0
      %650 = vmatprep.subr.mxu0 0.0
      %651 = vmatpush1.msra.mxu0 0.0
      %652 = vmatprep.subr.mxu0 0.0
      %653 = vmatpush1.msra.mxu0 0.0
      %654 = vmatprep.subr.mxu0 0.0
      %655 = vmatpush1.msra.mxu0 0.0
      %656 = vmatprep.subr.mxu0 0.0
      %657 = vmatpush1.msra.mxu0 0.0
      %658 = vmatprep.subr.mxu0 0.0
      %659 = vmatpush1.msra.mxu0 0.0
      %660 = vmatprep.subr.mxu0 0.0
      %661 = vmatpush1.msra.mxu0 0.0
      %662 = vmatprep.subr.mxu0 0.0
      %663 = vmatpush1.msra.mxu0 0.0
      %664 = vmatprep.subr.mxu0 0.0
      %665 = vmatpush1.msra.mxu0 0.0
      %666 = vmatprep.subr.mxu0 0.0
      %667 = vmatpush1.msra.mxu0 0.0
      %668 = vmatprep.subr.mxu0 0.0
      %669 = vmatpush1.msra.mxu0 0.0
      %670 = vmatprep.subr.mxu0 0.0
      %671 = vmatpush1.msra.mxu0 0.0
      %672 = vmatprep.subr.mxu0 0.0
      %673 = vmatpush1.msra.mxu0 0.0
      %674 = vmatprep.subr.mxu0 0.0
      %675 = vmatpush1.msra.mxu0 0.0
      %676 = vmatprep.mubr.f32.mxu0 0.0
      %677 = vmatmul.mubr.f32.gmra.mrb[0].mxu0 %v607
      %v678 = vpop.f32.mrb[0].mxu0
      %v679 = vadd.f32 %v603, %v678
      %v680 = vpop.f32.mrb[0].mxu0
      %681 = vmatprep.mubr.f32.mxu0 0.0
      %682 = vmatmul.mubr.f32.gmra.mrb[0].mxu0 %v610
      %v683 = vpop.f32.mrb[0].mxu0
      %v684 = vadd.f32 %v603, %v683
      %v685 = vpop.f32.mrb[0].mxu0
      %686 = vdwg.mxu0
      %v687 = vmax.f32 %v679, 0.0
      %v688 = vmax.f32 %v684, 0.0
      %689 = vst.msk [vmem:[%s421] sm:$0xff] %vm605, %v687
      %690 = vst.msk [vmem:[%s421 + $0x8] sm:$0xff] %vm605, %v688
      %v691 = vld [vmem:[%s5] sm:$0xff]
      %v692 = vld [vmem:[%s6] sm:$0x1]
      %v694 = vlaneseq
      %v695 = vshrl.u32 %v694, 7
      %v696 = vsub.s32 0, %v695
      %v697 = vrot.slane %v692, %v696
      %v700 = vsel %vm605, %v427, 0
      %v703 = vsel %vm605, %v428, 0
      %705 = vmatprep.subr.mxu0 0.0
      %706 = vmatpush1.msra.mxu0 %v691
      %707 = vmatprep.subr.mxu0 0.0
      %708 = vmatpush1.msra.mxu0 0.0
      %709 = vmatprep.subr.mxu0 0.0
      %710 = vmatpush1.msra.mxu0 0.0
      %711 = vmatprep.subr.mxu0 0.0
      %712 = vmatpush1.msra.mxu0 0.0
      %713 = vmatprep.subr.mxu0 0.0
      %714 = vmatpush1.msra.mxu0 0.0
      %715 = vmatprep.subr.mxu0 0.0
      %716 = vmatpush1.msra.mxu0 0.0
      %717 = vmatprep.subr.mxu0 0.0
      %718 = vmatpush1.msra.mxu0 0.0
      %719 = vmatprep.subr.mxu0 0.0
      %720 = vmatpush1.msra.mxu0 0.0
      %721 = vmatprep.subr.mxu0 0.0
      %722 = vmatpush1.msra.mxu0 0.0
      %723 = vmatprep.subr.mxu0 0.0
      %724 = vmatpush1.msra.mxu0 0.0
      %725 = vmatprep.subr.mxu0 0.0
      %726 = vmatpush1.msra.mxu0 0.0
      %727 = vmatprep.subr.mxu0 0.0
      %728 = vmatpush1.msra.mxu0 0.0
      %729 = vmatprep.subr.mxu0 0.0
      %730 = vmatpush1.msra.mxu0 0.0
      %731 = vmatprep.subr.mxu0 0.0
      %732 = vmatpush1.msra.mxu0 0.0
      %733 = vmatprep.subr.mxu0 0.0
      %734 = vmatpush1.msra.mxu0 0.0
      %735 = vmatprep.subr.mxu0 0.0
      %736 = vmatpush1.msra.mxu0 0.0
      %737 = vmatprep.subr.mxu0 0.0
      %738 = vmatpush1.msra.mxu0 0.0
      %739 = vmatprep.subr.mxu0 0.0
      %740 = vmatpush1.msra.mxu0 0.0
      %741 = vmatprep.subr.mxu0 0.0
      %742 = vmatpush1.msra.mxu0 0.0
      %743 = vmatprep.subr.mxu0 0.0
      %744 = vmatpush1.msra.mxu0 0.0
      %745 = vmatprep.subr.mxu0 0.0
      %746 = vmatpush1.msra.mxu0 0.0
      %747 = vmatprep.subr.mxu0 0.0
      %748 = vmatpush1.msra.mxu0 0.0
      %749 = vmatprep.subr.mxu0 0.0
      %750 = vmatpush1.msra.mxu0 0.0
      %751 = vmatprep.subr.mxu0 0.0
      %752 = vmatpush1.msra.mxu0 0.0
      %753 = vmatprep.subr.mxu0 0.0
      %754 = vmatpush1.msra.mxu0 0.0
      %755 = vmatprep.subr.mxu0 0.0
      %756 = vmatpush1.msra.mxu0 0.0
      %757 = vmatprep.subr.mxu0 0.0
      %758 = vmatpush1.msra.mxu0 0.0
      %759 = vmatprep.subr.mxu0 0.0
      %760 = vmatpush1.msra.mxu0 0.0
      %761 = vmatprep.subr.mxu0 0.0
      %762 = vmatpush1.msra.mxu0 0.0
      %763 = vmatprep.subr.mxu0 0.0
      %764 = vmatpush1.msra.mxu0 0.0
      %765 = vmatprep.subr.mxu0 0.0
      %766 = vmatpush1.msra.mxu0 0.0
      %767 = vmatprep.subr.mxu0 0.0
      %768 = vmatpush1.msra.mxu0 0.0
      %769 = vmatprep.mubr.f32.mxu0 0.0
      %770 = vmatmul.mubr.f32.gmra.mrb[0].mxu0 %v700
      %v771 = vpop.f32.mrb[0].mxu0
      %v772 = vadd.f32 %v697, %v771
      %v773 = vpop.f32.mrb[0].mxu0
      %774 = vmatprep.mubr.f32.mxu0 0.0
      %775 = vmatmul.mubr.f32.gmra.mrb[0].mxu0 %v703
      %v776 = vpop.f32.mrb[0].mxu0
      %v777 = vadd.f32 %v697, %v776
      %v778 = vpop.f32.mrb[0].mxu0
      %779 = vdwg.mxu0
      %v780 = vmax.f32 %v772, 0.0
      %v781 = vmax.f32 %v777, 0.0
      %v782 = vsel %vm605, %v430, 0
      %v784 = vsel %vm605, %v431, 0
      %786 = vmatprep.subr.mxu0 0.0
      %787 = vmatpush1.msra.mxu0 %v691
      %788 = vmatprep.subr.mxu0 0.0
      %789 = vmatpush1.msra.mxu0 0.0
      %790 = vmatprep.subr.mxu0 0.0
      %791 = vmatpush1.msra.mxu0 0.0
      %792 = vmatprep.subr.mxu0 0.0
      %793 = vmatpush1.msra.mxu0 0.0
      %794 = vmatprep.subr.mxu0 0.0
      %795 = vmatpush1.msra.mxu0 0.0
      %796 = vmatprep.subr.mxu0 0.0
      %797 = vmatpush1.msra.mxu0 0.0
      %798 = vmatprep.subr.mxu0 0.0
      %799 = vmatpush1.msra.mxu0 0.0
      %800 = vmatprep.subr.mxu0 0.0
      %801 = vmatpush1.msra.mxu0 0.0
      %802 = vmatprep.subr.mxu0 0.0
      %803 = vmatpush1.msra.mxu0 0.0
      %804 = vmatprep.subr.mxu0 0.0
      %805 = vmatpush1.msra.mxu0 0.0
      %806 = vmatprep.subr.mxu0 0.0
      %807 = vmatpush1.msra.mxu0 0.0
      %808 = vmatprep.subr.mxu0 0.0
      %809 = vmatpush1.msra.mxu0 0.0
      %810 = vmatprep.subr.mxu0 0.0
      %811 = vmatpush1.msra.mxu0 0.0
      %812 = vmatprep.subr.mxu0 0.0
      %813 = vmatpush1.msra.mxu0 0.0
      %814 = vmatprep.subr.mxu0 0.0
      %815 = vmatpush1.msra.mxu0 0.0
      %816 = vmatprep.subr.mxu0 0.0
      %817 = vmatpush1.msra.mxu0 0.0
      %818 = vmatprep.subr.mxu0 0.0
      %819 = vmatpush1.msra.mxu0 0.0
      %820 = vmatprep.subr.mxu0 0.0
      %821 = vmatpush1.msra.mxu0 0.0
      %822 = vmatprep.subr.mxu0 0.0
      %823 = vmatpush1.msra.mxu0 0.0
      %824 = vmatprep.subr.mxu0 0.0
      %825 = vmatpush1.msra.mxu0 0.0
      %826 = vmatprep.subr.mxu0 0.0
      %827 = vmatpush1.msra.mxu0 0.0
      %828 = vmatprep.subr.mxu0 0.0
      %829 = vmatpush1.msra.mxu0 0.0
      %830 = vmatprep.subr.mxu0 0.0
      %831 = vmatpush1.msra.mxu0 0.0
      %832 = vmatprep.subr.mxu0 0.0
      %833 = vmatpush1.msra.mxu0 0.0
      %834 = vmatprep.subr.mxu0 0.0
      %835 = vmatpush1.msra.mxu0 0.0
      %836 = vmatprep.subr.mxu0 0.0
      %837 = vmatpush1.msra.mxu0 0.0
      %838 = vmatprep.subr.mxu0 0.0
      %839 = vmatpush1.msra.mxu0 0.0
      %840 = vmatprep.subr.mxu0 0.0
      %841 = vmatpush1.msra.mxu0 0.0
      %842 = vmatprep.subr.mxu0 0.0
      %843 = vmatpush1.msra.mxu0 0.0
      %844 = vmatprep.subr.mxu0 0.0
      %845 = vmatpush1.msra.mxu0 0.0
      %846 = vmatprep.subr.mxu0 0.0
      %847 = vmatpush1.msra.mxu0 0.0
      %848 = vmatprep.subr.mxu0 0.0
      %849 = vmatpush1.msra.mxu0 0.0
      %850 = vmatprep.mubr.f32.mxu0 0.0
      %851 = vmatmul.mubr.f32.gmra.mrb[0].mxu0 %v782
      %v852 = vpop.f32.mrb[0].mxu0
      %v853 = vadd.f32 %v697, %v852
      %v854 = vpop.f32.mrb[0].mxu0
      %855 = vmatprep.mubr.f32.mxu0 0.0
      %856 = vmatmul.mubr.f32.gmra.mrb[0].mxu0 %v784
      %v857 = vpop.f32.mrb[0].mxu0
      %v858 = vadd.f32 %v697, %v857
      %v859 = vpop.f32.mrb[0].mxu0
      %860 = vdwg.mxu0
      %v861 = vmax.f32 %v853, 0.0
      %v862 = vmax.f32 %v858, 0.0
      %v863 = vsel %vm605, %v433, 0
      %v865 = vsel %vm605, %v434, 0
      %867 = vmatprep.subr.mxu0 0.0
      %868 = vmatpush1.msra.mxu0 %v691
      %869 = vmatprep.subr.mxu0 0.0
      %870 = vmatpush1.msra.mxu0 0.0
      %871 = vmatprep.subr.mxu0 0.0
      %872 = vmatpush1.msra.mxu0 0.0
      %873 = vmatprep.subr.mxu0 0.0
      %874 = vmatpush1.msra.mxu0 0.0
      %875 = vmatprep.subr.mxu0 0.0
      %876 = vmatpush1.msra.mxu0 0.0
      %877 = vmatprep.subr.mxu0 0.0
      %878 = vmatpush1.msra.mxu0 0.0
      %879 = vmatprep.subr.mxu0 0.0
      %880 = vmatpush1.msra.mxu0 0.0
      %881 = vmatprep.subr.mxu0 0.0
      %882 = vmatpush1.msra.mxu0 0.0
      %883 = vmatprep.subr.mxu0 0.0
      %884 = vmatpush1.msra.mxu0 0.0
      %885 = vmatprep.subr.mxu0 0.0
      %886 = vmatpush1.msra.mxu0 0.0
      %887 = vmatprep.subr.mxu0 0.0
      %888 = vmatpush1.msra.mxu0 0.0
      %889 = vmatprep.subr.mxu0 0.0
      %890 = vmatpush1.msra.mxu0 0.0
      %891 = vmatprep.subr.mxu0 0.0
      %892 = vmatpush1.msra.mxu0 0.0
      %893 = vmatprep.subr.mxu0 0.0
      %894 = vmatpush1.msra.mxu0 0.0
      %895 = vmatprep.subr.mxu0 0.0
      %896 = vmatpush1.msra.mxu0 0.0
      %897 = vmatprep.subr.mxu0 0.0
      %898 = vmatpush1.msra.mxu0 0.0
      %899 = vmatprep.subr.mxu0 0.0
      %900 = vmatpush1.msra.mxu0 0.0
      %901 = vmatprep.subr.mxu0 0.0
      %902 = vmatpush1.msra.mxu0 0.0
      %903 = vmatprep.subr.mxu0 0.0
      %904 = vmatpush1.msra.mxu0 0.0
      %905 = vmatprep.subr.mxu0 0.0
      %906 = vmatpush1.msra.mxu0 0.0
      %907 = vmatprep.subr.mxu0 0.0
      %908 = vmatpush1.msra.mxu0 0.0
      %909 = vmatprep.subr.mxu0 0.0
      %910 = vmatpush1.msra.mxu0 0.0
      %911 = vmatprep.subr.mxu0 0.0
      %912 = vmatpush1.msra.mxu0 0.0
      %913 = vmatprep.subr.mxu0 0.0
      %914 = vmatpush1.msra.mxu0 0.0
      %915 = vmatprep.subr.mxu0 0.0
      %916 = vmatpush1.msra.mxu0 0.0
      %917 = vmatprep.subr.mxu0 0.0
      %918 = vmatpush1.msra.mxu0 0.0
      %919 = vmatprep.subr.mxu0 0.0
      %920 = vmatpush1.msra.mxu0 0.0
      %921 = vmatprep.subr.mxu0 0.0
      %922 = vmatpush1.msra.mxu0 0.0
      %923 = vmatprep.subr.mxu0 0.0
      %924 = vmatpush1.msra.mxu0 0.0
      %925 = vmatprep.subr.mxu0 0.0
      %926 = vmatpush1.msra.mxu0 0.0
      %927 = vmatprep.subr.mxu0 0.0
      %928 = vmatpush1.msra.mxu0 0.0
      %929 = vmatprep.subr.mxu0 0.0
      %930 = vmatpush1.msra.mxu0 0.0
      %931 = vmatprep.mubr.f32.mxu0 0.0
      %932 = vmatmul.mubr.f32.gmra.mrb[0].mxu0 %v863
      %v933 = vpop.f32.mrb[0].mxu0
      %v934 = vadd.f32 %v697, %v933
      %v935 = vpop.f32.mrb[0].mxu0
      %936 = vmatprep.mubr.f32.mxu0 0.0
      %937 = vmatmul.mubr.f32.gmra.mrb[0].mxu0 %v865
      %v938 = vpop.f32.mrb[0].mxu0
      %v939 = vadd.f32 %v697, %v938
      %v940 = vpop.f32.mrb[0].mxu0
      %941 = vdwg.mxu0
      %v942 = vmax.f32 %v934, 0.0
      %v943 = vmax.f32 %v939, 0.0
      %v944 = vsel %vm605, %v436, 0
      %v946 = vsel %vm605, %v437, 0
      %948 = vmatprep.subr.mxu0 0.0
      %949 = vmatpush1.msra.mxu0 %v691
      %950 = vmatprep.subr.mxu0 0.0
      %951 = vmatpush1.msra.mxu0 0.0
      %952 = vmatprep.subr.mxu0 0.0
      %953 = vmatpush1.msra.mxu0 0.0
      %954 = vmatprep.subr.mxu0 0.0
      %955 = vmatpush1.msra.mxu0 0.0
      %956 = vmatprep.subr.mxu0 0.0
      %957 = vmatpush1.msra.mxu0 0.0
      %958 = vmatprep.subr.mxu0 0.0
      %959 = vmatpush1.msra.mxu0 0.0
      %960 = vmatprep.subr.mxu0 0.0
      %961 = vmatpush1.msra.mxu0 0.0
      %962 = vmatprep.subr.mxu0 0.0
      %963 = vmatpush1.msra.mxu0 0.0
      %964 = vmatprep.subr.mxu0 0.0
      %965 = vmatpush1.msra.mxu0 0.0
      %966 = vmatprep.subr.mxu0 0.0
      %967 = vmatpush1.msra.mxu0 0.0
      %968 = vmatprep.subr.mxu0 0.0
      %969 = vmatpush1.msra.mxu0 0.0
      %970 = vmatprep.subr.mxu0 0.0
      %971 = vmatpush1.msra.mxu0 0.0
      %972 = vmatprep.subr.mxu0 0.0
      %973 = vmatpush1.msra.mxu0 0.0
      %974 = vmatprep.subr.mxu0 0.0
      %975 = vmatpush1.msra.mxu0 0.0
      %976 = vmatprep.subr.mxu0 0.0
      %977 = vmatpush1.msra.mxu0 0.0
      %978 = vmatprep.subr.mxu0 0.0
      %979 = vmatpush1.msra.mxu0 0.0
      %980 = vmatprep.subr.mxu0 0.0
      %981 = vmatpush1.msra.mxu0 0.0
      %982 = vmatprep.subr.mxu0 0.0
      %983 = vmatpush1.msra.mxu0 0.0
      %984 = vmatprep.subr.mxu0 0.0
      %985 = vmatpush1.msra.mxu0 0.0
      %986 = vmatprep.subr.mxu0 0.0
      %987 = vmatpush1.msra.mxu0 0.0
      %988 = vmatprep.subr.mxu0 0.0
      %989 = vmatpush1.msra.mxu0 0.0
      %990 = vmatprep.subr.mxu0 0.0
      %991 = vmatpush1.msra.mxu0 0.0
      %992 = vmatprep.subr.mxu0 0.0
      %993 = vmatpush1.msra.mxu0 0.0
      %994 = vmatprep.subr.mxu0 0.0
      %995 = vmatpush1.msra.mxu0 0.0
      %996 = vmatprep.subr.mxu0 0.0
      %997 = vmatpush1.msra.mxu0 0.0
      %998 = vmatprep.subr.mxu0 0.0
      %999 = vmatpush1.msra.mxu0 0.0
      %1000 = vmatprep.subr.mxu0 0.0
      %1001 = vmatpush1.msra.mxu0 0.0
      %1002 = vmatprep.subr.mxu0 0.0
      %1003 = vmatpush1.msra.mxu0 0.0
      %1004 = vmatprep.subr.mxu0 0.0
      %1005 = vmatpush1.msra.mxu0 0.0
      %1006 = vmatprep.subr.mxu0 0.0
      %1007 = vmatpush1.msra.mxu0 0.0
      %1008 = vmatprep.subr.mxu0 0.0
      %1009 = vmatpush1.msra.mxu0 0.0
      %1010 = vmatprep.subr.mxu0 0.0
      %1011 = vmatpush1.msra.mxu0 0.0
      %1012 = vmatprep.mubr.f32.mxu0 0.0
      %1013 = vmatmul.mubr.f32.gmra.mrb[0].mxu0 %v944
      %v1014 = vpop.f32.mrb[0].mxu0
      %v1015 = vadd.f32 %v697, %v1014
      %v1016 = vpop.f32.mrb[0].mxu0
      %1017 = vmatprep.mubr.f32.mxu0 0.0
      %1018 = vmatmul.mubr.f32.gmra.mrb[0].mxu0 %v946
      %v1019 = vpop.f32.mrb[0].mxu0
      %v1020 = vadd.f32 %v697, %v1019
      %v1021 = vpop.f32.mrb[0].mxu0
      %1022 = vdwg.mxu0
      %v1023 = vmax.f32 %v1015, 0.0
      %v1024 = vmax.f32 %v1020, 0.0
      %v1025 = vld [vmem:[%s7] sm:$0xff]
      %v1026 = vld [vmem:[%s7 + $0x8] sm:$0x1]
      %v1027 = vld [vmem:[%s8] sm:$0x1]
      %v1030 = vrot.slane %v1023, 3
      %v1031 = vrot.slane %v1024, 3
      %v1032 = vsel %vm470, %v1030, %v1031
      %v1035 = vsel %vm470, 0.0, %v1030
      %v1036 = vlaneseq
      %v1037 = vshrl.u32 %v1036, 7
      %v1038 = vsub.s32 0, %v1037
      %v1039 = vrot.slane %v1025, %v1038
      %v1040 = vmul.f32 %v1035, %v1039
      %v1041 = vmul.f32 %v1032, %v1039
      %v1042 = vsel %vm487, %v1040, 0.0
      %v1043 = vsel %vm488, %v1041, 0.0
      %v1046 = vrot.slane %v942, 4
      %v1047 = vrot.slane %v943, 4
      %v1048 = vsel %vm493, %v1046, %v1047
      %v1051 = vsel %vm493, 0.0, %v1046
      %v1052 = vlaneseq
      %v1053 = vshrl.u32 %v1052, 7
      %v1054 = vsub.s32 1, %v1053
      %v1055 = vrot.slane %v1025, %v1054
      %v1056 = vmul.f32 %v1051, %v1055
      %v1057 = vmul.f32 %v1048, %v1055
      %v1058 = vrot.slane %v1023, 4
      %v1059 = vrot.slane %v1024, 4
      %v1060 = vsel %vm493, %v1058, %v1059
      %v1063 = vsel %vm493, 0.0, %v1058
      %v1064 = vlaneseq
      %v1065 = vshrl.u32 %v1064, 7
      %v1066 = vsub.s32 2, %v1065
      %v1067 = vrot.slane %v1025, %v1066
      %v1068 = vmul.f32 %v1063, %v1067
      %v1069 = vmul.f32 %v1060, %v1067
      %v1072 = vrot.slane %v861, 7
      %v1073 = vrot.slane %v862, 7
      %v1074 = vsel %vm520, %v1072, %v1073
      %v1077 = vsel %vm520, 0.0, %v1072
      %v1078 = vlaneseq
      %v1079 = vshrl.u32 %v1078, 7
      %v1080 = vsub.s32 3, %v1079
      %v1081 = vrot.slane %v1025, %v1080
      %v1082 = vmul.f32 %v1077, %v1081
      %v1083 = vmul.f32 %v1074, %v1081
      %v1084 = vsel %vm487, %v1082, 0.0
      %v1085 = vsel %vm488, %v1083, 0.0
      %v1086 = vlaneseq
      %v1087 = vshrl.u32 %v1086, 7
      %v1088 = vsub.s32 4, %v1087
      %v1089 = vrot.slane %v1025, %v1088
      %v1090 = vmul.f32 %v780, %v1089
      %v1091 = vmul.f32 %v781, %v1089
      %v1092 = vlaneseq
      %v1093 = vshrl.u32 %v1092, 7
      %v1094 = vsub.s32 5, %v1093
      %v1095 = vrot.slane %v1025, %v1094
      %v1096 = vmul.f32 %v861, %v1095
      %v1097 = vmul.f32 %v862, %v1095
      %v1098 = vrot.slane %v1023, 7
      %v1099 = vrot.slane %v1024, 7
      %v1100 = vsel %vm520, %v1098, %v1099
      %v1103 = vsel %vm520, 0.0, %v1098
      %v1104 = vlaneseq
      %v1105 = vshrl.u32 %v1104, 7
      %v1106 = vsub.s32 6, %v1105
      %v1107 = vrot.slane %v1025, %v1106
      %v1108 = vmul.f32 %v1103, %v1107
      %v1109 = vmul.f32 %v1100, %v1107
      %v1110 = vsel %vm487, %v1108, 0.0
      %v1111 = vsel %vm488, %v1109, 0.0
      %v1112 = vlaneseq
      %v1113 = vshrl.u32 %v1112, 7
      %v1114 = vsub.s32 7, %v1113
      %v1115 = vrot.slane %v1025, %v1114
      %v1116 = vmul.f32 %v942, %v1115
      %v1117 = vmul.f32 %v943, %v1115
      %v1118 = vlaneseq
      %v1119 = vshrl.u32 %v1118, 7
      %v1120 = vsub.s32 0, %v1119
      %v1121 = vrot.slane %v1026, %v1120
      %v1122 = vmul.f32 %v1023, %v1121
      %v1123 = vmul.f32 %v1024, %v1121
      %v1124 = vadd.f32 %v1042, %v1056
      %v1125 = vadd.f32 %v1043, %v1057
      %v1126 = vadd.f32 %v1068, %v1084
      %v1127 = vadd.f32 %v1069, %v1085
      %v1128 = vadd.f32 %v1090, %v1096
      %v1129 = vadd.f32 %v1091, %v1097
      %v1130 = vadd.f32 %v1110, %v1116
      %v1131 = vadd.f32 %v1111, %v1117
      %v1132 = vadd.f32 %v1124, %v1126
      %v1133 = vadd.f32 %v1125, %v1127
      %v1134 = vadd.f32 %v1128, %v1130
      %v1135 = vadd.f32 %v1129, %v1131
      %v1136 = vadd.f32 %v1132, %v1134
      %v1137 = vadd.f32 %v1133, %v1135
      %v1138 = vadd.f32 %v1136, %v1122
      %v1139 = vadd.f32 %v1137, %v1123
      %v1141 = vlaneseq
      %v1142 = vshrl.u32 %v1141, 7
      %v1143 = vsub.s32 0, %v1142
      %v1144 = vrot.slane %v1027, %v1143
      %v1146 = vadd.f32 %v1138, %v1144
      %v1147 = vadd.f32 %v1139, %v1144
      %v1148 = vld [vmem:[%s9] sm:$0xff]
      %v1149 = vld [vmem:[%s10] sm:$0x1]
      %v1151 = vlaneseq
      %v1152 = vshrl.u32 %v1151, 7
      %v1153 = vsub.s32 0, %v1152
      %v1154 = vrot.slane %v1149, %v1153
      %v1157 = vsel %vm605, %v1146, 0
      %v1160 = vsel %vm605, %v1147, 0
      %1162 = vmatprep.subr.mxu0 0.0
      %1163 = vmatpush1.msra.mxu0 %v1148
      %1164 = vmatprep.subr.mxu0 0.0
      %1165 = vmatpush1.msra.mxu0 0.0
      %1166 = vmatprep.subr.mxu0 0.0
      %1167 = vmatpush1.msra.mxu0 0.0
      %1168 = vmatprep.subr.mxu0 0.0
      %1169 = vmatpush1.msra.mxu0 0.0
      %1170 = vmatprep.subr.mxu0 0.0
      %1171 = vmatpush1.msra.mxu0 0.0
      %1172 = vmatprep.subr.mxu0 0.0
      %1173 = vmatpush1.msra.mxu0 0.0
      %1174 = vmatprep.subr.mxu0 0.0
      %1175 = vmatpush1.msra.mxu0 0.0
      %1176 = vmatprep.subr.mxu0 0.0
      %1177 = vmatpush1.msra.mxu0 0.0
      %1178 = vmatprep.subr.mxu0 0.0
      %1179 = vmatpush1.msra.mxu0 0.0
      %1180 = vmatprep.subr.mxu0 0.0
      %1181 = vmatpush1.msra.mxu0 0.0
      %1182 = vmatprep.subr.mxu0 0.0
      %1183 = vmatpush1.msra.mxu0 0.0
      %1184 = vmatprep.subr.mxu0 0.0
      %1185 = vmatpush1.msra.mxu0 0.0
      %1186 = vmatprep.subr.mxu0 0.0
      %1187 = vmatpush1.msra.mxu0 0.0
      %1188 = vmatprep.subr.mxu0 0.0
      %1189 = vmatpush1.msra.mxu0 0.0
      %1190 = vmatprep.subr.mxu0 0.0
      %1191 = vmatpush1.msra.mxu0 0.0
      %1192 = vmatprep.subr.mxu0 0.0
      %1193 = vmatpush1.msra.mxu0 0.0
      %1194 = vmatprep.subr.mxu0 0.0
      %1195 = vmatpush1.msra.mxu0 0.0
      %1196 = vmatprep.subr.mxu0 0.0
      %1197 = vmatpush1.msra.mxu0 0.0
      %1198 = vmatprep.subr.mxu0 0.0
      %1199 = vmatpush1.msra.mxu0 0.0
      %1200 = vmatprep.subr.mxu0 0.0
      %1201 = vmatpush1.msra.mxu0 0.0
      %1202 = vmatprep.subr.mxu0 0.0
      %1203 = vmatpush1.msra.mxu0 0.0
      %1204 = vmatprep.subr.mxu0 0.0
      %1205 = vmatpush1.msra.mxu0 0.0
      %1206 = vmatprep.subr.mxu0 0.0
      %1207 = vmatpush1.msra.mxu0 0.0
      %1208 = vmatprep.subr.mxu0 0.0
      %1209 = vmatpush1.msra.mxu0 0.0
      %1210 = vmatprep.subr.mxu0 0.0
      %1211 = vmatpush1.msra.mxu0 0.0
      %1212 = vmatprep.subr.mxu0 0.0
      %1213 = vmatpush1.msra.mxu0 0.0
      %1214 = vmatprep.subr.mxu0 0.0
      %1215 = vmatpush1.msra.mxu0 0.0
      %1216 = vmatprep.subr.mxu0 0.0
      %1217 = vmatpush1.msra.mxu0 0.0
      %1218 = vmatprep.subr.mxu0 0.0
      %1219 = vmatpush1.msra.mxu0 0.0
      %1220 = vmatprep.subr.mxu0 0.0
      %1221 = vmatpush1.msra.mxu0 0.0
      %1222 = vmatprep.subr.mxu0 0.0
      %1223 = vmatpush1.msra.mxu0 0.0
      %1224 = vmatprep.subr.mxu0 0.0
      %1225 = vmatpush1.msra.mxu0 0.0
      %1226 = vmatprep.mubr.f32.mxu0 0.0
      %1227 = vmatmul.mubr.f32.gmra.mrb[0].mxu0 %v1157
      %v1228 = vpop.f32.mrb[0].mxu0
      %v1229 = vadd.f32 %v1154, %v1228
      %v1230 = vpop.f32.mrb[0].mxu0
      %1231 = vmatprep.mubr.f32.mxu0 0.0
      %1232 = vmatmul.mubr.f32.gmra.mrb[0].mxu0 %v1160
      %v1233 = vpop.f32.mrb[0].mxu0
      %v1234 = vadd.f32 %v1154, %v1233
      %v1235 = vpop.f32.mrb[0].mxu0
      %1236 = vdwg.mxu0
      %v1237 = vmax.f32 %v1229, 0.0
      %v1238 = vmax.f32 %v1234, 0.0
      %1239 = vst.msk [vmem:[%s426] sm:$0xff] %vm605, %v1237
      %1240 = vst.msk [vmem:[%s426 + $0x8] sm:$0xff] %vm605, %v1238
      %p1241 = scmp.lt.s32.totalorder %s24, 1
      %s1242 = scalar_select %p1241, %s24, 1
      %s1243 = smul.addr %s1242, 2
      %s1244 = smul.addr %s1243, 8
      %s1245 = scalar_lea.vmem %s11, %s1244
      %p1246 = scmp.lt.s32.totalorder %s24, 1
      %s1247 = scalar_select %p1246, %s24, 1
      %s1248 = smul.addr %s1247, 2
      %s1249 = smul.addr %s1248, 8
      %s1250 = scalar_lea.vmem %s12, %s1249
      // Predicated region
      $region65: #{_lambda_.11} parent=63 // pred_check
        %p1251 = pneg %p278
      $region66: #{_lambda_.11} parent=63 // pred_check_branch
        %1253 = sbr.rel (%p1251) target = $region68
      $region67: #{_lambda_.11} parent=63 // pred_region
        _
      $region68: #{_lambda_.11} parent=63 // pred_fallthru
        _
      // Predicated region
      $region69: #{_lambda_.11} parent=63 // pred_check
        %p1254 = pneg %p304
      $region70: #{_lambda_.11} parent=63 // pred_check_branch
        %1256 = sbr.rel (%p1254) target = $region72
      $region71: #{_lambda_.11} parent=63 // pred_region
        _
      $region72: #{_lambda_.11} parent=63 // pred_fallthru
        _
    $region64: #{_lambda_.11} parent=5 // pred_fallthru
      _
    %p1257 = scmp.le.s32.totalorder 2, %s19
    // Predicated region
    $region73: #{_lambda_.11} parent=5 // pred_check
      %p1258 = pneg %p1257
    $region74: #{_lambda_.11} parent=5 // pred_check_branch
      %1260 = sbr.rel (%p1258) target = $region76
    $region75: #{_lambda_.11} parent=5 // pred_region
      %s1261 = ssub.s32 %s19, 2
      // Predicated region
      $region77: #{_lambda_.11} parent=75 // pred_check
        %p1262 = pneg %p284
      $region78: #{_lambda_.11} parent=75 // pred_check_branch
        %1264 = sbr.rel (%p1262) target = $region80
      $region79: #{_lambda_.11} parent=75 // pred_region
        %p1265 = scmp.lt.s32.totalorder %s25, 1
        %s1266 = scalar_select %p1265, %s25, 1
        %s1267 = smul.addr %s1266, 2
        %s1268 = smul.addr %s1267, 8
        %s1269 = scalar_lea.vmem %s11, %s1268
      $region80: #{_lambda_.11} parent=75 // pred_fallthru
        _
      // Predicated region
      $region81: #{_lambda_.11} parent=75 // pred_check
        %p1270 = pneg %p310
      $region82: #{_lambda_.11} parent=75 // pred_check_branch
        %1272 = sbr.rel (%p1270) target = $region84
      $region83: #{_lambda_.11} parent=75 // pred_region
        %p1273 = scmp.lt.s32.totalorder %s25, 1
        %s1274 = scalar_select %p1273, %s25, 1
        %s1275 = smul.addr %s1274, 2
        %s1276 = smul.addr %s1275, 8
        %s1277 = scalar_lea.vmem %s12, %s1276
      $region84: #{_lambda_.11} parent=75 // pred_fallthru
        _
    $region76: #{_lambda_.11} parent=5 // pred_fallthru
      _
  $region6: #{_lambda_.11} parent=0 // loop_footer
    %s23 = sadd.s32 1, %s19
  $region7: #{_lambda_.11} parent=0 // loop_footer_branch
    %18 = sbr.rel target = $region3
  $region8: #{_lambda_.11} parent=0 // loop_exit
    _

// kernel: _lambda_.12
$region0: #{_lambda_.12}
  #allocation0 [shape = 'u32[]', space=smem, size = 0x4, offset = 0x4, fixed_abs, tag = 'smem constant byte address 0x4 - core index']
  #allocation1 [shape = 'u32[144,128]{1,0:T(1,128)}', space=vmem, size = 0x12000, scoped, tag = 'internal scratch']
  %s0 = inlined_call_operand.vmem [shape: f32[2,16,8], index: 0, kind: input, shape index: {}]
  %s1 = inlined_call_operand.vmem [shape: f32[8,8], index: 1, kind: input, shape index: {}]
  %s2 = inlined_call_operand.vmem [shape: f32[1,8], index: 2, kind: input, shape index: {}, may-alias: {2,4,6}]
  %s3 = inlined_call_operand.vmem [shape: f32[9,8], index: 3, kind: input, shape index: {}]
  %s4 = inlined_call_operand.vmem [shape: f32[1,8], index: 4, kind: input, shape index: {}, may-alias: {2,4,6}]
  %s5 = inlined_call_operand.vmem [shape: f32[8,8], index: 5, kind: input, shape index: {}]
  %s6 = inlined_call_operand.vmem [shape: f32[1,8], index: 6, kind: input, shape index: {}, may-alias: {2,4,6}]
  %s7 = inlined_call_operand.vmem [shape: f32[2,16,8], index: 7, kind: output, shape index: {}]
  %s8 = sld [smem:[#allocation0]]
  $region61: #{_lambda_.12} parent=0
    _
  %s10 = ssub.s32 1, %s8
  %s11 = scalar_select 0, %s10, %s8
  loop: start=0, step=1, limit=4
  $region2: #{_lambda_.12} parent=0 // loop_pre_header
    _
  $region3: #{_lambda_.12} parent=0 // loop_header
    %s13 = sphi 0, %s17
    %p14 = scmp.ge.s32.totalorder %s13, 4
    %s23 = sphi 0, %s25
    %s26 = sphi 0, %s23
    %s27 = sphi 0, %s26
    %s43 = sphi 0, %s27
    %s47 = sphi 0, %s47
    %s49 = sphi 0, %s47
    %s50 = sphi 0, %s49
    %s64 = sphi 0, %s50
    %s68 = sphi 0, %s68
    %s70 = sphi 0, %s68
    %s71 = sphi 0, %s70
    %s85 = sphi 0, %s71
    %s89 = sphi 0, %s89
    %s91 = sphi 0, %s89
    %s92 = sphi 0, %s91
    %s106 = sphi 0, %s92
    %s110 = sphi 0, %s110
    %s112 = sphi 0, %s110
    %s113 = sphi 0, %s112
    %s127 = sphi 0, %s113
    %s131 = sphi 0, %s131
    %s133 = sphi 0, %s131
    %s134 = sphi 0, %s133
    %s148 = sphi 0, %s134
    %s152 = sphi 0, %s152
    %s154 = sphi 0, %s152
    %s155 = sphi 0, %s154
    %s169 = sphi 0, %s155
    %s175 = sphi 0, %s177
    %s178 = sphi 0, %s175
    %s179 = sphi 0, %s178
    %s195 = sphi 0, %s179
  $region4: #{_lambda_.12} parent=0 // loop_header_branch
    %16 = sbr.rel (%p14) target = $region8
  $region5: #{_lambda_.12} parent=0 // loop_body
    %s18 = ssub.s32 %s13, 1
    %s19 = ssub.s32 %s13, 2
    %s20 = sadd.s32 %s13, 1
    %s21 = ssub.s32 %s13, %s20
    %p22 = scmp.eq.s32.totalorder %s21, 0
    %s24 = sadd.s32 %s23, 1
    %s25 = scalar_select %p22, %s23, %s24
    %p28 = pneg %p22
    %p29 = scmp.eq.s32.totalorder %s13, 1
    %p30 = por %p28, %p29
    %p31 = scmp.ne.s32.totalorder %s23, %s26
    %p32 = scmp.eq.s32.totalorder %s13, 0
    %p33 = por %p31, %p32
    %p34 = scmp.ne.s32.totalorder %s23, %s26
    %p35 = scmp.eq.s32.totalorder %s18, 1
    %p36 = por %p34, %p35
    %p37 = scmp.ne.s32.totalorder %s26, %s27
    %p38 = scmp.eq.s32.totalorder %s18, 0
    %p39 = por %p37, %p38
    %p40 = scmp.ne.s32.totalorder %s26, %s27
    %p41 = scmp.eq.s32.totalorder %s19, 1
    %p42 = por %p40, %p41
    %p44 = scmp.ne.s32.totalorder %s27, %s43
    %p45 = scmp.eq.s32.totalorder %s19, 0
    %p46 = por %p44, %p45
    %s48 = sadd.s32 %s47, 1
    %p51 = scmp.eq.s32.totalorder %s13, 1
    %p52 = scmp.ne.s32.totalorder %s47, %s49
    %p53 = scmp.eq.s32.totalorder %s13, 0
    %p54 = por %p52, %p53
    %p55 = scmp.ne.s32.totalorder %s47, %s49
    %p56 = scmp.eq.s32.totalorder %s18, 1
    %p57 = por %p55, %p56
    %p58 = scmp.ne.s32.totalorder %s49, %s50
    %p59 = scmp.eq.s32.totalorder %s18, 0
    %p60 = por %p58, %p59
    %p61 = scmp.ne.s32.totalorder %s49, %s50
    %p62 = scmp.eq.s32.totalorder %s19, 1
    %p63 = por %p61, %p62
    %p65 = scmp.ne.s32.totalorder %s50, %s64
    %p66 = scmp.eq.s32.totalorder %s19, 0
    %p67 = por %p65, %p66
    %s69 = sadd.s32 %s68, 1
    %p72 = scmp.eq.s32.totalorder %s13, 1
    %p73 = scmp.ne.s32.totalorder %s68, %s70
    %p74 = scmp.eq.s32.totalorder %s13, 0
    %p75 = por %p73, %p74
    %p76 = scmp.ne.s32.totalorder %s68, %s70
    %p77 = scmp.eq.s32.totalorder %s18, 1
    %p78 = por %p76, %p77
    %p79 = scmp.ne.s32.totalorder %s70, %s71
    %p80 = scmp.eq.s32.totalorder %s18, 0
    %p81 = por %p79, %p80
    %p82 = scmp.ne.s32.totalorder %s70, %s71
    %p83 = scmp.eq.s32.totalorder %s19, 1
    %p84 = por %p82, %p83
    %p86 = scmp.ne.s32.totalorder %s71, %s85
    %p87 = scmp.eq.s32.totalorder %s19, 0
    %p88 = por %p86, %p87
    %s90 = sadd.s32 %s89, 1
    %p93 = scmp.eq.s32.totalorder %s13, 1
    %p94 = scmp.ne.s32.totalorder %s89, %s91
    %p95 = scmp.eq.s32.totalorder %s13, 0
    %p96 = por %p94, %p95
    %p97 = scmp.ne.s32.totalorder %s89, %s91
    %p98 = scmp.eq.s32.totalorder %s18, 1
    %p99 = por %p97, %p98
    %p100 = scmp.ne.s32.totalorder %s91, %s92
    %p101 = scmp.eq.s32.totalorder %s18, 0
    %p102 = por %p100, %p101
    %p103 = scmp.ne.s32.totalorder %s91, %s92
    %p104 = scmp.eq.s32.totalorder %s19, 1
    %p105 = por %p103, %p104
    %p107 = scmp.ne.s32.totalorder %s92, %s106
    %p108 = scmp.eq.s32.totalorder %s19, 0
    %p109 = por %p107, %p108
    %s111 = sadd.s32 %s110, 1
    %p114 = scmp.eq.s32.totalorder %s13, 1
    %p115 = scmp.ne.s32.totalorder %s110, %s112
    %p116 = scmp.eq.s32.totalorder %s13, 0
    %p117 = por %p115, %p116
    %p118 = scmp.ne.s32.totalorder %s110, %s112
    %p119 = scmp.eq.s32.totalorder %s18, 1
    %p120 = por %p118, %p119
    %p121 = scmp.ne.s32.totalorder %s112, %s113
    %p122 = scmp.eq.s32.totalorder %s18, 0
    %p123 = por %p121, %p122
    %p124 = scmp.ne.s32.totalorder %s112, %s113
    %p125 = scmp.eq.s32.totalorder %s19, 1
    %p126 = por %p124, %p125
    %p128 = scmp.ne.s32.totalorder %s113, %s127
    %p129 = scmp.eq.s32.totalorder %s19, 0
    %p130 = por %p128, %p129
    %s132 = sadd.s32 %s131, 1
    %p135 = scmp.eq.s32.totalorder %s13, 1
    %p136 = scmp.ne.s32.totalorder %s131, %s133
    %p137 = scmp.eq.s32.totalorder %s13, 0
    %p138 = por %p136, %p137
    %p139 = scmp.ne.s32.totalorder %s131, %s133
    %p140 = scmp.eq.s32.totalorder %s18, 1
    %p141 = por %p139, %p140
    %p142 = scmp.ne.s32.totalorder %s133, %s134
    %p143 = scmp.eq.s32.totalorder %s18, 0
    %p144 = por %p142, %p143
    %p145 = scmp.ne.s32.totalorder %s133, %s134
    %p146 = scmp.eq.s32.totalorder %s19, 1
    %p147 = por %p145, %p146
    %p149 = scmp.ne.s32.totalorder %s134, %s148
    %p150 = scmp.eq.s32.totalorder %s19, 0
    %p151 = por %p149, %p150
    %s153 = sadd.s32 %s152, 1
    %p156 = scmp.eq.s32.totalorder %s13, 1
    %p157 = scmp.ne.s32.totalorder %s152, %s154
    %p158 = scmp.eq.s32.totalorder %s13, 0
    %p159 = por %p157, %p158
    %p160 = scmp.ne.s32.totalorder %s152, %s154
    %p161 = scmp.eq.s32.totalorder %s18, 1
    %p162 = por %p160, %p161
    %p163 = scmp.ne.s32.totalorder %s154, %s155
    %p164 = scmp.eq.s32.totalorder %s18, 0
    %p165 = por %p163, %p164
    %p166 = scmp.ne.s32.totalorder %s154, %s155
    %p167 = scmp.eq.s32.totalorder %s19, 1
    %p168 = por %p166, %p167
    %p170 = scmp.ne.s32.totalorder %s155, %s169
    %p171 = scmp.eq.s32.totalorder %s19, 0
    %p172 = por %p170, %p171
    %s173 = ssub.s32 %s13, %s20
    %p174 = scmp.eq.s32.totalorder %s173, 0
    %s176 = sadd.s32 %s175, 1
    %s177 = scalar_select %p174, %s175, %s176
    %p180 = pneg %p174
    %p181 = scmp.eq.s32.totalorder %s13, 1
    %p182 = por %p180, %p181
    %p183 = scmp.ne.s32.totalorder %s175, %s178
    %p184 = scmp.eq.s32.totalorder %s13, 0
    %p185 = por %p183, %p184
    %p186 = scmp.ne.s32.totalorder %s175, %s178
    %p187 = scmp.eq.s32.totalorder %s18, 1
    %p188 = por %p186, %p187
    %p189 = scmp.ne.s32.totalorder %s178, %s179
    %p190 = scmp.eq.s32.totalorder %s18, 0
    %p191 = por %p189, %p190
    %p192 = scmp.ne.s32.totalorder %s178, %s179
    %p193 = scmp.eq.s32.totalorder %s19, 1
    %p194 = por %p192, %p193
    %p196 = scmp.ne.s32.totalorder %s179, %s195
    %p197 = scmp.eq.s32.totalorder %s19, 0
    %p198 = por %p196, %p197
    %p199 = scmp.le.s32.totalorder 1, %s13
    %p200 = scmp.lt.s32.totalorder %s13, 3
    %p201 = pnand %p199, %p200
    %p202 = pneg %p201
    // Predicated region
    $region9: #{_lambda_.12} parent=5 // pred_check
      _
    $region10: #{_lambda_.12} parent=5 // pred_check_branch
      %204 = sbr.rel (%p201) target = $region12
    $region11: #{_lambda_.12} parent=5 // pred_region
      %s205 = ssub.s32 %s13, 1
      // Predicated region
      $region13: #{_lambda_.12} parent=11 // pred_check
        %p206 = pneg %p60
      $region14: #{_lambda_.12} parent=11 // pred_check_branch
        %208 = sbr.rel (%p206) target = $region16
      $region15: #{_lambda_.12} parent=11 // pred_region
        _
      $region16: #{_lambda_.12} parent=11 // pred_fallthru
        _
      // Predicated region
      $region17: #{_lambda_.12} parent=11 // pred_check
        %p209 = pneg %p81
      $region18: #{_lambda_.12} parent=11 // pred_check_branch
        %211 = sbr.rel (%p209) target = $region20
      $region19: #{_lambda_.12} parent=11 // pred_region
        _
      $region20: #{_lambda_.12} parent=11 // pred_fallthru
        _
      // Predicated region
      $region21: #{_lambda_.12} parent=11 // pred_check
        %p212 = pneg %p102
      $region22: #{_lambda_.12} parent=11 // pred_check_branch
        %214 = sbr.rel (%p212) target = $region24
      $region23: #{_lambda_.12} parent=11 // pred_region
        _
      $region24: #{_lambda_.12} parent=11 // pred_fallthru
        _
      // Predicated region
      $region25: #{_lambda_.12} parent=11 // pred_check
        %p215 = pneg %p123
      $region26: #{_lambda_.12} parent=11 // pred_check_branch
        %217 = sbr.rel (%p215) target = $region28
      $region27: #{_lambda_.12} parent=11 // pred_region
        _
      $region28: #{_lambda_.12} parent=11 // pred_fallthru
        _
      // Predicated region
      $region29: #{_lambda_.12} parent=11 // pred_check
        %p218 = pneg %p144
      $region30: #{_lambda_.12} parent=11 // pred_check_branch
        %220 = sbr.rel (%p218) target = $region32
      $region31: #{_lambda_.12} parent=11 // pred_region
        _
      $region32: #{_lambda_.12} parent=11 // pred_fallthru
        _
      // Predicated region
      $region33: #{_lambda_.12} parent=11 // pred_check
        %p221 = pneg %p165
      $region34: #{_lambda_.12} parent=11 // pred_check_branch
        %223 = sbr.rel (%p221) target = $region36
      $region35: #{_lambda_.12} parent=11 // pred_region
        _
      $region36: #{_lambda_.12} parent=11 // pred_fallthru
        _
    $region12: #{_lambda_.12} parent=5 // pred_fallthru
      _
    %p224 = scmp.lt.s32.totalorder %s13, 2
    // Predicated region
    $region37: #{_lambda_.12} parent=5 // pred_check
      %p225 = pneg %p224
    $region38: #{_lambda_.12} parent=5 // pred_check_branch
      %227 = sbr.rel (%p225) target = $region40
    $region39: #{_lambda_.12} parent=5 // pred_region
      // Predicated region
      $region41: #{_lambda_.12} parent=39 // pred_check
        %p228 = pneg %p33
      $region42: #{_lambda_.12} parent=39 // pred_check_branch
        %230 = sbr.rel (%p228) target = $region44
      $region43: #{_lambda_.12} parent=39 // pred_region
        %p231 = scmp.lt.s32.totalorder %s13, 1
        %s232 = scalar_select %p231, %s13, 1
        %s233 = smul.addr %s232, 2
        %s234 = smul.addr %s233, 8
        %s235 = scalar_lea.vmem %s0, %s234
      $region44: #{_lambda_.12} parent=39 // pred_fallthru
        _
    $region40: #{_lambda_.12} parent=5 // pred_fallthru
      _
    %p236 = scmp.le.s32.totalorder 1, %s13
    %p237 = scmp.lt.s32.totalorder %s13, 3
    %p238 = pnand %p236, %p237
    %p239 = pneg %p238
    // Predicated region
    $region45: #{_lambda_.12} parent=5 // pred_check
      _
    $region46: #{_lambda_.12} parent=5 // pred_check_branch
      %241 = sbr.rel (%p238) target = $region48
    $region47: #{_lambda_.12} parent=5 // pred_region
      %s242 = ssub.s32 %s13, 1
      %p243 = scmp.lt.s32.totalorder %s18, 1
      %s244 = scalar_select %p243, %s18, 1
      %s245 = smul.addr %s244, 2
      %s246 = smul.addr %s245, 8
      %s247 = scalar_lea.vmem %s0, %s246
      %p248 = pneg %p39
      %p249 = pneg %p36
      %p250 = pneg %p60
      %p251 = pneg %p57
      %p252 = pneg %p81
      %p253 = pneg %p78
      %p254 = pneg %p102
      %p255 = pneg %p99
      %p256 = pneg %p123
      %p257 = pneg %p120
      %p258 = pneg %p144
      %p259 = pneg %p141
      %p260 = pneg %p165
      %p261 = pneg %p162
      %p262 = pneg %p191
      %p263 = pneg %p188
      %p264 = scmp.lt.s32.totalorder %s18, 1
      %s265 = scalar_select %p264, %s18, 1
      %s266 = smul.addr %s265, 2
      %s267 = smul.addr %s266, 8
      %s268 = scalar_lea.vmem %s7, %s267
      %p269 = scmp.lt.s32.totalorder %s18, 1
      %s270 = scalar_select %p269, %s18, 1
      %s271 = smul.addr %s270, 2
      %s272 = smul.addr %s271, 8
      %s273 = scalar_lea.vmem %s0, %s272
      %p274 = scmp.lt.s32.totalorder %s18, 1
      %s275 = scalar_select %p274, %s18, 1
      %s276 = smul.addr %s275, 2
      %s277 = smul.addr %s276, 8
      %s278 = scalar_lea.vmem %s7, %s277
      %v279 = vld [vmem:[%s273] sm:$0xff]
      %v280 = vld [vmem:[%s273 + $0x8] sm:$0xff]
      %v281 = vld [vmem:[%s1] sm:$0xff]
      %v282 = vld [vmem:[%s2] sm:$0x1]
      %v284 = vlaneseq
      %v285 = vshrl.u32 %v284, 7
      %v286 = vsub.s32 0, %v285
      %v287 = vrot.slane %v282, %v286
      %vm289 = vcmask 64512
      %v291 = vsel %vm289, %v279, 0
      %v294 = vsel %vm289, %v280, 0
      %296 = vmatprep.subr.mxu0 0.0
      %297 = vmatpush1.msra.mxu0 %v281
      %298 = vmatprep.subr.mxu0 0.0
      %299 = vmatpush1.msra.mxu0 0.0
      %300 = vmatprep.subr.mxu0 0.0
      %301 = vmatpush1.msra.mxu0 0.0
      %302 = vmatprep.subr.mxu0 0.0
      %303 = vmatpush1.msra.mxu0 0.0
      %304 = vmatprep.subr.mxu0 0.0
      %305 = vmatpush1.msra.mxu0 0.0
      %306 = vmatprep.subr.mxu0 0.0
      %307 = vmatpush1.msra.mxu0 0.0
      %308 = vmatprep.subr.mxu0 0.0
      %309 = vmatpush1.msra.mxu0 0.0
      %310 = vmatprep.subr.mxu0 0.0
      %311 = vmatpush1.msra.mxu0 0.0
      %312 = vmatprep.subr.mxu0 0.0
      %313 = vmatpush1.msra.mxu0 0.0
      %314 = vmatprep.subr.mxu0 0.0
      %315 = vmatpush1.msra.mxu0 0.0
      %316 = vmatprep.subr.mxu0 0.0
      %317 = vmatpush1.msra.mxu0 0.0
      %318 = vmatprep.subr.mxu0 0.0
      %319 = vmatpush1.msra.mxu0 0.0
      %320 = vmatprep.subr.mxu0 0.0
      %321 = vmatpush1.msra.mxu0 0.0
      %322 = vmatprep.subr.mxu0 0.0
      %323 = vmatpush1.msra.mxu0 0.0
      %324 = vmatprep.subr.mxu0 0.0
      %325 = vmatpush1.msra.mxu0 0.0
      %326 = vmatprep.subr.mxu0 0.0
      %327 = vmatpush1.msra.mxu0 0.0
      %328 = vmatprep.subr.mxu0 0.0
      %329 = vmatpush1.msra.mxu0 0.0
      %330 = vmatprep.subr.mxu0 0.0
      %331 = vmatpush1.msra.mxu0 0.0
      %332 = vmatprep.subr.mxu0 0.0
      %333 = vmatpush1.msra.mxu0 0.0
      %334 = vmatprep.subr.mxu0 0.0
      %335 = vmatpush1.msra.mxu0 0.0
      %336 = vmatprep.subr.mxu0 0.0
      %337 = vmatpush1.msra.mxu0 0.0
      %338 = vmatprep.subr.mxu0 0.0
      %339 = vmatpush1.msra.mxu0 0.0
      %340 = vmatprep.subr.mxu0 0.0
      %341 = vmatpush1.msra.mxu0 0.0
      %342 = vmatprep.subr.mxu0 0.0
      %343 = vmatpush1.msra.mxu0 0.0
      %344 = vmatprep.subr.mxu0 0.0
      %345 = vmatpush1.msra.mxu0 0.0
      %346 = vmatprep.subr.mxu0 0.0
      %347 = vmatpush1.msra.mxu0 0.0
      %348 = vmatprep.subr.mxu0 0.0
      %349 = vmatpush1.msra.mxu0 0.0
      %350 = vmatprep.subr.mxu0 0.0
      %351 = vmatpush1.msra.mxu0 0.0
      %352 = vmatprep.subr.mxu0 0.0
      %353 = vmatpush1.msra.mxu0 0.0
      %354 = vmatprep.subr.mxu0 0.0
      %355 = vmatpush1.msra.mxu0 0.0
      %356 = vmatprep.subr.mxu0 0.0
      %357 = vmatpush1.msra.mxu0 0.0
      %358 = vmatprep.subr.mxu0 0.0
      %359 = vmatpush1.msra.mxu0 0.0
      %360 = vmatprep.mubr.f32.mxu0 0.0
      %361 = vmatmul.mubr.f32.gmra.mrb[0].mxu0 %v291
      %v362 = vpop.f32.mrb[0].mxu0
      %v363 = vadd.f32 %v287, %v362
      %v364 = vpop.f32.mrb[0].mxu0
      %365 = vmatprep.mubr.f32.mxu0 0.0
      %366 = vmatmul.mubr.f32.gmra.mrb[0].mxu0 %v294
      %v367 = vpop.f32.mrb[0].mxu0
      %v368 = vadd.f32 %v287, %v367
      %v369 = vpop.f32.mrb[0].mxu0
      %370 = vdwg.mxu0
      %v371 = vmax.f32 %v363, 0.0
      %v372 = vmax.f32 %v368, 0.0
      %v373 = vld [vmem:[%s3] sm:$0xff]
      %v374 = vld [vmem:[%s3 + $0x8] sm:$0x1]
      %v375 = vld [vmem:[%s4] sm:$0x1]
      %v376 = vlaneseq
      %v377 = vshrl.u32 %v376, 7
      %v378 = vadd.s32 %v377, 8
      %vm379 = vcmp.lt.s32.totalorder %v377, 0
      %v380 = vsub.s32 0, %v377
      %v381 = vsel %vm379, %v380, %v377
      %v382 = vshrl.u32 %v381, 2
      %v383 = vand.u32 %v381, 3
      %v384 = vsub.s32 0, %v383
      %v385 = vsel %vm379, %v384, %v383
      %vm386 = vcmp.lt.s32.totalorder %v378, 0
      %v387 = vsub.s32 0, %v378
      %v388 = vsel %vm386, %v387, %v378
      %v389 = vshrl.u32 %v388, 2
      %v390 = vand.u32 %v388, 3
      %v391 = vsub.s32 0, %v390
      %v392 = vsel %vm386, %v391, %v390
      %vm393 = vcmp.ne.s32.totalorder %v385, 0
      %vm394 = vcmp.ne.s32.totalorder %v392, 0
      %vm395 = vcmp.lt.s32.totalorder %v385, 0
      %vm396 = vcmp.lt.s32.totalorder %v392, 0
      %vm397 = vmand %vm395, %vm393
      %vm398 = vmand %vm396, %vm394
      %v399 = vadd.s32 %v385, 4
      %v400 = vadd.s32 %v392, 4
      %v401 = vsel %vm397, %v399, %v385
      %v402 = vsel %vm398, %v400, %v392
      %vm405 = vcmask 1044480
      %v406 = vrot.slane %v371, 3
      %v407 = vrot.slane %v372, 3
      %v408 = vsel %vm405, %v406, %v407
      %v411 = vsel %vm405, 0.0, %v406
      %v412 = vlaneseq
      %v413 = vshrl.u32 %v412, 7
      %v414 = vsub.s32 0, %v413
      %v415 = vrot.slane %v373, %v414
      %v416 = vmul.f32 %v411, %v415
      %v417 = vmul.f32 %v408, %v415
      %vm418 = vcmp.ge.s32.totalorder %v401, 1
      %vm419 = vcmp.ge.s32.totalorder %v402, 1
      %v420 = vsel %vm418, 1, 0
      %v421 = vsel %vm419, 1, 0
      %vm422 = vcmp.eq.s32.totalorder %v420, 1
      %vm423 = vcmp.eq.s32.totalorder %v421, 1
      %v424 = vsel %vm422, %v416, 0.0
      %v425 = vsel %vm423, %v417, 0.0
      %vm426 = vcmask 1043456
      %v427 = vrot.slane %v371, 4
      %v428 = vrot.slane %v372, 4
      %v429 = vsel %vm426, %v427, %v428
      %v432 = vsel %vm426, 0.0, %v427
      %v433 = vlaneseq
      %v434 = vshrl.u32 %v433, 7
      %v435 = vsub.s32 1, %v434
      %v436 = vrot.slane %v373, %v435
      %v437 = vmul.f32 %v432, %v436
      %v438 = vmul.f32 %v429, %v436
      %vm439 = vcmask 1042432
      %v440 = vrot.slane %v371, 5
      %v441 = vrot.slane %v372, 5
      %v442 = vsel %vm439, %v440, %v441
      %v445 = vsel %vm439, 0.0, %v440
      %v446 = vlaneseq
      %v447 = vshrl.u32 %v446, 7
      %v448 = vsub.s32 2, %v447
      %v449 = vrot.slane %v373, %v448
      %v450 = vmul.f32 %v445, %v449
      %v451 = vmul.f32 %v442, %v449
      %vm452 = vcmp.le.s32.totalorder %v401, 2
      %vm453 = vcmp.le.s32.totalorder %v402, 2
      %v454 = vsel %vm452, 1, 0
      %v455 = vsel %vm453, 1, 0
      %vm456 = vcmp.eq.s32.totalorder %v454, 1
      %vm457 = vcmp.eq.s32.totalorder %v455, 1
      %v458 = vsel %vm456, %v450, 0.0
      %v459 = vsel %vm457, %v451, 0.0
      %vm460 = vcmask 1040384
      %v461 = vrot.slane %v371, 7
      %v462 = vrot.slane %v372, 7
      %v463 = vsel %vm460, %v461, %v462
      %v466 = vsel %vm460, 0.0, %v461
      %v467 = vlaneseq
      %v468 = vshrl.u32 %v467, 7
      %v469 = vsub.s32 3, %v468
      %v470 = vrot.slane %v373, %v469
      %v471 = vmul.f32 %v466, %v470
      %v472 = vmul.f32 %v463, %v470
      %v473 = vsel %vm422, %v471, 0.0
      %v474 = vsel %vm423, %v472, 0.0
      %v475 = vlaneseq
      %v476 = vshrl.u32 %v475, 7
      %v477 = vsub.s32 4, %v476
      %v478 = vrot.slane %v373, %v477
      %v479 = vmul.f32 %v371, %v478
      %v480 = vmul.f32 %v372, %v478
      %vm481 = vcmask 1046528
      %v482 = vrot.slane %v371, 1
      %v483 = vrot.slane %v372, 1
      %v484 = vsel %vm481, %v482, %v483
      %v487 = vsel %vm481, %v483, 0.0
      %v488 = vlaneseq
      %v489 = vshrl.u32 %v488, 7
      %v490 = vsub.s32 5, %v489
      %v491 = vrot.slane %v373, %v490
      %v492 = vmul.f32 %v484, %v491
      %v493 = vmul.f32 %v487, %v491
      %v494 = vsel %vm456, %v492, 0.0
      %v495 = vsel %vm457, %v493, 0.0
      %v497 = vsel %vm405, %v407, 0.0
      %v498 = vlaneseq
      %v499 = vshrl.u32 %v498, 7
      %v500 = vsub.s32 6, %v499
      %v501 = vrot.slane %v373, %v500
      %v502 = vmul.f32 %v408, %v501
      %v503 = vmul.f32 %v497, %v501
      %v504 = vsel %vm422, %v502, 0.0
      %v505 = vsel %vm423, %v503, 0.0
      %v507 = vsel %vm426, %v428, 0.0
      %v508 = vlaneseq
      %v509 = vshrl.u32 %v508, 7
      %v510 = vsub.s32 7, %v509
      %v511 = vrot.slane %v373, %v510
      %v512 = vmul.f32 %v429, %v511
      %v513 = vmul.f32 %v507, %v511
      %v515 = vsel %vm439, %v441, 0.0
      %v516 = vlaneseq
      %v517 = vshrl.u32 %v516, 7
      %v518 = vsub.s32 0, %v517
      %v519 = vrot.slane %v374, %v518
      %v520 = vmul.f32 %v442, %v519
      %v521 = vmul.f32 %v515, %v519
      %v522 = vsel %vm456, %v520, 0.0
      %v523 = vsel %vm457, %v521, 0.0
      %v524 = vadd.f32 %v424, %v437
      %v525 = vadd.f32 %v425, %v438
      %v526 = vadd.f32 %v458, %v473
      %v527 = vadd.f32 %v459, %v474
      %v528 = vadd.f32 %v479, %v494
      %v529 = vadd.f32 %v480, %v495
      %v530 = vadd.f32 %v504, %v512
      %v531 = vadd.f32 %v505, %v513
      %v532 = vadd.f32 %v524, %v526
      %v533 = vadd.f32 %v525, %v527
      %v534 = vadd.f32 %v528, %v530
      %v535 = vadd.f32 %v529, %v531
      %v536 = vadd.f32 %v532, %v534
      %v537 = vadd.f32 %v533, %v535
      %v538 = vadd.f32 %v536, %v522
      %v539 = vadd.f32 %v537, %v523
      %v541 = vlaneseq
      %v542 = vshrl.u32 %v541, 7
      %v543 = vsub.s32 0, %v542
      %v544 = vrot.slane %v375, %v543
      %v546 = vadd.f32 %v538, %v544
      %v547 = vadd.f32 %v539, %v544
      %v548 = vld [vmem:[%s5] sm:$0xff]
      %v549 = vld [vmem:[%s6] sm:$0x1]
      %v551 = vlaneseq
      %v552 = vshrl.u32 %v551, 7
      %v553 = vsub.s32 0, %v552
      %v554 = vrot.slane %v549, %v553
      %v557 = vsel %vm289, %v546, 0
      %v560 = vsel %vm289, %v547, 0
      %562 = vmatprep.subr.mxu0 0.0
      %563 = vmatpush1.msra.mxu0 %v548
      %564 = vmatprep.subr.mxu0 0.0
      %565 = vmatpush1.msra.mxu0 0.0
      %566 = vmatprep.subr.mxu0 0.0
      %567 = vmatpush1.msra.mxu0 0.0
      %568 = vmatprep.subr.mxu0 0.0
      %569 = vmatpush1.msra.mxu0 0.0
      %570 = vmatprep.subr.mxu0 0.0
      %571 = vmatpush1.msra.mxu0 0.0
      %572 = vmatprep.subr.mxu0 0.0
      %573 = vmatpush1.msra.mxu0 0.0
      %574 = vmatprep.subr.mxu0 0.0
      %575 = vmatpush1.msra.mxu0 0.0
      %576 = vmatprep.subr.mxu0 0.0
      %577 = vmatpush1.msra.mxu0 0.0
      %578 = vmatprep.subr.mxu0 0.0
      %579 = vmatpush1.msra.mxu0 0.0
      %580 = vmatprep.subr.mxu0 0.0
      %581 = vmatpush1.msra.mxu0 0.0
      %582 = vmatprep.subr.mxu0 0.0
      %583 = vmatpush1.msra.mxu0 0.0
      %584 = vmatprep.subr.mxu0 0.0
      %585 = vmatpush1.msra.mxu0 0.0
      %586 = vmatprep.subr.mxu0 0.0
      %587 = vmatpush1.msra.mxu0 0.0
      %588 = vmatprep.subr.mxu0 0.0
      %589 = vmatpush1.msra.mxu0 0.0
      %590 = vmatprep.subr.mxu0 0.0
      %591 = vmatpush1.msra.mxu0 0.0
      %592 = vmatprep.subr.mxu0 0.0
      %593 = vmatpush1.msra.mxu0 0.0
      %594 = vmatprep.subr.mxu0 0.0
      %595 = vmatpush1.msra.mxu0 0.0
      %596 = vmatprep.subr.mxu0 0.0
      %597 = vmatpush1.msra.mxu0 0.0
      %598 = vmatprep.subr.mxu0 0.0
      %599 = vmatpush1.msra.mxu0 0.0
      %600 = vmatprep.subr.mxu0 0.0
      %601 = vmatpush1.msra.mxu0 0.0
      %602 = vmatprep.subr.mxu0 0.0
      %603 = vmatpush1.msra.mxu0 0.0
      %604 = vmatprep.subr.mxu0 0.0
      %605 = vmatpush1.msra.mxu0 0.0
      %606 = vmatprep.subr.mxu0 0.0
      %607 = vmatpush1.msra.mxu0 0.0
      %608 = vmatprep.subr.mxu0 0.0
      %609 = vmatpush1.msra.mxu0 0.0
      %610 = vmatprep.subr.mxu0 0.0
      %611 = vmatpush1.msra.mxu0 0.0
      %612 = vmatprep.subr.mxu0 0.0
      %613 = vmatpush1.msra.mxu0 0.0
      %614 = vmatprep.subr.mxu0 0.0
      %615 = vmatpush1.msra.mxu0 0.0
      %616 = vmatprep.subr.mxu0 0.0
      %617 = vmatpush1.msra.mxu0 0.0
      %618 = vmatprep.subr.mxu0 0.0
      %619 = vmatpush1.msra.mxu0 0.0
      %620 = vmatprep.subr.mxu0 0.0
      %621 = vmatpush1.msra.mxu0 0.0
      %622 = vmatprep.subr.mxu0 0.0
      %623 = vmatpush1.msra.mxu0 0.0
      %624 = vmatprep.subr.mxu0 0.0
      %625 = vmatpush1.msra.mxu0 0.0
      %626 = vmatprep.mubr.f32.mxu0 0.0
      %627 = vmatmul.mubr.f32.gmra.mrb[0].mxu0 %v557
      %v628 = vpop.f32.mrb[0].mxu0
      %v629 = vadd.f32 %v554, %v628
      %v630 = vpop.f32.mrb[0].mxu0
      %631 = vmatprep.mubr.f32.mxu0 0.0
      %632 = vmatmul.mubr.f32.gmra.mrb[0].mxu0 %v560
      %v633 = vpop.f32.mrb[0].mxu0
      %v634 = vadd.f32 %v554, %v633
      %v635 = vpop.f32.mrb[0].mxu0
      %636 = vdwg.mxu0
      %v637 = vmax.f32 %v629, 0.0
      %v638 = vmax.f32 %v634, 0.0
      %639 = vst.msk [vmem:[%s278] sm:$0xff] %vm289, %v637
      %640 = vst.msk [vmem:[%s278 + $0x8] sm:$0xff] %vm289, %v638
      %p641 = scmp.lt.s32.totalorder %s18, 1
      %s642 = scalar_select %p641, %s18, 1
      %s643 = smul.addr %s642, 2
      %s644 = smul.addr %s643, 8
      %s645 = scalar_lea.vmem %s7, %s644
      // Predicated region
      $region49: #{_lambda_.12} parent=47 // pred_check
        %p646 = pneg %p188
      $region50: #{_lambda_.12} parent=47 // pred_check_branch
        %648 = sbr.rel (%p646) target = $region52
      $region51: #{_lambda_.12} parent=47 // pred_region
        _
      $region52: #{_lambda_.12} parent=47 // pred_fallthru
        _
    $region48: #{_lambda_.12} parent=5 // pred_fallthru
      _
    %p649 = scmp.le.s32.totalorder 2, %s13
    // Predicated region
    $region53: #{_lambda_.12} parent=5 // pred_check
      %p650 = pneg %p649
    $region54: #{_lambda_.12} parent=5 // pred_check_branch
      %652 = sbr.rel (%p650) target = $region56
    $region55: #{_lambda_.12} parent=5 // pred_region
      %s653 = ssub.s32 %s13, 2
      // Predicated region
      $region57: #{_lambda_.12} parent=55 // pred_check
        %p654 = pneg %p194
      $region58: #{_lambda_.12} parent=55 // pred_check_branch
        %656 = sbr.rel (%p654) target = $region60
      $region59: #{_lambda_.12} parent=55 // pred_region
        %p657 = scmp.lt.s32.totalorder %s19, 1
        %s658 = scalar_select %p657, %s19, 1
        %s659 = smul.addr %s658, 2
        %s660 = smul.addr %s659, 8
        %s661 = scalar_lea.vmem %s7, %s660
      $region60: #{_lambda_.12} parent=55 // pred_fallthru
        _
    $region56: #{_lambda_.12} parent=5 // pred_fallthru
      _
  $region6: #{_lambda_.12} parent=0 // loop_footer
    %s17 = sadd.s32 1, %s13
  $region7: #{_lambda_.12} parent=0 // loop_footer_branch
    %12 = sbr.rel target = $region3
  $region8: #{_lambda_.12} parent=0 // loop_exit
    _

// kernel: _lambda_.14
$region0: #{_lambda_.14}
  #allocation0 [shape = 'u32[]', space=smem, size = 0x4, offset = 0x4, fixed_abs, tag = 'smem constant byte address 0x4 - core index']
  #allocation1 [shape = 'u32[144,128]{1,0:T(1,128)}', space=vmem, size = 0x12000, scoped, tag = 'internal scratch']
  %s0 = inlined_call_operand.vmem [shape: f32[2,4,16], index: 0, kind: input, shape index: {}]
  %s1 = inlined_call_operand.vmem [shape: f32[16,16], index: 1, kind: input, shape index: {}]
  %s2 = inlined_call_operand.vmem [shape: f32[1,16], index: 2, kind: input, shape index: {}, may-alias: {2,4,6}]
  %s3 = inlined_call_operand.vmem [shape: f32[9,16], index: 3, kind: input, shape index: {}]
  %s4 = inlined_call_operand.vmem [shape: f32[1,16], index: 4, kind: input, shape index: {}, may-alias: {2,4,6}]
  %s5 = inlined_call_operand.vmem [shape: f32[16,16], index: 5, kind: input, shape index: {}]
  %s6 = inlined_call_operand.vmem [shape: f32[1,16], index: 6, kind: input, shape index: {}, may-alias: {2,4,6}]
  %s7 = inlined_call_operand.vmem [shape: f32[2,4,16], index: 7, kind: output, shape index: {}]
  %s8 = sld [smem:[#allocation0]]
  $region61: #{_lambda_.14} parent=0
    _
  %s10 = ssub.s32 1, %s8
  %s11 = scalar_select 0, %s10, %s8
  loop: start=0, step=1, limit=4
  $region2: #{_lambda_.14} parent=0 // loop_pre_header
    _
  $region3: #{_lambda_.14} parent=0 // loop_header
    %s13 = sphi 0, %s17
    %p14 = scmp.ge.s32.totalorder %s13, 4
    %s23 = sphi 0, %s25
    %s26 = sphi 0, %s23
    %s27 = sphi 0, %s26
    %s43 = sphi 0, %s27
    %s47 = sphi 0, %s47
    %s49 = sphi 0, %s47
    %s50 = sphi 0, %s49
    %s64 = sphi 0, %s50
    %s68 = sphi 0, %s68
    %s70 = sphi 0, %s68
    %s71 = sphi 0, %s70
    %s85 = sphi 0, %s71
    %s89 = sphi 0, %s89
    %s91 = sphi 0, %s89
    %s92 = sphi 0, %s91
    %s106 = sphi 0, %s92
    %s110 = sphi 0, %s110
    %s112 = sphi 0, %s110
    %s113 = sphi 0, %s112
    %s127 = sphi 0, %s113
    %s131 = sphi 0, %s131
    %s133 = sphi 0, %s131
    %s134 = sphi 0, %s133
    %s148 = sphi 0, %s134
    %s152 = sphi 0, %s152
    %s154 = sphi 0, %s152
    %s155 = sphi 0, %s154
    %s169 = sphi 0, %s155
    %s175 = sphi 0, %s177
    %s178 = sphi 0, %s175
    %s179 = sphi 0, %s178
    %s195 = sphi 0, %s179
  $region4: #{_lambda_.14} parent=0 // loop_header_branch
    %16 = sbr.rel (%p14) target = $region8
  $region5: #{_lambda_.14} parent=0 // loop_body
    %s18 = ssub.s32 %s13, 1
    %s19 = ssub.s32 %s13, 2
    %s20 = sadd.s32 %s13, 1
    %s21 = ssub.s32 %s13, %s20
    %p22 = scmp.eq.s32.totalorder %s21, 0
    %s24 = sadd.s32 %s23, 1
    %s25 = scalar_select %p22, %s23, %s24
    %p28 = pneg %p22
    %p29 = scmp.eq.s32.totalorder %s13, 1
    %p30 = por %p28, %p29
    %p31 = scmp.ne.s32.totalorder %s23, %s26
    %p32 = scmp.eq.s32.totalorder %s13, 0
    %p33 = por %p31, %p32
    %p34 = scmp.ne.s32.totalorder %s23, %s26
    %p35 = scmp.eq.s32.totalorder %s18, 1
    %p36 = por %p34, %p35
    %p37 = scmp.ne.s32.totalorder %s26, %s27
    %p38 = scmp.eq.s32.totalorder %s18, 0
    %p39 = por %p37, %p38
    %p40 = scmp.ne.s32.totalorder %s26, %s27
    %p41 = scmp.eq.s32.totalorder %s19, 1
    %p42 = por %p40, %p41
    %p44 = scmp.ne.s32.totalorder %s27, %s43
    %p45 = scmp.eq.s32.totalorder %s19, 0
    %p46 = por %p44, %p45
    %s48 = sadd.s32 %s47, 1
    %p51 = scmp.eq.s32.totalorder %s13, 1
    %p52 = scmp.ne.s32.totalorder %s47, %s49
    %p53 = scmp.eq.s32.totalorder %s13, 0
    %p54 = por %p52, %p53
    %p55 = scmp.ne.s32.totalorder %s47, %s49
    %p56 = scmp.eq.s32.totalorder %s18, 1
    %p57 = por %p55, %p56
    %p58 = scmp.ne.s32.totalorder %s49, %s50
    %p59 = scmp.eq.s32.totalorder %s18, 0
    %p60 = por %p58, %p59
    %p61 = scmp.ne.s32.totalorder %s49, %s50
    %p62 = scmp.eq.s32.totalorder %s19, 1
    %p63 = por %p61, %p62
    %p65 = scmp.ne.s32.totalorder %s50, %s64
    %p66 = scmp.eq.s32.totalorder %s19, 0
    %p67 = por %p65, %p66
    %s69 = sadd.s32 %s68, 1
    %p72 = scmp.eq.s32.totalorder %s13, 1
    %p73 = scmp.ne.s32.totalorder %s68, %s70
    %p74 = scmp.eq.s32.totalorder %s13, 0
    %p75 = por %p73, %p74
    %p76 = scmp.ne.s32.totalorder %s68, %s70
    %p77 = scmp.eq.s32.totalorder %s18, 1
    %p78 = por %p76, %p77
    %p79 = scmp.ne.s32.totalorder %s70, %s71
    %p80 = scmp.eq.s32.totalorder %s18, 0
    %p81 = por %p79, %p80
    %p82 = scmp.ne.s32.totalorder %s70, %s71
    %p83 = scmp.eq.s32.totalorder %s19, 1
    %p84 = por %p82, %p83
    %p86 = scmp.ne.s32.totalorder %s71, %s85
    %p87 = scmp.eq.s32.totalorder %s19, 0
    %p88 = por %p86, %p87
    %s90 = sadd.s32 %s89, 1
    %p93 = scmp.eq.s32.totalorder %s13, 1
    %p94 = scmp.ne.s32.totalorder %s89, %s91
    %p95 = scmp.eq.s32.totalorder %s13, 0
    %p96 = por %p94, %p95
    %p97 = scmp.ne.s32.totalorder %s89, %s91
    %p98 = scmp.eq.s32.totalorder %s18, 1
    %p99 = por %p97, %p98
    %p100 = scmp.ne.s32.totalorder %s91, %s92
    %p101 = scmp.eq.s32.totalorder %s18, 0
    %p102 = por %p100, %p101
    %p103 = scmp.ne.s32.totalorder %s91, %s92
    %p104 = scmp.eq.s32.totalorder %s19, 1
    %p105 = por %p103, %p104
    %p107 = scmp.ne.s32.totalorder %s92, %s106
    %p108 = scmp.eq.s32.totalorder %s19, 0
    %p109 = por %p107, %p108
    %s111 = sadd.s32 %s110, 1
    %p114 = scmp.eq.s32.totalorder %s13, 1
    %p115 = scmp.ne.s32.totalorder %s110, %s112
    %p116 = scmp.eq.s32.totalorder %s13, 0
    %p117 = por %p115, %p116
    %p118 = scmp.ne.s32.totalorder %s110, %s112
    %p119 = scmp.eq.s32.totalorder %s18, 1
    %p120 = por %p118, %p119
    %p121 = scmp.ne.s32.totalorder %s112, %s113
    %p122 = scmp.eq.s32.totalorder %s18, 0
    %p123 = por %p121, %p122
    %p124 = scmp.ne.s32.totalorder %s112, %s113
    %p125 = scmp.eq.s32.totalorder %s19, 1
    %p126 = por %p124, %p125
    %p128 = scmp.ne.s32.totalorder %s113, %s127
    %p129 = scmp.eq.s32.totalorder %s19, 0
    %p130 = por %p128, %p129
    %s132 = sadd.s32 %s131, 1
    %p135 = scmp.eq.s32.totalorder %s13, 1
    %p136 = scmp.ne.s32.totalorder %s131, %s133
    %p137 = scmp.eq.s32.totalorder %s13, 0
    %p138 = por %p136, %p137
    %p139 = scmp.ne.s32.totalorder %s131, %s133
    %p140 = scmp.eq.s32.totalorder %s18, 1
    %p141 = por %p139, %p140
    %p142 = scmp.ne.s32.totalorder %s133, %s134
    %p143 = scmp.eq.s32.totalorder %s18, 0
    %p144 = por %p142, %p143
    %p145 = scmp.ne.s32.totalorder %s133, %s134
    %p146 = scmp.eq.s32.totalorder %s19, 1
    %p147 = por %p145, %p146
    %p149 = scmp.ne.s32.totalorder %s134, %s148
    %p150 = scmp.eq.s32.totalorder %s19, 0
    %p151 = por %p149, %p150
    %s153 = sadd.s32 %s152, 1
    %p156 = scmp.eq.s32.totalorder %s13, 1
    %p157 = scmp.ne.s32.totalorder %s152, %s154
    %p158 = scmp.eq.s32.totalorder %s13, 0
    %p159 = por %p157, %p158
    %p160 = scmp.ne.s32.totalorder %s152, %s154
    %p161 = scmp.eq.s32.totalorder %s18, 1
    %p162 = por %p160, %p161
    %p163 = scmp.ne.s32.totalorder %s154, %s155
    %p164 = scmp.eq.s32.totalorder %s18, 0
    %p165 = por %p163, %p164
    %p166 = scmp.ne.s32.totalorder %s154, %s155
    %p167 = scmp.eq.s32.totalorder %s19, 1
    %p168 = por %p166, %p167
    %p170 = scmp.ne.s32.totalorder %s155, %s169
    %p171 = scmp.eq.s32.totalorder %s19, 0
    %p172 = por %p170, %p171
    %s173 = ssub.s32 %s13, %s20
    %p174 = scmp.eq.s32.totalorder %s173, 0
    %s176 = sadd.s32 %s175, 1
    %s177 = scalar_select %p174, %s175, %s176
    %p180 = pneg %p174
    %p181 = scmp.eq.s32.totalorder %s13, 1
    %p182 = por %p180, %p181
    %p183 = scmp.ne.s32.totalorder %s175, %s178
    %p184 = scmp.eq.s32.totalorder %s13, 0
    %p185 = por %p183, %p184
    %p186 = scmp.ne.s32.totalorder %s175, %s178
    %p187 = scmp.eq.s32.totalorder %s18, 1
    %p188 = por %p186, %p187
    %p189 = scmp.ne.s32.totalorder %s178, %s179
    %p190 = scmp.eq.s32.totalorder %s18, 0
    %p191 = por %p189, %p190
    %p192 = scmp.ne.s32.totalorder %s178, %s179
    %p193 = scmp.eq.s32.totalorder %s19, 1
    %p194 = por %p192, %p193
    %p196 = scmp.ne.s32.totalorder %s179, %s195
    %p197 = scmp.eq.s32.totalorder %s19, 0
    %p198 = por %p196, %p197
    %p199 = scmp.le.s32.totalorder 1, %s13
    %p200 = scmp.lt.s32.totalorder %s13, 3
    %p201 = pnand %p199, %p200
    %p202 = pneg %p201
    // Predicated region
    $region9: #{_lambda_.14} parent=5 // pred_check
      _
    $region10: #{_lambda_.14} parent=5 // pred_check_branch
      %204 = sbr.rel (%p201) target = $region12
    $region11: #{_lambda_.14} parent=5 // pred_region
      %s205 = ssub.s32 %s13, 1
      // Predicated region
      $region13: #{_lambda_.14} parent=11 // pred_check
        %p206 = pneg %p60
      $region14: #{_lambda_.14} parent=11 // pred_check_branch
        %208 = sbr.rel (%p206) target = $region16
      $region15: #{_lambda_.14} parent=11 // pred_region
        _
      $region16: #{_lambda_.14} parent=11 // pred_fallthru
        _
      // Predicated region
      $region17: #{_lambda_.14} parent=11 // pred_check
        %p209 = pneg %p81
      $region18: #{_lambda_.14} parent=11 // pred_check_branch
        %211 = sbr.rel (%p209) target = $region20
      $region19: #{_lambda_.14} parent=11 // pred_region
        _
      $region20: #{_lambda_.14} parent=11 // pred_fallthru
        _
      // Predicated region
      $region21: #{_lambda_.14} parent=11 // pred_check
        %p212 = pneg %p102
      $region22: #{_lambda_.14} parent=11 // pred_check_branch
        %214 = sbr.rel (%p212) target = $region24
      $region23: #{_lambda_.14} parent=11 // pred_region
        _
      $region24: #{_lambda_.14} parent=11 // pred_fallthru
        _
      // Predicated region
      $region25: #{_lambda_.14} parent=11 // pred_check
        %p215 = pneg %p123
      $region26: #{_lambda_.14} parent=11 // pred_check_branch
        %217 = sbr.rel (%p215) target = $region28
      $region27: #{_lambda_.14} parent=11 // pred_region
        _
      $region28: #{_lambda_.14} parent=11 // pred_fallthru
        _
      // Predicated region
      $region29: #{_lambda_.14} parent=11 // pred_check
        %p218 = pneg %p144
      $region30: #{_lambda_.14} parent=11 // pred_check_branch
        %220 = sbr.rel (%p218) target = $region32
      $region31: #{_lambda_.14} parent=11 // pred_region
        _
      $region32: #{_lambda_.14} parent=11 // pred_fallthru
        _
      // Predicated region
      $region33: #{_lambda_.14} parent=11 // pred_check
        %p221 = pneg %p165
      $region34: #{_lambda_.14} parent=11 // pred_check_branch
        %223 = sbr.rel (%p221) target = $region36
      $region35: #{_lambda_.14} parent=11 // pred_region
        _
      $region36: #{_lambda_.14} parent=11 // pred_fallthru
        _
    $region12: #{_lambda_.14} parent=5 // pred_fallthru
      _
    %p224 = scmp.lt.s32.totalorder %s13, 2
    // Predicated region
    $region37: #{_lambda_.14} parent=5 // pred_check
      %p225 = pneg %p224
    $region38: #{_lambda_.14} parent=5 // pred_check_branch
      %227 = sbr.rel (%p225) target = $region40
    $region39: #{_lambda_.14} parent=5 // pred_region
      // Predicated region
      $region41: #{_lambda_.14} parent=39 // pred_check
        %p228 = pneg %p33
      $region42: #{_lambda_.14} parent=39 // pred_check_branch
        %230 = sbr.rel (%p228) target = $region44
      $region43: #{_lambda_.14} parent=39 // pred_region
        %p231 = scmp.lt.s32.totalorder %s13, 1
        %s232 = scalar_select %p231, %s13, 1
        %s233 = smul.addr %s232, 4
        %s234 = scalar_lea.vmem %s0, %s233
      $region44: #{_lambda_.14} parent=39 // pred_fallthru
        _
    $region40: #{_lambda_.14} parent=5 // pred_fallthru
      _
    %p235 = scmp.le.s32.totalorder 1, %s13
    %p236 = scmp.lt.s32.totalorder %s13, 3
    %p237 = pnand %p235, %p236
    %p238 = pneg %p237
    // Predicated region
    $region45: #{_lambda_.14} parent=5 // pred_check
      _
    $region46: #{_lambda_.14} parent=5 // pred_check_branch
      %240 = sbr.rel (%p237) target = $region48
    $region47: #{_lambda_.14} parent=5 // pred_region
      %s241 = ssub.s32 %s13, 1
      %p242 = scmp.lt.s32.totalorder %s18, 1
      %s243 = scalar_select %p242, %s18, 1
      %s244 = smul.addr %s243, 4
      %s245 = scalar_lea.vmem %s0, %s244
      %p246 = pneg %p39
      %p247 = pneg %p36
      %p248 = pneg %p60
      %p249 = pneg %p57
      %p250 = pneg %p81
      %p251 = pneg %p78
      %p252 = pneg %p102
      %p253 = pneg %p99
      %p254 = pneg %p123
      %p255 = pneg %p120
      %p256 = pneg %p144
      %p257 = pneg %p141
      %p258 = pneg %p165
      %p259 = pneg %p162
      %p260 = pneg %p191
      %p261 = pneg %p188
      %p262 = scmp.lt.s32.totalorder %s18, 1
      %s263 = scalar_select %p262, %s18, 1
      %s264 = smul.addr %s263, 4
      %s265 = scalar_lea.vmem %s7, %s264
      %p266 = scmp.lt.s32.totalorder %s18, 1
      %s267 = scalar_select %p266, %s18, 1
      %s268 = smul.addr %s267, 4
      %s269 = scalar_lea.vmem %s0, %s268
      %p270 = scmp.lt.s32.totalorder %s18, 1
      %s271 = scalar_select %p270, %s18, 1
      %s272 = smul.addr %s271, 4
      %s273 = scalar_lea.vmem %s7, %s272
      %v274 = vld [vmem:[%s269] sm:$0xf]
      %v275 = vld [vmem:[%s1] sm:$0xff]
      %v276 = vld [vmem:[%s1 + $0x8] sm:$0xff]
      %v277 = vld [vmem:[%s2] sm:$0x1]
      %v279 = vlaneseq
      %v280 = vshrl.u32 %v279, 7
      %v281 = vsub.s32 0, %v280
      %v282 = vrot.slane %v277, %v281
      %vm284 = vcmask 130048
      %v286 = vsel %vm284, %v274, 0
      %288 = vmatprep.subr.mxu0 0.0
      %289 = vmatpush1.msra.mxu0 %v275
      %290 = vmatprep.subr.mxu0 0.0
      %291 = vmatpush1.msra.mxu0 %v276
      %292 = vmatprep.subr.mxu0 0.0
      %293 = vmatpush1.msra.mxu0 0.0
      %294 = vmatprep.subr.mxu0 0.0
      %295 = vmatpush1.msra.mxu0 0.0
      %296 = vmatprep.subr.mxu0 0.0
      %297 = vmatpush1.msra.mxu0 0.0
      %298 = vmatprep.subr.mxu0 0.0
      %299 = vmatpush1.msra.mxu0 0.0
      %300 = vmatprep.subr.mxu0 0.0
      %301 = vmatpush1.msra.mxu0 0.0
      %302 = vmatprep.subr.mxu0 0.0
      %303 = vmatpush1.msra.mxu0 0.0
      %304 = vmatprep.subr.mxu0 0.0
      %305 = vmatpush1.msra.mxu0 0.0
      %306 = vmatprep.subr.mxu0 0.0
      %307 = vmatpush1.msra.mxu0 0.0
      %308 = vmatprep.subr.mxu0 0.0
      %309 = vmatpush1.msra.mxu0 0.0
      %310 = vmatprep.subr.mxu0 0.0
      %311 = vmatpush1.msra.mxu0 0.0
      %312 = vmatprep.subr.mxu0 0.0
      %313 = vmatpush1.msra.mxu0 0.0
      %314 = vmatprep.subr.mxu0 0.0
      %315 = vmatpush1.msra.mxu0 0.0
      %316 = vmatprep.subr.mxu0 0.0
      %317 = vmatpush1.msra.mxu0 0.0
      %318 = vmatprep.subr.mxu0 0.0
      %319 = vmatpush1.msra.mxu0 0.0
      %320 = vmatprep.subr.mxu0 0.0
      %321 = vmatpush1.msra.mxu0 0.0
      %322 = vmatprep.subr.mxu0 0.0
      %323 = vmatpush1.msra.mxu0 0.0
      %324 = vmatprep.subr.mxu0 0.0
      %325 = vmatpush1.msra.mxu0 0.0
      %326 = vmatprep.subr.mxu0 0.0
      %327 = vmatpush1.msra.mxu0 0.0
      %328 = vmatprep.subr.mxu0 0.0
      %329 = vmatpush1.msra.mxu0 0.0
      %330 = vmatprep.subr.mxu0 0.0
      %331 = vmatpush1.msra.mxu0 0.0
      %332 = vmatprep.subr.mxu0 0.0
      %333 = vmatpush1.msra.mxu0 0.0
      %334 = vmatprep.subr.mxu0 0.0
      %335 = vmatpush1.msra.mxu0 0.0
      %336 = vmatprep.subr.mxu0 0.0
      %337 = vmatpush1.msra.mxu0 0.0
      %338 = vmatprep.subr.mxu0 0.0
      %339 = vmatpush1.msra.mxu0 0.0
      %340 = vmatprep.subr.mxu0 0.0
      %341 = vmatpush1.msra.mxu0 0.0
      %342 = vmatprep.subr.mxu0 0.0
      %343 = vmatpush1.msra.mxu0 0.0
      %344 = vmatprep.subr.mxu0 0.0
      %345 = vmatpush1.msra.mxu0 0.0
      %346 = vmatprep.subr.mxu0 0.0
      %347 = vmatpush1.msra.mxu0 0.0
      %348 = vmatprep.subr.mxu0 0.0
      %349 = vmatpush1.msra.mxu0 0.0
      %350 = vmatprep.subr.mxu0 0.0
      %351 = vmatpush1.msra.mxu0 0.0
      %352 = vmatprep.mubr.f32.mxu0 0.0
      %353 = vmatmul.mubr.f32.gmra.mrb[0].mxu0 %v286
      %v354 = vpop.f32.mrb[0].mxu0
      %v355 = vadd.f32 %v282, %v354
      %v356 = vpop.f32.mrb[0].mxu0
      %357 = vdwg.mxu0
      %v358 = vmax.f32 %v355, 0.0
      %v359 = vld [vmem:[%s3] sm:$0xff]
      %v360 = vld [vmem:[%s3 + $0x8] sm:$0x1]
      %v361 = vld [vmem:[%s4] sm:$0x1]
      %v362 = vlaneseq
      %v363 = vshrl.u32 %v362, 7
      %vm364 = vcmp.lt.s32.totalorder %v363, 0
      %v365 = vsub.s32 0, %v363
      %v366 = vsel %vm364, %v365, %v363
      %v367 = vshrl.u32 %v366, 1
      %v368 = vand.u32 %v366, 1
      %v369 = vsub.s32 0, %v368
      %v370 = vsel %vm364, %v369, %v368
      %vm371 = vcmp.ne.s32.totalorder %v370, 0
      %vm372 = vcmp.lt.s32.totalorder %v370, 0
      %vm373 = vmand %vm372, %vm371
      %v374 = vadd.s32 %v370, 2
      %v375 = vsel %vm373, %v374, %v370
      %v377 = vrot.slane %v358, 5
      %vm379 = vcmask 1042432
      %v380 = vsel %vm379, 0.0, %v377
      %v381 = vlaneseq
      %v382 = vshrl.u32 %v381, 7
      %v383 = vsub.s32 0, %v382
      %v384 = vrot.slane %v359, %v383
      %v385 = vmul.f32 %v380, %v384
      %vm386 = vcmp.ge.s32.totalorder %v375, 1
      %v387 = vsel %vm386, 1, 0
      %vm388 = vcmp.eq.s32.totalorder %v387, 1
      %v389 = vsel %vm388, %v385, 0.0
      %v390 = vrot.slane %v358, 6
      %vm392 = vcmask 1041408
      %v393 = vsel %vm392, 0.0, %v390
      %v394 = vlaneseq
      %v395 = vshrl.u32 %v394, 7
      %v396 = vsub.s32 1, %v395
      %v397 = vrot.slane %v359, %v396
      %v398 = vmul.f32 %v393, %v397
      %v399 = vrot.slane %v358, 7
      %vm401 = vcmask 1040384
      %v402 = vsel %vm401, 0.0, %v399
      %v403 = vlaneseq
      %v404 = vshrl.u32 %v403, 7
      %v405 = vsub.s32 2, %v404
      %v406 = vrot.slane %v359, %v405
      %v407 = vmul.f32 %v402, %v406
      %vm408 = vcmp.le.s32.totalorder %v375, 0
      %v409 = vsel %vm408, 1, 0
      %vm410 = vcmp.eq.s32.totalorder %v409, 1
      %v411 = vsel %vm410, %v407, 0.0
      %v412 = vlaneseq
      %v413 = vshrl.u32 %v412, 7
      %v414 = vsub.s32 3, %v413
      %v415 = vrot.slane %v359, %v414
      %v416 = vmul.f32 %v402, %v415
      %v417 = vsel %vm388, %v416, 0.0
      %v418 = vlaneseq
      %v419 = vshrl.u32 %v418, 7
      %v420 = vsub.s32 4, %v419
      %v421 = vrot.slane %v359, %v420
      %v422 = vmul.f32 %v358, %v421
      %v423 = vrot.slane %v358, 1
      %v425 = vsel %vm379, %v423, 0.0
      %v426 = vlaneseq
      %v427 = vshrl.u32 %v426, 7
      %v428 = vsub.s32 5, %v427
      %v429 = vrot.slane %v359, %v428
      %v430 = vmul.f32 %v425, %v429
      %v431 = vsel %vm410, %v430, 0.0
      %v432 = vlaneseq
      %v433 = vshrl.u32 %v432, 7
      %v434 = vsub.s32 6, %v433
      %v435 = vrot.slane %v359, %v434
      %v436 = vmul.f32 %v425, %v435
      %v437 = vsel %vm388, %v436, 0.0
      %v438 = vrot.slane %v358, 2
      %v440 = vsel %vm392, %v438, 0.0
      %v441 = vlaneseq
      %v442 = vshrl.u32 %v441, 7
      %v443 = vsub.s32 7, %v442
      %v444 = vrot.slane %v359, %v443
      %v445 = vmul.f32 %v440, %v444
      %v446 = vrot.slane %v358, 3
      %v448 = vsel %vm401, %v446, 0.0
      %v449 = vlaneseq
      %v450 = vshrl.u32 %v449, 7
      %v451 = vsub.s32 0, %v450
      %v452 = vrot.slane %v360, %v451
      %v453 = vmul.f32 %v448, %v452
      %v454 = vsel %vm410, %v453, 0.0
      %v455 = vadd.f32 %v389, %v398
      %v456 = vadd.f32 %v411, %v417
      %v457 = vadd.f32 %v422, %v431
      %v458 = vadd.f32 %v437, %v445
      %v459 = vadd.f32 %v455, %v456
      %v460 = vadd.f32 %v457, %v458
      %v461 = vadd.f32 %v459, %v460
      %v462 = vadd.f32 %v461, %v454
      %v464 = vlaneseq
      %v465 = vshrl.u32 %v464, 7
      %v466 = vsub.s32 0, %v465
      %v467 = vrot.slane %v361, %v466
      %v469 = vadd.f32 %v462, %v467
      %v470 = vld [vmem:[%s5] sm:$0xff]
      %v471 = vld [vmem:[%s5 + $0x8] sm:$0xff]
      %v472 = vld [vmem:[%s6] sm:$0x1]
      %v474 = vlaneseq
      %v475 = vshrl.u32 %v474, 7
      %v476 = vsub.s32 0, %v475
      %v477 = vrot.slane %v472, %v476
      %v480 = vsel %vm284, %v469, 0
      %482 = vmatprep.subr.mxu0 0.0
      %483 = vmatpush1.msra.mxu0 %v470
      %484 = vmatprep.subr.mxu0 0.0
      %485 = vmatpush1.msra.mxu0 %v471
      %486 = vmatprep.subr.mxu0 0.0
      %487 = vmatpush1.msra.mxu0 0.0
      %488 = vmatprep.subr.mxu0 0.0
      %489 = vmatpush1.msra.mxu0 0.0
      %490 = vmatprep.subr.mxu0 0.0
      %491 = vmatpush1.msra.mxu0 0.0
      %492 = vmatprep.subr.mxu0 0.0
      %493 = vmatpush1.msra.mxu0 0.0
      %494 = vmatprep.subr.mxu0 0.0
      %495 = vmatpush1.msra.mxu0 0.0
      %496 = vmatprep.subr.mxu0 0.0
      %497 = vmatpush1.msra.mxu0 0.0
      %498 = vmatprep.subr.mxu0 0.0
      %499 = vmatpush1.msra.mxu0 0.0
      %500 = vmatprep.subr.mxu0 0.0
      %501 = vmatpush1.msra.mxu0 0.0
      %502 = vmatprep.subr.mxu0 0.0
      %503 = vmatpush1.msra.mxu0 0.0
      %504 = vmatprep.subr.mxu0 0.0
      %505 = vmatpush1.msra.mxu0 0.0
      %506 = vmatprep.subr.mxu0 0.0
      %507 = vmatpush1.msra.mxu0 0.0
      %508 = vmatprep.subr.mxu0 0.0
      %509 = vmatpush1.msra.mxu0 0.0
      %510 = vmatprep.subr.mxu0 0.0
      %511 = vmatpush1.msra.mxu0 0.0
      %512 = vmatprep.subr.mxu0 0.0
      %513 = vmatpush1.msra.mxu0 0.0
      %514 = vmatprep.subr.mxu0 0.0
      %515 = vmatpush1.msra.mxu0 0.0
      %516 = vmatprep.subr.mxu0 0.0
      %517 = vmatpush1.msra.mxu0 0.0
      %518 = vmatprep.subr.mxu0 0.0
      %519 = vmatpush1.msra.mxu0 0.0
      %520 = vmatprep.subr.mxu0 0.0
      %521 = vmatpush1.msra.mxu0 0.0
      %522 = vmatprep.subr.mxu0 0.0
      %523 = vmatpush1.msra.mxu0 0.0
      %524 = vmatprep.subr.mxu0 0.0
      %525 = vmatpush1.msra.mxu0 0.0
      %526 = vmatprep.subr.mxu0 0.0
      %527 = vmatpush1.msra.mxu0 0.0
      %528 = vmatprep.subr.mxu0 0.0
      %529 = vmatpush1.msra.mxu0 0.0
      %530 = vmatprep.subr.mxu0 0.0
      %531 = vmatpush1.msra.mxu0 0.0
      %532 = vmatprep.subr.mxu0 0.0
      %533 = vmatpush1.msra.mxu0 0.0
      %534 = vmatprep.subr.mxu0 0.0
      %535 = vmatpush1.msra.mxu0 0.0
      %536 = vmatprep.subr.mxu0 0.0
      %537 = vmatpush1.msra.mxu0 0.0
      %538 = vmatprep.subr.mxu0 0.0
      %539 = vmatpush1.msra.mxu0 0.0
      %540 = vmatprep.subr.mxu0 0.0
      %541 = vmatpush1.msra.mxu0 0.0
      %542 = vmatprep.subr.mxu0 0.0
      %543 = vmatpush1.msra.mxu0 0.0
      %544 = vmatprep.subr.mxu0 0.0
      %545 = vmatpush1.msra.mxu0 0.0
      %546 = vmatprep.mubr.f32.mxu0 0.0
      %547 = vmatmul.mubr.f32.gmra.mrb[0].mxu0 %v480
      %v548 = vpop.f32.mrb[0].mxu0
      %v549 = vadd.f32 %v477, %v548
      %v550 = vpop.f32.mrb[0].mxu0
      %551 = vdwg.mxu0
      %v552 = vmax.f32 %v549, 0.0
      %vm553 = vcmask 125952
      %554 = vst.msk [vmem:[%s273] sm:$0xf] %vm553, %v552
      %p555 = scmp.lt.s32.totalorder %s18, 1
      %s556 = scalar_select %p555, %s18, 1
      %s557 = smul.addr %s556, 4
      %s558 = scalar_lea.vmem %s7, %s557
      // Predicated region
      $region49: #{_lambda_.14} parent=47 // pred_check
        %p559 = pneg %p188
      $region50: #{_lambda_.14} parent=47 // pred_check_branch
        %561 = sbr.rel (%p559) target = $region52
      $region51: #{_lambda_.14} parent=47 // pred_region
        _
      $region52: #{_lambda_.14} parent=47 // pred_fallthru
        _
    $region48: #{_lambda_.14} parent=5 // pred_fallthru
      _
    %p562 = scmp.le.s32.totalorder 2, %s13
    // Predicated region
    $region53: #{_lambda_.14} parent=5 // pred_check
      %p563 = pneg %p562
    $region54: #{_lambda_.14} parent=5 // pred_check_branch
      %565 = sbr.rel (%p563) target = $region56
    $region55: #{_lambda_.14} parent=5 // pred_region
      %s566 = ssub.s32 %s13, 2
      // Predicated region
      $region57: #{_lambda_.14} parent=55 // pred_check
        %p567 = pneg %p194
      $region58: #{_lambda_.14} parent=55 // pred_check_branch
        %569 = sbr.rel (%p567) target = $region60
      $region59: #{_lambda_.14} parent=55 // pred_region
        %p570 = scmp.lt.s32.totalorder %s19, 1
        %s571 = scalar_select %p570, %s19, 1
        %s572 = smul.addr %s571, 4
        %s573 = scalar_lea.vmem %s7, %s572
      $region60: #{_lambda_.14} parent=55 // pred_fallthru
        _
    $region56: #{_lambda_.14} parent=5 // pred_fallthru
      _
  $region6: #{_lambda_.14} parent=0 // loop_footer
    %s17 = sadd.s32 1, %s13
  $region7: #{_lambda_.14} parent=0 // loop_footer_branch
    %12 = sbr.rel target = $region3
  $region8: #{_lambda_.14} parent=0 // loop_exit
    _

// kernel: _lambda_.13
$region0: #{_lambda_.13}
  #allocation0 [shape = 'u32[]', space=smem, size = 0x4, offset = 0x4, fixed_abs, tag = 'smem constant byte address 0x4 - core index']
  #allocation1 [shape = 'u32[144,128]{1,0:T(1,128)}', space=vmem, size = 0x12000, scoped, tag = 'internal scratch']
  %s0 = inlined_call_operand.vmem [shape: f32[2,4,4,16], index: 0, kind: input, shape index: {}]
  %s1 = inlined_call_operand.vmem [shape: f32[9,16], index: 1, kind: input, shape index: {}]
  %s2 = inlined_call_operand.vmem [shape: f32[1,16], index: 2, kind: input, shape index: {}, may-alias: {2,4,6,8,10}]
  %s3 = inlined_call_operand.vmem [shape: f32[16,16], index: 3, kind: input, shape index: {}]
  %s4 = inlined_call_operand.vmem [shape: f32[1,16], index: 4, kind: input, shape index: {}, may-alias: {2,4,6,8,10}]
  %s5 = inlined_call_operand.vmem [shape: f32[16,16], index: 5, kind: input, shape index: {}]
  %s6 = inlined_call_operand.vmem [shape: f32[1,16], index: 6, kind: input, shape index: {}, may-alias: {2,4,6,8,10}]
  %s7 = inlined_call_operand.vmem [shape: f32[9,16], index: 7, kind: input, shape index: {}]
  %s8 = inlined_call_operand.vmem [shape: f32[1,16], index: 8, kind: input, shape index: {}, may-alias: {2,4,6,8,10}]
  %s9 = inlined_call_operand.vmem [shape: f32[16,16], index: 9, kind: input, shape index: {}]
  %s10 = inlined_call_operand.vmem [shape: f32[1,16], index: 10, kind: input, shape index: {}, may-alias: {2,4,6,8,10}]
  %s11 = inlined_call_operand.vmem [shape: f32[2,4,16], index: 11, kind: output, shape index: {0}]
  %s12 = inlined_call_operand.vmem [shape: f32[2,4,16], index: 12, kind: output, shape index: {1}]
  %13 = xla_tuple %s11, %s12
  %s14 = sld [smem:[#allocation0]]
  $region85: #{_lambda_.13} parent=0
    _
  %s16 = ssub.s32 1, %s14
  %s17 = scalar_select 0, %s16, %s14
  loop: start=0, step=1, limit=4
  $region2: #{_lambda_.13} parent=0 // loop_pre_header
    _
  $region3: #{_lambda_.13} parent=0 // loop_header
    %s19 = sphi 0, %s23
    %p20 = scmp.ge.s32.totalorder %s19, 4
    %s29 = sphi 0, %s31
    %s32 = sphi 0, %s29
    %s33 = sphi 0, %s32
    %s49 = sphi 0, %s33
    %s53 = sphi 0, %s53
    %s55 = sphi 0, %s53
    %s56 = sphi 0, %s55
    %s70 = sphi 0, %s56
    %s74 = sphi 0, %s74
    %s76 = sphi 0, %s74
    %s77 = sphi 0, %s76
    %s91 = sphi 0, %s77
    %s95 = sphi 0, %s95
    %s97 = sphi 0, %s95
    %s98 = sphi 0, %s97
    %s112 = sphi 0, %s98
    %s116 = sphi 0, %s116
    %s118 = sphi 0, %s116
    %s119 = sphi 0, %s118
    %s133 = sphi 0, %s119
    %s137 = sphi 0, %s137
    %s139 = sphi 0, %s137
    %s140 = sphi 0, %s139
    %s154 = sphi 0, %s140
    %s158 = sphi 0, %s158
    %s160 = sphi 0, %s158
    %s161 = sphi 0, %s160
    %s175 = sphi 0, %s161
    %s179 = sphi 0, %s179
    %s181 = sphi 0, %s179
    %s182 = sphi 0, %s181
    %s196 = sphi 0, %s182
    %s200 = sphi 0, %s200
    %s202 = sphi 0, %s200
    %s203 = sphi 0, %s202
    %s217 = sphi 0, %s203
    %s221 = sphi 0, %s221
    %s223 = sphi 0, %s221
    %s224 = sphi 0, %s223
    %s238 = sphi 0, %s224
    %s242 = sphi 0, %s242
    %s244 = sphi 0, %s242
    %s245 = sphi 0, %s244
    %s259 = sphi 0, %s245
    %s265 = sphi 0, %s267
    %s268 = sphi 0, %s265
    %s269 = sphi 0, %s268
    %s285 = sphi 0, %s269
    %s291 = sphi 0, %s293
    %s294 = sphi 0, %s291
    %s295 = sphi 0, %s294
    %s311 = sphi 0, %s295
  $region4: #{_lambda_.13} parent=0 // loop_header_branch
    %22 = sbr.rel (%p20) target = $region8
  $region5: #{_lambda_.13} parent=0 // loop_body
    %s24 = ssub.s32 %s19, 1
    %s25 = ssub.s32 %s19, 2
    %s26 = sadd.s32 %s19, 1
    %s27 = ssub.s32 %s19, %s26
    %p28 = scmp.eq.s32.totalorder %s27, 0
    %s30 = sadd.s32 %s29, 1
    %s31 = scalar_select %p28, %s29, %s30
    %p34 = pneg %p28
    %p35 = scmp.eq.s32.totalorder %s19, 1
    %p36 = por %p34, %p35
    %p37 = scmp.ne.s32.totalorder %s29, %s32
    %p38 = scmp.eq.s32.totalorder %s19, 0
    %p39 = por %p37, %p38
    %p40 = scmp.ne.s32.totalorder %s29, %s32
    %p41 = scmp.eq.s32.totalorder %s24, 1
    %p42 = por %p40, %p41
    %p43 = scmp.ne.s32.totalorder %s32, %s33
    %p44 = scmp.eq.s32.totalorder %s24, 0
    %p45 = por %p43, %p44
    %p46 = scmp.ne.s32.totalorder %s32, %s33
    %p47 = scmp.eq.s32.totalorder %s25, 1
    %p48 = por %p46, %p47
    %p50 = scmp.ne.s32.totalorder %s33, %s49
    %p51 = scmp.eq.s32.totalorder %s25, 0
    %p52 = por %p50, %p51
    %s54 = sadd.s32 %s53, 1
    %p57 = scmp.eq.s32.totalorder %s19, 1
    %p58 = scmp.ne.s32.totalorder %s53, %s55
    %p59 = scmp.eq.s32.totalorder %s19, 0
    %p60 = por %p58, %p59
    %p61 = scmp.ne.s32.totalorder %s53, %s55
    %p62 = scmp.eq.s32.totalorder %s24, 1
    %p63 = por %p61, %p62
    %p64 = scmp.ne.s32.totalorder %s55, %s56
    %p65 = scmp.eq.s32.totalorder %s24, 0
    %p66 = por %p64, %p65
    %p67 = scmp.ne.s32.totalorder %s55, %s56
    %p68 = scmp.eq.s32.totalorder %s25, 1
    %p69 = por %p67, %p68
    %p71 = scmp.ne.s32.totalorder %s56, %s70
    %p72 = scmp.eq.s32.totalorder %s25, 0
    %p73 = por %p71, %p72
    %s75 = sadd.s32 %s74, 1
    %p78 = scmp.eq.s32.totalorder %s19, 1
    %p79 = scmp.ne.s32.totalorder %s74, %s76
    %p80 = scmp.eq.s32.totalorder %s19, 0
    %p81 = por %p79, %p80
    %p82 = scmp.ne.s32.totalorder %s74, %s76
    %p83 = scmp.eq.s32.totalorder %s24, 1
    %p84 = por %p82, %p83
    %p85 = scmp.ne.s32.totalorder %s76, %s77
    %p86 = scmp.eq.s32.totalorder %s24, 0
    %p87 = por %p85, %p86
    %p88 = scmp.ne.s32.totalorder %s76, %s77
    %p89 = scmp.eq.s32.totalorder %s25, 1
    %p90 = por %p88, %p89
    %p92 = scmp.ne.s32.totalorder %s77, %s91
    %p93 = scmp.eq.s32.totalorder %s25, 0
    %p94 = por %p92, %p93
    %s96 = sadd.s32 %s95, 1
    %p99 = scmp.eq.s32.totalorder %s19, 1
    %p100 = scmp.ne.s32.totalorder %s95, %s97
    %p101 = scmp.eq.s32.totalorder %s19, 0
    %p102 = por %p100, %p101
    %p103 = scmp.ne.s32.totalorder %s95, %s97
    %p104 = scmp.eq.s32.totalorder %s24, 1
    %p105 = por %p103, %p104
    %p106 = scmp.ne.s32.totalorder %s97, %s98
    %p107 = scmp.eq.s32.totalorder %s24, 0
    %p108 = por %p106, %p107
    %p109 = scmp.ne.s32.totalorder %s97, %s98
    %p110 = scmp.eq.s32.totalorder %s25, 1
    %p111 = por %p109, %p110
    %p113 = scmp.ne.s32.totalorder %s98, %s112
    %p114 = scmp.eq.s32.totalorder %s25, 0
    %p115 = por %p113, %p114
    %s117 = sadd.s32 %s116, 1
    %p120 = scmp.eq.s32.totalorder %s19, 1
    %p121 = scmp.ne.s32.totalorder %s116, %s118
    %p122 = scmp.eq.s32.totalorder %s19, 0
    %p123 = por %p121, %p122
    %p124 = scmp.ne.s32.totalorder %s116, %s118
    %p125 = scmp.eq.s32.totalorder %s24, 1
    %p126 = por %p124, %p125
    %p127 = scmp.ne.s32.totalorder %s118, %s119
    %p128 = scmp.eq.s32.totalorder %s24, 0
    %p129 = por %p127, %p128
    %p130 = scmp.ne.s32.totalorder %s118, %s119
    %p131 = scmp.eq.s32.totalorder %s25, 1
    %p132 = por %p130, %p131
    %p134 = scmp.ne.s32.totalorder %s119, %s133
    %p135 = scmp.eq.s32.totalorder %s25, 0
    %p136 = por %p134, %p135
    %s138 = sadd.s32 %s137, 1
    %p141 = scmp.eq.s32.totalorder %s19, 1
    %p142 = scmp.ne.s32.totalorder %s137, %s139
    %p143 = scmp.eq.s32.totalorder %s19, 0
    %p144 = por %p142, %p143
    %p145 = scmp.ne.s32.totalorder %s137, %s139
    %p146 = scmp.eq.s32.totalorder %s24, 1
    %p147 = por %p145, %p146
    %p148 = scmp.ne.s32.totalorder %s139, %s140
    %p149 = scmp.eq.s32.totalorder %s24, 0
    %p150 = por %p148, %p149
    %p151 = scmp.ne.s32.totalorder %s139, %s140
    %p152 = scmp.eq.s32.totalorder %s25, 1
    %p153 = por %p151, %p152
    %p155 = scmp.ne.s32.totalorder %s140, %s154
    %p156 = scmp.eq.s32.totalorder %s25, 0
    %p157 = por %p155, %p156
    %s159 = sadd.s32 %s158, 1
    %p162 = scmp.eq.s32.totalorder %s19, 1
    %p163 = scmp.ne.s32.totalorder %s158, %s160
    %p164 = scmp.eq.s32.totalorder %s19, 0
    %p165 = por %p163, %p164
    %p166 = scmp.ne.s32.totalorder %s158, %s160
    %p167 = scmp.eq.s32.totalorder %s24, 1
    %p168 = por %p166, %p167
    %p169 = scmp.ne.s32.totalorder %s160, %s161
    %p170 = scmp.eq.s32.totalorder %s24, 0
    %p171 = por %p169, %p170
    %p172 = scmp.ne.s32.totalorder %s160, %s161
    %p173 = scmp.eq.s32.totalorder %s25, 1
    %p174 = por %p172, %p173
    %p176 = scmp.ne.s32.totalorder %s161, %s175
    %p177 = scmp.eq.s32.totalorder %s25, 0
    %p178 = por %p176, %p177
    %s180 = sadd.s32 %s179, 1
    %p183 = scmp.eq.s32.totalorder %s19, 1
    %p184 = scmp.ne.s32.totalorder %s179, %s181
    %p185 = scmp.eq.s32.totalorder %s19, 0
    %p186 = por %p184, %p185
    %p187 = scmp.ne.s32.totalorder %s179, %s181
    %p188 = scmp.eq.s32.totalorder %s24, 1
    %p189 = por %p187, %p188
    %p190 = scmp.ne.s32.totalorder %s181, %s182
    %p191 = scmp.eq.s32.totalorder %s24, 0
    %p192 = por %p190, %p191
    %p193 = scmp.ne.s32.totalorder %s181, %s182
    %p194 = scmp.eq.s32.totalorder %s25, 1
    %p195 = por %p193, %p194
    %p197 = scmp.ne.s32.totalorder %s182, %s196
    %p198 = scmp.eq.s32.totalorder %s25, 0
    %p199 = por %p197, %p198
    %s201 = sadd.s32 %s200, 1
    %p204 = scmp.eq.s32.totalorder %s19, 1
    %p205 = scmp.ne.s32.totalorder %s200, %s202
    %p206 = scmp.eq.s32.totalorder %s19, 0
    %p207 = por %p205, %p206
    %p208 = scmp.ne.s32.totalorder %s200, %s202
    %p209 = scmp.eq.s32.totalorder %s24, 1
    %p210 = por %p208, %p209
    %p211 = scmp.ne.s32.totalorder %s202, %s203
    %p212 = scmp.eq.s32.totalorder %s24, 0
    %p213 = por %p211, %p212
    %p214 = scmp.ne.s32.totalorder %s202, %s203
    %p215 = scmp.eq.s32.totalorder %s25, 1
    %p216 = por %p214, %p215
    %p218 = scmp.ne.s32.totalorder %s203, %s217
    %p219 = scmp.eq.s32.totalorder %s25, 0
    %p220 = por %p218, %p219
    %s222 = sadd.s32 %s221, 1
    %p225 = scmp.eq.s32.totalorder %s19, 1
    %p226 = scmp.ne.s32.totalorder %s221, %s223
    %p227 = scmp.eq.s32.totalorder %s19, 0
    %p228 = por %p226, %p227
    %p229 = scmp.ne.s32.totalorder %s221, %s223
    %p230 = scmp.eq.s32.totalorder %s24, 1
    %p231 = por %p229, %p230
    %p232 = scmp.ne.s32.totalorder %s223, %s224
    %p233 = scmp.eq.s32.totalorder %s24, 0
    %p234 = por %p232, %p233
    %p235 = scmp.ne.s32.totalorder %s223, %s224
    %p236 = scmp.eq.s32.totalorder %s25, 1
    %p237 = por %p235, %p236
    %p239 = scmp.ne.s32.totalorder %s224, %s238
    %p240 = scmp.eq.s32.totalorder %s25, 0
    %p241 = por %p239, %p240
    %s243 = sadd.s32 %s242, 1
    %p246 = scmp.eq.s32.totalorder %s19, 1
    %p247 = scmp.ne.s32.totalorder %s242, %s244
    %p248 = scmp.eq.s32.totalorder %s19, 0
    %p249 = por %p247, %p248
    %p250 = scmp.ne.s32.totalorder %s242, %s244
    %p251 = scmp.eq.s32.totalorder %s24, 1
    %p252 = por %p250, %p251
    %p253 = scmp.ne.s32.totalorder %s244, %s245
    %p254 = scmp.eq.s32.totalorder %s24, 0
    %p255 = por %p253, %p254
    %p256 = scmp.ne.s32.totalorder %s244, %s245
    %p257 = scmp.eq.s32.totalorder %s25, 1
    %p258 = por %p256, %p257
    %p260 = scmp.ne.s32.totalorder %s245, %s259
    %p261 = scmp.eq.s32.totalorder %s25, 0
    %p262 = por %p260, %p261
    %s263 = ssub.s32 %s19, %s26
    %p264 = scmp.eq.s32.totalorder %s263, 0
    %s266 = sadd.s32 %s265, 1
    %s267 = scalar_select %p264, %s265, %s266
    %p270 = pneg %p264
    %p271 = scmp.eq.s32.totalorder %s19, 1
    %p272 = por %p270, %p271
    %p273 = scmp.ne.s32.totalorder %s265, %s268
    %p274 = scmp.eq.s32.totalorder %s19, 0
    %p275 = por %p273, %p274
    %p276 = scmp.ne.s32.totalorder %s265, %s268
    %p277 = scmp.eq.s32.totalorder %s24, 1
    %p278 = por %p276, %p277
    %p279 = scmp.ne.s32.totalorder %s268, %s269
    %p280 = scmp.eq.s32.totalorder %s24, 0
    %p281 = por %p279, %p280
    %p282 = scmp.ne.s32.totalorder %s268, %s269
    %p283 = scmp.eq.s32.totalorder %s25, 1
    %p284 = por %p282, %p283
    %p286 = scmp.ne.s32.totalorder %s269, %s285
    %p287 = scmp.eq.s32.totalorder %s25, 0
    %p288 = por %p286, %p287
    %s289 = ssub.s32 %s19, %s26
    %p290 = scmp.eq.s32.totalorder %s289, 0
    %s292 = sadd.s32 %s291, 1
    %s293 = scalar_select %p290, %s291, %s292
    %p296 = pneg %p290
    %p297 = scmp.eq.s32.totalorder %s19, 1
    %p298 = por %p296, %p297
    %p299 = scmp.ne.s32.totalorder %s291, %s294
    %p300 = scmp.eq.s32.totalorder %s19, 0
    %p301 = por %p299, %p300
    %p302 = scmp.ne.s32.totalorder %s291, %s294
    %p303 = scmp.eq.s32.totalorder %s24, 1
    %p304 = por %p302, %p303
    %p305 = scmp.ne.s32.totalorder %s294, %s295
    %p306 = scmp.eq.s32.totalorder %s24, 0
    %p307 = por %p305, %p306
    %p308 = scmp.ne.s32.totalorder %s294, %s295
    %p309 = scmp.eq.s32.totalorder %s25, 1
    %p310 = por %p308, %p309
    %p312 = scmp.ne.s32.totalorder %s295, %s311
    %p313 = scmp.eq.s32.totalorder %s25, 0
    %p314 = por %p312, %p313
    %p315 = scmp.le.s32.totalorder 1, %s19
    %p316 = scmp.lt.s32.totalorder %s19, 3
    %p317 = pnand %p315, %p316
    %p318 = pneg %p317
    // Predicated region
    $region9: #{_lambda_.13} parent=5 // pred_check
      _
    $region10: #{_lambda_.13} parent=5 // pred_check_branch
      %320 = sbr.rel (%p317) target = $region12
    $region11: #{_lambda_.13} parent=5 // pred_region
      %s321 = ssub.s32 %s19, 1
      // Predicated region
      $region13: #{_lambda_.13} parent=11 // pred_check
        %p322 = pneg %p66
      $region14: #{_lambda_.13} parent=11 // pred_check_branch
        %324 = sbr.rel (%p322) target = $region16
      $region15: #{_lambda_.13} parent=11 // pred_region
        _
      $region16: #{_lambda_.13} parent=11 // pred_fallthru
        _
      // Predicated region
      $region17: #{_lambda_.13} parent=11 // pred_check
        %p325 = pneg %p87
      $region18: #{_lambda_.13} parent=11 // pred_check_branch
        %327 = sbr.rel (%p325) target = $region20
      $region19: #{_lambda_.13} parent=11 // pred_region
        _
      $region20: #{_lambda_.13} parent=11 // pred_fallthru
        _
      // Predicated region
      $region21: #{_lambda_.13} parent=11 // pred_check
        %p328 = pneg %p108
      $region22: #{_lambda_.13} parent=11 // pred_check_branch
        %330 = sbr.rel (%p328) target = $region24
      $region23: #{_lambda_.13} parent=11 // pred_region
        _
      $region24: #{_lambda_.13} parent=11 // pred_fallthru
        _
      // Predicated region
      $region25: #{_lambda_.13} parent=11 // pred_check
        %p331 = pneg %p129
      $region26: #{_lambda_.13} parent=11 // pred_check_branch
        %333 = sbr.rel (%p331) target = $region28
      $region27: #{_lambda_.13} parent=11 // pred_region
        _
      $region28: #{_lambda_.13} parent=11 // pred_fallthru
        _
      // Predicated region
      $region29: #{_lambda_.13} parent=11 // pred_check
        %p334 = pneg %p150
      $region30: #{_lambda_.13} parent=11 // pred_check_branch
        %336 = sbr.rel (%p334) target = $region32
      $region31: #{_lambda_.13} parent=11 // pred_region
        _
      $region32: #{_lambda_.13} parent=11 // pred_fallthru
        _
      // Predicated region
      $region33: #{_lambda_.13} parent=11 // pred_check
        %p337 = pneg %p171
      $region34: #{_lambda_.13} parent=11 // pred_check_branch
        %339 = sbr.rel (%p337) target = $region36
      $region35: #{_lambda_.13} parent=11 // pred_region
        _
      $region36: #{_lambda_.13} parent=11 // pred_fallthru
        _
      // Predicated region
      $region37: #{_lambda_.13} parent=11 // pred_check
        %p340 = pneg %p192
      $region38: #{_lambda_.13} parent=11 // pred_check_branch
        %342 = sbr.rel (%p340) target = $region40
      $region39: #{_lambda_.13} parent=11 // pred_region
        _
      $region40: #{_lambda_.13} parent=11 // pred_fallthru
        _
      // Predicated region
      $region41: #{_lambda_.13} parent=11 // pred_check
        %p343 = pneg %p213
      $region42: #{_lambda_.13} parent=11 // pred_check_branch
        %345 = sbr.rel (%p343) target = $region44
      $region43: #{_lambda_.13} parent=11 // pred_region
        _
      $region44: #{_lambda_.13} parent=11 // pred_fallthru
        _
      // Predicated region
      $region45: #{_lambda_.13} parent=11 // pred_check
        %p346 = pneg %p234
      $region46: #{_lambda_.13} parent=11 // pred_check_branch
        %348 = sbr.rel (%p346) target = $region48
      $region47: #{_lambda_.13} parent=11 // pred_region
        _
      $region48: #{_lambda_.13} parent=11 // pred_fallthru
        _
      // Predicated region
      $region49: #{_lambda_.13} parent=11 // pred_check
        %p349 = pneg %p255
      $region50: #{_lambda_.13} parent=11 // pred_check_branch
        %351 = sbr.rel (%p349) target = $region52
      $region51: #{_lambda_.13} parent=11 // pred_region
        _
      $region52: #{_lambda_.13} parent=11 // pred_fallthru
        _
    $region12: #{_lambda_.13} parent=5 // pred_fallthru
      _
    %p352 = scmp.lt.s32.totalorder %s19, 2
    // Predicated region
    $region53: #{_lambda_.13} parent=5 // pred_check
      %p353 = pneg %p352
    $region54: #{_lambda_.13} parent=5 // pred_check_branch
      %355 = sbr.rel (%p353) target = $region56
    $region55: #{_lambda_.13} parent=5 // pred_region
      // Predicated region
      $region57: #{_lambda_.13} parent=55 // pred_check
        %p356 = pneg %p39
      $region58: #{_lambda_.13} parent=55 // pred_check_branch
        %358 = sbr.rel (%p356) target = $region60
      $region59: #{_lambda_.13} parent=55 // pred_region
        %p359 = scmp.lt.s32.totalorder %s19, 1
        %s360 = scalar_select %p359, %s19, 1
        %s361 = smul.addr %s360, 4
        %s362 = smul.addr %s361, 4
        %s363 = scalar_lea.vmem %s0, %s362
      $region60: #{_lambda_.13} parent=55 // pred_fallthru
        _
    $region56: #{_lambda_.13} parent=5 // pred_fallthru
      _
    %p364 = scmp.le.s32.totalorder 1, %s19
    %p365 = scmp.lt.s32.totalorder %s19, 3
    %p366 = pnand %p364, %p365
    %p367 = pneg %p366
    // Predicated region
    $region61: #{_lambda_.13} parent=5 // pred_check
      _
    $region62: #{_lambda_.13} parent=5 // pred_check_branch
      %369 = sbr.rel (%p366) target = $region64
    $region63: #{_lambda_.13} parent=5 // pred_region
      %s370 = ssub.s32 %s19, 1
      %p371 = scmp.lt.s32.totalorder %s24, 1
      %s372 = scalar_select %p371, %s24, 1
      %s373 = smul.addr %s372, 4
      %s374 = smul.addr %s373, 4
      %s375 = scalar_lea.vmem %s0, %s374
      %p376 = pneg %p45
      %p377 = pneg %p42
      %p378 = pneg %p66
      %p379 = pneg %p63
      %p380 = pneg %p87
      %p381 = pneg %p84
      %p382 = pneg %p108
      %p383 = pneg %p105
      %p384 = pneg %p129
      %p385 = pneg %p126
      %p386 = pneg %p150
      %p387 = pneg %p147
      %p388 = pneg %p171
      %p389 = pneg %p168
      %p390 = pneg %p192
      %p391 = pneg %p189
      %p392 = pneg %p213
      %p393 = pneg %p210
      %p394 = pneg %p234
      %p395 = pneg %p231
      %p396 = pneg %p255
      %p397 = pneg %p252
      %p398 = pneg %p281
      %p399 = pneg %p278
      %p400 = scmp.lt.s32.totalorder %s24, 1
      %s401 = scalar_select %p400, %s24, 1
      %s402 = smul.addr %s401, 4
      %s403 = scalar_lea.vmem %s11, %s402
      %p404 = pneg %p307
      %p405 = pneg %p304
      %p406 = scmp.lt.s32.totalorder %s24, 1
      %s407 = scalar_select %p406, %s24, 1
      %s408 = smul.addr %s407, 4
      %s409 = scalar_lea.vmem %s12, %s408
      %p410 = scmp.lt.s32.totalorder %s24, 1
      %s411 = scalar_select %p410, %s24, 1
      %s412 = smul.addr %s411, 4
      %s413 = smul.addr %s412, 4
      %s414 = scalar_lea.vmem %s0, %s413
      %p415 = scmp.lt.s32.totalorder %s24, 1
      %s416 = scalar_select %p415, %s24, 1
      %s417 = smul.addr %s416, 4
      %s418 = scalar_lea.vmem %s11, %s417
      %p419 = scmp.lt.s32.totalorder %s24, 1
      %s420 = scalar_select %p419, %s24, 1
      %s421 = smul.addr %s420, 4
      %s422 = scalar_lea.vmem %s12, %s421
      %v423 = vld [vmem:[%s414] sm:$0xf]
      %s424 = scalar_lea.vmem %s414, 4
      %v425 = vld [vmem:[%s424] sm:$0xf]
      %s426 = scalar_lea.vmem %s414, 8
      %v427 = vld [vmem:[%s426] sm:$0xf]
      %s428 = scalar_lea.vmem %s414, 12
      %v429 = vld [vmem:[%s428] sm:$0xf]
      %v430 = vld [vmem:[%s1] sm:$0xff]
      %v431 = vld [vmem:[%s1 + $0x8] sm:$0x1]
      %v432 = vld [vmem:[%s2] sm:$0x1]
      %v433 = vlaneseq
      %v434 = vshrl.u32 %v433, 7
      %vm435 = vcmp.lt.s32.totalorder %v434, 0
      %v436 = vsub.s32 0, %v434
      %v437 = vsel %vm435, %v436, %v434
      %v438 = vshrl.u32 %v437, 1
      %v439 = vand.u32 %v437, 1
      %v440 = vsub.s32 0, %v439
      %v441 = vsel %vm435, %v440, %v439
      %vm442 = vcmp.ne.s32.totalorder %v441, 0
      %vm443 = vcmp.lt.s32.totalorder %v441, 0
      %vm444 = vmand %vm443, %vm442
      %v445 = vadd.s32 %v441, 2
      %v446 = vsel %vm444, %v445, %v441
      %v448 = vrot.slane %v429, 5
      %vm450 = vcmask 1042432
      %v451 = vsel %vm450, 0.0, %v448
      %v452 = vlaneseq
      %v453 = vshrl.u32 %v452, 7
      %v454 = vsub.s32 0, %v453
      %v455 = vrot.slane %v430, %v454
      %v456 = vmul.f32 %v451, %v455
      %vm457 = vcmp.ge.s32.totalorder %v446, 1
      %v458 = vsel %vm457, 1, 0
      %vm459 = vcmp.eq.s32.totalorder %v458, 1
      %v460 = vsel %vm459, %v456, 0.0
      %v462 = vrot.slane %v427, 6
      %vm464 = vcmask 1041408
      %v465 = vsel %vm464, 0.0, %v462
      %v466 = vlaneseq
      %v467 = vshrl.u32 %v466, 7
      %v468 = vsub.s32 1, %v467
      %v469 = vrot.slane %v430, %v468
      %v470 = vmul.f32 %v465, %v469
      %v471 = vrot.slane %v429, 6
      %v473 = vsel %vm464, 0.0, %v471
      %v474 = vlaneseq
      %v475 = vshrl.u32 %v474, 7
      %v476 = vsub.s32 2, %v475
      %v477 = vrot.slane %v430, %v476
      %v478 = vmul.f32 %v473, %v477
      %v480 = vrot.slane %v425, 7
      %vm482 = vcmask 1040384
      %v483 = vsel %vm482, 0.0, %v480
      %v484 = vlaneseq
      %v485 = vshrl.u32 %v484, 7
      %v486 = vsub.s32 3, %v485
      %v487 = vrot.slane %v430, %v486
      %v488 = vmul.f32 %v483, %v487
      %v489 = vsel %vm459, %v488, 0.0
      %v490 = vlaneseq
      %v491 = vshrl.u32 %v490, 7
      %v492 = vsub.s32 4, %v491
      %v493 = vrot.slane %v430, %v492
      %v494 = vmul.f32 %v423, %v493
      %v495 = vlaneseq
      %v496 = vshrl.u32 %v495, 7
      %v497 = vsub.s32 5, %v496
      %v498 = vrot.slane %v430, %v497
      %v499 = vmul.f32 %v425, %v498
      %v500 = vrot.slane %v429, 7
      %v502 = vsel %vm482, 0.0, %v500
      %v503 = vlaneseq
      %v504 = vshrl.u32 %v503, 7
      %v505 = vsub.s32 6, %v504
      %v506 = vrot.slane %v430, %v505
      %v507 = vmul.f32 %v502, %v506
      %v508 = vsel %vm459, %v507, 0.0
      %v509 = vlaneseq
      %v510 = vshrl.u32 %v509, 7
      %v511 = vsub.s32 7, %v510
      %v512 = vrot.slane %v430, %v511
      %v513 = vmul.f32 %v427, %v512
      %v514 = vlaneseq
      %v515 = vshrl.u32 %v514, 7
      %v516 = vsub.s32 0, %v515
      %v517 = vrot.slane %v431, %v516
      %v518 = vmul.f32 %v429, %v517
      %v519 = vadd.f32 %v460, %v470
      %v520 = vadd.f32 %v478, %v489
      %v521 = vadd.f32 %v494, %v499
      %v522 = vadd.f32 %v508, %v513
      %v523 = vadd.f32 %v519, %v520
      %v524 = vadd.f32 %v521, %v522
      %v525 = vadd.f32 %v523, %v524
      %v526 = vadd.f32 %v525, %v518
      %v528 = vlaneseq
      %v529 = vshrl.u32 %v528, 7
      %v530 = vsub.s32 0, %v529
      %v531 = vrot.slane %v432, %v530
      %v533 = vadd.f32 %v526, %v531
      %v534 = vld [vmem:[%s3] sm:$0xff]
      %v535 = vld [vmem:[%s3 + $0x8] sm:$0xff]
      %v536 = vld [vmem:[%s4] sm:$0x1]
      %v538 = vlaneseq
      %v539 = vshrl.u32 %v538, 7
      %v540 = vsub.s32 0, %v539
      %v541 = vrot.slane %v536, %v540
      %vm543 = vcmask 130048
      %v545 = vsel %vm543, %v533, 0
      %547 = vmatprep.subr.mxu0 0.0
      %548 = vmatpush1.msra.mxu0 %v534
      %549 = vmatprep.subr.mxu0 0.0
      %550 = vmatpush1.msra.mxu0 %v535
      %551 = vmatprep.subr.mxu0 0.0
      %552 = vmatpush1.msra.mxu0 0.0
      %553 = vmatprep.subr.mxu0 0.0
      %554 = vmatpush1.msra.mxu0 0.0
      %555 = vmatprep.subr.mxu0 0.0
      %556 = vmatpush1.msra.mxu0 0.0
      %557 = vmatprep.subr.mxu0 0.0
      %558 = vmatpush1.msra.mxu0 0.0
      %559 = vmatprep.subr.mxu0 0.0
      %560 = vmatpush1.msra.mxu0 0.0
      %561 = vmatprep.subr.mxu0 0.0
      %562 = vmatpush1.msra.mxu0 0.0
      %563 = vmatprep.subr.mxu0 0.0
      %564 = vmatpush1.msra.mxu0 0.0
      %565 = vmatprep.subr.mxu0 0.0
      %566 = vmatpush1.msra.mxu0 0.0
      %567 = vmatprep.subr.mxu0 0.0
      %568 = vmatpush1.msra.mxu0 0.0
      %569 = vmatprep.subr.mxu0 0.0
      %570 = vmatpush1.msra.mxu0 0.0
      %571 = vmatprep.subr.mxu0 0.0
      %572 = vmatpush1.msra.mxu0 0.0
      %573 = vmatprep.subr.mxu0 0.0
      %574 = vmatpush1.msra.mxu0 0.0
      %575 = vmatprep.subr.mxu0 0.0
      %576 = vmatpush1.msra.mxu0 0.0
      %577 = vmatprep.subr.mxu0 0.0
      %578 = vmatpush1.msra.mxu0 0.0
      %579 = vmatprep.subr.mxu0 0.0
      %580 = vmatpush1.msra.mxu0 0.0
      %581 = vmatprep.subr.mxu0 0.0
      %582 = vmatpush1.msra.mxu0 0.0
      %583 = vmatprep.subr.mxu0 0.0
      %584 = vmatpush1.msra.mxu0 0.0
      %585 = vmatprep.subr.mxu0 0.0
      %586 = vmatpush1.msra.mxu0 0.0
      %587 = vmatprep.subr.mxu0 0.0
      %588 = vmatpush1.msra.mxu0 0.0
      %589 = vmatprep.subr.mxu0 0.0
      %590 = vmatpush1.msra.mxu0 0.0
      %591 = vmatprep.subr.mxu0 0.0
      %592 = vmatpush1.msra.mxu0 0.0
      %593 = vmatprep.subr.mxu0 0.0
      %594 = vmatpush1.msra.mxu0 0.0
      %595 = vmatprep.subr.mxu0 0.0
      %596 = vmatpush1.msra.mxu0 0.0
      %597 = vmatprep.subr.mxu0 0.0
      %598 = vmatpush1.msra.mxu0 0.0
      %599 = vmatprep.subr.mxu0 0.0
      %600 = vmatpush1.msra.mxu0 0.0
      %601 = vmatprep.subr.mxu0 0.0
      %602 = vmatpush1.msra.mxu0 0.0
      %603 = vmatprep.subr.mxu0 0.0
      %604 = vmatpush1.msra.mxu0 0.0
      %605 = vmatprep.subr.mxu0 0.0
      %606 = vmatpush1.msra.mxu0 0.0
      %607 = vmatprep.subr.mxu0 0.0
      %608 = vmatpush1.msra.mxu0 0.0
      %609 = vmatprep.subr.mxu0 0.0
      %610 = vmatpush1.msra.mxu0 0.0
      %611 = vmatprep.mubr.f32.mxu0 0.0
      %612 = vmatmul.mubr.f32.gmra.mrb[0].mxu0 %v545
      %v613 = vpop.f32.mrb[0].mxu0
      %v614 = vadd.f32 %v541, %v613
      %v615 = vpop.f32.mrb[0].mxu0
      %616 = vdwg.mxu0
      %v617 = vmax.f32 %v614, 0.0
      %vm618 = vcmask 125952
      %619 = vst.msk [vmem:[%s418] sm:$0xf] %vm618, %v617
      %v620 = vld [vmem:[%s5] sm:$0xff]
      %v621 = vld [vmem:[%s5 + $0x8] sm:$0xff]
      %v622 = vld [vmem:[%s6] sm:$0x1]
      %v624 = vlaneseq
      %v625 = vshrl.u32 %v624, 7
      %v626 = vsub.s32 0, %v625
      %v627 = vrot.slane %v622, %v626
      %v630 = vsel %vm543, %v423, 0
      %632 = vmatprep.subr.mxu0 0.0
      %633 = vmatpush1.msra.mxu0 %v620
      %634 = vmatprep.subr.mxu0 0.0
      %635 = vmatpush1.msra.mxu0 %v621
      %636 = vmatprep.subr.mxu0 0.0
      %637 = vmatpush1.msra.mxu0 0.0
      %638 = vmatprep.subr.mxu0 0.0
      %639 = vmatpush1.msra.mxu0 0.0
      %640 = vmatprep.subr.mxu0 0.0
      %641 = vmatpush1.msra.mxu0 0.0
      %642 = vmatprep.subr.mxu0 0.0
      %643 = vmatpush1.msra.mxu0 0.0
      %644 = vmatprep.subr.mxu0 0.0
      %645 = vmatpush1.msra.mxu0 0.0
      %646 = vmatprep.subr.mxu0 0.0
      %647 = vmatpush1.msra.mxu0 0.0
      %648 = vmatprep.subr.mxu0 0.0
      %649 = vmatpush1.msra.mxu0 0.0
      %650 = vmatprep.subr.mxu0 0.0
      %651 = vmatpush1.msra.mxu0 0.0
      %652 = vmatprep.subr.mxu0 0.0
      %653 = vmatpush1.msra.mxu0 0.0
      %654 = vmatprep.subr.mxu0 0.0
      %655 = vmatpush1.msra.mxu0 0.0
      %656 = vmatprep.subr.mxu0 0.0
      %657 = vmatpush1.msra.mxu0 0.0
      %658 = vmatprep.subr.mxu0 0.0
      %659 = vmatpush1.msra.mxu0 0.0
      %660 = vmatprep.subr.mxu0 0.0
      %661 = vmatpush1.msra.mxu0 0.0
      %662 = vmatprep.subr.mxu0 0.0
      %663 = vmatpush1.msra.mxu0 0.0
      %664 = vmatprep.subr.mxu0 0.0
      %665 = vmatpush1.msra.mxu0 0.0
      %666 = vmatprep.subr.mxu0 0.0
      %667 = vmatpush1.msra.mxu0 0.0
      %668 = vmatprep.subr.mxu0 0.0
      %669 = vmatpush1.msra.mxu0 0.0
      %670 = vmatprep.subr.mxu0 0.0
      %671 = vmatpush1.msra.mxu0 0.0
      %672 = vmatprep.subr.mxu0 0.0
      %673 = vmatpush1.msra.mxu0 0.0
      %674 = vmatprep.subr.mxu0 0.0
      %675 = vmatpush1.msra.mxu0 0.0
      %676 = vmatprep.subr.mxu0 0.0
      %677 = vmatpush1.msra.mxu0 0.0
      %678 = vmatprep.subr.mxu0 0.0
      %679 = vmatpush1.msra.mxu0 0.0
      %680 = vmatprep.subr.mxu0 0.0
      %681 = vmatpush1.msra.mxu0 0.0
      %682 = vmatprep.subr.mxu0 0.0
      %683 = vmatpush1.msra.mxu0 0.0
      %684 = vmatprep.subr.mxu0 0.0
      %685 = vmatpush1.msra.mxu0 0.0
      %686 = vmatprep.subr.mxu0 0.0
      %687 = vmatpush1.msra.mxu0 0.0
      %688 = vmatprep.subr.mxu0 0.0
      %689 = vmatpush1.msra.mxu0 0.0
      %690 = vmatprep.subr.mxu0 0.0
      %691 = vmatpush1.msra.mxu0 0.0
      %692 = vmatprep.subr.mxu0 0.0
      %693 = vmatpush1.msra.mxu0 0.0
      %694 = vmatprep.subr.mxu0 0.0
      %695 = vmatpush1.msra.mxu0 0.0
      %696 = vmatprep.mubr.f32.mxu0 0.0
      %697 = vmatmul.mubr.f32.gmra.mrb[0].mxu0 %v630
      %v698 = vpop.f32.mrb[0].mxu0
      %v699 = vadd.f32 %v627, %v698
      %v700 = vpop.f32.mrb[0].mxu0
      %701 = vdwg.mxu0
      %v702 = vmax.f32 %v699, 0.0
      %v703 = vsel %vm543, %v425, 0
      %705 = vmatprep.subr.mxu0 0.0
      %706 = vmatpush1.msra.mxu0 %v620
      %707 = vmatprep.subr.mxu0 0.0
      %708 = vmatpush1.msra.mxu0 %v621
      %709 = vmatprep.subr.mxu0 0.0
      %710 = vmatpush1.msra.mxu0 0.0
      %711 = vmatprep.subr.mxu0 0.0
      %712 = vmatpush1.msra.mxu0 0.0
      %713 = vmatprep.subr.mxu0 0.0
      %714 = vmatpush1.msra.mxu0 0.0
      %715 = vmatprep.subr.mxu0 0.0
      %716 = vmatpush1.msra.mxu0 0.0
      %717 = vmatprep.subr.mxu0 0.0
      %718 = vmatpush1.msra.mxu0 0.0
      %719 = vmatprep.subr.mxu0 0.0
      %720 = vmatpush1.msra.mxu0 0.0
      %721 = vmatprep.subr.mxu0 0.0
      %722 = vmatpush1.msra.mxu0 0.0
      %723 = vmatprep.subr.mxu0 0.0
      %724 = vmatpush1.msra.mxu0 0.0
      %725 = vmatprep.subr.mxu0 0.0
      %726 = vmatpush1.msra.mxu0 0.0
      %727 = vmatprep.subr.mxu0 0.0
      %728 = vmatpush1.msra.mxu0 0.0
      %729 = vmatprep.subr.mxu0 0.0
      %730 = vmatpush1.msra.mxu0 0.0
      %731 = vmatprep.subr.mxu0 0.0
      %732 = vmatpush1.msra.mxu0 0.0
      %733 = vmatprep.subr.mxu0 0.0
      %734 = vmatpush1.msra.mxu0 0.0
      %735 = vmatprep.subr.mxu0 0.0
      %736 = vmatpush1.msra.mxu0 0.0
      %737 = vmatprep.subr.mxu0 0.0
      %738 = vmatpush1.msra.mxu0 0.0
      %739 = vmatprep.subr.mxu0 0.0
      %740 = vmatpush1.msra.mxu0 0.0
      %741 = vmatprep.subr.mxu0 0.0
      %742 = vmatpush1.msra.mxu0 0.0
      %743 = vmatprep.subr.mxu0 0.0
      %744 = vmatpush1.msra.mxu0 0.0
      %745 = vmatprep.subr.mxu0 0.0
      %746 = vmatpush1.msra.mxu0 0.0
      %747 = vmatprep.subr.mxu0 0.0
      %748 = vmatpush1.msra.mxu0 0.0
      %749 = vmatprep.subr.mxu0 0.0
      %750 = vmatpush1.msra.mxu0 0.0
      %751 = vmatprep.subr.mxu0 0.0
      %752 = vmatpush1.msra.mxu0 0.0
      %753 = vmatprep.subr.mxu0 0.0
      %754 = vmatpush1.msra.mxu0 0.0
      %755 = vmatprep.subr.mxu0 0.0
      %756 = vmatpush1.msra.mxu0 0.0
      %757 = vmatprep.subr.mxu0 0.0
      %758 = vmatpush1.msra.mxu0 0.0
      %759 = vmatprep.subr.mxu0 0.0
      %760 = vmatpush1.msra.mxu0 0.0
      %761 = vmatprep.subr.mxu0 0.0
      %762 = vmatpush1.msra.mxu0 0.0
      %763 = vmatprep.subr.mxu0 0.0
      %764 = vmatpush1.msra.mxu0 0.0
      %765 = vmatprep.subr.mxu0 0.0
      %766 = vmatpush1.msra.mxu0 0.0
      %767 = vmatprep.subr.mxu0 0.0
      %768 = vmatpush1.msra.mxu0 0.0
      %769 = vmatprep.mubr.f32.mxu0 0.0
      %770 = vmatmul.mubr.f32.gmra.mrb[0].mxu0 %v703
      %v771 = vpop.f32.mrb[0].mxu0
      %v772 = vadd.f32 %v627, %v771
      %v773 = vpop.f32.mrb[0].mxu0
      %774 = vdwg.mxu0
      %v775 = vmax.f32 %v772, 0.0
      %v776 = vsel %vm543, %v427, 0
      %778 = vmatprep.subr.mxu0 0.0
      %779 = vmatpush1.msra.mxu0 %v620
      %780 = vmatprep.subr.mxu0 0.0
      %781 = vmatpush1.msra.mxu0 %v621
      %782 = vmatprep.subr.mxu0 0.0
      %783 = vmatpush1.msra.mxu0 0.0
      %784 = vmatprep.subr.mxu0 0.0
      %785 = vmatpush1.msra.mxu0 0.0
      %786 = vmatprep.subr.mxu0 0.0
      %787 = vmatpush1.msra.mxu0 0.0
      %788 = vmatprep.subr.mxu0 0.0
      %789 = vmatpush1.msra.mxu0 0.0
      %790 = vmatprep.subr.mxu0 0.0
      %791 = vmatpush1.msra.mxu0 0.0
      %792 = vmatprep.subr.mxu0 0.0
      %793 = vmatpush1.msra.mxu0 0.0
      %794 = vmatprep.subr.mxu0 0.0
      %795 = vmatpush1.msra.mxu0 0.0
      %796 = vmatprep.subr.mxu0 0.0
      %797 = vmatpush1.msra.mxu0 0.0
      %798 = vmatprep.subr.mxu0 0.0
      %799 = vmatpush1.msra.mxu0 0.0
      %800 = vmatprep.subr.mxu0 0.0
      %801 = vmatpush1.msra.mxu0 0.0
      %802 = vmatprep.subr.mxu0 0.0
      %803 = vmatpush1.msra.mxu0 0.0
      %804 = vmatprep.subr.mxu0 0.0
      %805 = vmatpush1.msra.mxu0 0.0
      %806 = vmatprep.subr.mxu0 0.0
      %807 = vmatpush1.msra.mxu0 0.0
      %808 = vmatprep.subr.mxu0 0.0
      %809 = vmatpush1.msra.mxu0 0.0
      %810 = vmatprep.subr.mxu0 0.0
      %811 = vmatpush1.msra.mxu0 0.0
      %812 = vmatprep.subr.mxu0 0.0
      %813 = vmatpush1.msra.mxu0 0.0
      %814 = vmatprep.subr.mxu0 0.0
      %815 = vmatpush1.msra.mxu0 0.0
      %816 = vmatprep.subr.mxu0 0.0
      %817 = vmatpush1.msra.mxu0 0.0
      %818 = vmatprep.subr.mxu0 0.0
      %819 = vmatpush1.msra.mxu0 0.0
      %820 = vmatprep.subr.mxu0 0.0
      %821 = vmatpush1.msra.mxu0 0.0
      %822 = vmatprep.subr.mxu0 0.0
      %823 = vmatpush1.msra.mxu0 0.0
      %824 = vmatprep.subr.mxu0 0.0
      %825 = vmatpush1.msra.mxu0 0.0
      %826 = vmatprep.subr.mxu0 0.0
      %827 = vmatpush1.msra.mxu0 0.0
      %828 = vmatprep.subr.mxu0 0.0
      %829 = vmatpush1.msra.mxu0 0.0
      %830 = vmatprep.subr.mxu0 0.0
      %831 = vmatpush1.msra.mxu0 0.0
      %832 = vmatprep.subr.mxu0 0.0
      %833 = vmatpush1.msra.mxu0 0.0
      %834 = vmatprep.subr.mxu0 0.0
      %835 = vmatpush1.msra.mxu0 0.0
      %836 = vmatprep.subr.mxu0 0.0
      %837 = vmatpush1.msra.mxu0 0.0
      %838 = vmatprep.subr.mxu0 0.0
      %839 = vmatpush1.msra.mxu0 0.0
      %840 = vmatprep.subr.mxu0 0.0
      %841 = vmatpush1.msra.mxu0 0.0
      %842 = vmatprep.mubr.f32.mxu0 0.0
      %843 = vmatmul.mubr.f32.gmra.mrb[0].mxu0 %v776
      %v844 = vpop.f32.mrb[0].mxu0
      %v845 = vadd.f32 %v627, %v844
      %v846 = vpop.f32.mrb[0].mxu0
      %847 = vdwg.mxu0
      %v848 = vmax.f32 %v845, 0.0
      %v849 = vsel %vm543, %v429, 0
      %851 = vmatprep.subr.mxu0 0.0
      %852 = vmatpush1.msra.mxu0 %v620
      %853 = vmatprep.subr.mxu0 0.0
      %854 = vmatpush1.msra.mxu0 %v621
      %855 = vmatprep.subr.mxu0 0.0
      %856 = vmatpush1.msra.mxu0 0.0
      %857 = vmatprep.subr.mxu0 0.0
      %858 = vmatpush1.msra.mxu0 0.0
      %859 = vmatprep.subr.mxu0 0.0
      %860 = vmatpush1.msra.mxu0 0.0
      %861 = vmatprep.subr.mxu0 0.0
      %862 = vmatpush1.msra.mxu0 0.0
      %863 = vmatprep.subr.mxu0 0.0
      %864 = vmatpush1.msra.mxu0 0.0
      %865 = vmatprep.subr.mxu0 0.0
      %866 = vmatpush1.msra.mxu0 0.0
      %867 = vmatprep.subr.mxu0 0.0
      %868 = vmatpush1.msra.mxu0 0.0
      %869 = vmatprep.subr.mxu0 0.0
      %870 = vmatpush1.msra.mxu0 0.0
      %871 = vmatprep.subr.mxu0 0.0
      %872 = vmatpush1.msra.mxu0 0.0
      %873 = vmatprep.subr.mxu0 0.0
      %874 = vmatpush1.msra.mxu0 0.0
      %875 = vmatprep.subr.mxu0 0.0
      %876 = vmatpush1.msra.mxu0 0.0
      %877 = vmatprep.subr.mxu0 0.0
      %878 = vmatpush1.msra.mxu0 0.0
      %879 = vmatprep.subr.mxu0 0.0
      %880 = vmatpush1.msra.mxu0 0.0
      %881 = vmatprep.subr.mxu0 0.0
      %882 = vmatpush1.msra.mxu0 0.0
      %883 = vmatprep.subr.mxu0 0.0
      %884 = vmatpush1.msra.mxu0 0.0
      %885 = vmatprep.subr.mxu0 0.0
      %886 = vmatpush1.msra.mxu0 0.0
      %887 = vmatprep.subr.mxu0 0.0
      %888 = vmatpush1.msra.mxu0 0.0
      %889 = vmatprep.subr.mxu0 0.0
      %890 = vmatpush1.msra.mxu0 0.0
      %891 = vmatprep.subr.mxu0 0.0
      %892 = vmatpush1.msra.mxu0 0.0
      %893 = vmatprep.subr.mxu0 0.0
      %894 = vmatpush1.msra.mxu0 0.0
      %895 = vmatprep.subr.mxu0 0.0
      %896 = vmatpush1.msra.mxu0 0.0
      %897 = vmatprep.subr.mxu0 0.0
      %898 = vmatpush1.msra.mxu0 0.0
      %899 = vmatprep.subr.mxu0 0.0
      %900 = vmatpush1.msra.mxu0 0.0
      %901 = vmatprep.subr.mxu0 0.0
      %902 = vmatpush1.msra.mxu0 0.0
      %903 = vmatprep.subr.mxu0 0.0
      %904 = vmatpush1.msra.mxu0 0.0
      %905 = vmatprep.subr.mxu0 0.0
      %906 = vmatpush1.msra.mxu0 0.0
      %907 = vmatprep.subr.mxu0 0.0
      %908 = vmatpush1.msra.mxu0 0.0
      %909 = vmatprep.subr.mxu0 0.0
      %910 = vmatpush1.msra.mxu0 0.0
      %911 = vmatprep.subr.mxu0 0.0
      %912 = vmatpush1.msra.mxu0 0.0
      %913 = vmatprep.subr.mxu0 0.0
      %914 = vmatpush1.msra.mxu0 0.0
      %915 = vmatprep.mubr.f32.mxu0 0.0
      %916 = vmatmul.mubr.f32.gmra.mrb[0].mxu0 %v849
      %v917 = vpop.f32.mrb[0].mxu0
      %v918 = vadd.f32 %v627, %v917
      %v919 = vpop.f32.mrb[0].mxu0
      %920 = vdwg.mxu0
      %v921 = vmax.f32 %v918, 0.0
      %v922 = vld [vmem:[%s7] sm:$0xff]
      %v923 = vld [vmem:[%s7 + $0x8] sm:$0x1]
      %v924 = vld [vmem:[%s8] sm:$0x1]
      %v926 = vrot.slane %v921, 5
      %v928 = vsel %vm450, 0.0, %v926
      %v929 = vlaneseq
      %v930 = vshrl.u32 %v929, 7
      %v931 = vsub.s32 0, %v930
      %v932 = vrot.slane %v922, %v931
      %v933 = vmul.f32 %v928, %v932
      %v934 = vsel %vm459, %v933, 0.0
      %v936 = vrot.slane %v848, 6
      %v938 = vsel %vm464, 0.0, %v936
      %v939 = vlaneseq
      %v940 = vshrl.u32 %v939, 7
      %v941 = vsub.s32 1, %v940
      %v942 = vrot.slane %v922, %v941
      %v943 = vmul.f32 %v938, %v942
      %v944 = vrot.slane %v921, 6
      %v946 = vsel %vm464, 0.0, %v944
      %v947 = vlaneseq
      %v948 = vshrl.u32 %v947, 7
      %v949 = vsub.s32 2, %v948
      %v950 = vrot.slane %v922, %v949
      %v951 = vmul.f32 %v946, %v950
      %v953 = vrot.slane %v775, 7
      %v955 = vsel %vm482, 0.0, %v953
      %v956 = vlaneseq
      %v957 = vshrl.u32 %v956, 7
      %v958 = vsub.s32 3, %v957
      %v959 = vrot.slane %v922, %v958
      %v960 = vmul.f32 %v955, %v959
      %v961 = vsel %vm459, %v960, 0.0
      %v962 = vlaneseq
      %v963 = vshrl.u32 %v962, 7
      %v964 = vsub.s32 4, %v963
      %v965 = vrot.slane %v922, %v964
      %v966 = vmul.f32 %v702, %v965
      %v967 = vlaneseq
      %v968 = vshrl.u32 %v967, 7
      %v969 = vsub.s32 5, %v968
      %v970 = vrot.slane %v922, %v969
      %v971 = vmul.f32 %v775, %v970
      %v972 = vrot.slane %v921, 7
      %v974 = vsel %vm482, 0.0, %v972
      %v975 = vlaneseq
      %v976 = vshrl.u32 %v975, 7
      %v977 = vsub.s32 6, %v976
      %v978 = vrot.slane %v922, %v977
      %v979 = vmul.f32 %v974, %v978
      %v980 = vsel %vm459, %v979, 0.0
      %v981 = vlaneseq
      %v982 = vshrl.u32 %v981, 7
      %v983 = vsub.s32 7, %v982
      %v984 = vrot.slane %v922, %v983
      %v985 = vmul.f32 %v848, %v984
      %v986 = vlaneseq
      %v987 = vshrl.u32 %v986, 7
      %v988 = vsub.s32 0, %v987
      %v989 = vrot.slane %v923, %v988
      %v990 = vmul.f32 %v921, %v989
      %v991 = vadd.f32 %v934, %v943
      %v992 = vadd.f32 %v951, %v961
      %v993 = vadd.f32 %v966, %v971
      %v994 = vadd.f32 %v980, %v985
      %v995 = vadd.f32 %v991, %v992
      %v996 = vadd.f32 %v993, %v994
      %v997 = vadd.f32 %v995, %v996
      %v998 = vadd.f32 %v997, %v990
      %v1000 = vlaneseq
      %v1001 = vshrl.u32 %v1000, 7
      %v1002 = vsub.s32 0, %v1001
      %v1003 = vrot.slane %v924, %v1002
      %v1005 = vadd.f32 %v998, %v1003
      %v1006 = vld [vmem:[%s9] sm:$0xff]
      %v1007 = vld [vmem:[%s9 + $0x8] sm:$0xff]
      %v1008 = vld [vmem:[%s10] sm:$0x1]
      %v1010 = vlaneseq
      %v1011 = vshrl.u32 %v1010, 7
      %v1012 = vsub.s32 0, %v1011
      %v1013 = vrot.slane %v1008, %v1012
      %v1016 = vsel %vm543, %v1005, 0
      %1018 = vmatprep.subr.mxu0 0.0
      %1019 = vmatpush1.msra.mxu0 %v1006
      %1020 = vmatprep.subr.mxu0 0.0
      %1021 = vmatpush1.msra.mxu0 %v1007
      %1022 = vmatprep.subr.mxu0 0.0
      %1023 = vmatpush1.msra.mxu0 0.0
      %1024 = vmatprep.subr.mxu0 0.0
      %1025 = vmatpush1.msra.mxu0 0.0
      %1026 = vmatprep.subr.mxu0 0.0
      %1027 = vmatpush1.msra.mxu0 0.0
      %1028 = vmatprep.subr.mxu0 0.0
      %1029 = vmatpush1.msra.mxu0 0.0
      %1030 = vmatprep.subr.mxu0 0.0
      %1031 = vmatpush1.msra.mxu0 0.0
      %1032 = vmatprep.subr.mxu0 0.0
      %1033 = vmatpush1.msra.mxu0 0.0
      %1034 = vmatprep.subr.mxu0 0.0
      %1035 = vmatpush1.msra.mxu0 0.0
      %1036 = vmatprep.subr.mxu0 0.0
      %1037 = vmatpush1.msra.mxu0 0.0
      %1038 = vmatprep.subr.mxu0 0.0
      %1039 = vmatpush1.msra.mxu0 0.0
      %1040 = vmatprep.subr.mxu0 0.0
      %1041 = vmatpush1.msra.mxu0 0.0
      %1042 = vmatprep.subr.mxu0 0.0
      %1043 = vmatpush1.msra.mxu0 0.0
      %1044 = vmatprep.subr.mxu0 0.0
      %1045 = vmatpush1.msra.mxu0 0.0
      %1046 = vmatprep.subr.mxu0 0.0
      %1047 = vmatpush1.msra.mxu0 0.0
      %1048 = vmatprep.subr.mxu0 0.0
      %1049 = vmatpush1.msra.mxu0 0.0
      %1050 = vmatprep.subr.mxu0 0.0
      %1051 = vmatpush1.msra.mxu0 0.0
      %1052 = vmatprep.subr.mxu0 0.0
      %1053 = vmatpush1.msra.mxu0 0.0
      %1054 = vmatprep.subr.mxu0 0.0
      %1055 = vmatpush1.msra.mxu0 0.0
      %1056 = vmatprep.subr.mxu0 0.0
      %1057 = vmatpush1.msra.mxu0 0.0
      %1058 = vmatprep.subr.mxu0 0.0
      %1059 = vmatpush1.msra.mxu0 0.0
      %1060 = vmatprep.subr.mxu0 0.0
      %1061 = vmatpush1.msra.mxu0 0.0
      %1062 = vmatprep.subr.mxu0 0.0
      %1063 = vmatpush1.msra.mxu0 0.0
      %1064 = vmatprep.subr.mxu0 0.0
      %1065 = vmatpush1.msra.mxu0 0.0
      %1066 = vmatprep.subr.mxu0 0.0
      %1067 = vmatpush1.msra.mxu0 0.0
      %1068 = vmatprep.subr.mxu0 0.0
      %1069 = vmatpush1.msra.mxu0 0.0
      %1070 = vmatprep.subr.mxu0 0.0
      %1071 = vmatpush1.msra.mxu0 0.0
      %1072 = vmatprep.subr.mxu0 0.0
      %1073 = vmatpush1.msra.mxu0 0.0
      %1074 = vmatprep.subr.mxu0 0.0
      %1075 = vmatpush1.msra.mxu0 0.0
      %1076 = vmatprep.subr.mxu0 0.0
      %1077 = vmatpush1.msra.mxu0 0.0
      %1078 = vmatprep.subr.mxu0 0.0
      %1079 = vmatpush1.msra.mxu0 0.0
      %1080 = vmatprep.subr.mxu0 0.0
      %1081 = vmatpush1.msra.mxu0 0.0
      %1082 = vmatprep.mubr.f32.mxu0 0.0
      %1083 = vmatmul.mubr.f32.gmra.mrb[0].mxu0 %v1016
      %v1084 = vpop.f32.mrb[0].mxu0
      %v1085 = vadd.f32 %v1013, %v1084
      %v1086 = vpop.f32.mrb[0].mxu0
      %1087 = vdwg.mxu0
      %v1088 = vmax.f32 %v1085, 0.0
      %1089 = vst.msk [vmem:[%s422] sm:$0xf] %vm618, %v1088
      %p1090 = scmp.lt.s32.totalorder %s24, 1
      %s1091 = scalar_select %p1090, %s24, 1
      %s1092 = smul.addr %s1091, 4
      %s1093 = scalar_lea.vmem %s11, %s1092
      %p1094 = scmp.lt.s32.totalorder %s24, 1
      %s1095 = scalar_select %p1094, %s24, 1
      %s1096 = smul.addr %s1095, 4
      %s1097 = scalar_lea.vmem %s12, %s1096
      // Predicated region
      $region65: #{_lambda_.13} parent=63 // pred_check
        %p1098 = pneg %p278
      $region66: #{_lambda_.13} parent=63 // pred_check_branch
        %1100 = sbr.rel (%p1098) target = $region68
      $region67: #{_lambda_.13} parent=63 // pred_region
        _
      $region68: #{_lambda_.13} parent=63 // pred_fallthru
        _
      // Predicated region
      $region69: #{_lambda_.13} parent=63 // pred_check
        %p1101 = pneg %p304
      $region70: #{_lambda_.13} parent=63 // pred_check_branch
        %1103 = sbr.rel (%p1101) target = $region72
      $region71: #{_lambda_.13} parent=63 // pred_region
        _
      $region72: #{_lambda_.13} parent=63 // pred_fallthru
        _
    $region64: #{_lambda_.13} parent=5 // pred_fallthru
      _
    %p1104 = scmp.le.s32.totalorder 2, %s19
    // Predicated region
    $region73: #{_lambda_.13} parent=5 // pred_check
      %p1105 = pneg %p1104
    $region74: #{_lambda_.13} parent=5 // pred_check_branch
      %1107 = sbr.rel (%p1105) target = $region76
    $region75: #{_lambda_.13} parent=5 // pred_region
      %s1108 = ssub.s32 %s19, 2
      // Predicated region
      $region77: #{_lambda_.13} parent=75 // pred_check
        %p1109 = pneg %p284
      $region78: #{_lambda_.13} parent=75 // pred_check_branch
        %1111 = sbr.rel (%p1109) target = $region80
      $region79: #{_lambda_.13} parent=75 // pred_region
        %p1112 = scmp.lt.s32.totalorder %s25, 1
        %s1113 = scalar_select %p1112, %s25, 1
        %s1114 = smul.addr %s1113, 4
        %s1115 = scalar_lea.vmem %s11, %s1114
      $region80: #{_lambda_.13} parent=75 // pred_fallthru
        _
      // Predicated region
      $region81: #{_lambda_.13} parent=75 // pred_check
        %p1116 = pneg %p310
      $region82: #{_lambda_.13} parent=75 // pred_check_branch
        %1118 = sbr.rel (%p1116) target = $region84
      $region83: #{_lambda_.13} parent=75 // pred_region
        %p1119 = scmp.lt.s32.totalorder %s25, 1
        %s1120 = scalar_select %p1119, %s25, 1
        %s1121 = smul.addr %s1120, 4
        %s1122 = scalar_lea.vmem %s12, %s1121
      $region84: #{_lambda_.13} parent=75 // pred_fallthru
        _
    $region76: #{_lambda_.13} parent=5 // pred_fallthru
      _
  $region6: #{_lambda_.13} parent=0 // loop_footer
    %s23 = sadd.s32 1, %s19
  $region7: #{_lambda_.13} parent=0 // loop_footer_branch
    %18 = sbr.rel target = $region3
  $region8: #{_lambda_.13} parent=0 // loop_exit
    _

// kernel: _lambda_.16
$region0: #{_lambda_.16}
  #allocation0 [shape = 'u32[]', space=smem, size = 0x4, offset = 0x4, fixed_abs, tag = 'smem constant byte address 0x4 - core index']
  #allocation1 [shape = 'u32[144,128]{1,0:T(1,128)}', space=vmem, size = 0x12000, scoped, tag = 'internal scratch']
  %s0 = inlined_call_operand.vmem [shape: f32[2,1,32], index: 0, kind: input, shape index: {}]
  %s1 = inlined_call_operand.vmem [shape: f32[32,32], index: 1, kind: input, shape index: {}]
  %s2 = inlined_call_operand.vmem [shape: f32[1,32], index: 2, kind: input, shape index: {}, may-alias: {2,4,6}]
  %s3 = inlined_call_operand.vmem [shape: f32[9,32], index: 3, kind: input, shape index: {}]
  %s4 = inlined_call_operand.vmem [shape: f32[1,32], index: 4, kind: input, shape index: {}, may-alias: {2,4,6}]
  %s5 = inlined_call_operand.vmem [shape: f32[32,32], index: 5, kind: input, shape index: {}]
  %s6 = inlined_call_operand.vmem [shape: f32[1,32], index: 6, kind: input, shape index: {}, may-alias: {2,4,6}]
  %s7 = inlined_call_operand.vmem [shape: f32[2,1,32], index: 7, kind: output, shape index: {}]
  %s8 = sld [smem:[#allocation0]]
  $region61: #{_lambda_.16} parent=0
    _
  %s10 = ssub.s32 1, %s8
  %s11 = scalar_select 0, %s10, %s8
  loop: start=0, step=1, limit=4
  $region2: #{_lambda_.16} parent=0 // loop_pre_header
    _
  $region3: #{_lambda_.16} parent=0 // loop_header
    %s13 = sphi 0, %s17
    %p14 = scmp.ge.s32.totalorder %s13, 4
    %s23 = sphi 0, %s25
    %s26 = sphi 0, %s23
    %s27 = sphi 0, %s26
    %s43 = sphi 0, %s27
    %s47 = sphi 0, %s47
    %s49 = sphi 0, %s47
    %s50 = sphi 0, %s49
    %s64 = sphi 0, %s50
    %s68 = sphi 0, %s68
    %s70 = sphi 0, %s68
    %s71 = sphi 0, %s70
    %s85 = sphi 0, %s71
    %s89 = sphi 0, %s89
    %s91 = sphi 0, %s89
    %s92 = sphi 0, %s91
    %s106 = sphi 0, %s92
    %s110 = sphi 0, %s110
    %s112 = sphi 0, %s110
    %s113 = sphi 0, %s112
    %s127 = sphi 0, %s113
    %s131 = sphi 0, %s131
    %s133 = sphi 0, %s131
    %s134 = sphi 0, %s133
    %s148 = sphi 0, %s134
    %s152 = sphi 0, %s152
    %s154 = sphi 0, %s152
    %s155 = sphi 0, %s154
    %s169 = sphi 0, %s155
    %s175 = sphi 0, %s177
    %s178 = sphi 0, %s175
    %s179 = sphi 0, %s178
    %s195 = sphi 0, %s179
  $region4: #{_lambda_.16} parent=0 // loop_header_branch
    %16 = sbr.rel (%p14) target = $region8
  $region5: #{_lambda_.16} parent=0 // loop_body
    %s18 = ssub.s32 %s13, 1
    %s19 = ssub.s32 %s13, 2
    %s20 = sadd.s32 %s13, 1
    %s21 = ssub.s32 %s13, %s20
    %p22 = scmp.eq.s32.totalorder %s21, 0
    %s24 = sadd.s32 %s23, 1
    %s25 = scalar_select %p22, %s23, %s24
    %p28 = pneg %p22
    %p29 = scmp.eq.s32.totalorder %s13, 1
    %p30 = por %p28, %p29
    %p31 = scmp.ne.s32.totalorder %s23, %s26
    %p32 = scmp.eq.s32.totalorder %s13, 0
    %p33 = por %p31, %p32
    %p34 = scmp.ne.s32.totalorder %s23, %s26
    %p35 = scmp.eq.s32.totalorder %s18, 1
    %p36 = por %p34, %p35
    %p37 = scmp.ne.s32.totalorder %s26, %s27
    %p38 = scmp.eq.s32.totalorder %s18, 0
    %p39 = por %p37, %p38
    %p40 = scmp.ne.s32.totalorder %s26, %s27
    %p41 = scmp.eq.s32.totalorder %s19, 1
    %p42 = por %p40, %p41
    %p44 = scmp.ne.s32.totalorder %s27, %s43
    %p45 = scmp.eq.s32.totalorder %s19, 0
    %p46 = por %p44, %p45
    %s48 = sadd.s32 %s47, 1
    %p51 = scmp.eq.s32.totalorder %s13, 1
    %p52 = scmp.ne.s32.totalorder %s47, %s49
    %p53 = scmp.eq.s32.totalorder %s13, 0
    %p54 = por %p52, %p53
    %p55 = scmp.ne.s32.totalorder %s47, %s49
    %p56 = scmp.eq.s32.totalorder %s18, 1
    %p57 = por %p55, %p56
    %p58 = scmp.ne.s32.totalorder %s49, %s50
    %p59 = scmp.eq.s32.totalorder %s18, 0
    %p60 = por %p58, %p59
    %p61 = scmp.ne.s32.totalorder %s49, %s50
    %p62 = scmp.eq.s32.totalorder %s19, 1
    %p63 = por %p61, %p62
    %p65 = scmp.ne.s32.totalorder %s50, %s64
    %p66 = scmp.eq.s32.totalorder %s19, 0
    %p67 = por %p65, %p66
    %s69 = sadd.s32 %s68, 1
    %p72 = scmp.eq.s32.totalorder %s13, 1
    %p73 = scmp.ne.s32.totalorder %s68, %s70
    %p74 = scmp.eq.s32.totalorder %s13, 0
    %p75 = por %p73, %p74
    %p76 = scmp.ne.s32.totalorder %s68, %s70
    %p77 = scmp.eq.s32.totalorder %s18, 1
    %p78 = por %p76, %p77
    %p79 = scmp.ne.s32.totalorder %s70, %s71
    %p80 = scmp.eq.s32.totalorder %s18, 0
    %p81 = por %p79, %p80
    %p82 = scmp.ne.s32.totalorder %s70, %s71
    %p83 = scmp.eq.s32.totalorder %s19, 1
    %p84 = por %p82, %p83
    %p86 = scmp.ne.s32.totalorder %s71, %s85
    %p87 = scmp.eq.s32.totalorder %s19, 0
    %p88 = por %p86, %p87
    %s90 = sadd.s32 %s89, 1
    %p93 = scmp.eq.s32.totalorder %s13, 1
    %p94 = scmp.ne.s32.totalorder %s89, %s91
    %p95 = scmp.eq.s32.totalorder %s13, 0
    %p96 = por %p94, %p95
    %p97 = scmp.ne.s32.totalorder %s89, %s91
    %p98 = scmp.eq.s32.totalorder %s18, 1
    %p99 = por %p97, %p98
    %p100 = scmp.ne.s32.totalorder %s91, %s92
    %p101 = scmp.eq.s32.totalorder %s18, 0
    %p102 = por %p100, %p101
    %p103 = scmp.ne.s32.totalorder %s91, %s92
    %p104 = scmp.eq.s32.totalorder %s19, 1
    %p105 = por %p103, %p104
    %p107 = scmp.ne.s32.totalorder %s92, %s106
    %p108 = scmp.eq.s32.totalorder %s19, 0
    %p109 = por %p107, %p108
    %s111 = sadd.s32 %s110, 1
    %p114 = scmp.eq.s32.totalorder %s13, 1
    %p115 = scmp.ne.s32.totalorder %s110, %s112
    %p116 = scmp.eq.s32.totalorder %s13, 0
    %p117 = por %p115, %p116
    %p118 = scmp.ne.s32.totalorder %s110, %s112
    %p119 = scmp.eq.s32.totalorder %s18, 1
    %p120 = por %p118, %p119
    %p121 = scmp.ne.s32.totalorder %s112, %s113
    %p122 = scmp.eq.s32.totalorder %s18, 0
    %p123 = por %p121, %p122
    %p124 = scmp.ne.s32.totalorder %s112, %s113
    %p125 = scmp.eq.s32.totalorder %s19, 1
    %p126 = por %p124, %p125
    %p128 = scmp.ne.s32.totalorder %s113, %s127
    %p129 = scmp.eq.s32.totalorder %s19, 0
    %p130 = por %p128, %p129
    %s132 = sadd.s32 %s131, 1
    %p135 = scmp.eq.s32.totalorder %s13, 1
    %p136 = scmp.ne.s32.totalorder %s131, %s133
    %p137 = scmp.eq.s32.totalorder %s13, 0
    %p138 = por %p136, %p137
    %p139 = scmp.ne.s32.totalorder %s131, %s133
    %p140 = scmp.eq.s32.totalorder %s18, 1
    %p141 = por %p139, %p140
    %p142 = scmp.ne.s32.totalorder %s133, %s134
    %p143 = scmp.eq.s32.totalorder %s18, 0
    %p144 = por %p142, %p143
    %p145 = scmp.ne.s32.totalorder %s133, %s134
    %p146 = scmp.eq.s32.totalorder %s19, 1
    %p147 = por %p145, %p146
    %p149 = scmp.ne.s32.totalorder %s134, %s148
    %p150 = scmp.eq.s32.totalorder %s19, 0
    %p151 = por %p149, %p150
    %s153 = sadd.s32 %s152, 1
    %p156 = scmp.eq.s32.totalorder %s13, 1
    %p157 = scmp.ne.s32.totalorder %s152, %s154
    %p158 = scmp.eq.s32.totalorder %s13, 0
    %p159 = por %p157, %p158
    %p160 = scmp.ne.s32.totalorder %s152, %s154
    %p161 = scmp.eq.s32.totalorder %s18, 1
    %p162 = por %p160, %p161
    %p163 = scmp.ne.s32.totalorder %s154, %s155
    %p164 = scmp.eq.s32.totalorder %s18, 0
    %p165 = por %p163, %p164
    %p166 = scmp.ne.s32.totalorder %s154, %s155
    %p167 = scmp.eq.s32.totalorder %s19, 1
    %p168 = por %p166, %p167
    %p170 = scmp.ne.s32.totalorder %s155, %s169
    %p171 = scmp.eq.s32.totalorder %s19, 0
    %p172 = por %p170, %p171
    %s173 = ssub.s32 %s13, %s20
    %p174 = scmp.eq.s32.totalorder %s173, 0
    %s176 = sadd.s32 %s175, 1
    %s177 = scalar_select %p174, %s175, %s176
    %p180 = pneg %p174
    %p181 = scmp.eq.s32.totalorder %s13, 1
    %p182 = por %p180, %p181
    %p183 = scmp.ne.s32.totalorder %s175, %s178
    %p184 = scmp.eq.s32.totalorder %s13, 0
    %p185 = por %p183, %p184
    %p186 = scmp.ne.s32.totalorder %s175, %s178
    %p187 = scmp.eq.s32.totalorder %s18, 1
    %p188 = por %p186, %p187
    %p189 = scmp.ne.s32.totalorder %s178, %s179
    %p190 = scmp.eq.s32.totalorder %s18, 0
    %p191 = por %p189, %p190
    %p192 = scmp.ne.s32.totalorder %s178, %s179
    %p193 = scmp.eq.s32.totalorder %s19, 1
    %p194 = por %p192, %p193
    %p196 = scmp.ne.s32.totalorder %s179, %s195
    %p197 = scmp.eq.s32.totalorder %s19, 0
    %p198 = por %p196, %p197
    %p199 = scmp.le.s32.totalorder 1, %s13
    %p200 = scmp.lt.s32.totalorder %s13, 3
    %p201 = pnand %p199, %p200
    %p202 = pneg %p201
    // Predicated region
    $region9: #{_lambda_.16} parent=5 // pred_check
      _
    $region10: #{_lambda_.16} parent=5 // pred_check_branch
      %204 = sbr.rel (%p201) target = $region12
    $region11: #{_lambda_.16} parent=5 // pred_region
      %s205 = ssub.s32 %s13, 1
      // Predicated region
      $region13: #{_lambda_.16} parent=11 // pred_check
        %p206 = pneg %p60
      $region14: #{_lambda_.16} parent=11 // pred_check_branch
        %208 = sbr.rel (%p206) target = $region16
      $region15: #{_lambda_.16} parent=11 // pred_region
        _
      $region16: #{_lambda_.16} parent=11 // pred_fallthru
        _
      // Predicated region
      $region17: #{_lambda_.16} parent=11 // pred_check
        %p209 = pneg %p81
      $region18: #{_lambda_.16} parent=11 // pred_check_branch
        %211 = sbr.rel (%p209) target = $region20
      $region19: #{_lambda_.16} parent=11 // pred_region
        _
      $region20: #{_lambda_.16} parent=11 // pred_fallthru
        _
      // Predicated region
      $region21: #{_lambda_.16} parent=11 // pred_check
        %p212 = pneg %p102
      $region22: #{_lambda_.16} parent=11 // pred_check_branch
        %214 = sbr.rel (%p212) target = $region24
      $region23: #{_lambda_.16} parent=11 // pred_region
        _
      $region24: #{_lambda_.16} parent=11 // pred_fallthru
        _
      // Predicated region
      $region25: #{_lambda_.16} parent=11 // pred_check
        %p215 = pneg %p123
      $region26: #{_lambda_.16} parent=11 // pred_check_branch
        %217 = sbr.rel (%p215) target = $region28
      $region27: #{_lambda_.16} parent=11 // pred_region
        _
      $region28: #{_lambda_.16} parent=11 // pred_fallthru
        _
      // Predicated region
      $region29: #{_lambda_.16} parent=11 // pred_check
        %p218 = pneg %p144
      $region30: #{_lambda_.16} parent=11 // pred_check_branch
        %220 = sbr.rel (%p218) target = $region32
      $region31: #{_lambda_.16} parent=11 // pred_region
        _
      $region32: #{_lambda_.16} parent=11 // pred_fallthru
        _
      // Predicated region
      $region33: #{_lambda_.16} parent=11 // pred_check
        %p221 = pneg %p165
      $region34: #{_lambda_.16} parent=11 // pred_check_branch
        %223 = sbr.rel (%p221) target = $region36
      $region35: #{_lambda_.16} parent=11 // pred_region
        _
      $region36: #{_lambda_.16} parent=11 // pred_fallthru
        _
    $region12: #{_lambda_.16} parent=5 // pred_fallthru
      _
    %p224 = scmp.lt.s32.totalorder %s13, 2
    // Predicated region
    $region37: #{_lambda_.16} parent=5 // pred_check
      %p225 = pneg %p224
    $region38: #{_lambda_.16} parent=5 // pred_check_branch
      %227 = sbr.rel (%p225) target = $region40
    $region39: #{_lambda_.16} parent=5 // pred_region
      // Predicated region
      $region41: #{_lambda_.16} parent=39 // pred_check
        %p228 = pneg %p33
      $region42: #{_lambda_.16} parent=39 // pred_check_branch
        %230 = sbr.rel (%p228) target = $region44
      $region43: #{_lambda_.16} parent=39 // pred_region
        %p231 = scmp.lt.s32.totalorder %s13, 1
        %s232 = scalar_select %p231, %s13, 1
        %s233 = scalar_lea.vmem %s0, %s232
      $region44: #{_lambda_.16} parent=39 // pred_fallthru
        _
    $region40: #{_lambda_.16} parent=5 // pred_fallthru
      _
    %p234 = scmp.le.s32.totalorder 1, %s13
    %p235 = scmp.lt.s32.totalorder %s13, 3
    %p236 = pnand %p234, %p235
    %p237 = pneg %p236
    // Predicated region
    $region45: #{_lambda_.16} parent=5 // pred_check
      _
    $region46: #{_lambda_.16} parent=5 // pred_check_branch
      %239 = sbr.rel (%p236) target = $region48
    $region47: #{_lambda_.16} parent=5 // pred_region
      %s240 = ssub.s32 %s13, 1
      %p241 = scmp.lt.s32.totalorder %s18, 1
      %s242 = scalar_select %p241, %s18, 1
      %s243 = scalar_lea.vmem %s0, %s242
      %p244 = pneg %p39
      %p245 = pneg %p36
      %p246 = pneg %p60
      %p247 = pneg %p57
      %p248 = pneg %p81
      %p249 = pneg %p78
      %p250 = pneg %p102
      %p251 = pneg %p99
      %p252 = pneg %p123
      %p253 = pneg %p120
      %p254 = pneg %p144
      %p255 = pneg %p141
      %p256 = pneg %p165
      %p257 = pneg %p162
      %p258 = pneg %p191
      %p259 = pneg %p188
      %p260 = scmp.lt.s32.totalorder %s18, 1
      %s261 = scalar_select %p260, %s18, 1
      %s262 = scalar_lea.vmem %s7, %s261
      %p263 = scmp.lt.s32.totalorder %s18, 1
      %s264 = scalar_select %p263, %s18, 1
      %s265 = scalar_lea.vmem %s0, %s264
      %p266 = scmp.lt.s32.totalorder %s18, 1
      %s267 = scalar_select %p266, %s18, 1
      %s268 = scalar_lea.vmem %s7, %s267
      %v269 = vld [vmem:[%s265] sm:$0x1]
      %v270 = vld [vmem:[%s1] sm:$0xff]
      %v271 = vld [vmem:[%s1 + $0x8] sm:$0xff]
      %v272 = vld [vmem:[%s1 + $0x10] sm:$0xff]
      %v273 = vld [vmem:[%s1 + $0x18] sm:$0xff]
      %v274 = vld [vmem:[%s2] sm:$0x1]
      %vm275 = vcmask 261120
      %v277 = vsel %vm275, %v269, 0
      %279 = vmatprep.subr.mxu0 0.0
      %280 = vmatpush1.msra.mxu0 %v270
      %281 = vmatprep.subr.mxu0 0.0
      %282 = vmatpush1.msra.mxu0 %v271
      %283 = vmatprep.subr.mxu0 0.0
      %284 = vmatpush1.msra.mxu0 %v272
      %285 = vmatprep.subr.mxu0 0.0
      %286 = vmatpush1.msra.mxu0 %v273
      %287 = vmatprep.subr.mxu0 0.0
      %288 = vmatpush1.msra.mxu0 0.0
      %289 = vmatprep.subr.mxu0 0.0
      %290 = vmatpush1.msra.mxu0 0.0
      %291 = vmatprep.subr.mxu0 0.0
      %292 = vmatpush1.msra.mxu0 0.0
      %293 = vmatprep.subr.mxu0 0.0
      %294 = vmatpush1.msra.mxu0 0.0
      %295 = vmatprep.subr.mxu0 0.0
      %296 = vmatpush1.msra.mxu0 0.0
      %297 = vmatprep.subr.mxu0 0.0
      %298 = vmatpush1.msra.mxu0 0.0
      %299 = vmatprep.subr.mxu0 0.0
      %300 = vmatpush1.msra.mxu0 0.0
      %301 = vmatprep.subr.mxu0 0.0
      %302 = vmatpush1.msra.mxu0 0.0
      %303 = vmatprep.subr.mxu0 0.0
      %304 = vmatpush1.msra.mxu0 0.0
      %305 = vmatprep.subr.mxu0 0.0
      %306 = vmatpush1.msra.mxu0 0.0
      %307 = vmatprep.subr.mxu0 0.0
      %308 = vmatpush1.msra.mxu0 0.0
      %309 = vmatprep.subr.mxu0 0.0
      %310 = vmatpush1.msra.mxu0 0.0
      %311 = vmatprep.subr.mxu0 0.0
      %312 = vmatpush1.msra.mxu0 0.0
      %313 = vmatprep.subr.mxu0 0.0
      %314 = vmatpush1.msra.mxu0 0.0
      %315 = vmatprep.subr.mxu0 0.0
      %316 = vmatpush1.msra.mxu0 0.0
      %317 = vmatprep.subr.mxu0 0.0
      %318 = vmatpush1.msra.mxu0 0.0
      %319 = vmatprep.subr.mxu0 0.0
      %320 = vmatpush1.msra.mxu0 0.0
      %321 = vmatprep.subr.mxu0 0.0
      %322 = vmatpush1.msra.mxu0 0.0
      %323 = vmatprep.subr.mxu0 0.0
      %324 = vmatpush1.msra.mxu0 0.0
      %325 = vmatprep.subr.mxu0 0.0
      %326 = vmatpush1.msra.mxu0 0.0
      %327 = vmatprep.subr.mxu0 0.0
      %328 = vmatpush1.msra.mxu0 0.0
      %329 = vmatprep.subr.mxu0 0.0
      %330 = vmatpush1.msra.mxu0 0.0
      %331 = vmatprep.subr.mxu0 0.0
      %332 = vmatpush1.msra.mxu0 0.0
      %333 = vmatprep.subr.mxu0 0.0
      %334 = vmatpush1.msra.mxu0 0.0
      %335 = vmatprep.subr.mxu0 0.0
      %336 = vmatpush1.msra.mxu0 0.0
      %337 = vmatprep.subr.mxu0 0.0
      %338 = vmatpush1.msra.mxu0 0.0
      %339 = vmatprep.subr.mxu0 0.0
      %340 = vmatpush1.msra.mxu0 0.0
      %341 = vmatprep.subr.mxu0 0.0
      %342 = vmatpush1.msra.mxu0 0.0
      %343 = vmatprep.mubr.f32.mxu0 0.0
      %344 = vmatmul.mubr.f32.gmra.mrb[0].mxu0 %v277
      %v345 = vpop.f32.mrb[0].mxu0
      %v346 = vadd.f32 %v274, %v345
      %v347 = vpop.f32.mrb[0].mxu0
      %348 = vdwg.mxu0
      %v349 = vmax.f32 %v346, 0.0
      %v350 = vld [vmem:[%s3] sm:$0xff]
      %v351 = vld [vmem:[%s4] sm:$0x1]
      %v353 = vrot.slane %v350, 4
      %v355 = vmul.f32 %v349, %v353
      %v356 = vadd.f32 %v355, %v351
      %v357 = vld [vmem:[%s5] sm:$0xff]
      %v358 = vld [vmem:[%s5 + $0x8] sm:$0xff]
      %v359 = vld [vmem:[%s5 + $0x10] sm:$0xff]
      %v360 = vld [vmem:[%s5 + $0x18] sm:$0xff]
      %v361 = vld [vmem:[%s6] sm:$0x1]
      %v363 = vsel %vm275, %v356, 0
      %365 = vmatprep.subr.mxu0 0.0
      %366 = vmatpush1.msra.mxu0 %v357
      %367 = vmatprep.subr.mxu0 0.0
      %368 = vmatpush1.msra.mxu0 %v358
      %369 = vmatprep.subr.mxu0 0.0
      %370 = vmatpush1.msra.mxu0 %v359
      %371 = vmatprep.subr.mxu0 0.0
      %372 = vmatpush1.msra.mxu0 %v360
      %373 = vmatprep.subr.mxu0 0.0
      %374 = vmatpush1.msra.mxu0 0.0
      %375 = vmatprep.subr.mxu0 0.0
      %376 = vmatpush1.msra.mxu0 0.0
      %377 = vmatprep.subr.mxu0 0.0
      %378 = vmatpush1.msra.mxu0 0.0
      %379 = vmatprep.subr.mxu0 0.0
      %380 = vmatpush1.msra.mxu0 0.0
      %381 = vmatprep.subr.mxu0 0.0
      %382 = vmatpush1.msra.mxu0 0.0
      %383 = vmatprep.subr.mxu0 0.0
      %384 = vmatpush1.msra.mxu0 0.0
      %385 = vmatprep.subr.mxu0 0.0
      %386 = vmatpush1.msra.mxu0 0.0
      %387 = vmatprep.subr.mxu0 0.0
      %388 = vmatpush1.msra.mxu0 0.0
      %389 = vmatprep.subr.mxu0 0.0
      %390 = vmatpush1.msra.mxu0 0.0
      %391 = vmatprep.subr.mxu0 0.0
      %392 = vmatpush1.msra.mxu0 0.0
      %393 = vmatprep.subr.mxu0 0.0
      %394 = vmatpush1.msra.mxu0 0.0
      %395 = vmatprep.subr.mxu0 0.0
      %396 = vmatpush1.msra.mxu0 0.0
      %397 = vmatprep.subr.mxu0 0.0
      %398 = vmatpush1.msra.mxu0 0.0
      %399 = vmatprep.subr.mxu0 0.0
      %400 = vmatpush1.msra.mxu0 0.0
      %401 = vmatprep.subr.mxu0 0.0
      %402 = vmatpush1.msra.mxu0 0.0
      %403 = vmatprep.subr.mxu0 0.0
      %404 = vmatpush1.msra.mxu0 0.0
      %405 = vmatprep.subr.mxu0 0.0
      %406 = vmatpush1.msra.mxu0 0.0
      %407 = vmatprep.subr.mxu0 0.0
      %408 = vmatpush1.msra.mxu0 0.0
      %409 = vmatprep.subr.mxu0 0.0
      %410 = vmatpush1.msra.mxu0 0.0
      %411 = vmatprep.subr.mxu0 0.0
      %412 = vmatpush1.msra.mxu0 0.0
      %413 = vmatprep.subr.mxu0 0.0
      %414 = vmatpush1.msra.mxu0 0.0
      %415 = vmatprep.subr.mxu0 0.0
      %416 = vmatpush1.msra.mxu0 0.0
      %417 = vmatprep.subr.mxu0 0.0
      %418 = vmatpush1.msra.mxu0 0.0
      %419 = vmatprep.subr.mxu0 0.0
      %420 = vmatpush1.msra.mxu0 0.0
      %421 = vmatprep.subr.mxu0 0.0
      %422 = vmatpush1.msra.mxu0 0.0
      %423 = vmatprep.subr.mxu0 0.0
      %424 = vmatpush1.msra.mxu0 0.0
      %425 = vmatprep.subr.mxu0 0.0
      %426 = vmatpush1.msra.mxu0 0.0
      %427 = vmatprep.subr.mxu0 0.0
      %428 = vmatpush1.msra.mxu0 0.0
      %429 = vmatprep.mubr.f32.mxu0 0.0
      %430 = vmatmul.mubr.f32.gmra.mrb[0].mxu0 %v363
      %v431 = vpop.f32.mrb[0].mxu0
      %v432 = vadd.f32 %v361, %v431
      %v433 = vpop.f32.mrb[0].mxu0
      %434 = vdwg.mxu0
      %v435 = vmax.f32 %v432, 0.0
      %vm436 = vcmask 253952
      %437 = vst.msk [vmem:[%s268] sm:$0x1] %vm436, %v435
      %p438 = scmp.lt.s32.totalorder %s18, 1
      %s439 = scalar_select %p438, %s18, 1
      %s440 = scalar_lea.vmem %s7, %s439
      // Predicated region
      $region49: #{_lambda_.16} parent=47 // pred_check
        %p441 = pneg %p188
      $region50: #{_lambda_.16} parent=47 // pred_check_branch
        %443 = sbr.rel (%p441) target = $region52
      $region51: #{_lambda_.16} parent=47 // pred_region
        _
      $region52: #{_lambda_.16} parent=47 // pred_fallthru
        _
    $region48: #{_lambda_.16} parent=5 // pred_fallthru
      _
    %p444 = scmp.le.s32.totalorder 2, %s13
    // Predicated region
    $region53: #{_lambda_.16} parent=5 // pred_check
      %p445 = pneg %p444
    $region54: #{_lambda_.16} parent=5 // pred_check_branch
      %447 = sbr.rel (%p445) target = $region56
    $region55: #{_lambda_.16} parent=5 // pred_region
      %s448 = ssub.s32 %s13, 2
      // Predicated region
      $region57: #{_lambda_.16} parent=55 // pred_check
        %p449 = pneg %p194
      $region58: #{_lambda_.16} parent=55 // pred_check_branch
        %451 = sbr.rel (%p449) target = $region60
      $region59: #{_lambda_.16} parent=55 // pred_region
        %p452 = scmp.lt.s32.totalorder %s19, 1
        %s453 = scalar_select %p452, %s19, 1
        %s454 = scalar_lea.vmem %s7, %s453
      $region60: #{_lambda_.16} parent=55 // pred_fallthru
        _
    $region56: #{_lambda_.16} parent=5 // pred_fallthru
      _
  $region6: #{_lambda_.16} parent=0 // loop_footer
    %s17 = sadd.s32 1, %s13
  $region7: #{_lambda_.16} parent=0 // loop_footer_branch
    %12 = sbr.rel target = $region3
  $region8: #{_lambda_.16} parent=0 // loop_exit
    _

// kernel: _lambda_.15
$region0: #{_lambda_.15}
  #allocation0 [shape = 'u32[]', space=smem, size = 0x4, offset = 0x4, fixed_abs, tag = 'smem constant byte address 0x4 - core index']
  #allocation1 [shape = 'u32[144,128]{1,0:T(1,128)}', space=vmem, size = 0x12000, scoped, tag = 'internal scratch']
  %s0 = inlined_call_operand.vmem [shape: f32[2,4,1,32], index: 0, kind: input, shape index: {}]
  %s1 = inlined_call_operand.vmem [shape: f32[9,32], index: 1, kind: input, shape index: {}]
  %s2 = inlined_call_operand.vmem [shape: f32[1,32], index: 2, kind: input, shape index: {}, may-alias: {2,4,6,8,10}]
  %s3 = inlined_call_operand.vmem [shape: f32[32,32], index: 3, kind: input, shape index: {}]
  %s4 = inlined_call_operand.vmem [shape: f32[1,32], index: 4, kind: input, shape index: {}, may-alias: {2,4,6,8,10}]
  %s5 = inlined_call_operand.vmem [shape: f32[32,32], index: 5, kind: input, shape index: {}]
  %s6 = inlined_call_operand.vmem [shape: f32[1,32], index: 6, kind: input, shape index: {}, may-alias: {2,4,6,8,10}]
  %s7 = inlined_call_operand.vmem [shape: f32[9,32], index: 7, kind: input, shape index: {}]
  %s8 = inlined_call_operand.vmem [shape: f32[1,32], index: 8, kind: input, shape index: {}, may-alias: {2,4,6,8,10}]
  %s9 = inlined_call_operand.vmem [shape: f32[32,32], index: 9, kind: input, shape index: {}]
  %s10 = inlined_call_operand.vmem [shape: f32[1,32], index: 10, kind: input, shape index: {}, may-alias: {2,4,6,8,10}]
  %s11 = inlined_call_operand.vmem [shape: f32[2,1,32], index: 11, kind: output, shape index: {0}]
  %s12 = inlined_call_operand.vmem [shape: f32[2,1,32], index: 12, kind: output, shape index: {1}]
  %13 = xla_tuple %s11, %s12
  %s14 = sld [smem:[#allocation0]]
  $region85: #{_lambda_.15} parent=0
    _
  %s16 = ssub.s32 1, %s14
  %s17 = scalar_select 0, %s16, %s14
  loop: start=0, step=1, limit=4
  $region2: #{_lambda_.15} parent=0 // loop_pre_header
    _
  $region3: #{_lambda_.15} parent=0 // loop_header
    %s19 = sphi 0, %s23
    %p20 = scmp.ge.s32.totalorder %s19, 4
    %s29 = sphi 0, %s31
    %s32 = sphi 0, %s29
    %s33 = sphi 0, %s32
    %s49 = sphi 0, %s33
    %s53 = sphi 0, %s53
    %s55 = sphi 0, %s53
    %s56 = sphi 0, %s55
    %s70 = sphi 0, %s56
    %s74 = sphi 0, %s74
    %s76 = sphi 0, %s74
    %s77 = sphi 0, %s76
    %s91 = sphi 0, %s77
    %s95 = sphi 0, %s95
    %s97 = sphi 0, %s95
    %s98 = sphi 0, %s97
    %s112 = sphi 0, %s98
    %s116 = sphi 0, %s116
    %s118 = sphi 0, %s116
    %s119 = sphi 0, %s118
    %s133 = sphi 0, %s119
    %s137 = sphi 0, %s137
    %s139 = sphi 0, %s137
    %s140 = sphi 0, %s139
    %s154 = sphi 0, %s140
    %s158 = sphi 0, %s158
    %s160 = sphi 0, %s158
    %s161 = sphi 0, %s160
    %s175 = sphi 0, %s161
    %s179 = sphi 0, %s179
    %s181 = sphi 0, %s179
    %s182 = sphi 0, %s181
    %s196 = sphi 0, %s182
    %s200 = sphi 0, %s200
    %s202 = sphi 0, %s200
    %s203 = sphi 0, %s202
    %s217 = sphi 0, %s203
    %s221 = sphi 0, %s221
    %s223 = sphi 0, %s221
    %s224 = sphi 0, %s223
    %s238 = sphi 0, %s224
    %s242 = sphi 0, %s242
    %s244 = sphi 0, %s242
    %s245 = sphi 0, %s244
    %s259 = sphi 0, %s245
    %s265 = sphi 0, %s267
    %s268 = sphi 0, %s265
    %s269 = sphi 0, %s268
    %s285 = sphi 0, %s269
    %s291 = sphi 0, %s293
    %s294 = sphi 0, %s291
    %s295 = sphi 0, %s294
    %s311 = sphi 0, %s295
  $region4: #{_lambda_.15} parent=0 // loop_header_branch
    %22 = sbr.rel (%p20) target = $region8
  $region5: #{_lambda_.15} parent=0 // loop_body
    %s24 = ssub.s32 %s19, 1
    %s25 = ssub.s32 %s19, 2
    %s26 = sadd.s32 %s19, 1
    %s27 = ssub.s32 %s19, %s26
    %p28 = scmp.eq.s32.totalorder %s27, 0
    %s30 = sadd.s32 %s29, 1
    %s31 = scalar_select %p28, %s29, %s30
    %p34 = pneg %p28
    %p35 = scmp.eq.s32.totalorder %s19, 1
    %p36 = por %p34, %p35
    %p37 = scmp.ne.s32.totalorder %s29, %s32
    %p38 = scmp.eq.s32.totalorder %s19, 0
    %p39 = por %p37, %p38
    %p40 = scmp.ne.s32.totalorder %s29, %s32
    %p41 = scmp.eq.s32.totalorder %s24, 1
    %p42 = por %p40, %p41
    %p43 = scmp.ne.s32.totalorder %s32, %s33
    %p44 = scmp.eq.s32.totalorder %s24, 0
    %p45 = por %p43, %p44
    %p46 = scmp.ne.s32.totalorder %s32, %s33
    %p47 = scmp.eq.s32.totalorder %s25, 1
    %p48 = por %p46, %p47
    %p50 = scmp.ne.s32.totalorder %s33, %s49
    %p51 = scmp.eq.s32.totalorder %s25, 0
    %p52 = por %p50, %p51
    %s54 = sadd.s32 %s53, 1
    %p57 = scmp.eq.s32.totalorder %s19, 1
    %p58 = scmp.ne.s32.totalorder %s53, %s55
    %p59 = scmp.eq.s32.totalorder %s19, 0
    %p60 = por %p58, %p59
    %p61 = scmp.ne.s32.totalorder %s53, %s55
    %p62 = scmp.eq.s32.totalorder %s24, 1
    %p63 = por %p61, %p62
    %p64 = scmp.ne.s32.totalorder %s55, %s56
    %p65 = scmp.eq.s32.totalorder %s24, 0
    %p66 = por %p64, %p65
    %p67 = scmp.ne.s32.totalorder %s55, %s56
    %p68 = scmp.eq.s32.totalorder %s25, 1
    %p69 = por %p67, %p68
    %p71 = scmp.ne.s32.totalorder %s56, %s70
    %p72 = scmp.eq.s32.totalorder %s25, 0
    %p73 = por %p71, %p72
    %s75 = sadd.s32 %s74, 1
    %p78 = scmp.eq.s32.totalorder %s19, 1
    %p79 = scmp.ne.s32.totalorder %s74, %s76
    %p80 = scmp.eq.s32.totalorder %s19, 0
    %p81 = por %p79, %p80
    %p82 = scmp.ne.s32.totalorder %s74, %s76
    %p83 = scmp.eq.s32.totalorder %s24, 1
    %p84 = por %p82, %p83
    %p85 = scmp.ne.s32.totalorder %s76, %s77
    %p86 = scmp.eq.s32.totalorder %s24, 0
    %p87 = por %p85, %p86
    %p88 = scmp.ne.s32.totalorder %s76, %s77
    %p89 = scmp.eq.s32.totalorder %s25, 1
    %p90 = por %p88, %p89
    %p92 = scmp.ne.s32.totalorder %s77, %s91
    %p93 = scmp.eq.s32.totalorder %s25, 0
    %p94 = por %p92, %p93
    %s96 = sadd.s32 %s95, 1
    %p99 = scmp.eq.s32.totalorder %s19, 1
    %p100 = scmp.ne.s32.totalorder %s95, %s97
    %p101 = scmp.eq.s32.totalorder %s19, 0
    %p102 = por %p100, %p101
    %p103 = scmp.ne.s32.totalorder %s95, %s97
    %p104 = scmp.eq.s32.totalorder %s24, 1
    %p105 = por %p103, %p104
    %p106 = scmp.ne.s32.totalorder %s97, %s98
    %p107 = scmp.eq.s32.totalorder %s24, 0
    %p108 = por %p106, %p107
    %p109 = scmp.ne.s32.totalorder %s97, %s98
    %p110 = scmp.eq.s32.totalorder %s25, 1
    %p111 = por %p109, %p110
    %p113 = scmp.ne.s32.totalorder %s98, %s112
    %p114 = scmp.eq.s32.totalorder %s25, 0
    %p115 = por %p113, %p114
    %s117 = sadd.s32 %s116, 1
    %p120 = scmp.eq.s32.totalorder %s19, 1
    %p121 = scmp.ne.s32.totalorder %s116, %s118
    %p122 = scmp.eq.s32.totalorder %s19, 0
    %p123 = por %p121, %p122
    %p124 = scmp.ne.s32.totalorder %s116, %s118
    %p125 = scmp.eq.s32.totalorder %s24, 1
    %p126 = por %p124, %p125
    %p127 = scmp.ne.s32.totalorder %s118, %s119
    %p128 = scmp.eq.s32.totalorder %s24, 0
    %p129 = por %p127, %p128
    %p130 = scmp.ne.s32.totalorder %s118, %s119
    %p131 = scmp.eq.s32.totalorder %s25, 1
    %p132 = por %p130, %p131
    %p134 = scmp.ne.s32.totalorder %s119, %s133
    %p135 = scmp.eq.s32.totalorder %s25, 0
    %p136 = por %p134, %p135
    %s138 = sadd.s32 %s137, 1
    %p141 = scmp.eq.s32.totalorder %s19, 1
    %p142 = scmp.ne.s32.totalorder %s137, %s139
    %p143 = scmp.eq.s32.totalorder %s19, 0
    %p144 = por %p142, %p143
    %p145 = scmp.ne.s32.totalorder %s137, %s139
    %p146 = scmp.eq.s32.totalorder %s24, 1
    %p147 = por %p145, %p146
    %p148 = scmp.ne.s32.totalorder %s139, %s140
    %p149 = scmp.eq.s32.totalorder %s24, 0
    %p150 = por %p148, %p149
    %p151 = scmp.ne.s32.totalorder %s139, %s140
    %p152 = scmp.eq.s32.totalorder %s25, 1
    %p153 = por %p151, %p152
    %p155 = scmp.ne.s32.totalorder %s140, %s154
    %p156 = scmp.eq.s32.totalorder %s25, 0
    %p157 = por %p155, %p156
    %s159 = sadd.s32 %s158, 1
    %p162 = scmp.eq.s32.totalorder %s19, 1
    %p163 = scmp.ne.s32.totalorder %s158, %s160
    %p164 = scmp.eq.s32.totalorder %s19, 0
    %p165 = por %p163, %p164
    %p166 = scmp.ne.s32.totalorder %s158, %s160
    %p167 = scmp.eq.s32.totalorder %s24, 1
    %p168 = por %p166, %p167
    %p169 = scmp.ne.s32.totalorder %s160, %s161
    %p170 = scmp.eq.s32.totalorder %s24, 0
    %p171 = por %p169, %p170
    %p172 = scmp.ne.s32.totalorder %s160, %s161
    %p173 = scmp.eq.s32.totalorder %s25, 1
    %p174 = por %p172, %p173
    %p176 = scmp.ne.s32.totalorder %s161, %s175
    %p177 = scmp.eq.s32.totalorder %s25, 0
    %p178 = por %p176, %p177
    %s180 = sadd.s32 %s179, 1
    %p183 = scmp.eq.s32.totalorder %s19, 1
    %p184 = scmp.ne.s32.totalorder %s179, %s181
    %p185 = scmp.eq.s32.totalorder %s19, 0
    %p186 = por %p184, %p185
    %p187 = scmp.ne.s32.totalorder %s179, %s181
    %p188 = scmp.eq.s32.totalorder %s24, 1
    %p189 = por %p187, %p188
    %p190 = scmp.ne.s32.totalorder %s181, %s182
    %p191 = scmp.eq.s32.totalorder %s24, 0
    %p192 = por %p190, %p191
    %p193 = scmp.ne.s32.totalorder %s181, %s182
    %p194 = scmp.eq.s32.totalorder %s25, 1
    %p195 = por %p193, %p194
    %p197 = scmp.ne.s32.totalorder %s182, %s196
    %p198 = scmp.eq.s32.totalorder %s25, 0
    %p199 = por %p197, %p198
    %s201 = sadd.s32 %s200, 1
    %p204 = scmp.eq.s32.totalorder %s19, 1
    %p205 = scmp.ne.s32.totalorder %s200, %s202
    %p206 = scmp.eq.s32.totalorder %s19, 0
    %p207 = por %p205, %p206
    %p208 = scmp.ne.s32.totalorder %s200, %s202
    %p209 = scmp.eq.s32.totalorder %s24, 1
    %p210 = por %p208, %p209
    %p211 = scmp.ne.s32.totalorder %s202, %s203
    %p212 = scmp.eq.s32.totalorder %s24, 0
    %p213 = por %p211, %p212
    %p214 = scmp.ne.s32.totalorder %s202, %s203
    %p215 = scmp.eq.s32.totalorder %s25, 1
    %p216 = por %p214, %p215
    %p218 = scmp.ne.s32.totalorder %s203, %s217
    %p219 = scmp.eq.s32.totalorder %s25, 0
    %p220 = por %p218, %p219
    %s222 = sadd.s32 %s221, 1
    %p225 = scmp.eq.s32.totalorder %s19, 1
    %p226 = scmp.ne.s32.totalorder %s221, %s223
    %p227 = scmp.eq.s32.totalorder %s19, 0
    %p228 = por %p226, %p227
    %p229 = scmp.ne.s32.totalorder %s221, %s223
    %p230 = scmp.eq.s32.totalorder %s24, 1
    %p231 = por %p229, %p230
    %p232 = scmp.ne.s32.totalorder %s223, %s224
    %p233 = scmp.eq.s32.totalorder %s24, 0
    %p234 = por %p232, %p233
    %p235 = scmp.ne.s32.totalorder %s223, %s224
    %p236 = scmp.eq.s32.totalorder %s25, 1
    %p237 = por %p235, %p236
    %p239 = scmp.ne.s32.totalorder %s224, %s238
    %p240 = scmp.eq.s32.totalorder %s25, 0
    %p241 = por %p239, %p240
    %s243 = sadd.s32 %s242, 1
    %p246 = scmp.eq.s32.totalorder %s19, 1
    %p247 = scmp.ne.s32.totalorder %s242, %s244
    %p248 = scmp.eq.s32.totalorder %s19, 0
    %p249 = por %p247, %p248
    %p250 = scmp.ne.s32.totalorder %s242, %s244
    %p251 = scmp.eq.s32.totalorder %s24, 1
    %p252 = por %p250, %p251
    %p253 = scmp.ne.s32.totalorder %s244, %s245
    %p254 = scmp.eq.s32.totalorder %s24, 0
    %p255 = por %p253, %p254
    %p256 = scmp.ne.s32.totalorder %s244, %s245
    %p257 = scmp.eq.s32.totalorder %s25, 1
    %p258 = por %p256, %p257
    %p260 = scmp.ne.s32.totalorder %s245, %s259
    %p261 = scmp.eq.s32.totalorder %s25, 0
    %p262 = por %p260, %p261
    %s263 = ssub.s32 %s19, %s26
    %p264 = scmp.eq.s32.totalorder %s263, 0
    %s266 = sadd.s32 %s265, 1
    %s267 = scalar_select %p264, %s265, %s266
    %p270 = pneg %p264
    %p271 = scmp.eq.s32.totalorder %s19, 1
    %p272 = por %p270, %p271
    %p273 = scmp.ne.s32.totalorder %s265, %s268
    %p274 = scmp.eq.s32.totalorder %s19, 0
    %p275 = por %p273, %p274
    %p276 = scmp.ne.s32.totalorder %s265, %s268
    %p277 = scmp.eq.s32.totalorder %s24, 1
    %p278 = por %p276, %p277
    %p279 = scmp.ne.s32.totalorder %s268, %s269
    %p280 = scmp.eq.s32.totalorder %s24, 0
    %p281 = por %p279, %p280
    %p282 = scmp.ne.s32.totalorder %s268, %s269
    %p283 = scmp.eq.s32.totalorder %s25, 1
    %p284 = por %p282, %p283
    %p286 = scmp.ne.s32.totalorder %s269, %s285
    %p287 = scmp.eq.s32.totalorder %s25, 0
    %p288 = por %p286, %p287
    %s289 = ssub.s32 %s19, %s26
    %p290 = scmp.eq.s32.totalorder %s289, 0
    %s292 = sadd.s32 %s291, 1
    %s293 = scalar_select %p290, %s291, %s292
    %p296 = pneg %p290
    %p297 = scmp.eq.s32.totalorder %s19, 1
    %p298 = por %p296, %p297
    %p299 = scmp.ne.s32.totalorder %s291, %s294
    %p300 = scmp.eq.s32.totalorder %s19, 0
    %p301 = por %p299, %p300
    %p302 = scmp.ne.s32.totalorder %s291, %s294
    %p303 = scmp.eq.s32.totalorder %s24, 1
    %p304 = por %p302, %p303
    %p305 = scmp.ne.s32.totalorder %s294, %s295
    %p306 = scmp.eq.s32.totalorder %s24, 0
    %p307 = por %p305, %p306
    %p308 = scmp.ne.s32.totalorder %s294, %s295
    %p309 = scmp.eq.s32.totalorder %s25, 1
    %p310 = por %p308, %p309
    %p312 = scmp.ne.s32.totalorder %s295, %s311
    %p313 = scmp.eq.s32.totalorder %s25, 0
    %p314 = por %p312, %p313
    %p315 = scmp.le.s32.totalorder 1, %s19
    %p316 = scmp.lt.s32.totalorder %s19, 3
    %p317 = pnand %p315, %p316
    %p318 = pneg %p317
    // Predicated region
    $region9: #{_lambda_.15} parent=5 // pred_check
      _
    $region10: #{_lambda_.15} parent=5 // pred_check_branch
      %320 = sbr.rel (%p317) target = $region12
    $region11: #{_lambda_.15} parent=5 // pred_region
      %s321 = ssub.s32 %s19, 1
      // Predicated region
      $region13: #{_lambda_.15} parent=11 // pred_check
        %p322 = pneg %p66
      $region14: #{_lambda_.15} parent=11 // pred_check_branch
        %324 = sbr.rel (%p322) target = $region16
      $region15: #{_lambda_.15} parent=11 // pred_region
        _
      $region16: #{_lambda_.15} parent=11 // pred_fallthru
        _
      // Predicated region
      $region17: #{_lambda_.15} parent=11 // pred_check
        %p325 = pneg %p87
      $region18: #{_lambda_.15} parent=11 // pred_check_branch
        %327 = sbr.rel (%p325) target = $region20
      $region19: #{_lambda_.15} parent=11 // pred_region
        _
      $region20: #{_lambda_.15} parent=11 // pred_fallthru
        _
      // Predicated region
      $region21: #{_lambda_.15} parent=11 // pred_check
        %p328 = pneg %p108
      $region22: #{_lambda_.15} parent=11 // pred_check_branch
        %330 = sbr.rel (%p328) target = $region24
      $region23: #{_lambda_.15} parent=11 // pred_region
        _
      $region24: #{_lambda_.15} parent=11 // pred_fallthru
        _
      // Predicated region
      $region25: #{_lambda_.15} parent=11 // pred_check
        %p331 = pneg %p129
      $region26: #{_lambda_.15} parent=11 // pred_check_branch
        %333 = sbr.rel (%p331) target = $region28
      $region27: #{_lambda_.15} parent=11 // pred_region
        _
      $region28: #{_lambda_.15} parent=11 // pred_fallthru
        _
      // Predicated region
      $region29: #{_lambda_.15} parent=11 // pred_check
        %p334 = pneg %p150
      $region30: #{_lambda_.15} parent=11 // pred_check_branch
        %336 = sbr.rel (%p334) target = $region32
      $region31: #{_lambda_.15} parent=11 // pred_region
        _
      $region32: #{_lambda_.15} parent=11 // pred_fallthru
        _
      // Predicated region
      $region33: #{_lambda_.15} parent=11 // pred_check
        %p337 = pneg %p171
      $region34: #{_lambda_.15} parent=11 // pred_check_branch
        %339 = sbr.rel (%p337) target = $region36
      $region35: #{_lambda_.15} parent=11 // pred_region
        _
      $region36: #{_lambda_.15} parent=11 // pred_fallthru
        _
      // Predicated region
      $region37: #{_lambda_.15} parent=11 // pred_check
        %p340 = pneg %p192
      $region38: #{_lambda_.15} parent=11 // pred_check_branch
        %342 = sbr.rel (%p340) target = $region40
      $region39: #{_lambda_.15} parent=11 // pred_region
        _
      $region40: #{_lambda_.15} parent=11 // pred_fallthru
        _
      // Predicated region
      $region41: #{_lambda_.15} parent=11 // pred_check
        %p343 = pneg %p213
      $region42: #{_lambda_.15} parent=11 // pred_check_branch
        %345 = sbr.rel (%p343) target = $region44
      $region43: #{_lambda_.15} parent=11 // pred_region
        _
      $region44: #{_lambda_.15} parent=11 // pred_fallthru
        _
      // Predicated region
      $region45: #{_lambda_.15} parent=11 // pred_check
        %p346 = pneg %p234
      $region46: #{_lambda_.15} parent=11 // pred_check_branch
        %348 = sbr.rel (%p346) target = $region48
      $region47: #{_lambda_.15} parent=11 // pred_region
        _
      $region48: #{_lambda_.15} parent=11 // pred_fallthru
        _
      // Predicated region
      $region49: #{_lambda_.15} parent=11 // pred_check
        %p349 = pneg %p255
      $region50: #{_lambda_.15} parent=11 // pred_check_branch
        %351 = sbr.rel (%p349) target = $region52
      $region51: #{_lambda_.15} parent=11 // pred_region
        _
      $region52: #{_lambda_.15} parent=11 // pred_fallthru
        _
    $region12: #{_lambda_.15} parent=5 // pred_fallthru
      _
    %p352 = scmp.lt.s32.totalorder %s19, 2
    // Predicated region
    $region53: #{_lambda_.15} parent=5 // pred_check
      %p353 = pneg %p352
    $region54: #{_lambda_.15} parent=5 // pred_check_branch
      %355 = sbr.rel (%p353) target = $region56
    $region55: #{_lambda_.15} parent=5 // pred_region
      // Predicated region
      $region57: #{_lambda_.15} parent=55 // pred_check
        %p356 = pneg %p39
      $region58: #{_lambda_.15} parent=55 // pred_check_branch
        %358 = sbr.rel (%p356) target = $region60
      $region59: #{_lambda_.15} parent=55 // pred_region
        %p359 = scmp.lt.s32.totalorder %s19, 1
        %s360 = scalar_select %p359, %s19, 1
        %s361 = smul.addr %s360, 4
        %s362 = scalar_lea.vmem %s0, %s361
      $region60: #{_lambda_.15} parent=55 // pred_fallthru
        _
    $region56: #{_lambda_.15} parent=5 // pred_fallthru
      _
    %p363 = scmp.le.s32.totalorder 1, %s19
    %p364 = scmp.lt.s32.totalorder %s19, 3
    %p365 = pnand %p363, %p364
    %p366 = pneg %p365
    // Predicated region
    $region61: #{_lambda_.15} parent=5 // pred_check
      _
    $region62: #{_lambda_.15} parent=5 // pred_check_branch
      %368 = sbr.rel (%p365) target = $region64
    $region63: #{_lambda_.15} parent=5 // pred_region
      %s369 = ssub.s32 %s19, 1
      %p370 = scmp.lt.s32.totalorder %s24, 1
      %s371 = scalar_select %p370, %s24, 1
      %s372 = smul.addr %s371, 4
      %s373 = scalar_lea.vmem %s0, %s372
      %p374 = pneg %p45
      %p375 = pneg %p42
      %p376 = pneg %p66
      %p377 = pneg %p63
      %p378 = pneg %p87
      %p379 = pneg %p84
      %p380 = pneg %p108
      %p381 = pneg %p105
      %p382 = pneg %p129
      %p383 = pneg %p126
      %p384 = pneg %p150
      %p385 = pneg %p147
      %p386 = pneg %p171
      %p387 = pneg %p168
      %p388 = pneg %p192
      %p389 = pneg %p189
      %p390 = pneg %p213
      %p391 = pneg %p210
      %p392 = pneg %p234
      %p393 = pneg %p231
      %p394 = pneg %p255
      %p395 = pneg %p252
      %p396 = pneg %p281
      %p397 = pneg %p278
      %p398 = scmp.lt.s32.totalorder %s24, 1
      %s399 = scalar_select %p398, %s24, 1
      %s400 = scalar_lea.vmem %s11, %s399
      %p401 = pneg %p307
      %p402 = pneg %p304
      %p403 = scmp.lt.s32.totalorder %s24, 1
      %s404 = scalar_select %p403, %s24, 1
      %s405 = scalar_lea.vmem %s12, %s404
      %p406 = scmp.lt.s32.totalorder %s24, 1
      %s407 = scalar_select %p406, %s24, 1
      %s408 = smul.addr %s407, 4
      %s409 = scalar_lea.vmem %s0, %s408
      %p410 = scmp.lt.s32.totalorder %s24, 1
      %s411 = scalar_select %p410, %s24, 1
      %s412 = scalar_lea.vmem %s11, %s411
      %p413 = scmp.lt.s32.totalorder %s24, 1
      %s414 = scalar_select %p413, %s24, 1
      %s415 = scalar_lea.vmem %s12, %s414
      %v416 = vld [vmem:[%s409] sm:$0x1]
      %s417 = scalar_lea.vmem %s409, 1
      %v418 = vld [vmem:[%s417] sm:$0x1]
      %s419 = scalar_lea.vmem %s409, 2
      %v420 = vld [vmem:[%s419] sm:$0x1]
      %s421 = scalar_lea.vmem %s409, 3
      %v422 = vld [vmem:[%s421] sm:$0x1]
      %v423 = vld [vmem:[%s1] sm:$0xff]
      %v424 = vld [vmem:[%s1 + $0x8] sm:$0x1]
      %v425 = vld [vmem:[%s2] sm:$0x1]
      %v427 = vcombine.high %v423, %v423
      %v429 = vunpack.c.l.s4 1966171168
      %v430 = vunpack.c.0.s8 %v429
      %v431 = vlaneseq
      %v432 = vshrl.u32 %v431, 7
      %v433 = vsub.s32 %v430, %v432
      %v434 = vrot.slane %v427, %v433
      %v436 = vunpack.c.l.s4 1966171168
      %v437 = vunpack.c.0.s8 %v436
      %v438 = vlaneseq
      %v439 = vshrl.u32 %v438, 7
      %v440 = vsub.s32 %v437, %v439
      %v441 = vrot.slane %v434, %v440
      %v443 = vmul.f32 %v416, %v441
      %v444 = vcombine.high %v434, %v434
      %v446 = vunpack.c.l.s4 1966171168
      %v447 = vunpack.c.0.s8 %v446
      %v448 = vlaneseq
      %v449 = vshrl.u32 %v448, 7
      %v450 = vsub.s32 %v447, %v449
      %v451 = vrot.slane %v444, %v450
      %v453 = vmul.f32 %v418, %v451
      %v454 = vcombine.high %v451, %v451
      %v456 = vmul.f32 %v420, %v454
      %v457 = vmul.f32 %v422, %v424
      %v458 = vadd.f32 %v443, %v453
      %v459 = vadd.f32 %v456, %v457
      %v460 = vadd.f32 %v458, %v459
      %v461 = vadd.f32 %v460, %v425
      %v462 = vld [vmem:[%s3] sm:$0xff]
      %v463 = vld [vmem:[%s3 + $0x8] sm:$0xff]
      %v464 = vld [vmem:[%s3 + $0x10] sm:$0xff]
      %v465 = vld [vmem:[%s3 + $0x18] sm:$0xff]
      %v466 = vld [vmem:[%s4] sm:$0x1]
      %vm467 = vcmask 261120
      %v469 = vsel %vm467, %v461, 0
      %471 = vmatprep.subr.mxu0 0.0
      %472 = vmatpush1.msra.mxu0 %v462
      %473 = vmatprep.subr.mxu0 0.0
      %474 = vmatpush1.msra.mxu0 %v463
      %475 = vmatprep.subr.mxu0 0.0
      %476 = vmatpush1.msra.mxu0 %v464
      %477 = vmatprep.subr.mxu0 0.0
      %478 = vmatpush1.msra.mxu0 %v465
      %479 = vmatprep.subr.mxu0 0.0
      %480 = vmatpush1.msra.mxu0 0.0
      %481 = vmatprep.subr.mxu0 0.0
      %482 = vmatpush1.msra.mxu0 0.0
      %483 = vmatprep.subr.mxu0 0.0
      %484 = vmatpush1.msra.mxu0 0.0
      %485 = vmatprep.subr.mxu0 0.0
      %486 = vmatpush1.msra.mxu0 0.0
      %487 = vmatprep.subr.mxu0 0.0
      %488 = vmatpush1.msra.mxu0 0.0
      %489 = vmatprep.subr.mxu0 0.0
      %490 = vmatpush1.msra.mxu0 0.0
      %491 = vmatprep.subr.mxu0 0.0
      %492 = vmatpush1.msra.mxu0 0.0
      %493 = vmatprep.subr.mxu0 0.0
      %494 = vmatpush1.msra.mxu0 0.0
      %495 = vmatprep.subr.mxu0 0.0
      %496 = vmatpush1.msra.mxu0 0.0
      %497 = vmatprep.subr.mxu0 0.0
      %498 = vmatpush1.msra.mxu0 0.0
      %499 = vmatprep.subr.mxu0 0.0
      %500 = vmatpush1.msra.mxu0 0.0
      %501 = vmatprep.subr.mxu0 0.0
      %502 = vmatpush1.msra.mxu0 0.0
      %503 = vmatprep.subr.mxu0 0.0
      %504 = vmatpush1.msra.mxu0 0.0
      %505 = vmatprep.subr.mxu0 0.0
      %506 = vmatpush1.msra.mxu0 0.0
      %507 = vmatprep.subr.mxu0 0.0
      %508 = vmatpush1.msra.mxu0 0.0
      %509 = vmatprep.subr.mxu0 0.0
      %510 = vmatpush1.msra.mxu0 0.0
      %511 = vmatprep.subr.mxu0 0.0
      %512 = vmatpush1.msra.mxu0 0.0
      %513 = vmatprep.subr.mxu0 0.0
      %514 = vmatpush1.msra.mxu0 0.0
      %515 = vmatprep.subr.mxu0 0.0
      %516 = vmatpush1.msra.mxu0 0.0
      %517 = vmatprep.subr.mxu0 0.0
      %518 = vmatpush1.msra.mxu0 0.0
      %519 = vmatprep.subr.mxu0 0.0
      %520 = vmatpush1.msra.mxu0 0.0
      %521 = vmatprep.subr.mxu0 0.0
      %522 = vmatpush1.msra.mxu0 0.0
      %523 = vmatprep.subr.mxu0 0.0
      %524 = vmatpush1.msra.mxu0 0.0
      %525 = vmatprep.subr.mxu0 0.0
      %526 = vmatpush1.msra.mxu0 0.0
      %527 = vmatprep.subr.mxu0 0.0
      %528 = vmatpush1.msra.mxu0 0.0
      %529 = vmatprep.subr.mxu0 0.0
      %530 = vmatpush1.msra.mxu0 0.0
      %531 = vmatprep.subr.mxu0 0.0
      %532 = vmatpush1.msra.mxu0 0.0
      %533 = vmatprep.subr.mxu0 0.0
      %534 = vmatpush1.msra.mxu0 0.0
      %535 = vmatprep.mubr.f32.mxu0 0.0
      %536 = vmatmul.mubr.f32.gmra.mrb[0].mxu0 %v469
      %v537 = vpop.f32.mrb[0].mxu0
      %v538 = vadd.f32 %v466, %v537
      %v539 = vpop.f32.mrb[0].mxu0
      %540 = vdwg.mxu0
      %v541 = vmax.f32 %v538, 0.0
      %vm542 = vcmask 253952
      %543 = vst.msk [vmem:[%s412] sm:$0x1] %vm542, %v541
      %v544 = vld [vmem:[%s5] sm:$0xff]
      %v545 = vld [vmem:[%s5 + $0x8] sm:$0xff]
      %v546 = vld [vmem:[%s5 + $0x10] sm:$0xff]
      %v547 = vld [vmem:[%s5 + $0x18] sm:$0xff]
      %v548 = vld [vmem:[%s6] sm:$0x1]
      %v550 = vsel %vm467, %v416, 0
      %552 = vmatprep.subr.mxu0 0.0
      %553 = vmatpush1.msra.mxu0 %v544
      %554 = vmatprep.subr.mxu0 0.0
      %555 = vmatpush1.msra.mxu0 %v545
      %556 = vmatprep.subr.mxu0 0.0
      %557 = vmatpush1.msra.mxu0 %v546
      %558 = vmatprep.subr.mxu0 0.0
      %559 = vmatpush1.msra.mxu0 %v547
      %560 = vmatprep.subr.mxu0 0.0
      %561 = vmatpush1.msra.mxu0 0.0
      %562 = vmatprep.subr.mxu0 0.0
      %563 = vmatpush1.msra.mxu0 0.0
      %564 = vmatprep.subr.mxu0 0.0
      %565 = vmatpush1.msra.mxu0 0.0
      %566 = vmatprep.subr.mxu0 0.0
      %567 = vmatpush1.msra.mxu0 0.0
      %568 = vmatprep.subr.mxu0 0.0
      %569 = vmatpush1.msra.mxu0 0.0
      %570 = vmatprep.subr.mxu0 0.0
      %571 = vmatpush1.msra.mxu0 0.0
      %572 = vmatprep.subr.mxu0 0.0
      %573 = vmatpush1.msra.mxu0 0.0
      %574 = vmatprep.subr.mxu0 0.0
      %575 = vmatpush1.msra.mxu0 0.0
      %576 = vmatprep.subr.mxu0 0.0
      %577 = vmatpush1.msra.mxu0 0.0
      %578 = vmatprep.subr.mxu0 0.0
      %579 = vmatpush1.msra.mxu0 0.0
      %580 = vmatprep.subr.mxu0 0.0
      %581 = vmatpush1.msra.mxu0 0.0
      %582 = vmatprep.subr.mxu0 0.0
      %583 = vmatpush1.msra.mxu0 0.0
      %584 = vmatprep.subr.mxu0 0.0
      %585 = vmatpush1.msra.mxu0 0.0
      %586 = vmatprep.subr.mxu0 0.0
      %587 = vmatpush1.msra.mxu0 0.0
      %588 = vmatprep.subr.mxu0 0.0
      %589 = vmatpush1.msra.mxu0 0.0
      %590 = vmatprep.subr.mxu0 0.0
      %591 = vmatpush1.msra.mxu0 0.0
      %592 = vmatprep.subr.mxu0 0.0
      %593 = vmatpush1.msra.mxu0 0.0
      %594 = vmatprep.subr.mxu0 0.0
      %595 = vmatpush1.msra.mxu0 0.0
      %596 = vmatprep.subr.mxu0 0.0
      %597 = vmatpush1.msra.mxu0 0.0
      %598 = vmatprep.subr.mxu0 0.0
      %599 = vmatpush1.msra.mxu0 0.0
      %600 = vmatprep.subr.mxu0 0.0
      %601 = vmatpush1.msra.mxu0 0.0
      %602 = vmatprep.subr.mxu0 0.0
      %603 = vmatpush1.msra.mxu0 0.0
      %604 = vmatprep.subr.mxu0 0.0
      %605 = vmatpush1.msra.mxu0 0.0
      %606 = vmatprep.subr.mxu0 0.0
      %607 = vmatpush1.msra.mxu0 0.0
      %608 = vmatprep.subr.mxu0 0.0
      %609 = vmatpush1.msra.mxu0 0.0
      %610 = vmatprep.subr.mxu0 0.0
      %611 = vmatpush1.msra.mxu0 0.0
      %612 = vmatprep.subr.mxu0 0.0
      %613 = vmatpush1.msra.mxu0 0.0
      %614 = vmatprep.subr.mxu0 0.0
      %615 = vmatpush1.msra.mxu0 0.0
      %616 = vmatprep.mubr.f32.mxu0 0.0
      %617 = vmatmul.mubr.f32.gmra.mrb[0].mxu0 %v550
      %v618 = vpop.f32.mrb[0].mxu0
      %v619 = vadd.f32 %v548, %v618
      %v620 = vpop.f32.mrb[0].mxu0
      %621 = vdwg.mxu0
      %v622 = vmax.f32 %v619, 0.0
      %v624 = vsel %vm467, %v418, 0
      %626 = vmatprep.subr.mxu0 0.0
      %627 = vmatpush1.msra.mxu0 %v544
      %628 = vmatprep.subr.mxu0 0.0
      %629 = vmatpush1.msra.mxu0 %v545
      %630 = vmatprep.subr.mxu0 0.0
      %631 = vmatpush1.msra.mxu0 %v546
      %632 = vmatprep.subr.mxu0 0.0
      %633 = vmatpush1.msra.mxu0 %v547
      %634 = vmatprep.subr.mxu0 0.0
      %635 = vmatpush1.msra.mxu0 0.0
      %636 = vmatprep.subr.mxu0 0.0
      %637 = vmatpush1.msra.mxu0 0.0
      %638 = vmatprep.subr.mxu0 0.0
      %639 = vmatpush1.msra.mxu0 0.0
      %640 = vmatprep.subr.mxu0 0.0
      %641 = vmatpush1.msra.mxu0 0.0
      %642 = vmatprep.subr.mxu0 0.0
      %643 = vmatpush1.msra.mxu0 0.0
      %644 = vmatprep.subr.mxu0 0.0
      %645 = vmatpush1.msra.mxu0 0.0
      %646 = vmatprep.subr.mxu0 0.0
      %647 = vmatpush1.msra.mxu0 0.0
      %648 = vmatprep.subr.mxu0 0.0
      %649 = vmatpush1.msra.mxu0 0.0
      %650 = vmatprep.subr.mxu0 0.0
      %651 = vmatpush1.msra.mxu0 0.0
      %652 = vmatprep.subr.mxu0 0.0
      %653 = vmatpush1.msra.mxu0 0.0
      %654 = vmatprep.subr.mxu0 0.0
      %655 = vmatpush1.msra.mxu0 0.0
      %656 = vmatprep.subr.mxu0 0.0
      %657 = vmatpush1.msra.mxu0 0.0
      %658 = vmatprep.subr.mxu0 0.0
      %659 = vmatpush1.msra.mxu0 0.0
      %660 = vmatprep.subr.mxu0 0.0
      %661 = vmatpush1.msra.mxu0 0.0
      %662 = vmatprep.subr.mxu0 0.0
      %663 = vmatpush1.msra.mxu0 0.0
      %664 = vmatprep.subr.mxu0 0.0
      %665 = vmatpush1.msra.mxu0 0.0
      %666 = vmatprep.subr.mxu0 0.0
      %667 = vmatpush1.msra.mxu0 0.0
      %668 = vmatprep.subr.mxu0 0.0
      %669 = vmatpush1.msra.mxu0 0.0
      %670 = vmatprep.subr.mxu0 0.0
      %671 = vmatpush1.msra.mxu0 0.0
      %672 = vmatprep.subr.mxu0 0.0
      %673 = vmatpush1.msra.mxu0 0.0
      %674 = vmatprep.subr.mxu0 0.0
      %675 = vmatpush1.msra.mxu0 0.0
      %676 = vmatprep.subr.mxu0 0.0
      %677 = vmatpush1.msra.mxu0 0.0
      %678 = vmatprep.subr.mxu0 0.0
      %679 = vmatpush1.msra.mxu0 0.0
      %680 = vmatprep.subr.mxu0 0.0
      %681 = vmatpush1.msra.mxu0 0.0
      %682 = vmatprep.subr.mxu0 0.0
      %683 = vmatpush1.msra.mxu0 0.0
      %684 = vmatprep.subr.mxu0 0.0
      %685 = vmatpush1.msra.mxu0 0.0
      %686 = vmatprep.subr.mxu0 0.0
      %687 = vmatpush1.msra.mxu0 0.0
      %688 = vmatprep.subr.mxu0 0.0
      %689 = vmatpush1.msra.mxu0 0.0
      %690 = vmatprep.mubr.f32.mxu0 0.0
      %691 = vmatmul.mubr.f32.gmra.mrb[0].mxu0 %v624
      %v692 = vpop.f32.mrb[0].mxu0
      %v693 = vadd.f32 %v548, %v692
      %v694 = vpop.f32.mrb[0].mxu0
      %695 = vdwg.mxu0
      %v696 = vmax.f32 %v693, 0.0
      %v698 = vsel %vm467, %v420, 0
      %700 = vmatprep.subr.mxu0 0.0
      %701 = vmatpush1.msra.mxu0 %v544
      %702 = vmatprep.subr.mxu0 0.0
      %703 = vmatpush1.msra.mxu0 %v545
      %704 = vmatprep.subr.mxu0 0.0
      %705 = vmatpush1.msra.mxu0 %v546
      %706 = vmatprep.subr.mxu0 0.0
      %707 = vmatpush1.msra.mxu0 %v547
      %708 = vmatprep.subr.mxu0 0.0
      %709 = vmatpush1.msra.mxu0 0.0
      %710 = vmatprep.subr.mxu0 0.0
      %711 = vmatpush1.msra.mxu0 0.0
      %712 = vmatprep.subr.mxu0 0.0
      %713 = vmatpush1.msra.mxu0 0.0
      %714 = vmatprep.subr.mxu0 0.0
      %715 = vmatpush1.msra.mxu0 0.0
      %716 = vmatprep.subr.mxu0 0.0
      %717 = vmatpush1.msra.mxu0 0.0
      %718 = vmatprep.subr.mxu0 0.0
      %719 = vmatpush1.msra.mxu0 0.0
      %720 = vmatprep.subr.mxu0 0.0
      %721 = vmatpush1.msra.mxu0 0.0
      %722 = vmatprep.subr.mxu0 0.0
      %723 = vmatpush1.msra.mxu0 0.0
      %724 = vmatprep.subr.mxu0 0.0
      %725 = vmatpush1.msra.mxu0 0.0
      %726 = vmatprep.subr.mxu0 0.0
      %727 = vmatpush1.msra.mxu0 0.0
      %728 = vmatprep.subr.mxu0 0.0
      %729 = vmatpush1.msra.mxu0 0.0
      %730 = vmatprep.subr.mxu0 0.0
      %731 = vmatpush1.msra.mxu0 0.0
      %732 = vmatprep.subr.mxu0 0.0
      %733 = vmatpush1.msra.mxu0 0.0
      %734 = vmatprep.subr.mxu0 0.0
      %735 = vmatpush1.msra.mxu0 0.0
      %736 = vmatprep.subr.mxu0 0.0
      %737 = vmatpush1.msra.mxu0 0.0
      %738 = vmatprep.subr.mxu0 0.0
      %739 = vmatpush1.msra.mxu0 0.0
      %740 = vmatprep.subr.mxu0 0.0
      %741 = vmatpush1.msra.mxu0 0.0
      %742 = vmatprep.subr.mxu0 0.0
      %743 = vmatpush1.msra.mxu0 0.0
      %744 = vmatprep.subr.mxu0 0.0
      %745 = vmatpush1.msra.mxu0 0.0
      %746 = vmatprep.subr.mxu0 0.0
      %747 = vmatpush1.msra.mxu0 0.0
      %748 = vmatprep.subr.mxu0 0.0
      %749 = vmatpush1.msra.mxu0 0.0
      %750 = vmatprep.subr.mxu0 0.0
      %751 = vmatpush1.msra.mxu0 0.0
      %752 = vmatprep.subr.mxu0 0.0
      %753 = vmatpush1.msra.mxu0 0.0
      %754 = vmatprep.subr.mxu0 0.0
      %755 = vmatpush1.msra.mxu0 0.0
      %756 = vmatprep.subr.mxu0 0.0
      %757 = vmatpush1.msra.mxu0 0.0
      %758 = vmatprep.subr.mxu0 0.0
      %759 = vmatpush1.msra.mxu0 0.0
      %760 = vmatprep.subr.mxu0 0.0
      %761 = vmatpush1.msra.mxu0 0.0
      %762 = vmatprep.subr.mxu0 0.0
      %763 = vmatpush1.msra.mxu0 0.0
      %764 = vmatprep.mubr.f32.mxu0 0.0
      %765 = vmatmul.mubr.f32.gmra.mrb[0].mxu0 %v698
      %v766 = vpop.f32.mrb[0].mxu0
      %v767 = vadd.f32 %v548, %v766
      %v768 = vpop.f32.mrb[0].mxu0
      %769 = vdwg.mxu0
      %v770 = vmax.f32 %v767, 0.0
      %v772 = vsel %vm467, %v422, 0
      %774 = vmatprep.subr.mxu0 0.0
      %775 = vmatpush1.msra.mxu0 %v544
      %776 = vmatprep.subr.mxu0 0.0
      %777 = vmatpush1.msra.mxu0 %v545
      %778 = vmatprep.subr.mxu0 0.0
      %779 = vmatpush1.msra.mxu0 %v546
      %780 = vmatprep.subr.mxu0 0.0
      %781 = vmatpush1.msra.mxu0 %v547
      %782 = vmatprep.subr.mxu0 0.0
      %783 = vmatpush1.msra.mxu0 0.0
      %784 = vmatprep.subr.mxu0 0.0
      %785 = vmatpush1.msra.mxu0 0.0
      %786 = vmatprep.subr.mxu0 0.0
      %787 = vmatpush1.msra.mxu0 0.0
      %788 = vmatprep.subr.mxu0 0.0
      %789 = vmatpush1.msra.mxu0 0.0
      %790 = vmatprep.subr.mxu0 0.0
      %791 = vmatpush1.msra.mxu0 0.0
      %792 = vmatprep.subr.mxu0 0.0
      %793 = vmatpush1.msra.mxu0 0.0
      %794 = vmatprep.subr.mxu0 0.0
      %795 = vmatpush1.msra.mxu0 0.0
      %796 = vmatprep.subr.mxu0 0.0
      %797 = vmatpush1.msra.mxu0 0.0
      %798 = vmatprep.subr.mxu0 0.0
      %799 = vmatpush1.msra.mxu0 0.0
      %800 = vmatprep.subr.mxu0 0.0
      %801 = vmatpush1.msra.mxu0 0.0
      %802 = vmatprep.subr.mxu0 0.0
      %803 = vmatpush1.msra.mxu0 0.0
      %804 = vmatprep.subr.mxu0 0.0
      %805 = vmatpush1.msra.mxu0 0.0
      %806 = vmatprep.subr.mxu0 0.0
      %807 = vmatpush1.msra.mxu0 0.0
      %808 = vmatprep.subr.mxu0 0.0
      %809 = vmatpush1.msra.mxu0 0.0
      %810 = vmatprep.subr.mxu0 0.0
      %811 = vmatpush1.msra.mxu0 0.0
      %812 = vmatprep.subr.mxu0 0.0
      %813 = vmatpush1.msra.mxu0 0.0
      %814 = vmatprep.subr.mxu0 0.0
      %815 = vmatpush1.msra.mxu0 0.0
      %816 = vmatprep.subr.mxu0 0.0
      %817 = vmatpush1.msra.mxu0 0.0
      %818 = vmatprep.subr.mxu0 0.0
      %819 = vmatpush1.msra.mxu0 0.0
      %820 = vmatprep.subr.mxu0 0.0
      %821 = vmatpush1.msra.mxu0 0.0
      %822 = vmatprep.subr.mxu0 0.0
      %823 = vmatpush1.msra.mxu0 0.0
      %824 = vmatprep.subr.mxu0 0.0
      %825 = vmatpush1.msra.mxu0 0.0
      %826 = vmatprep.subr.mxu0 0.0
      %827 = vmatpush1.msra.mxu0 0.0
      %828 = vmatprep.subr.mxu0 0.0
      %829 = vmatpush1.msra.mxu0 0.0
      %830 = vmatprep.subr.mxu0 0.0
      %831 = vmatpush1.msra.mxu0 0.0
      %832 = vmatprep.subr.mxu0 0.0
      %833 = vmatpush1.msra.mxu0 0.0
      %834 = vmatprep.subr.mxu0 0.0
      %835 = vmatpush1.msra.mxu0 0.0
      %836 = vmatprep.subr.mxu0 0.0
      %837 = vmatpush1.msra.mxu0 0.0
      %838 = vmatprep.mubr.f32.mxu0 0.0
      %839 = vmatmul.mubr.f32.gmra.mrb[0].mxu0 %v772
      %v840 = vpop.f32.mrb[0].mxu0
      %v841 = vadd.f32 %v548, %v840
      %v842 = vpop.f32.mrb[0].mxu0
      %843 = vdwg.mxu0
      %v844 = vmax.f32 %v841, 0.0
      %v845 = vld [vmem:[%s7] sm:$0xff]
      %v846 = vld [vmem:[%s7 + $0x8] sm:$0x1]
      %v847 = vld [vmem:[%s8] sm:$0x1]
      %v849 = vrot.slane %v845, 4
      %v851 = vmul.f32 %v622, %v849
      %v852 = vrot.slane %v845, 5
      %v854 = vmul.f32 %v696, %v852
      %v855 = vrot.slane %v845, 7
      %v857 = vmul.f32 %v770, %v855
      %v858 = vmul.f32 %v844, %v846
      %v859 = vadd.f32 %v851, %v854
      %v860 = vadd.f32 %v857, %v858
      %v861 = vadd.f32 %v859, %v860
      %v862 = vadd.f32 %v861, %v847
      %v863 = vld [vmem:[%s9] sm:$0xff]
      %v864 = vld [vmem:[%s9 + $0x8] sm:$0xff]
      %v865 = vld [vmem:[%s9 + $0x10] sm:$0xff]
      %v866 = vld [vmem:[%s9 + $0x18] sm:$0xff]
      %v867 = vld [vmem:[%s10] sm:$0x1]
      %v869 = vsel %vm467, %v862, 0
      %871 = vmatprep.subr.mxu0 0.0
      %872 = vmatpush1.msra.mxu0 %v863
      %873 = vmatprep.subr.mxu0 0.0
      %874 = vmatpush1.msra.mxu0 %v864
      %875 = vmatprep.subr.mxu0 0.0
      %876 = vmatpush1.msra.mxu0 %v865
      %877 = vmatprep.subr.mxu0 0.0
      %878 = vmatpush1.msra.mxu0 %v866
      %879 = vmatprep.subr.mxu0 0.0
      %880 = vmatpush1.msra.mxu0 0.0
      %881 = vmatprep.subr.mxu0 0.0
      %882 = vmatpush1.msra.mxu0 0.0
      %883 = vmatprep.subr.mxu0 0.0
      %884 = vmatpush1.msra.mxu0 0.0
      %885 = vmatprep.subr.mxu0 0.0
      %886 = vmatpush1.msra.mxu0 0.0
      %887 = vmatprep.subr.mxu0 0.0
      %888 = vmatpush1.msra.mxu0 0.0
      %889 = vmatprep.subr.mxu0 0.0
      %890 = vmatpush1.msra.mxu0 0.0
      %891 = vmatprep.subr.mxu0 0.0
      %892 = vmatpush1.msra.mxu0 0.0
      %893 = vmatprep.subr.mxu0 0.0
      %894 = vmatpush1.msra.mxu0 0.0
      %895 = vmatprep.subr.mxu0 0.0
      %896 = vmatpush1.msra.mxu0 0.0
      %897 = vmatprep.subr.mxu0 0.0
      %898 = vmatpush1.msra.mxu0 0.0
      %899 = vmatprep.subr.mxu0 0.0
      %900 = vmatpush1.msra.mxu0 0.0
      %901 = vmatprep.subr.mxu0 0.0
      %902 = vmatpush1.msra.mxu0 0.0
      %903 = vmatprep.subr.mxu0 0.0
      %904 = vmatpush1.msra.mxu0 0.0
      %905 = vmatprep.subr.mxu0 0.0
      %906 = vmatpush1.msra.mxu0 0.0
      %907 = vmatprep.subr.mxu0 0.0
      %908 = vmatpush1.msra.mxu0 0.0
      %909 = vmatprep.subr.mxu0 0.0
      %910 = vmatpush1.msra.mxu0 0.0
      %911 = vmatprep.subr.mxu0 0.0
      %912 = vmatpush1.msra.mxu0 0.0
      %913 = vmatprep.subr.mxu0 0.0
      %914 = vmatpush1.msra.mxu0 0.0
      %915 = vmatprep.subr.mxu0 0.0
      %916 = vmatpush1.msra.mxu0 0.0
      %917 = vmatprep.subr.mxu0 0.0
      %918 = vmatpush1.msra.mxu0 0.0
      %919 = vmatprep.subr.mxu0 0.0
      %920 = vmatpush1.msra.mxu0 0.0
      %921 = vmatprep.subr.mxu0 0.0
      %922 = vmatpush1.msra.mxu0 0.0
      %923 = vmatprep.subr.mxu0 0.0
      %924 = vmatpush1.msra.mxu0 0.0
      %925 = vmatprep.subr.mxu0 0.0
      %926 = vmatpush1.msra.mxu0 0.0
      %927 = vmatprep.subr.mxu0 0.0
      %928 = vmatpush1.msra.mxu0 0.0
      %929 = vmatprep.subr.mxu0 0.0
      %930 = vmatpush1.msra.mxu0 0.0
      %931 = vmatprep.subr.mxu0 0.0
      %932 = vmatpush1.msra.mxu0 0.0
      %933 = vmatprep.subr.mxu0 0.0
      %934 = vmatpush1.msra.mxu0 0.0
      %935 = vmatprep.mubr.f32.mxu0 0.0
      %936 = vmatmul.mubr.f32.gmra.mrb[0].mxu0 %v869
      %v937 = vpop.f32.mrb[0].mxu0
      %v938 = vadd.f32 %v867, %v937
      %v939 = vpop.f32.mrb[0].mxu0
      %940 = vdwg.mxu0
      %v941 = vmax.f32 %v938, 0.0
      %942 = vst.msk [vmem:[%s415] sm:$0x1] %vm542, %v941
      %p943 = scmp.lt.s32.totalorder %s24, 1
      %s944 = scalar_select %p943, %s24, 1
      %s945 = scalar_lea.vmem %s11, %s944
      %p946 = scmp.lt.s32.totalorder %s24, 1
      %s947 = scalar_select %p946, %s24, 1
      %s948 = scalar_lea.vmem %s12, %s947
      // Predicated region
      $region65: #{_lambda_.15} parent=63 // pred_check
        %p949 = pneg %p278
      $region66: #{_lambda_.15} parent=63 // pred_check_branch
        %951 = sbr.rel (%p949) target = $region68
      $region67: #{_lambda_.15} parent=63 // pred_region
        _
      $region68: #{_lambda_.15} parent=63 // pred_fallthru
        _
      // Predicated region
      $region69: #{_lambda_.15} parent=63 // pred_check
        %p952 = pneg %p304
      $region70: #{_lambda_.15} parent=63 // pred_check_branch
        %954 = sbr.rel (%p952) target = $region72
      $region71: #{_lambda_.15} parent=63 // pred_region
        _
      $region72: #{_lambda_.15} parent=63 // pred_fallthru
        _
    $region64: #{_lambda_.15} parent=5 // pred_fallthru
      _
    %p955 = scmp.le.s32.totalorder 2, %s19
    // Predicated region
    $region73: #{_lambda_.15} parent=5 // pred_check
      %p956 = pneg %p955
    $region74: #{_lambda_.15} parent=5 // pred_check_branch
      %958 = sbr.rel (%p956) target = $region76
    $region75: #{_lambda_.15} parent=5 // pred_region
      %s959 = ssub.s32 %s19, 2
      // Predicated region
      $region77: #{_lambda_.15} parent=75 // pred_check
        %p960 = pneg %p284
      $region78: #{_lambda_.15} parent=75 // pred_check_branch
        %962 = sbr.rel (%p960) target = $region80
      $region79: #{_lambda_.15} parent=75 // pred_region
        %p963 = scmp.lt.s32.totalorder %s25, 1
        %s964 = scalar_select %p963, %s25, 1
        %s965 = scalar_lea.vmem %s11, %s964
      $region80: #{_lambda_.15} parent=75 // pred_fallthru
        _
      // Predicated region
      $region81: #{_lambda_.15} parent=75 // pred_check
        %p966 = pneg %p310
      $region82: #{_lambda_.15} parent=75 // pred_check_branch
        %968 = sbr.rel (%p966) target = $region84
      $region83: #{_lambda_.15} parent=75 // pred_region
        %p969 = scmp.lt.s32.totalorder %s25, 1
        %s970 = scalar_select %p969, %s25, 1
        %s971 = scalar_lea.vmem %s12, %s970
      $region84: #{_lambda_.15} parent=75 // pred_fallthru
        _
    $region76: #{_lambda_.15} parent=5 // pred_fallthru
      _
  $region6: #{_lambda_.15} parent=0 // loop_footer
    %s23 = sadd.s32 1, %s19
  $region7: #{_lambda_.15} parent=0 // loop_footer_branch
    %18 = sbr.rel target = $region3
  $region8: #{_lambda_.15} parent=0 // loop_exit
    _

// kernel: _lambda_.17
$region0: #{_lambda_.17}
  #allocation0 [shape = 'u32[]', space=smem, size = 0x4, offset = 0x4, fixed_abs, tag = 'smem constant byte address 0x4 - core index']
  #allocation1 [shape = 'u32[144,128]{1,0:T(1,128)}', space=vmem, size = 0x12000, scoped, tag = 'internal scratch']
  %s0 = inlined_call_operand.vmem [shape: f32[2,1,64], index: 0, kind: input, shape index: {}]
  %s1 = inlined_call_operand.vmem [shape: f32[64,64], index: 1, kind: input, shape index: {}]
  %s2 = inlined_call_operand.vmem [shape: f32[1,64], index: 2, kind: input, shape index: {}]
  %s3 = inlined_call_operand.vmem [shape: f32[64,10], index: 3, kind: input, shape index: {}]
  %s4 = inlined_call_operand.hbm [shape: f32[2,1,10], index: 4, kind: output, shape index: {}]
  %s5 = sld [smem:[#allocation0]]
  $region49: #{_lambda_.17} parent=0
    _
  %s7 = ssub.s32 1, %s5
  %s8 = scalar_select 0, %s7, %s5
  $region1: #{_lambda_.17} parent=0
    #allocation2 [shape = 'u8[1024]{0}', space=vmem, size = 0x400, scoped, tag = 'output window, operand 0']
    #allocation3 [shape = 's32[2]{0}', space=sflag, size = 0x8, scoped, tag = 'scoped memory for _lambda_.17']
    %9 = vsyncpa [#allocation3], 0
    %s10 = scalar_lea.sflag [#allocation3], 1
    %11 = vsyncpa %s10, 0
    loop: start=0, step=1, limit=4
    $region2: #{_lambda_.17} parent=1 // loop_pre_header
      _
    $region3: #{_lambda_.17} parent=1 // loop_header
      %s13 = sphi 0, %s17
      %p14 = scmp.ge.s32.totalorder %s13, 4
      %s23 = sphi 0, %s25
      %s26 = sphi 0, %s23
      %s27 = sphi 0, %s26
      %s43 = sphi 0, %s27
      %s47 = sphi 0, %s47
      %s49 = sphi 0, %s47
      %s50 = sphi 0, %s49
      %s64 = sphi 0, %s50
      %s68 = sphi 0, %s68
      %s70 = sphi 0, %s68
      %s71 = sphi 0, %s70
      %s85 = sphi 0, %s71
      %s89 = sphi 0, %s89
      %s91 = sphi 0, %s89
      %s92 = sphi 0, %s91
      %s106 = sphi 0, %s92
      %s112 = sphi 0, %s114
      %s115 = sphi 0, %s112
      %s116 = sphi 0, %s115
      %s132 = sphi 0, %s116
    $region4: #{_lambda_.17} parent=1 // loop_header_branch
      %16 = sbr.rel (%p14) target = $region8
    $region5: #{_lambda_.17} parent=1 // loop_body
      %s18 = ssub.s32 %s13, 1
      %s19 = ssub.s32 %s13, 2
      %s20 = sadd.s32 %s13, 1
      %s21 = ssub.s32 %s13, %s20
      %p22 = scmp.eq.s32.totalorder %s21, 0
      %s24 = sadd.s32 %s23, 1
      %s25 = scalar_select %p22, %s23, %s24
      %p28 = pneg %p22
      %p29 = scmp.eq.s32.totalorder %s13, 1
      %p30 = por %p28, %p29
      %p31 = scmp.ne.s32.totalorder %s23, %s26
      %p32 = scmp.eq.s32.totalorder %s13, 0
      %p33 = por %p31, %p32
      %p34 = scmp.ne.s32.totalorder %s23, %s26
      %p35 = scmp.eq.s32.totalorder %s18, 1
      %p36 = por %p34, %p35
      %p37 = scmp.ne.s32.totalorder %s26, %s27
      %p38 = scmp.eq.s32.totalorder %s18, 0
      %p39 = por %p37, %p38
      %p40 = scmp.ne.s32.totalorder %s26, %s27
      %p41 = scmp.eq.s32.totalorder %s19, 1
      %p42 = por %p40, %p41
      %p44 = scmp.ne.s32.totalorder %s27, %s43
      %p45 = scmp.eq.s32.totalorder %s19, 0
      %p46 = por %p44, %p45
      %s48 = sadd.s32 %s47, 1
      %p51 = scmp.eq.s32.totalorder %s13, 1
      %p52 = scmp.ne.s32.totalorder %s47, %s49
      %p53 = scmp.eq.s32.totalorder %s13, 0
      %p54 = por %p52, %p53
      %p55 = scmp.ne.s32.totalorder %s47, %s49
      %p56 = scmp.eq.s32.totalorder %s18, 1
      %p57 = por %p55, %p56
      %p58 = scmp.ne.s32.totalorder %s49, %s50
      %p59 = scmp.eq.s32.totalorder %s18, 0
      %p60 = por %p58, %p59
      %p61 = scmp.ne.s32.totalorder %s49, %s50
      %p62 = scmp.eq.s32.totalorder %s19, 1
      %p63 = por %p61, %p62
      %p65 = scmp.ne.s32.totalorder %s50, %s64
      %p66 = scmp.eq.s32.totalorder %s19, 0
      %p67 = por %p65, %p66
      %s69 = sadd.s32 %s68, 1
      %p72 = scmp.eq.s32.totalorder %s13, 1
      %p73 = scmp.ne.s32.totalorder %s68, %s70
      %p74 = scmp.eq.s32.totalorder %s13, 0
      %p75 = por %p73, %p74
      %p76 = scmp.ne.s32.totalorder %s68, %s70
      %p77 = scmp.eq.s32.totalorder %s18, 1
      %p78 = por %p76, %p77
      %p79 = scmp.ne.s32.totalorder %s70, %s71
      %p80 = scmp.eq.s32.totalorder %s18, 0
      %p81 = por %p79, %p80
      %p82 = scmp.ne.s32.totalorder %s70, %s71
      %p83 = scmp.eq.s32.totalorder %s19, 1
      %p84 = por %p82, %p83
      %p86 = scmp.ne.s32.totalorder %s71, %s85
      %p87 = scmp.eq.s32.totalorder %s19, 0
      %p88 = por %p86, %p87
      %s90 = sadd.s32 %s89, 1
      %p93 = scmp.eq.s32.totalorder %s13, 1
      %p94 = scmp.ne.s32.totalorder %s89, %s91
      %p95 = scmp.eq.s32.totalorder %s13, 0
      %p96 = por %p94, %p95
      %p97 = scmp.ne.s32.totalorder %s89, %s91
      %p98 = scmp.eq.s32.totalorder %s18, 1
      %p99 = por %p97, %p98
      %p100 = scmp.ne.s32.totalorder %s91, %s92
      %p101 = scmp.eq.s32.totalorder %s18, 0
      %p102 = por %p100, %p101
      %p103 = scmp.ne.s32.totalorder %s91, %s92
      %p104 = scmp.eq.s32.totalorder %s19, 1
      %p105 = por %p103, %p104
      %p107 = scmp.ne.s32.totalorder %s92, %s106
      %p108 = scmp.eq.s32.totalorder %s19, 0
      %p109 = por %p107, %p108
      %s110 = ssub.s32 %s13, %s20
      %p111 = scmp.eq.s32.totalorder %s110, 0
      %s113 = sadd.s32 %s112, 1
      %s114 = scalar_select %p111, %s112, %s113
      %p117 = pneg %p111
      %p118 = scmp.eq.s32.totalorder %s13, 1
      %p119 = por %p117, %p118
      %p120 = scmp.ne.s32.totalorder %s112, %s115
      %p121 = scmp.eq.s32.totalorder %s13, 0
      %p122 = por %p120, %p121
      %p123 = scmp.ne.s32.totalorder %s112, %s115
      %p124 = scmp.eq.s32.totalorder %s18, 1
      %p125 = por %p123, %p124
      %p126 = scmp.ne.s32.totalorder %s115, %s116
      %p127 = scmp.eq.s32.totalorder %s18, 0
      %p128 = por %p126, %p127
      %p129 = scmp.ne.s32.totalorder %s115, %s116
      %p130 = scmp.eq.s32.totalorder %s19, 1
      %p131 = por %p129, %p130
      %p133 = scmp.ne.s32.totalorder %s116, %s132
      %p134 = scmp.eq.s32.totalorder %s19, 0
      %p135 = por %p133, %p134
      %p136 = scmp.le.s32.totalorder 1, %s13
      %p137 = scmp.lt.s32.totalorder %s13, 3
      %p138 = pnand %p136, %p137
      %p139 = pneg %p138
      // Predicated region
      $region9: #{_lambda_.17} parent=5 // pred_check
        _
      $region10: #{_lambda_.17} parent=5 // pred_check_branch
        %141 = sbr.rel (%p138) target = $region12
      $region11: #{_lambda_.17} parent=5 // pred_region
        %s142 = ssub.s32 %s13, 1
        // Predicated region
        $region13: #{_lambda_.17} parent=11 // pred_check
          %p143 = pneg %p60
        $region14: #{_lambda_.17} parent=11 // pred_check_branch
          %145 = sbr.rel (%p143) target = $region16
        $region15: #{_lambda_.17} parent=11 // pred_region
          _
        $region16: #{_lambda_.17} parent=11 // pred_fallthru
          _
        // Predicated region
        $region17: #{_lambda_.17} parent=11 // pred_check
          %p146 = pneg %p81
        $region18: #{_lambda_.17} parent=11 // pred_check_branch
          %148 = sbr.rel (%p146) target = $region20
        $region19: #{_lambda_.17} parent=11 // pred_region
          _
        $region20: #{_lambda_.17} parent=11 // pred_fallthru
          _
        // Predicated region
        $region21: #{_lambda_.17} parent=11 // pred_check
          %p149 = pneg %p102
        $region22: #{_lambda_.17} parent=11 // pred_check_branch
          %151 = sbr.rel (%p149) target = $region24
        $region23: #{_lambda_.17} parent=11 // pred_region
          _
        $region24: #{_lambda_.17} parent=11 // pred_fallthru
          _
      $region12: #{_lambda_.17} parent=5 // pred_fallthru
        _
      %p152 = scmp.lt.s32.totalorder %s13, 2
      // Predicated region
      $region25: #{_lambda_.17} parent=5 // pred_check
        %p153 = pneg %p152
      $region26: #{_lambda_.17} parent=5 // pred_check_branch
        %155 = sbr.rel (%p153) target = $region28
      $region27: #{_lambda_.17} parent=5 // pred_region
        // Predicated region
        $region29: #{_lambda_.17} parent=27 // pred_check
          %p156 = pneg %p33
        $region30: #{_lambda_.17} parent=27 // pred_check_branch
          %158 = sbr.rel (%p156) target = $region32
        $region31: #{_lambda_.17} parent=27 // pred_region
          %p159 = scmp.lt.s32.totalorder %s13, 1
          %s160 = scalar_select %p159, %s13, 1
          %s161 = scalar_lea.vmem %s0, %s160
        $region32: #{_lambda_.17} parent=27 // pred_fallthru
          _
      $region28: #{_lambda_.17} parent=5 // pred_fallthru
        _
      %p162 = scmp.le.s32.totalorder 1, %s13
      %p163 = scmp.lt.s32.totalorder %s13, 3
      %p164 = pnand %p162, %p163
      %p165 = pneg %p164
      // Predicated region
      $region33: #{_lambda_.17} parent=5 // pred_check
        _
      $region34: #{_lambda_.17} parent=5 // pred_check_branch
        %167 = sbr.rel (%p164) target = $region36
      $region35: #{_lambda_.17} parent=5 // pred_region
        %s168 = ssub.s32 %s13, 1
        %p169 = scmp.lt.s32.totalorder %s18, 1
        %s170 = scalar_select %p169, %s18, 1
        %s171 = scalar_lea.vmem %s0, %s170
        %p172 = pneg %p39
        %p173 = pneg %p36
        %p174 = pneg %p60
        %p175 = pneg %p57
        %p176 = pneg %p81
        %p177 = pneg %p78
        %p178 = pneg %p102
        %p179 = pneg %p99
        %p180 = pneg %p128
        %p181 = pneg %p125
        %s182 = sand.u32 %s115, 1
        %s183 = scalar_lea.sflag [#allocation3], %s182
        %s184 = sand.u32 %s115, 1
        %s185 = scalar_lea.vmem [#allocation2], %s184
        %p186 = scmp.lt.s32.totalorder %s18, 1
        %s187 = scalar_select %p186, %s18, 1
        %s188 = scalar_lea.vmem %s0, %s187
        %v189 = vld [vmem:[%s188] sm:$0x1]
        %v190 = vld [vmem:[%s1] sm:$0xff]
        %v191 = vld [vmem:[%s1 + $0x8] sm:$0xff]
        %v192 = vld [vmem:[%s1 + $0x10] sm:$0xff]
        %v193 = vld [vmem:[%s1 + $0x18] sm:$0xff]
        %v194 = vld [vmem:[%s1 + $0x20] sm:$0xff]
        %v195 = vld [vmem:[%s1 + $0x28] sm:$0xff]
        %v196 = vld [vmem:[%s1 + $0x30] sm:$0xff]
        %v197 = vld [vmem:[%s1 + $0x38] sm:$0xff]
        %v198 = vld [vmem:[%s2] sm:$0x1]
        %vm199 = vcmask 523264
        %v201 = vsel %vm199, %v189, 0
        %203 = vmatprep.subr.mxu0 0.0
        %204 = vmatpush1.msra.mxu0 %v190
        %205 = vmatprep.subr.mxu0 0.0
        %206 = vmatpush1.msra.mxu0 %v191
        %207 = vmatprep.subr.mxu0 0.0
        %208 = vmatpush1.msra.mxu0 %v192
        %209 = vmatprep.subr.mxu0 0.0
        %210 = vmatpush1.msra.mxu0 %v193
        %211 = vmatprep.subr.mxu0 0.0
        %212 = vmatpush1.msra.mxu0 %v194
        %213 = vmatprep.subr.mxu0 0.0
        %214 = vmatpush1.msra.mxu0 %v195
        %215 = vmatprep.subr.mxu0 0.0
        %216 = vmatpush1.msra.mxu0 %v196
        %217 = vmatprep.subr.mxu0 0.0
        %218 = vmatpush1.msra.mxu0 %v197
        %219 = vmatprep.subr.mxu0 0.0
        %220 = vmatpush1.msra.mxu0 0.0
        %221 = vmatprep.subr.mxu0 0.0
        %222 = vmatpush1.msra.mxu0 0.0
        %223 = vmatprep.subr.mxu0 0.0
        %224 = vmatpush1.msra.mxu0 0.0
        %225 = vmatprep.subr.mxu0 0.0
        %226 = vmatpush1.msra.mxu0 0.0
        %227 = vmatprep.subr.mxu0 0.0
        %228 = vmatpush1.msra.mxu0 0.0
        %229 = vmatprep.subr.mxu0 0.0
        %230 = vmatpush1.msra.mxu0 0.0
        %231 = vmatprep.subr.mxu0 0.0
        %232 = vmatpush1.msra.mxu0 0.0
        %233 = vmatprep.subr.mxu0 0.0
        %234 = vmatpush1.msra.mxu0 0.0
        %235 = vmatprep.subr.mxu0 0.0
        %236 = vmatpush1.msra.mxu0 0.0
        %237 = vmatprep.subr.mxu0 0.0
        %238 = vmatpush1.msra.mxu0 0.0
        %239 = vmatprep.subr.mxu0 0.0
        %240 = vmatpush1.msra.mxu0 0.0
        %241 = vmatprep.subr.mxu0 0.0
        %242 = vmatpush1.msra.mxu0 0.0
        %243 = vmatprep.subr.mxu0 0.0
        %244 = vmatpush1.msra.mxu0 0.0
        %245 = vmatprep.subr.mxu0 0.0
        %246 = vmatpush1.msra.mxu0 0.0
        %247 = vmatprep.subr.mxu0 0.0
        %248 = vmatpush1.msra.mxu0 0.0
        %249 = vmatprep.subr.mxu0 0.0
        %250 = vmatpush1.msra.mxu0 0.0
        %251 = vmatprep.subr.mxu0 0.0
        %252 = vmatpush1.msra.mxu0 0.0
        %253 = vmatprep.subr.mxu0 0.0
        %254 = vmatpush1.msra.mxu0 0.0
        %255 = vmatprep.subr.mxu0 0.0
        %256 = vmatpush1.msra.mxu0 0.0
        %257 = vmatprep.subr.mxu0 0.0
        %258 = vmatpush1.msra.mxu0 0.0
        %259 = vmatprep.subr.mxu0 0.0
        %260 = vmatpush1.msra.mxu0 0.0
        %261 = vmatprep.subr.mxu0 0.0
        %262 = vmatpush1.msra.mxu0 0.0
        %263 = vmatprep.subr.mxu0 0.0
        %264 = vmatpush1.msra.mxu0 0.0
        %265 = vmatprep.subr.mxu0 0.0
        %266 = vmatpush1.msra.mxu0 0.0
        %267 = vmatprep.mubr.f32.mxu0 0.0
        %268 = vmatmul.mubr.f32.gmra.mrb[0].mxu0 %v201
        %v269 = vpop.f32.mrb[0].mxu0
        %v270 = vadd.f32 %v198, %v269
        %v271 = vpop.f32.mrb[0].mxu0
        %272 = vdwg.mxu0
        %v273 = vmax.f32 %v270, 0.0
        %v274 = vadd.f32 %v273, 0.0
        %v275 = vld [vmem:[%s3] sm:$0xff]
        %v276 = vld [vmem:[%s3 + $0x8] sm:$0xff]
        %v277 = vld [vmem:[%s3 + $0x10] sm:$0xff]
        %v278 = vld [vmem:[%s3 + $0x18] sm:$0xff]
        %v279 = vld [vmem:[%s3 + $0x20] sm:$0xff]
        %v280 = vld [vmem:[%s3 + $0x28] sm:$0xff]
        %v281 = vld [vmem:[%s3 + $0x30] sm:$0xff]
        %v282 = vld [vmem:[%s3 + $0x38] sm:$0xff]
        %v284 = vsel %vm199, %v274, 0
        %286 = vmatprep.subr.mxu0 0.0
        %287 = vmatpush1.msra.mxu0 %v275
        %288 = vmatprep.subr.mxu0 0.0
        %289 = vmatpush1.msra.mxu0 %v276
        %290 = vmatprep.subr.mxu0 0.0
        %291 = vmatpush1.msra.mxu0 %v277
        %292 = vmatprep.subr.mxu0 0.0
        %293 = vmatpush1.msra.mxu0 %v278
        %294 = vmatprep.subr.mxu0 0.0
        %295 = vmatpush1.msra.mxu0 %v279
        %296 = vmatprep.subr.mxu0 0.0
        %297 = vmatpush1.msra.mxu0 %v280
        %298 = vmatprep.subr.mxu0 0.0
        %299 = vmatpush1.msra.mxu0 %v281
        %300 = vmatprep.subr.mxu0 0.0
        %301 = vmatpush1.msra.mxu0 %v282
        %302 = vmatprep.subr.mxu0 0.0
        %303 = vmatpush1.msra.mxu0 0.0
        %304 = vmatprep.subr.mxu0 0.0
        %305 = vmatpush1.msra.mxu0 0.0
        %306 = vmatprep.subr.mxu0 0.0
        %307 = vmatpush1.msra.mxu0 0.0
        %308 = vmatprep.subr.mxu0 0.0
        %309 = vmatpush1.msra.mxu0 0.0
        %310 = vmatprep.subr.mxu0 0.0
        %311 = vmatpush1.msra.mxu0 0.0
        %312 = vmatprep.subr.mxu0 0.0
        %313 = vmatpush1.msra.mxu0 0.0
        %314 = vmatprep.subr.mxu0 0.0
        %315 = vmatpush1.msra.mxu0 0.0
        %316 = vmatprep.subr.mxu0 0.0
        %317 = vmatpush1.msra.mxu0 0.0
        %318 = vmatprep.subr.mxu0 0.0
        %319 = vmatpush1.msra.mxu0 0.0
        %320 = vmatprep.subr.mxu0 0.0
        %321 = vmatpush1.msra.mxu0 0.0
        %322 = vmatprep.subr.mxu0 0.0
        %323 = vmatpush1.msra.mxu0 0.0
        %324 = vmatprep.subr.mxu0 0.0
        %325 = vmatpush1.msra.mxu0 0.0
        %326 = vmatprep.subr.mxu0 0.0
        %327 = vmatpush1.msra.mxu0 0.0
        %328 = vmatprep.subr.mxu0 0.0
        %329 = vmatpush1.msra.mxu0 0.0
        %330 = vmatprep.subr.mxu0 0.0
        %331 = vmatpush1.msra.mxu0 0.0
        %332 = vmatprep.subr.mxu0 0.0
        %333 = vmatpush1.msra.mxu0 0.0
        %334 = vmatprep.subr.mxu0 0.0
        %335 = vmatpush1.msra.mxu0 0.0
        %336 = vmatprep.subr.mxu0 0.0
        %337 = vmatpush1.msra.mxu0 0.0
        %338 = vmatprep.subr.mxu0 0.0
        %339 = vmatpush1.msra.mxu0 0.0
        %340 = vmatprep.subr.mxu0 0.0
        %341 = vmatpush1.msra.mxu0 0.0
        %342 = vmatprep.subr.mxu0 0.0
        %343 = vmatpush1.msra.mxu0 0.0
        %344 = vmatprep.subr.mxu0 0.0
        %345 = vmatpush1.msra.mxu0 0.0
        %346 = vmatprep.subr.mxu0 0.0
        %347 = vmatpush1.msra.mxu0 0.0
        %348 = vmatprep.subr.mxu0 0.0
        %349 = vmatpush1.msra.mxu0 0.0
        %350 = vmatprep.mubr.f32.mxu0 0.0
        %351 = vmatmul.mubr.f32.gmra.mrb[0].mxu0 %v284
        %v352 = vpop.f32.mrb[0].mxu0
        %v353 = vadd.f32 0.0, %v352
        %v354 = vpop.f32.mrb[0].mxu0
        %355 = vdwg.mxu0
        %vm356 = vcmask 73728
        %357 = vst.msk [vmem:[%s185] sm:$0x1] %vm356, %v353
        %s358 = sand.u32 %s115, 1
        %s359 = scalar_lea.sflag [#allocation3], %s358
        %s360 = sand.u32 %s115, 1
        %s361 = scalar_lea.vmem [#allocation2], %s360
        // Predicated region
        $region37: #{_lambda_.17} parent=35 // pred_check
          %p362 = pneg %p125
        $region38: #{_lambda_.17} parent=35 // pred_check_branch
          %364 = sbr.rel (%p362) target = $region40
        $region39: #{_lambda_.17} parent=35 // pred_region
          %s366 = ssub.s32 16, 16
          %367 = vsyncadd %s359, %s366
          %s368 = smul.addr %s18, 16
          %s369 = scalar_lea.hbm %s4, %s368
          %s371 = sshll.u32 %s361, 4
          %s372 = int_to_ptr.vmem [resolvable:$true] %s371
          %374 = dma.vmem_to_hbm [thread:$0]  %s372, 16, %s369, %s359
        $region40: #{_lambda_.17} parent=35 // pred_fallthru
          _
      $region36: #{_lambda_.17} parent=5 // pred_fallthru
        _
      %p375 = scmp.le.s32.totalorder 2, %s13
      // Predicated region
      $region41: #{_lambda_.17} parent=5 // pred_check
        %p376 = pneg %p375
      $region42: #{_lambda_.17} parent=5 // pred_check_branch
        %378 = sbr.rel (%p376) target = $region44
      $region43: #{_lambda_.17} parent=5 // pred_region
        %s379 = ssub.s32 %s13, 2
        // Predicated region
        $region45: #{_lambda_.17} parent=43 // pred_check
          %p380 = pneg %p131
        $region46: #{_lambda_.17} parent=43 // pred_check_branch
          %382 = sbr.rel (%p380) target = $region48
        $region47: #{_lambda_.17} parent=43 // pred_region
          %s383 = sand.u32 %s116, 1
          %s384 = scalar_lea.sflag [#allocation3], %s383
          %s385 = sand.u32 %s116, 1
          %s386 = scalar_lea.vmem [#allocation2], %s385
          %387 = dma.done %s384, 16
        $region48: #{_lambda_.17} parent=43 // pred_fallthru
          _
      $region44: #{_lambda_.17} parent=5 // pred_fallthru
        _
    $region6: #{_lambda_.17} parent=1 // loop_footer
      %s17 = sadd.s32 1, %s13
    $region7: #{_lambda_.17} parent=1 // loop_footer_branch
      %12 = sbr.rel target = $region3
    $region8: #{_lambda_.17} parent=1 // loop_exit
      _
    %388 = vsyncpa [#allocation3], 1
    %s389 = scalar_lea.sflag [#allocation3], 1
    %390 = vsyncpa %s389, 1

</llo_original>
